<compile_context>
chip_gen: v7x
topology: tpu7x:2x2x1
jax: 0.10.0
libtpu: 0.0.40
codegen_flags: <defaults>
</compile_context>

<pallas_src>
import jax
import jax.numpy as jnp
from jax.experimental import pallas as pl

# Problem sizes (small, consistent with the module's forward).
B = 2          # batch
T = 4          # sequence length (x.shape[1] in the torch loop)
CIN = 3        # in_channels
HW = 24        # spatial size (forced by kernel sizes / squeezes)
HID = 32       # hidden_dim
LAST = 16      # last_dim
OHW = HW // 3  # 8 : output spatial of conv_w0
P = OHW * OHW  # 64 positions after conv_w0
K = CIN * 9    # im2col patch feature size (27)
KP = 32        # K padded to a clean sublane multiple
BP = B * P     # 128 -> fully lane-dense


# ---------------- Fused kernel: whole recurrence in one invocation ----------
def encoder_kernel(patches_ref, w0_ref, b0_ref, wr0_ref, br0_ref,
                   w1_ref, b1_ref, wl_ref, bl_ref, sel_ref,
                   h1_out_ref, h2_out_ref):
    # Small weights / biases hoisted out of the unrolled loop.
    w0 = w0_ref[...]      # (HID, KP)   bf16
    wr0 = wr0_ref[...]    # (HID, HID)  bf16
    wl = wl_ref[...]      # (LAST, LAST) f32
    sel = sel_ref[...]    # (BP, B)     f32  block-diagonal batch selector
    b0 = b0_ref[...]      # (HID, 1)    f32
    br0 = br0_ref[...]    # (HID, 1)    f32
    b1 = b1_ref[...]      # (LAST, 1)   f32
    bl = bl_ref[...]      # (LAST, 1)   f32

    n_t = patches_ref.shape[0]
    n_last = w1_ref.shape[0]

    h1 = None   # (HID, BP)  f32, lane-dense state
    h2 = None   # (LAST, B)  f32
    for t in range(n_t):  # static unroll: T is tiny, gives LLO full visibility
        # conv_w0 as one lane-dense MXU matmul (bf16 operands, f32 accumulate).
        conv0 = jnp.dot(w0, patches_ref[t],
                        preferred_element_type=jnp.float32) + b0      # (HID, BP)
        if t == 0:
            h1 = jnp.maximum(conv0, 0.0)
        else:
            # conv_r0 is a 1x1 conv -> channel matmul on previous h1.
            rec = jnp.dot(wr0, h1.astype(jnp.bfloat16),
                          preferred_element_type=jnp.float32) + br0   # (HID, BP)
            h1 = jnp.maximum(conv0 + rec, 0.0)

        # conv_w1 (8x8 kernel over the whole 8x8 field -> 1x1 output):
        # per output channel l: reduce over input channels on the VPU, then
        # sum each batch's 64 lanes with a (BP, B) selector matmul on the MXU.
        rows = []
        for l in range(n_last):
            rows.append(jnp.sum(w1_ref[l] * h1, axis=0, keepdims=True))  # (1, BP)
        m = jnp.concatenate(rows, axis=0)                                # (LAST, BP)
        g = jnp.maximum(
            jnp.dot(m, sel, preferred_element_type=jnp.float32) + b1, 0.0)  # (LAST, B)

        if t == 0:
            h2 = g
        else:
            # linear_r1 on previous h2 (transposed orientation: wl @ h2).
            lin = jnp.dot(wl, h2, preferred_element_type=jnp.float32) + bl
            h2 = jnp.maximum(g + lin, 0.0)

    # Only the final state is written back (downstream only needs h1[-1], h2).
    h1_out_ref[...] = h1
    h2_out_ref[...] = h2


# ---------------- Wrapper (glue: im2col, weight repack, one pallas_call) ----
def conv_rnn_encoder(x, params):
    (w0, b0, w1, b1, wr0, br0, wl, bl) = params  # PyTorch layouts
    Bx, Tx = x.shape[0], x.shape[1]

    # im2col for conv_w0 (3x3, stride 3 -> non-overlapping patches), packed
    # lane-dense as (T, K, B*P) with lanes = (b, oh, ow).
    # TODO(synk): patch extraction remains XLA wrapper glue (one fused ~55 KiB
    # transpose); it could be moved in-kernel with strided loads if needed.
    xr = x.reshape(Bx, Tx, CIN, OHW, 3, OHW, 3)
    patches = jnp.transpose(xr, (1, 2, 4, 6, 0, 3, 5)).reshape(Tx, K, Bx * P)
    patches = jnp.pad(patches, ((0, 0), (0, KP - K), (0, 0)))
    patches = patches.astype(jnp.bfloat16)                         # (T, KP, BP)

    # Repack weights for left-multiplication of the lane-dense state (glue).
    w0f = jnp.pad(w0.reshape(HID, K), ((0, 0), (0, KP - K))).astype(jnp.bfloat16)
    b0c = b0.reshape(HID, 1)
    wr0m = wr0[:, :, 0, 0].astype(jnp.bfloat16)                    # (cout, cin)
    br0c = br0.reshape(HID, 1)
    # conv_w1 weight, lane-dense: (LAST, HID, P) tiled across batch lanes.
    w1big = jnp.tile(w1.reshape(LAST, HID, P), (1, 1, Bx))         # (LAST, HID, BP)
    b1c = b1.reshape(LAST, 1)
    blc = bl.reshape(LAST, 1)
    # Block-diagonal selector: sums each batch's P lanes independently.
    sel = jnp.repeat(jnp.eye(Bx, dtype=jnp.float32), P, axis=0)    # (BP, B)

    h1t, h2t = pl.pallas_call(
        encoder_kernel,
        out_shape=(jax.ShapeDtypeStruct((HID, Bx * P), jnp.float32),
                   jax.ShapeDtypeStruct((LAST, Bx), jnp.float32)),
    )(patches, w0f, b0c, wr0m, br0c, w1big, b1c, wl, blc, sel)

    # Back to PyTorch conventions: h1 -> NCHW [B, hidden, 8, 8], h2 -> [B, last].
    h1_final = jnp.transpose(h1t.reshape(HID, Bx, OHW, OHW), (1, 0, 2, 3))
    h2_final = h2t.T
    return h1_final, h2_final


# ---------------- Pure-JAX reference (mirrors the PyTorch forward) -----------
def _conv2d_nchw(x, w, b, stride):
    out = jax.lax.conv_general_dilated(
        x, w, window_strides=(stride, stride), padding="VALID",
        dimension_numbers=("NCHW", "OIHW", "NCHW"))
    return out + b.reshape(1, -1, 1, 1)


def reference(x, params):
    (w0, b0, w1, b1, wr0, br0, wl, bl) = params
    h1 = h2 = None
    for i in range(x.shape[1]):
        layer = x[:, i]
        if i == 0:
            h1 = jax.nn.relu(_conv2d_nchw(layer, w0, b0, 3))
            h2 = jax.nn.relu(_conv2d_nchw(h1, w1, b1, 1))[:, :, 0, 0]
        else:
            h1 = jax.nn.relu(_conv2d_nchw(layer, w0, b0, 3)
                             + _conv2d_nchw(h1, wr0, br0, 1))
            h2_hidden = jax.nn.relu(_conv2d_nchw(h1, w1, b1, 1))[:, :, 0, 0]
            h2_last = h2 @ wl.T + bl
            h2 = jax.nn.relu(h2_hidden + h2_last)
    return h1, h2


if __name__ == "__main__":
    key = jax.random.PRNGKey(0)
    kx, kw = jax.random.split(key)
    x = jax.random.normal(kx, (B, T, CIN, HW, HW), jnp.float32)

    ks = jax.random.split(kw, 8)
    # Deterministic synthetic parameters, torch layouts:
    w0 = jax.random.normal(ks[0], (HID, CIN, 3, 3), jnp.float32) * 0.1    # conv_w0
    b0 = jax.random.normal(ks[1], (HID,), jnp.float32) * 0.1
    w1 = jax.random.normal(ks[2], (LAST, HID, 8, 8), jnp.float32) * 0.05  # conv_w1
    b1 = jax.random.normal(ks[3], (LAST,), jnp.float32) * 0.1
    wr0 = jax.random.normal(ks[4], (HID, HID, 1, 1), jnp.float32) * 0.1   # conv_r0
    br0 = jax.random.normal(ks[5], (HID,), jnp.float32) * 0.1
    wl = jax.random.normal(ks[6], (LAST, LAST), jnp.float32) * 0.1        # linear_r1
    bl = jax.random.normal(ks[7], (LAST,), jnp.float32) * 0.1
    params = (w0, b0, w1, b1, wr0, br0, wl, bl)

    h1_k, h2_k = jax.jit(conv_rnn_encoder)(x, params)
    jax.block_until_ready((h1_k, h2_k))

    h1_r, h2_r = reference(x, params)
    assert h1_k.shape == h1_r.shape == (B, HID, OHW, OHW)
    assert h2_k.shape == h2_r.shape == (B, LAST)
    if not (jnp.allclose(h1_k, h1_r, atol=5e-2, rtol=5e-2)
            and jnp.allclose(h2_k, h2_r, atol=5e-2, rtol=5e-2)):
        raise AssertionError("Pallas result does not match reference")
    print("KERNEL_OK")
</pallas_src>

<mosaic_0001>
module attributes {stable_mosaic.version = 11 : i64} {
  func.func @encoder_kernel(%arg0: memref<4x32x128xbf16, #tpu.memory_space<vmem>>, %arg1: memref<32x32xbf16, #tpu.memory_space<vmem>>, %arg2: memref<32x1xf32, #tpu.memory_space<vmem>>, %arg3: memref<32x32xbf16, #tpu.memory_space<vmem>>, %arg4: memref<32x1xf32, #tpu.memory_space<vmem>>, %arg5: memref<16x32x128xf32, #tpu.memory_space<vmem>>, %arg6: memref<16x1xf32, #tpu.memory_space<vmem>>, %arg7: memref<16x16xf32, #tpu.memory_space<vmem>>, %arg8: memref<16x1xf32, #tpu.memory_space<vmem>>, %arg9: memref<128x2xf32, #tpu.memory_space<vmem>>, %arg10: memref<32x128xf32, #tpu.memory_space<vmem>>, %arg11: memref<16x2xf32, #tpu.memory_space<vmem>>) attributes {dimension_semantics = [], scalar_prefetch = 0 : i64, scratch_operands = 0 : i64, tpu.core_type = #tpu.core_type<tc>} {
    %c0 = arith.constant 0 : index
    %c0_0 = arith.constant 0 : index
    %0 = vector.load %arg1[%c0, %c0_0] : memref<32x32xbf16, #tpu.memory_space<vmem>>, vector<32x32xbf16>
    %c0_1 = arith.constant 0 : index
    %c0_2 = arith.constant 0 : index
    %1 = vector.load %arg3[%c0_1, %c0_2] : memref<32x32xbf16, #tpu.memory_space<vmem>>, vector<32x32xbf16>
    %c0_3 = arith.constant 0 : index
    %c0_4 = arith.constant 0 : index
    %2 = vector.load %arg7[%c0_3, %c0_4] : memref<16x16xf32, #tpu.memory_space<vmem>>, vector<16x16xf32>
    %c0_5 = arith.constant 0 : index
    %c0_6 = arith.constant 0 : index
    %3 = vector.load %arg9[%c0_5, %c0_6] : memref<128x2xf32, #tpu.memory_space<vmem>>, vector<128x2xf32>
    %c0_7 = arith.constant 0 : index
    %c0_8 = arith.constant 0 : index
    %4 = vector.load %arg2[%c0_7, %c0_8] : memref<32x1xf32, #tpu.memory_space<vmem>>, vector<32x1xf32>
    %c0_9 = arith.constant 0 : index
    %c0_10 = arith.constant 0 : index
    %5 = vector.load %arg4[%c0_9, %c0_10] : memref<32x1xf32, #tpu.memory_space<vmem>>, vector<32x1xf32>
    %c0_11 = arith.constant 0 : index
    %c0_12 = arith.constant 0 : index
    %6 = vector.load %arg6[%c0_11, %c0_12] : memref<16x1xf32, #tpu.memory_space<vmem>>, vector<16x1xf32>
    %c0_13 = arith.constant 0 : index
    %c0_14 = arith.constant 0 : index
    %7 = vector.load %arg8[%c0_13, %c0_14] : memref<16x1xf32, #tpu.memory_space<vmem>>, vector<16x1xf32>
    %c0_15 = arith.constant 0 : index
    %c0_16 = arith.constant 0 : index
    %c0_17 = arith.constant 0 : index
    %8 = vector.load %arg0[%c0_15, %c0_16, %c0_17] : memref<4x32x128xbf16, #tpu.memory_space<vmem>>, vector<1x32x128xbf16>
    %9 = vector.shape_cast %8 : vector<1x32x128xbf16> to vector<32x128xbf16>
    %cst = arith.constant dense<0.000000e+00> : vector<32x128xf32>
    %10 = tpu.matmul %0, %9, %cst {dimension_numbers = #tpu.dot_dimension_numbers<[1], [0], [0], [1], [0, 0, 1, 1], [], []>} : vector<32x32xbf16>, vector<32x128xbf16>, vector<32x128xf32> -> vector<32x128xf32>
    %11 = vector.broadcast %4 : vector<32x1xf32> to vector<32x128xf32>
    %12 = arith.addf %10, %11 : vector<32x128xf32>
    %cst_18 = arith.constant 0.000000e+00 : f32
    %13 = vector.broadcast %cst_18 : f32 to vector<32x128xf32>
    %14 = arith.maximumf %12, %13 : vector<32x128xf32>
    %c0_19 = arith.constant 0 : index
    %c0_20 = arith.constant 0 : index
    %c0_21 = arith.constant 0 : index
    %15 = vector.load %arg5[%c0_19, %c0_20, %c0_21] : memref<16x32x128xf32, #tpu.memory_space<vmem>>, vector<1x32x128xf32>
    %16 = vector.shape_cast %15 : vector<1x32x128xf32> to vector<32x128xf32>
    %17 = arith.mulf %16, %14 : vector<32x128xf32>
    %cst_22 = arith.constant dense<0.000000e+00> : vector<128xf32>
    %18 = vector.multi_reduction <add>, %17, %cst_22 [0] : vector<32x128xf32> to vector<128xf32>
    %19 = vector.shape_cast %18 : vector<128xf32> to vector<1x128xf32>
    %c1 = arith.constant 1 : index
    %c0_23 = arith.constant 0 : index
    %c0_24 = arith.constant 0 : index
    %20 = vector.load %arg5[%c1, %c0_23, %c0_24] : memref<16x32x128xf32, #tpu.memory_space<vmem>>, vector<1x32x128xf32>
    %21 = vector.shape_cast %20 : vector<1x32x128xf32> to vector<32x128xf32>
    %22 = arith.mulf %21, %14 : vector<32x128xf32>
    %cst_25 = arith.constant dense<0.000000e+00> : vector<128xf32>
    %23 = vector.multi_reduction <add>, %22, %cst_25 [0] : vector<32x128xf32> to vector<128xf32>
    %24 = vector.shape_cast %23 : vector<128xf32> to vector<1x128xf32>
    %c2 = arith.constant 2 : index
    %c0_26 = arith.constant 0 : index
    %c0_27 = arith.constant 0 : index
    %25 = vector.load %arg5[%c2, %c0_26, %c0_27] : memref<16x32x128xf32, #tpu.memory_space<vmem>>, vector<1x32x128xf32>
    %26 = vector.shape_cast %25 : vector<1x32x128xf32> to vector<32x128xf32>
    %27 = arith.mulf %26, %14 : vector<32x128xf32>
    %cst_28 = arith.constant dense<0.000000e+00> : vector<128xf32>
    %28 = vector.multi_reduction <add>, %27, %cst_28 [0] : vector<32x128xf32> to vector<128xf32>
    %29 = vector.shape_cast %28 : vector<128xf32> to vector<1x128xf32>
    %c3 = arith.constant 3 : index
    %c0_29 = arith.constant 0 : index
    %c0_30 = arith.constant 0 : index
    %30 = vector.load %arg5[%c3, %c0_29, %c0_30] : memref<16x32x128xf32, #tpu.memory_space<vmem>>, vector<1x32x128xf32>
    %31 = vector.shape_cast %30 : vector<1x32x128xf32> to vector<32x128xf32>
    %32 = arith.mulf %31, %14 : vector<32x128xf32>
    %cst_31 = arith.constant dense<0.000000e+00> : vector<128xf32>
    %33 = vector.multi_reduction <add>, %32, %cst_31 [0] : vector<32x128xf32> to vector<128xf32>
    %34 = vector.shape_cast %33 : vector<128xf32> to vector<1x128xf32>
    %c4 = arith.constant 4 : index
    %c0_32 = arith.constant 0 : index
    %c0_33 = arith.constant 0 : index
    %35 = vector.load %arg5[%c4, %c0_32, %c0_33] : memref<16x32x128xf32, #tpu.memory_space<vmem>>, vector<1x32x128xf32>
    %36 = vector.shape_cast %35 : vector<1x32x128xf32> to vector<32x128xf32>
    %37 = arith.mulf %36, %14 : vector<32x128xf32>
    %cst_34 = arith.constant dense<0.000000e+00> : vector<128xf32>
    %38 = vector.multi_reduction <add>, %37, %cst_34 [0] : vector<32x128xf32> to vector<128xf32>
    %39 = vector.shape_cast %38 : vector<128xf32> to vector<1x128xf32>
    %c5 = arith.constant 5 : index
    %c0_35 = arith.constant 0 : index
    %c0_36 = arith.constant 0 : index
    %40 = vector.load %arg5[%c5, %c0_35, %c0_36] : memref<16x32x128xf32, #tpu.memory_space<vmem>>, vector<1x32x128xf32>
    %41 = vector.shape_cast %40 : vector<1x32x128xf32> to vector<32x128xf32>
    %42 = arith.mulf %41, %14 : vector<32x128xf32>
    %cst_37 = arith.constant dense<0.000000e+00> : vector<128xf32>
    %43 = vector.multi_reduction <add>, %42, %cst_37 [0] : vector<32x128xf32> to vector<128xf32>
    %44 = vector.shape_cast %43 : vector<128xf32> to vector<1x128xf32>
    %c6 = arith.constant 6 : index
    %c0_38 = arith.constant 0 : index
    %c0_39 = arith.constant 0 : index
    %45 = vector.load %arg5[%c6, %c0_38, %c0_39] : memref<16x32x128xf32, #tpu.memory_space<vmem>>, vector<1x32x128xf32>
    %46 = vector.shape_cast %45 : vector<1x32x128xf32> to vector<32x128xf32>
    %47 = arith.mulf %46, %14 : vector<32x128xf32>
    %cst_40 = arith.constant dense<0.000000e+00> : vector<128xf32>
    %48 = vector.multi_reduction <add>, %47, %cst_40 [0] : vector<32x128xf32> to vector<128xf32>
    %49 = vector.shape_cast %48 : vector<128xf32> to vector<1x128xf32>
    %c7 = arith.constant 7 : index
    %c0_41 = arith.constant 0 : index
    %c0_42 = arith.constant 0 : index
    %50 = vector.load %arg5[%c7, %c0_41, %c0_42] : memref<16x32x128xf32, #tpu.memory_space<vmem>>, vector<1x32x128xf32>
    %51 = vector.shape_cast %50 : vector<1x32x128xf32> to vector<32x128xf32>
    %52 = arith.mulf %51, %14 : vector<32x128xf32>
    %cst_43 = arith.constant dense<0.000000e+00> : vector<128xf32>
    %53 = vector.multi_reduction <add>, %52, %cst_43 [0] : vector<32x128xf32> to vector<128xf32>
    %54 = vector.shape_cast %53 : vector<128xf32> to vector<1x128xf32>
    %c8 = arith.constant 8 : index
    %c0_44 = arith.constant 0 : index
    %c0_45 = arith.constant 0 : index
    %55 = vector.load %arg5[%c8, %c0_44, %c0_45] : memref<16x32x128xf32, #tpu.memory_space<vmem>>, vector<1x32x128xf32>
    %56 = vector.shape_cast %55 : vector<1x32x128xf32> to vector<32x128xf32>
    %57 = arith.mulf %56, %14 : vector<32x128xf32>
    %cst_46 = arith.constant dense<0.000000e+00> : vector<128xf32>
    %58 = vector.multi_reduction <add>, %57, %cst_46 [0] : vector<32x128xf32> to vector<128xf32>
    %59 = vector.shape_cast %58 : vector<128xf32> to vector<1x128xf32>
    %c9 = arith.constant 9 : index
    %c0_47 = arith.constant 0 : index
    %c0_48 = arith.constant 0 : index
    %60 = vector.load %arg5[%c9, %c0_47, %c0_48] : memref<16x32x128xf32, #tpu.memory_space<vmem>>, vector<1x32x128xf32>
    %61 = vector.shape_cast %60 : vector<1x32x128xf32> to vector<32x128xf32>
    %62 = arith.mulf %61, %14 : vector<32x128xf32>
    %cst_49 = arith.constant dense<0.000000e+00> : vector<128xf32>
    %63 = vector.multi_reduction <add>, %62, %cst_49 [0] : vector<32x128xf32> to vector<128xf32>
    %64 = vector.shape_cast %63 : vector<128xf32> to vector<1x128xf32>
    %c10 = arith.constant 10 : index
    %c0_50 = arith.constant 0 : index
    %c0_51 = arith.constant 0 : index
    %65 = vector.load %arg5[%c10, %c0_50, %c0_51] : memref<16x32x128xf32, #tpu.memory_space<vmem>>, vector<1x32x128xf32>
    %66 = vector.shape_cast %65 : vector<1x32x128xf32> to vector<32x128xf32>
    %67 = arith.mulf %66, %14 : vector<32x128xf32>
    %cst_52 = arith.constant dense<0.000000e+00> : vector<128xf32>
    %68 = vector.multi_reduction <add>, %67, %cst_52 [0] : vector<32x128xf32> to vector<128xf32>
    %69 = vector.shape_cast %68 : vector<128xf32> to vector<1x128xf32>
    %c11 = arith.constant 11 : index
    %c0_53 = arith.constant 0 : index
    %c0_54 = arith.constant 0 : index
    %70 = vector.load %arg5[%c11, %c0_53, %c0_54] : memref<16x32x128xf32, #tpu.memory_space<vmem>>, vector<1x32x128xf32>
    %71 = vector.shape_cast %70 : vector<1x32x128xf32> to vector<32x128xf32>
    %72 = arith.mulf %71, %14 : vector<32x128xf32>
    %cst_55 = arith.constant dense<0.000000e+00> : vector<128xf32>
    %73 = vector.multi_reduction <add>, %72, %cst_55 [0] : vector<32x128xf32> to vector<128xf32>
    %74 = vector.shape_cast %73 : vector<128xf32> to vector<1x128xf32>
    %c12 = arith.constant 12 : index
    %c0_56 = arith.constant 0 : index
    %c0_57 = arith.constant 0 : index
    %75 = vector.load %arg5[%c12, %c0_56, %c0_57] : memref<16x32x128xf32, #tpu.memory_space<vmem>>, vector<1x32x128xf32>
    %76 = vector.shape_cast %75 : vector<1x32x128xf32> to vector<32x128xf32>
    %77 = arith.mulf %76, %14 : vector<32x128xf32>
    %cst_58 = arith.constant dense<0.000000e+00> : vector<128xf32>
    %78 = vector.multi_reduction <add>, %77, %cst_58 [0] : vector<32x128xf32> to vector<128xf32>
    %79 = vector.shape_cast %78 : vector<128xf32> to vector<1x128xf32>
    %c13 = arith.constant 13 : index
    %c0_59 = arith.constant 0 : index
    %c0_60 = arith.constant 0 : index
    %80 = vector.load %arg5[%c13, %c0_59, %c0_60] : memref<16x32x128xf32, #tpu.memory_space<vmem>>, vector<1x32x128xf32>
    %81 = vector.shape_cast %80 : vector<1x32x128xf32> to vector<32x128xf32>
    %82 = arith.mulf %81, %14 : vector<32x128xf32>
    %cst_61 = arith.constant dense<0.000000e+00> : vector<128xf32>
    %83 = vector.multi_reduction <add>, %82, %cst_61 [0] : vector<32x128xf32> to vector<128xf32>
    %84 = vector.shape_cast %83 : vector<128xf32> to vector<1x128xf32>
    %c14 = arith.constant 14 : index
    %c0_62 = arith.constant 0 : index
    %c0_63 = arith.constant 0 : index
    %85 = vector.load %arg5[%c14, %c0_62, %c0_63] : memref<16x32x128xf32, #tpu.memory_space<vmem>>, vector<1x32x128xf32>
    %86 = vector.shape_cast %85 : vector<1x32x128xf32> to vector<32x128xf32>
    %87 = arith.mulf %86, %14 : vector<32x128xf32>
    %cst_64 = arith.constant dense<0.000000e+00> : vector<128xf32>
    %88 = vector.multi_reduction <add>, %87, %cst_64 [0] : vector<32x128xf32> to vector<128xf32>
    %89 = vector.shape_cast %88 : vector<128xf32> to vector<1x128xf32>
    %c15 = arith.constant 15 : index
    %c0_65 = arith.constant 0 : index
    %c0_66 = arith.constant 0 : index
    %90 = vector.load %arg5[%c15, %c0_65, %c0_66] : memref<16x32x128xf32, #tpu.memory_space<vmem>>, vector<1x32x128xf32>
    %91 = vector.shape_cast %90 : vector<1x32x128xf32> to vector<32x128xf32>
    %92 = arith.mulf %91, %14 : vector<32x128xf32>
    %cst_67 = arith.constant dense<0.000000e+00> : vector<128xf32>
    %93 = vector.multi_reduction <add>, %92, %cst_67 [0] : vector<32x128xf32> to vector<128xf32>
    %94 = vector.shape_cast %93 : vector<128xf32> to vector<1x128xf32>
    %95 = tpu.concatenate %19, %24, %29, %34, %39, %44, %49, %54, %59, %64, %69, %74, %79, %84, %89, %94 in 0 : vector<1x128xf32>, vector<1x128xf32>, vector<1x128xf32>, vector<1x128xf32>, vector<1x128xf32>, vector<1x128xf32>, vector<1x128xf32>, vector<1x128xf32>, vector<1x128xf32>, vector<1x128xf32>, vector<1x128xf32>, vector<1x128xf32>, vector<1x128xf32>, vector<1x128xf32>, vector<1x128xf32>, vector<1x128xf32> -> vector<16x128xf32>
    %cst_68 = arith.constant dense<0.000000e+00> : vector<16x2xf32>
    %96 = tpu.matmul %95, %3, %cst_68 {dimension_numbers = #tpu.dot_dimension_numbers<[1], [0], [0], [1], [0, 0, 1, 1], [], []>} : vector<16x128xf32>, vector<128x2xf32>, vector<16x2xf32> -> vector<16x2xf32>
    %97 = vector.broadcast %6 : vector<16x1xf32> to vector<16x2xf32>
    %98 = arith.addf %96, %97 : vector<16x2xf32>
    %cst_69 = arith.constant 0.000000e+00 : f32
    %99 = vector.broadcast %cst_69 : f32 to vector<16x2xf32>
    %100 = arith.maximumf %98, %99 : vector<16x2xf32>
    %c1_70 = arith.constant 1 : index
    %c0_71 = arith.constant 0 : index
    %c0_72 = arith.constant 0 : index
    %101 = vector.load %arg0[%c1_70, %c0_71, %c0_72] : memref<4x32x128xbf16, #tpu.memory_space<vmem>>, vector<1x32x128xbf16>
    %102 = vector.shape_cast %101 : vector<1x32x128xbf16> to vector<32x128xbf16>
    %cst_73 = arith.constant dense<0.000000e+00> : vector<32x128xf32>
    %103 = tpu.matmul %0, %102, %cst_73 {dimension_numbers = #tpu.dot_dimension_numbers<[1], [0], [0], [1], [0, 0, 1, 1], [], []>} : vector<32x32xbf16>, vector<32x128xbf16>, vector<32x128xf32> -> vector<32x128xf32>
    %104 = vector.broadcast %4 : vector<32x1xf32> to vector<32x128xf32>
    %105 = arith.addf %103, %104 : vector<32x128xf32>
    %106 = arith.truncf %14 : vector<32x128xf32> to vector<32x128xbf16>
    %cst_74 = arith.constant dense<0.000000e+00> : vector<32x128xf32>
    %107 = tpu.matmul %1, %106, %cst_74 {dimension_numbers = #tpu.dot_dimension_numbers<[1], [0], [0], [1], [0, 0, 1, 1], [], []>} : vector<32x32xbf16>, vector<32x128xbf16>, vector<32x128xf32> -> vector<32x128xf32>
    %108 = vector.broadcast %5 : vector<32x1xf32> to vector<32x128xf32>
    %109 = arith.addf %107, %108 : vector<32x128xf32>
    %110 = arith.addf %105, %109 : vector<32x128xf32>
    %cst_75 = arith.constant 0.000000e+00 : f32
    %111 = vector.broadcast %cst_75 : f32 to vector<32x128xf32>
    %112 = arith.maximumf %110, %111 : vector<32x128xf32>
    %c0_76 = arith.constant 0 : index
    %c0_77 = arith.constant 0 : index
    %c0_78 = arith.constant 0 : index
    %113 = vector.load %arg5[%c0_76, %c0_77, %c0_78] : memref<16x32x128xf32, #tpu.memory_space<vmem>>, vector<1x32x128xf32>
    %114 = vector.shape_cast %113 : vector<1x32x128xf32> to vector<32x128xf32>
    %115 = arith.mulf %114, %112 : vector<32x128xf32>
    %cst_79 = arith.constant dense<0.000000e+00> : vector<128xf32>
    %116 = vector.multi_reduction <add>, %115, %cst_79 [0] : vector<32x128xf32> to vector<128xf32>
    %117 = vector.shape_cast %116 : vector<128xf32> to vector<1x128xf32>
    %c1_80 = arith.constant 1 : index
    %c0_81 = arith.constant 0 : index
    %c0_82 = arith.constant 0 : index
    %118 = vector.load %arg5[%c1_80, %c0_81, %c0_82] : memref<16x32x128xf32, #tpu.memory_space<vmem>>, vector<1x32x128xf32>
    %119 = vector.shape_cast %118 : vector<1x32x128xf32> to vector<32x128xf32>
    %120 = arith.mulf %119, %112 : vector<32x128xf32>
    %cst_83 = arith.constant dense<0.000000e+00> : vector<128xf32>
    %121 = vector.multi_reduction <add>, %120, %cst_83 [0] : vector<32x128xf32> to vector<128xf32>
    %122 = vector.shape_cast %121 : vector<128xf32> to vector<1x128xf32>
    %c2_84 = arith.constant 2 : index
    %c0_85 = arith.constant 0 : index
    %c0_86 = arith.constant 0 : index
    %123 = vector.load %arg5[%c2_84, %c0_85, %c0_86] : memref<16x32x128xf32, #tpu.memory_space<vmem>>, vector<1x32x128xf32>
    %124 = vector.shape_cast %123 : vector<1x32x128xf32> to vector<32x128xf32>
    %125 = arith.mulf %124, %112 : vector<32x128xf32>
    %cst_87 = arith.constant dense<0.000000e+00> : vector<128xf32>
    %126 = vector.multi_reduction <add>, %125, %cst_87 [0] : vector<32x128xf32> to vector<128xf32>
    %127 = vector.shape_cast %126 : vector<128xf32> to vector<1x128xf32>
    %c3_88 = arith.constant 3 : index
    %c0_89 = arith.constant 0 : index
    %c0_90 = arith.constant 0 : index
    %128 = vector.load %arg5[%c3_88, %c0_89, %c0_90] : memref<16x32x128xf32, #tpu.memory_space<vmem>>, vector<1x32x128xf32>
    %129 = vector.shape_cast %128 : vector<1x32x128xf32> to vector<32x128xf32>
    %130 = arith.mulf %129, %112 : vector<32x128xf32>
    %cst_91 = arith.constant dense<0.000000e+00> : vector<128xf32>
    %131 = vector.multi_reduction <add>, %130, %cst_91 [0] : vector<32x128xf32> to vector<128xf32>
    %132 = vector.shape_cast %131 : vector<128xf32> to vector<1x128xf32>
    %c4_92 = arith.constant 4 : index
    %c0_93 = arith.constant 0 : index
    %c0_94 = arith.constant 0 : index
    %133 = vector.load %arg5[%c4_92, %c0_93, %c0_94] : memref<16x32x128xf32, #tpu.memory_space<vmem>>, vector<1x32x128xf32>
    %134 = vector.shape_cast %133 : vector<1x32x128xf32> to vector<32x128xf32>
    %135 = arith.mulf %134, %112 : vector<32x128xf32>
    %cst_95 = arith.constant dense<0.000000e+00> : vector<128xf32>
    %136 = vector.multi_reduction <add>, %135, %cst_95 [0] : vector<32x128xf32> to vector<128xf32>
    %137 = vector.shape_cast %136 : vector<128xf32> to vector<1x128xf32>
    %c5_96 = arith.constant 5 : index
    %c0_97 = arith.constant 0 : index
    %c0_98 = arith.constant 0 : index
    %138 = vector.load %arg5[%c5_96, %c0_97, %c0_98] : memref<16x32x128xf32, #tpu.memory_space<vmem>>, vector<1x32x128xf32>
    %139 = vector.shape_cast %138 : vector<1x32x128xf32> to vector<32x128xf32>
    %140 = arith.mulf %139, %112 : vector<32x128xf32>
    %cst_99 = arith.constant dense<0.000000e+00> : vector<128xf32>
    %141 = vector.multi_reduction <add>, %140, %cst_99 [0] : vector<32x128xf32> to vector<128xf32>
    %142 = vector.shape_cast %141 : vector<128xf32> to vector<1x128xf32>
    %c6_100 = arith.constant 6 : index
    %c0_101 = arith.constant 0 : index
    %c0_102 = arith.constant 0 : index
    %143 = vector.load %arg5[%c6_100, %c0_101, %c0_102] : memref<16x32x128xf32, #tpu.memory_space<vmem>>, vector<1x32x128xf32>
    %144 = vector.shape_cast %143 : vector<1x32x128xf32> to vector<32x128xf32>
    %145 = arith.mulf %144, %112 : vector<32x128xf32>
    %cst_103 = arith.constant dense<0.000000e+00> : vector<128xf32>
    %146 = vector.multi_reduction <add>, %145, %cst_103 [0] : vector<32x128xf32> to vector<128xf32>
    %147 = vector.shape_cast %146 : vector<128xf32> to vector<1x128xf32>
    %c7_104 = arith.constant 7 : index
    %c0_105 = arith.constant 0 : index
    %c0_106 = arith.constant 0 : index
    %148 = vector.load %arg5[%c7_104, %c0_105, %c0_106] : memref<16x32x128xf32, #tpu.memory_space<vmem>>, vector<1x32x128xf32>
    %149 = vector.shape_cast %148 : vector<1x32x128xf32> to vector<32x128xf32>
    %150 = arith.mulf %149, %112 : vector<32x128xf32>
    %cst_107 = arith.constant dense<0.000000e+00> : vector<128xf32>
    %151 = vector.multi_reduction <add>, %150, %cst_107 [0] : vector<32x128xf32> to vector<128xf32>
    %152 = vector.shape_cast %151 : vector<128xf32> to vector<1x128xf32>
    %c8_108 = arith.constant 8 : index
    %c0_109 = arith.constant 0 : index
    %c0_110 = arith.constant 0 : index
    %153 = vector.load %arg5[%c8_108, %c0_109, %c0_110] : memref<16x32x128xf32, #tpu.memory_space<vmem>>, vector<1x32x128xf32>
    %154 = vector.shape_cast %153 : vector<1x32x128xf32> to vector<32x128xf32>
    %155 = arith.mulf %154, %112 : vector<32x128xf32>
    %cst_111 = arith.constant dense<0.000000e+00> : vector<128xf32>
    %156 = vector.multi_reduction <add>, %155, %cst_111 [0] : vector<32x128xf32> to vector<128xf32>
    %157 = vector.shape_cast %156 : vector<128xf32> to vector<1x128xf32>
    %c9_112 = arith.constant 9 : index
    %c0_113 = arith.constant 0 : index
    %c0_114 = arith.constant 0 : index
    %158 = vector.load %arg5[%c9_112, %c0_113, %c0_114] : memref<16x32x128xf32, #tpu.memory_space<vmem>>, vector<1x32x128xf32>
    %159 = vector.shape_cast %158 : vector<1x32x128xf32> to vector<32x128xf32>
    %160 = arith.mulf %159, %112 : vector<32x128xf32>
    %cst_115 = arith.constant dense<0.000000e+00> : vector<128xf32>
    %161 = vector.multi_reduction <add>, %160, %cst_115 [0] : vector<32x128xf32> to vector<128xf32>
    %162 = vector.shape_cast %161 : vector<128xf32> to vector<1x128xf32>
    %c10_116 = arith.constant 10 : index
    %c0_117 = arith.constant 0 : index
    %c0_118 = arith.constant 0 : index
    %163 = vector.load %arg5[%c10_116, %c0_117, %c0_118] : memref<16x32x128xf32, #tpu.memory_space<vmem>>, vector<1x32x128xf32>
    %164 = vector.shape_cast %163 : vector<1x32x128xf32> to vector<32x128xf32>
    %165 = arith.mulf %164, %112 : vector<32x128xf32>
    %cst_119 = arith.constant dense<0.000000e+00> : vector<128xf32>
    %166 = vector.multi_reduction <add>, %165, %cst_119 [0] : vector<32x128xf32> to vector<128xf32>
    %167 = vector.shape_cast %166 : vector<128xf32> to vector<1x128xf32>
    %c11_120 = arith.constant 11 : index
    %c0_121 = arith.constant 0 : index
    %c0_122 = arith.constant 0 : index
    %168 = vector.load %arg5[%c11_120, %c0_121, %c0_122] : memref<16x32x128xf32, #tpu.memory_space<vmem>>, vector<1x32x128xf32>
    %169 = vector.shape_cast %168 : vector<1x32x128xf32> to vector<32x128xf32>
    %170 = arith.mulf %169, %112 : vector<32x128xf32>
    %cst_123 = arith.constant dense<0.000000e+00> : vector<128xf32>
    %171 = vector.multi_reduction <add>, %170, %cst_123 [0] : vector<32x128xf32> to vector<128xf32>
    %172 = vector.shape_cast %171 : vector<128xf32> to vector<1x128xf32>
    %c12_124 = arith.constant 12 : index
    %c0_125 = arith.constant 0 : index
    %c0_126 = arith.constant 0 : index
    %173 = vector.load %arg5[%c12_124, %c0_125, %c0_126] : memref<16x32x128xf32, #tpu.memory_space<vmem>>, vector<1x32x128xf32>
    %174 = vector.shape_cast %173 : vector<1x32x128xf32> to vector<32x128xf32>
    %175 = arith.mulf %174, %112 : vector<32x128xf32>
    %cst_127 = arith.constant dense<0.000000e+00> : vector<128xf32>
    %176 = vector.multi_reduction <add>, %175, %cst_127 [0] : vector<32x128xf32> to vector<128xf32>
    %177 = vector.shape_cast %176 : vector<128xf32> to vector<1x128xf32>
    %c13_128 = arith.constant 13 : index
    %c0_129 = arith.constant 0 : index
    %c0_130 = arith.constant 0 : index
    %178 = vector.load %arg5[%c13_128, %c0_129, %c0_130] : memref<16x32x128xf32, #tpu.memory_space<vmem>>, vector<1x32x128xf32>
    %179 = vector.shape_cast %178 : vector<1x32x128xf32> to vector<32x128xf32>
    %180 = arith.mulf %179, %112 : vector<32x128xf32>
    %cst_131 = arith.constant dense<0.000000e+00> : vector<128xf32>
    %181 = vector.multi_reduction <add>, %180, %cst_131 [0] : vector<32x128xf32> to vector<128xf32>
    %182 = vector.shape_cast %181 : vector<128xf32> to vector<1x128xf32>
    %c14_132 = arith.constant 14 : index
    %c0_133 = arith.constant 0 : index
    %c0_134 = arith.constant 0 : index
    %183 = vector.load %arg5[%c14_132, %c0_133, %c0_134] : memref<16x32x128xf32, #tpu.memory_space<vmem>>, vector<1x32x128xf32>
    %184 = vector.shape_cast %183 : vector<1x32x128xf32> to vector<32x128xf32>
    %185 = arith.mulf %184, %112 : vector<32x128xf32>
    %cst_135 = arith.constant dense<0.000000e+00> : vector<128xf32>
    %186 = vector.multi_reduction <add>, %185, %cst_135 [0] : vector<32x128xf32> to vector<128xf32>
    %187 = vector.shape_cast %186 : vector<128xf32> to vector<1x128xf32>
    %c15_136 = arith.constant 15 : index
    %c0_137 = arith.constant 0 : index
    %c0_138 = arith.constant 0 : index
    %188 = vector.load %arg5[%c15_136, %c0_137, %c0_138] : memref<16x32x128xf32, #tpu.memory_space<vmem>>, vector<1x32x128xf32>
    %189 = vector.shape_cast %188 : vector<1x32x128xf32> to vector<32x128xf32>
    %190 = arith.mulf %189, %112 : vector<32x128xf32>
    %cst_139 = arith.constant dense<0.000000e+00> : vector<128xf32>
    %191 = vector.multi_reduction <add>, %190, %cst_139 [0] : vector<32x128xf32> to vector<128xf32>
    %192 = vector.shape_cast %191 : vector<128xf32> to vector<1x128xf32>
    %193 = tpu.concatenate %117, %122, %127, %132, %137, %142, %147, %152, %157, %162, %167, %172, %177, %182, %187, %192 in 0 : vector<1x128xf32>, vector<1x128xf32>, vector<1x128xf32>, vector<1x128xf32>, vector<1x128xf32>, vector<1x128xf32>, vector<1x128xf32>, vector<1x128xf32>, vector<1x128xf32>, vector<1x128xf32>, vector<1x128xf32>, vector<1x128xf32>, vector<1x128xf32>, vector<1x128xf32>, vector<1x128xf32>, vector<1x128xf32> -> vector<16x128xf32>
    %cst_140 = arith.constant dense<0.000000e+00> : vector<16x2xf32>
    %194 = tpu.matmul %193, %3, %cst_140 {dimension_numbers = #tpu.dot_dimension_numbers<[1], [0], [0], [1], [0, 0, 1, 1], [], []>} : vector<16x128xf32>, vector<128x2xf32>, vector<16x2xf32> -> vector<16x2xf32>
    %195 = vector.broadcast %6 : vector<16x1xf32> to vector<16x2xf32>
    %196 = arith.addf %194, %195 : vector<16x2xf32>
    %cst_141 = arith.constant 0.000000e+00 : f32
    %197 = vector.broadcast %cst_141 : f32 to vector<16x2xf32>
    %198 = arith.maximumf %196, %197 : vector<16x2xf32>
    %cst_142 = arith.constant dense<0.000000e+00> : vector<16x2xf32>
    %199 = tpu.matmul %2, %100, %cst_142 {dimension_numbers = #tpu.dot_dimension_numbers<[1], [0], [0], [1], [0, 0, 1, 1], [], []>} : vector<16x16xf32>, vector<16x2xf32>, vector<16x2xf32> -> vector<16x2xf32>
    %200 = vector.broadcast %7 : vector<16x1xf32> to vector<16x2xf32>
    %201 = arith.addf %199, %200 : vector<16x2xf32>
    %202 = arith.addf %198, %201 : vector<16x2xf32>
    %cst_143 = arith.constant 0.000000e+00 : f32
    %203 = vector.broadcast %cst_143 : f32 to vector<16x2xf32>
    %204 = arith.maximumf %202, %203 : vector<16x2xf32>
    %c2_144 = arith.constant 2 : index
    %c0_145 = arith.constant 0 : index
    %c0_146 = arith.constant 0 : index
    %205 = vector.load %arg0[%c2_144, %c0_145, %c0_146] : memref<4x32x128xbf16, #tpu.memory_space<vmem>>, vector<1x32x128xbf16>
    %206 = vector.shape_cast %205 : vector<1x32x128xbf16> to vector<32x128xbf16>
    %cst_147 = arith.constant dense<0.000000e+00> : vector<32x128xf32>
    %207 = tpu.matmul %0, %206, %cst_147 {dimension_numbers = #tpu.dot_dimension_numbers<[1], [0], [0], [1], [0, 0, 1, 1], [], []>} : vector<32x32xbf16>, vector<32x128xbf16>, vector<32x128xf32> -> vector<32x128xf32>
    %208 = vector.broadcast %4 : vector<32x1xf32> to vector<32x128xf32>
    %209 = arith.addf %207, %208 : vector<32x128xf32>
    %210 = arith.truncf %112 : vector<32x128xf32> to vector<32x128xbf16>
    %cst_148 = arith.constant dense<0.000000e+00> : vector<32x128xf32>
    %211 = tpu.matmul %1, %210, %cst_148 {dimension_numbers = #tpu.dot_dimension_numbers<[1], [0], [0], [1], [0, 0, 1, 1], [], []>} : vector<32x32xbf16>, vector<32x128xbf16>, vector<32x128xf32> -> vector<32x128xf32>
    %212 = vector.broadcast %5 : vector<32x1xf32> to vector<32x128xf32>
    %213 = arith.addf %211, %212 : vector<32x128xf32>
    %214 = arith.addf %209, %213 : vector<32x128xf32>
    %cst_149 = arith.constant 0.000000e+00 : f32
    %215 = vector.broadcast %cst_149 : f32 to vector<32x128xf32>
    %216 = arith.maximumf %214, %215 : vector<32x128xf32>
    %c0_150 = arith.constant 0 : index
    %c0_151 = arith.constant 0 : index
    %c0_152 = arith.constant 0 : index
    %217 = vector.load %arg5[%c0_150, %c0_151, %c0_152] : memref<16x32x128xf32, #tpu.memory_space<vmem>>, vector<1x32x128xf32>
    %218 = vector.shape_cast %217 : vector<1x32x128xf32> to vector<32x128xf32>
    %219 = arith.mulf %218, %216 : vector<32x128xf32>
    %cst_153 = arith.constant dense<0.000000e+00> : vector<128xf32>
    %220 = vector.multi_reduction <add>, %219, %cst_153 [0] : vector<32x128xf32> to vector<128xf32>
    %221 = vector.shape_cast %220 : vector<128xf32> to vector<1x128xf32>
    %c1_154 = arith.constant 1 : index
    %c0_155 = arith.constant 0 : index
    %c0_156 = arith.constant 0 : index
    %222 = vector.load %arg5[%c1_154, %c0_155, %c0_156] : memref<16x32x128xf32, #tpu.memory_space<vmem>>, vector<1x32x128xf32>
    %223 = vector.shape_cast %222 : vector<1x32x128xf32> to vector<32x128xf32>
    %224 = arith.mulf %223, %216 : vector<32x128xf32>
    %cst_157 = arith.constant dense<0.000000e+00> : vector<128xf32>
    %225 = vector.multi_reduction <add>, %224, %cst_157 [0] : vector<32x128xf32> to vector<128xf32>
    %226 = vector.shape_cast %225 : vector<128xf32> to vector<1x128xf32>
    %c2_158 = arith.constant 2 : index
    %c0_159 = arith.constant 0 : index
    %c0_160 = arith.constant 0 : index
    %227 = vector.load %arg5[%c2_158, %c0_159, %c0_160] : memref<16x32x128xf32, #tpu.memory_space<vmem>>, vector<1x32x128xf32>
    %228 = vector.shape_cast %227 : vector<1x32x128xf32> to vector<32x128xf32>
    %229 = arith.mulf %228, %216 : vector<32x128xf32>
    %cst_161 = arith.constant dense<0.000000e+00> : vector<128xf32>
    %230 = vector.multi_reduction <add>, %229, %cst_161 [0] : vector<32x128xf32> to vector<128xf32>
    %231 = vector.shape_cast %230 : vector<128xf32> to vector<1x128xf32>
    %c3_162 = arith.constant 3 : index
    %c0_163 = arith.constant 0 : index
    %c0_164 = arith.constant 0 : index
    %232 = vector.load %arg5[%c3_162, %c0_163, %c0_164] : memref<16x32x128xf32, #tpu.memory_space<vmem>>, vector<1x32x128xf32>
    %233 = vector.shape_cast %232 : vector<1x32x128xf32> to vector<32x128xf32>
    %234 = arith.mulf %233, %216 : vector<32x128xf32>
    %cst_165 = arith.constant dense<0.000000e+00> : vector<128xf32>
    %235 = vector.multi_reduction <add>, %234, %cst_165 [0] : vector<32x128xf32> to vector<128xf32>
    %236 = vector.shape_cast %235 : vector<128xf32> to vector<1x128xf32>
    %c4_166 = arith.constant 4 : index
    %c0_167 = arith.constant 0 : index
    %c0_168 = arith.constant 0 : index
    %237 = vector.load %arg5[%c4_166, %c0_167, %c0_168] : memref<16x32x128xf32, #tpu.memory_space<vmem>>, vector<1x32x128xf32>
    %238 = vector.shape_cast %237 : vector<1x32x128xf32> to vector<32x128xf32>
    %239 = arith.mulf %238, %216 : vector<32x128xf32>
    %cst_169 = arith.constant dense<0.000000e+00> : vector<128xf32>
    %240 = vector.multi_reduction <add>, %239, %cst_169 [0] : vector<32x128xf32> to vector<128xf32>
    %241 = vector.shape_cast %240 : vector<128xf32> to vector<1x128xf32>
    %c5_170 = arith.constant 5 : index
    %c0_171 = arith.constant 0 : index
    %c0_172 = arith.constant 0 : index
    %242 = vector.load %arg5[%c5_170, %c0_171, %c0_172] : memref<16x32x128xf32, #tpu.memory_space<vmem>>, vector<1x32x128xf32>
    %243 = vector.shape_cast %242 : vector<1x32x128xf32> to vector<32x128xf32>
    %244 = arith.mulf %243, %216 : vector<32x128xf32>
    %cst_173 = arith.constant dense<0.000000e+00> : vector<128xf32>
    %245 = vector.multi_reduction <add>, %244, %cst_173 [0] : vector<32x128xf32> to vector<128xf32>
    %246 = vector.shape_cast %245 : vector<128xf32> to vector<1x128xf32>
    %c6_174 = arith.constant 6 : index
    %c0_175 = arith.constant 0 : index
    %c0_176 = arith.constant 0 : index
    %247 = vector.load %arg5[%c6_174, %c0_175, %c0_176] : memref<16x32x128xf32, #tpu.memory_space<vmem>>, vector<1x32x128xf32>
    %248 = vector.shape_cast %247 : vector<1x32x128xf32> to vector<32x128xf32>
    %249 = arith.mulf %248, %216 : vector<32x128xf32>
    %cst_177 = arith.constant dense<0.000000e+00> : vector<128xf32>
    %250 = vector.multi_reduction <add>, %249, %cst_177 [0] : vector<32x128xf32> to vector<128xf32>
    %251 = vector.shape_cast %250 : vector<128xf32> to vector<1x128xf32>
    %c7_178 = arith.constant 7 : index
    %c0_179 = arith.constant 0 : index
    %c0_180 = arith.constant 0 : index
    %252 = vector.load %arg5[%c7_178, %c0_179, %c0_180] : memref<16x32x128xf32, #tpu.memory_space<vmem>>, vector<1x32x128xf32>
    %253 = vector.shape_cast %252 : vector<1x32x128xf32> to vector<32x128xf32>
    %254 = arith.mulf %253, %216 : vector<32x128xf32>
    %cst_181 = arith.constant dense<0.000000e+00> : vector<128xf32>
    %255 = vector.multi_reduction <add>, %254, %cst_181 [0] : vector<32x128xf32> to vector<128xf32>
    %256 = vector.shape_cast %255 : vector<128xf32> to vector<1x128xf32>
    %c8_182 = arith.constant 8 : index
    %c0_183 = arith.constant 0 : index
    %c0_184 = arith.constant 0 : index
    %257 = vector.load %arg5[%c8_182, %c0_183, %c0_184] : memref<16x32x128xf32, #tpu.memory_space<vmem>>, vector<1x32x128xf32>
    %258 = vector.shape_cast %257 : vector<1x32x128xf32> to vector<32x128xf32>
    %259 = arith.mulf %258, %216 : vector<32x128xf32>
    %cst_185 = arith.constant dense<0.000000e+00> : vector<128xf32>
    %260 = vector.multi_reduction <add>, %259, %cst_185 [0] : vector<32x128xf32> to vector<128xf32>
    %261 = vector.shape_cast %260 : vector<128xf32> to vector<1x128xf32>
    %c9_186 = arith.constant 9 : index
    %c0_187 = arith.constant 0 : index
    %c0_188 = arith.constant 0 : index
    %262 = vector.load %arg5[%c9_186, %c0_187, %c0_188] : memref<16x32x128xf32, #tpu.memory_space<vmem>>, vector<1x32x128xf32>
    %263 = vector.shape_cast %262 : vector<1x32x128xf32> to vector<32x128xf32>
    %264 = arith.mulf %263, %216 : vector<32x128xf32>
    %cst_189 = arith.constant dense<0.000000e+00> : vector<128xf32>
    %265 = vector.multi_reduction <add>, %264, %cst_189 [0] : vector<32x128xf32> to vector<128xf32>
    %266 = vector.shape_cast %265 : vector<128xf32> to vector<1x128xf32>
    %c10_190 = arith.constant 10 : index
    %c0_191 = arith.constant 0 : index
    %c0_192 = arith.constant 0 : index
    %267 = vector.load %arg5[%c10_190, %c0_191, %c0_192] : memref<16x32x128xf32, #tpu.memory_space<vmem>>, vector<1x32x128xf32>
    %268 = vector.shape_cast %267 : vector<1x32x128xf32> to vector<32x128xf32>
    %269 = arith.mulf %268, %216 : vector<32x128xf32>
    %cst_193 = arith.constant dense<0.000000e+00> : vector<128xf32>
    %270 = vector.multi_reduction <add>, %269, %cst_193 [0] : vector<32x128xf32> to vector<128xf32>
    %271 = vector.shape_cast %270 : vector<128xf32> to vector<1x128xf32>
    %c11_194 = arith.constant 11 : index
    %c0_195 = arith.constant 0 : index
    %c0_196 = arith.constant 0 : index
    %272 = vector.load %arg5[%c11_194, %c0_195, %c0_196] : memref<16x32x128xf32, #tpu.memory_space<vmem>>, vector<1x32x128xf32>
    %273 = vector.shape_cast %272 : vector<1x32x128xf32> to vector<32x128xf32>
    %274 = arith.mulf %273, %216 : vector<32x128xf32>
    %cst_197 = arith.constant dense<0.000000e+00> : vector<128xf32>
    %275 = vector.multi_reduction <add>, %274, %cst_197 [0] : vector<32x128xf32> to vector<128xf32>
    %276 = vector.shape_cast %275 : vector<128xf32> to vector<1x128xf32>
    %c12_198 = arith.constant 12 : index
    %c0_199 = arith.constant 0 : index
    %c0_200 = arith.constant 0 : index
    %277 = vector.load %arg5[%c12_198, %c0_199, %c0_200] : memref<16x32x128xf32, #tpu.memory_space<vmem>>, vector<1x32x128xf32>
    %278 = vector.shape_cast %277 : vector<1x32x128xf32> to vector<32x128xf32>
    %279 = arith.mulf %278, %216 : vector<32x128xf32>
    %cst_201 = arith.constant dense<0.000000e+00> : vector<128xf32>
    %280 = vector.multi_reduction <add>, %279, %cst_201 [0] : vector<32x128xf32> to vector<128xf32>
    %281 = vector.shape_cast %280 : vector<128xf32> to vector<1x128xf32>
    %c13_202 = arith.constant 13 : index
    %c0_203 = arith.constant 0 : index
    %c0_204 = arith.constant 0 : index
    %282 = vector.load %arg5[%c13_202, %c0_203, %c0_204] : memref<16x32x128xf32, #tpu.memory_space<vmem>>, vector<1x32x128xf32>
    %283 = vector.shape_cast %282 : vector<1x32x128xf32> to vector<32x128xf32>
    %284 = arith.mulf %283, %216 : vector<32x128xf32>
    %cst_205 = arith.constant dense<0.000000e+00> : vector<128xf32>
    %285 = vector.multi_reduction <add>, %284, %cst_205 [0] : vector<32x128xf32> to vector<128xf32>
    %286 = vector.shape_cast %285 : vector<128xf32> to vector<1x128xf32>
    %c14_206 = arith.constant 14 : index
    %c0_207 = arith.constant 0 : index
    %c0_208 = arith.constant 0 : index
    %287 = vector.load %arg5[%c14_206, %c0_207, %c0_208] : memref<16x32x128xf32, #tpu.memory_space<vmem>>, vector<1x32x128xf32>
    %288 = vector.shape_cast %287 : vector<1x32x128xf32> to vector<32x128xf32>
    %289 = arith.mulf %288, %216 : vector<32x128xf32>
    %cst_209 = arith.constant dense<0.000000e+00> : vector<128xf32>
    %290 = vector.multi_reduction <add>, %289, %cst_209 [0] : vector<32x128xf32> to vector<128xf32>
    %291 = vector.shape_cast %290 : vector<128xf32> to vector<1x128xf32>
    %c15_210 = arith.constant 15 : index
    %c0_211 = arith.constant 0 : index
    %c0_212 = arith.constant 0 : index
    %292 = vector.load %arg5[%c15_210, %c0_211, %c0_212] : memref<16x32x128xf32, #tpu.memory_space<vmem>>, vector<1x32x128xf32>
    %293 = vector.shape_cast %292 : vector<1x32x128xf32> to vector<32x128xf32>
    %294 = arith.mulf %293, %216 : vector<32x128xf32>
    %cst_213 = arith.constant dense<0.000000e+00> : vector<128xf32>
    %295 = vector.multi_reduction <add>, %294, %cst_213 [0] : vector<32x128xf32> to vector<128xf32>
    %296 = vector.shape_cast %295 : vector<128xf32> to vector<1x128xf32>
    %297 = tpu.concatenate %221, %226, %231, %236, %241, %246, %251, %256, %261, %266, %271, %276, %281, %286, %291, %296 in 0 : vector<1x128xf32>, vector<1x128xf32>, vector<1x128xf32>, vector<1x128xf32>, vector<1x128xf32>, vector<1x128xf32>, vector<1x128xf32>, vector<1x128xf32>, vector<1x128xf32>, vector<1x128xf32>, vector<1x128xf32>, vector<1x128xf32>, vector<1x128xf32>, vector<1x128xf32>, vector<1x128xf32>, vector<1x128xf32> -> vector<16x128xf32>
    %cst_214 = arith.constant dense<0.000000e+00> : vector<16x2xf32>
    %298 = tpu.matmul %297, %3, %cst_214 {dimension_numbers = #tpu.dot_dimension_numbers<[1], [0], [0], [1], [0, 0, 1, 1], [], []>} : vector<16x128xf32>, vector<128x2xf32>, vector<16x2xf32> -> vector<16x2xf32>
    %299 = vector.broadcast %6 : vector<16x1xf32> to vector<16x2xf32>
    %300 = arith.addf %298, %299 : vector<16x2xf32>
    %cst_215 = arith.constant 0.000000e+00 : f32
    %301 = vector.broadcast %cst_215 : f32 to vector<16x2xf32>
    %302 = arith.maximumf %300, %301 : vector<16x2xf32>
    %cst_216 = arith.constant dense<0.000000e+00> : vector<16x2xf32>
    %303 = tpu.matmul %2, %204, %cst_216 {dimension_numbers = #tpu.dot_dimension_numbers<[1], [0], [0], [1], [0, 0, 1, 1], [], []>} : vector<16x16xf32>, vector<16x2xf32>, vector<16x2xf32> -> vector<16x2xf32>
    %304 = vector.broadcast %7 : vector<16x1xf32> to vector<16x2xf32>
    %305 = arith.addf %303, %304 : vector<16x2xf32>
    %306 = arith.addf %302, %305 : vector<16x2xf32>
    %cst_217 = arith.constant 0.000000e+00 : f32
    %307 = vector.broadcast %cst_217 : f32 to vector<16x2xf32>
    %308 = arith.maximumf %306, %307 : vector<16x2xf32>
    %c3_218 = arith.constant 3 : index
    %c0_219 = arith.constant 0 : index
    %c0_220 = arith.constant 0 : index
    %309 = vector.load %arg0[%c3_218, %c0_219, %c0_220] : memref<4x32x128xbf16, #tpu.memory_space<vmem>>, vector<1x32x128xbf16>
    %310 = vector.shape_cast %309 : vector<1x32x128xbf16> to vector<32x128xbf16>
    %cst_221 = arith.constant dense<0.000000e+00> : vector<32x128xf32>
    %311 = tpu.matmul %0, %310, %cst_221 {dimension_numbers = #tpu.dot_dimension_numbers<[1], [0], [0], [1], [0, 0, 1, 1], [], []>} : vector<32x32xbf16>, vector<32x128xbf16>, vector<32x128xf32> -> vector<32x128xf32>
    %312 = vector.broadcast %4 : vector<32x1xf32> to vector<32x128xf32>
    %313 = arith.addf %311, %312 : vector<32x128xf32>
    %314 = arith.truncf %216 : vector<32x128xf32> to vector<32x128xbf16>
    %cst_222 = arith.constant dense<0.000000e+00> : vector<32x128xf32>
    %315 = tpu.matmul %1, %314, %cst_222 {dimension_numbers = #tpu.dot_dimension_numbers<[1], [0], [0], [1], [0, 0, 1, 1], [], []>} : vector<32x32xbf16>, vector<32x128xbf16>, vector<32x128xf32> -> vector<32x128xf32>
    %316 = vector.broadcast %5 : vector<32x1xf32> to vector<32x128xf32>
    %317 = arith.addf %315, %316 : vector<32x128xf32>
    %318 = arith.addf %313, %317 : vector<32x128xf32>
    %cst_223 = arith.constant 0.000000e+00 : f32
    %319 = vector.broadcast %cst_223 : f32 to vector<32x128xf32>
    %320 = arith.maximumf %318, %319 : vector<32x128xf32>
    %c0_224 = arith.constant 0 : index
    %c0_225 = arith.constant 0 : index
    %c0_226 = arith.constant 0 : index
    %321 = vector.load %arg5[%c0_224, %c0_225, %c0_226] : memref<16x32x128xf32, #tpu.memory_space<vmem>>, vector<1x32x128xf32>
    %322 = vector.shape_cast %321 : vector<1x32x128xf32> to vector<32x128xf32>
    %323 = arith.mulf %322, %320 : vector<32x128xf32>
    %cst_227 = arith.constant dense<0.000000e+00> : vector<128xf32>
    %324 = vector.multi_reduction <add>, %323, %cst_227 [0] : vector<32x128xf32> to vector<128xf32>
    %325 = vector.shape_cast %324 : vector<128xf32> to vector<1x128xf32>
    %c1_228 = arith.constant 1 : index
    %c0_229 = arith.constant 0 : index
    %c0_230 = arith.constant 0 : index
    %326 = vector.load %arg5[%c1_228, %c0_229, %c0_230] : memref<16x32x128xf32, #tpu.memory_space<vmem>>, vector<1x32x128xf32>
    %327 = vector.shape_cast %326 : vector<1x32x128xf32> to vector<32x128xf32>
    %328 = arith.mulf %327, %320 : vector<32x128xf32>
    %cst_231 = arith.constant dense<0.000000e+00> : vector<128xf32>
    %329 = vector.multi_reduction <add>, %328, %cst_231 [0] : vector<32x128xf32> to vector<128xf32>
    %330 = vector.shape_cast %329 : vector<128xf32> to vector<1x128xf32>
    %c2_232 = arith.constant 2 : index
    %c0_233 = arith.constant 0 : index
    %c0_234 = arith.constant 0 : index
    %331 = vector.load %arg5[%c2_232, %c0_233, %c0_234] : memref<16x32x128xf32, #tpu.memory_space<vmem>>, vector<1x32x128xf32>
    %332 = vector.shape_cast %331 : vector<1x32x128xf32> to vector<32x128xf32>
    %333 = arith.mulf %332, %320 : vector<32x128xf32>
    %cst_235 = arith.constant dense<0.000000e+00> : vector<128xf32>
    %334 = vector.multi_reduction <add>, %333, %cst_235 [0] : vector<32x128xf32> to vector<128xf32>
    %335 = vector.shape_cast %334 : vector<128xf32> to vector<1x128xf32>
    %c3_236 = arith.constant 3 : index
    %c0_237 = arith.constant 0 : index
    %c0_238 = arith.constant 0 : index
    %336 = vector.load %arg5[%c3_236, %c0_237, %c0_238] : memref<16x32x128xf32, #tpu.memory_space<vmem>>, vector<1x32x128xf32>
    %337 = vector.shape_cast %336 : vector<1x32x128xf32> to vector<32x128xf32>
    %338 = arith.mulf %337, %320 : vector<32x128xf32>
    %cst_239 = arith.constant dense<0.000000e+00> : vector<128xf32>
    %339 = vector.multi_reduction <add>, %338, %cst_239 [0] : vector<32x128xf32> to vector<128xf32>
    %340 = vector.shape_cast %339 : vector<128xf32> to vector<1x128xf32>
    %c4_240 = arith.constant 4 : index
    %c0_241 = arith.constant 0 : index
    %c0_242 = arith.constant 0 : index
    %341 = vector.load %arg5[%c4_240, %c0_241, %c0_242] : memref<16x32x128xf32, #tpu.memory_space<vmem>>, vector<1x32x128xf32>
    %342 = vector.shape_cast %341 : vector<1x32x128xf32> to vector<32x128xf32>
    %343 = arith.mulf %342, %320 : vector<32x128xf32>
    %cst_243 = arith.constant dense<0.000000e+00> : vector<128xf32>
    %344 = vector.multi_reduction <add>, %343, %cst_243 [0] : vector<32x128xf32> to vector<128xf32>
    %345 = vector.shape_cast %344 : vector<128xf32> to vector<1x128xf32>
    %c5_244 = arith.constant 5 : index
    %c0_245 = arith.constant 0 : index
    %c0_246 = arith.constant 0 : index
    %346 = vector.load %arg5[%c5_244, %c0_245, %c0_246] : memref<16x32x128xf32, #tpu.memory_space<vmem>>, vector<1x32x128xf32>
    %347 = vector.shape_cast %346 : vector<1x32x128xf32> to vector<32x128xf32>
    %348 = arith.mulf %347, %320 : vector<32x128xf32>
    %cst_247 = arith.constant dense<0.000000e+00> : vector<128xf32>
    %349 = vector.multi_reduction <add>, %348, %cst_247 [0] : vector<32x128xf32> to vector<128xf32>
    %350 = vector.shape_cast %349 : vector<128xf32> to vector<1x128xf32>
    %c6_248 = arith.constant 6 : index
    %c0_249 = arith.constant 0 : index
    %c0_250 = arith.constant 0 : index
    %351 = vector.load %arg5[%c6_248, %c0_249, %c0_250] : memref<16x32x128xf32, #tpu.memory_space<vmem>>, vector<1x32x128xf32>
    %352 = vector.shape_cast %351 : vector<1x32x128xf32> to vector<32x128xf32>
    %353 = arith.mulf %352, %320 : vector<32x128xf32>
    %cst_251 = arith.constant dense<0.000000e+00> : vector<128xf32>
    %354 = vector.multi_reduction <add>, %353, %cst_251 [0] : vector<32x128xf32> to vector<128xf32>
    %355 = vector.shape_cast %354 : vector<128xf32> to vector<1x128xf32>
    %c7_252 = arith.constant 7 : index
    %c0_253 = arith.constant 0 : index
    %c0_254 = arith.constant 0 : index
    %356 = vector.load %arg5[%c7_252, %c0_253, %c0_254] : memref<16x32x128xf32, #tpu.memory_space<vmem>>, vector<1x32x128xf32>
    %357 = vector.shape_cast %356 : vector<1x32x128xf32> to vector<32x128xf32>
    %358 = arith.mulf %357, %320 : vector<32x128xf32>
    %cst_255 = arith.constant dense<0.000000e+00> : vector<128xf32>
    %359 = vector.multi_reduction <add>, %358, %cst_255 [0] : vector<32x128xf32> to vector<128xf32>
    %360 = vector.shape_cast %359 : vector<128xf32> to vector<1x128xf32>
    %c8_256 = arith.constant 8 : index
    %c0_257 = arith.constant 0 : index
    %c0_258 = arith.constant 0 : index
    %361 = vector.load %arg5[%c8_256, %c0_257, %c0_258] : memref<16x32x128xf32, #tpu.memory_space<vmem>>, vector<1x32x128xf32>
    %362 = vector.shape_cast %361 : vector<1x32x128xf32> to vector<32x128xf32>
    %363 = arith.mulf %362, %320 : vector<32x128xf32>
    %cst_259 = arith.constant dense<0.000000e+00> : vector<128xf32>
    %364 = vector.multi_reduction <add>, %363, %cst_259 [0] : vector<32x128xf32> to vector<128xf32>
    %365 = vector.shape_cast %364 : vector<128xf32> to vector<1x128xf32>
    %c9_260 = arith.constant 9 : index
    %c0_261 = arith.constant 0 : index
    %c0_262 = arith.constant 0 : index
    %366 = vector.load %arg5[%c9_260, %c0_261, %c0_262] : memref<16x32x128xf32, #tpu.memory_space<vmem>>, vector<1x32x128xf32>
    %367 = vector.shape_cast %366 : vector<1x32x128xf32> to vector<32x128xf32>
    %368 = arith.mulf %367, %320 : vector<32x128xf32>
    %cst_263 = arith.constant dense<0.000000e+00> : vector<128xf32>
    %369 = vector.multi_reduction <add>, %368, %cst_263 [0] : vector<32x128xf32> to vector<128xf32>
    %370 = vector.shape_cast %369 : vector<128xf32> to vector<1x128xf32>
    %c10_264 = arith.constant 10 : index
    %c0_265 = arith.constant 0 : index
    %c0_266 = arith.constant 0 : index
    %371 = vector.load %arg5[%c10_264, %c0_265, %c0_266] : memref<16x32x128xf32, #tpu.memory_space<vmem>>, vector<1x32x128xf32>
    %372 = vector.shape_cast %371 : vector<1x32x128xf32> to vector<32x128xf32>
    %373 = arith.mulf %372, %320 : vector<32x128xf32>
    %cst_267 = arith.constant dense<0.000000e+00> : vector<128xf32>
    %374 = vector.multi_reduction <add>, %373, %cst_267 [0] : vector<32x128xf32> to vector<128xf32>
    %375 = vector.shape_cast %374 : vector<128xf32> to vector<1x128xf32>
    %c11_268 = arith.constant 11 : index
    %c0_269 = arith.constant 0 : index
    %c0_270 = arith.constant 0 : index
    %376 = vector.load %arg5[%c11_268, %c0_269, %c0_270] : memref<16x32x128xf32, #tpu.memory_space<vmem>>, vector<1x32x128xf32>
    %377 = vector.shape_cast %376 : vector<1x32x128xf32> to vector<32x128xf32>
    %378 = arith.mulf %377, %320 : vector<32x128xf32>
    %cst_271 = arith.constant dense<0.000000e+00> : vector<128xf32>
    %379 = vector.multi_reduction <add>, %378, %cst_271 [0] : vector<32x128xf32> to vector<128xf32>
    %380 = vector.shape_cast %379 : vector<128xf32> to vector<1x128xf32>
    %c12_272 = arith.constant 12 : index
    %c0_273 = arith.constant 0 : index
    %c0_274 = arith.constant 0 : index
    %381 = vector.load %arg5[%c12_272, %c0_273, %c0_274] : memref<16x32x128xf32, #tpu.memory_space<vmem>>, vector<1x32x128xf32>
    %382 = vector.shape_cast %381 : vector<1x32x128xf32> to vector<32x128xf32>
    %383 = arith.mulf %382, %320 : vector<32x128xf32>
    %cst_275 = arith.constant dense<0.000000e+00> : vector<128xf32>
    %384 = vector.multi_reduction <add>, %383, %cst_275 [0] : vector<32x128xf32> to vector<128xf32>
    %385 = vector.shape_cast %384 : vector<128xf32> to vector<1x128xf32>
    %c13_276 = arith.constant 13 : index
    %c0_277 = arith.constant 0 : index
    %c0_278 = arith.constant 0 : index
    %386 = vector.load %arg5[%c13_276, %c0_277, %c0_278] : memref<16x32x128xf32, #tpu.memory_space<vmem>>, vector<1x32x128xf32>
    %387 = vector.shape_cast %386 : vector<1x32x128xf32> to vector<32x128xf32>
    %388 = arith.mulf %387, %320 : vector<32x128xf32>
    %cst_279 = arith.constant dense<0.000000e+00> : vector<128xf32>
    %389 = vector.multi_reduction <add>, %388, %cst_279 [0] : vector<32x128xf32> to vector<128xf32>
    %390 = vector.shape_cast %389 : vector<128xf32> to vector<1x128xf32>
    %c14_280 = arith.constant 14 : index
    %c0_281 = arith.constant 0 : index
    %c0_282 = arith.constant 0 : index
    %391 = vector.load %arg5[%c14_280, %c0_281, %c0_282] : memref<16x32x128xf32, #tpu.memory_space<vmem>>, vector<1x32x128xf32>
    %392 = vector.shape_cast %391 : vector<1x32x128xf32> to vector<32x128xf32>
    %393 = arith.mulf %392, %320 : vector<32x128xf32>
    %cst_283 = arith.constant dense<0.000000e+00> : vector<128xf32>
    %394 = vector.multi_reduction <add>, %393, %cst_283 [0] : vector<32x128xf32> to vector<128xf32>
    %395 = vector.shape_cast %394 : vector<128xf32> to vector<1x128xf32>
    %c15_284 = arith.constant 15 : index
    %c0_285 = arith.constant 0 : index
    %c0_286 = arith.constant 0 : index
    %396 = vector.load %arg5[%c15_284, %c0_285, %c0_286] : memref<16x32x128xf32, #tpu.memory_space<vmem>>, vector<1x32x128xf32>
    %397 = vector.shape_cast %396 : vector<1x32x128xf32> to vector<32x128xf32>
    %398 = arith.mulf %397, %320 : vector<32x128xf32>
    %cst_287 = arith.constant dense<0.000000e+00> : vector<128xf32>
    %399 = vector.multi_reduction <add>, %398, %cst_287 [0] : vector<32x128xf32> to vector<128xf32>
    %400 = vector.shape_cast %399 : vector<128xf32> to vector<1x128xf32>
    %401 = tpu.concatenate %325, %330, %335, %340, %345, %350, %355, %360, %365, %370, %375, %380, %385, %390, %395, %400 in 0 : vector<1x128xf32>, vector<1x128xf32>, vector<1x128xf32>, vector<1x128xf32>, vector<1x128xf32>, vector<1x128xf32>, vector<1x128xf32>, vector<1x128xf32>, vector<1x128xf32>, vector<1x128xf32>, vector<1x128xf32>, vector<1x128xf32>, vector<1x128xf32>, vector<1x128xf32>, vector<1x128xf32>, vector<1x128xf32> -> vector<16x128xf32>
    %cst_288 = arith.constant dense<0.000000e+00> : vector<16x2xf32>
    %402 = tpu.matmul %401, %3, %cst_288 {dimension_numbers = #tpu.dot_dimension_numbers<[1], [0], [0], [1], [0, 0, 1, 1], [], []>} : vector<16x128xf32>, vector<128x2xf32>, vector<16x2xf32> -> vector<16x2xf32>
    %403 = vector.broadcast %6 : vector<16x1xf32> to vector<16x2xf32>
    %404 = arith.addf %402, %403 : vector<16x2xf32>
    %cst_289 = arith.constant 0.000000e+00 : f32
    %405 = vector.broadcast %cst_289 : f32 to vector<16x2xf32>
    %406 = arith.maximumf %404, %405 : vector<16x2xf32>
    %cst_290 = arith.constant dense<0.000000e+00> : vector<16x2xf32>
    %407 = tpu.matmul %2, %308, %cst_290 {dimension_numbers = #tpu.dot_dimension_numbers<[1], [0], [0], [1], [0, 0, 1, 1], [], []>} : vector<16x16xf32>, vector<16x2xf32>, vector<16x2xf32> -> vector<16x2xf32>
    %408 = vector.broadcast %7 : vector<16x1xf32> to vector<16x2xf32>
    %409 = arith.addf %407, %408 : vector<16x2xf32>
    %410 = arith.addf %406, %409 : vector<16x2xf32>
    %cst_291 = arith.constant 0.000000e+00 : f32
    %411 = vector.broadcast %cst_291 : f32 to vector<16x2xf32>
    %412 = arith.maximumf %410, %411 : vector<16x2xf32>
    %c0_292 = arith.constant 0 : index
    %c0_293 = arith.constant 0 : index
    %413 = vector.load %arg10[%c0_292, %c0_293] : memref<32x128xf32, #tpu.memory_space<vmem>>, vector<32x128xf32>
    tpu.vector_store %arg10[%c0_292, %c0_293], %320 {strides = array<i32>} : memref<32x128xf32, #tpu.memory_space<vmem>>, vector<32x128xf32>,
    %c0_294 = arith.constant 0 : index
    %c0_295 = arith.constant 0 : index
    %414 = vector.load %arg11[%c0_294, %c0_295] : memref<16x2xf32, #tpu.memory_space<vmem>>, vector<16x2xf32>
    tpu.vector_store %arg11[%c0_294, %c0_295], %412 {strides = array<i32>} : memref<16x2xf32, #tpu.memory_space<vmem>>, vector<16x2xf32>,
    return
  }
}

</mosaic_0001>

<llo_original>
// kernel: tile.7
$region0: #{tile.7}
  %s0 = inlined_call_operand.vmem [shape: f32[16,32,2,64], index: 0, kind: input, shape index: {}]
  %s1 = inlined_call_operand.vmem [shape: f32[16,32,128], index: 1, kind: output, shape index: {}]
  $region1: #{tile.7} parent=0
    #allocation0 [shape = 'u8[2097152]{0}', space=vmem, size = 0x200000, scoped, tag = 'scoped mem for input reshape']
    %s3 = sshllo.u32 0, 2
    %s4 = smul.addr 2, 511
    %s5 = scalar_lea.vmem %s0, %s4
    %v6 = vld [vmem:[%s5] sm:%s3]
    %s7 = scalar_lea.vmem [#allocation0], 4088
    %8 = vst [vmem:[%s7] sm:%s3] %v6
    %s9 = smul.addr 2, 510
    %s10 = scalar_lea.vmem %s0, %s9
    %v11 = vld [vmem:[%s10] sm:%s3]
    %s12 = scalar_lea.vmem [#allocation0], 4080
    %13 = vst [vmem:[%s12] sm:%s3] %v11
    %s14 = smul.addr 2, 509
    %s15 = scalar_lea.vmem %s0, %s14
    %v16 = vld [vmem:[%s15] sm:%s3]
    %s17 = scalar_lea.vmem [#allocation0], 4072
    %18 = vst [vmem:[%s17] sm:%s3] %v16
    %s19 = smul.addr 2, 508
    %s20 = scalar_lea.vmem %s0, %s19
    %v21 = vld [vmem:[%s20] sm:%s3]
    %s22 = scalar_lea.vmem [#allocation0], 4064
    %23 = vst [vmem:[%s22] sm:%s3] %v21
    %s24 = smul.addr 2, 507
    %s25 = scalar_lea.vmem %s0, %s24
    %v26 = vld [vmem:[%s25] sm:%s3]
    %s27 = scalar_lea.vmem [#allocation0], 4056
    %28 = vst [vmem:[%s27] sm:%s3] %v26
    %s29 = smul.addr 2, 506
    %s30 = scalar_lea.vmem %s0, %s29
    %v31 = vld [vmem:[%s30] sm:%s3]
    %s32 = scalar_lea.vmem [#allocation0], 4048
    %33 = vst [vmem:[%s32] sm:%s3] %v31
    %s34 = smul.addr 2, 505
    %s35 = scalar_lea.vmem %s0, %s34
    %v36 = vld [vmem:[%s35] sm:%s3]
    %s37 = scalar_lea.vmem [#allocation0], 4040
    %38 = vst [vmem:[%s37] sm:%s3] %v36
    %s39 = smul.addr 2, 504
    %s40 = scalar_lea.vmem %s0, %s39
    %v41 = vld [vmem:[%s40] sm:%s3]
    %s42 = scalar_lea.vmem [#allocation0], 4032
    %43 = vst [vmem:[%s42] sm:%s3] %v41
    %s44 = smul.addr 2, 503
    %s45 = scalar_lea.vmem %s0, %s44
    %v46 = vld [vmem:[%s45] sm:%s3]
    %s47 = scalar_lea.vmem [#allocation0], 4024
    %48 = vst [vmem:[%s47] sm:%s3] %v46
    %s49 = smul.addr 2, 502
    %s50 = scalar_lea.vmem %s0, %s49
    %v51 = vld [vmem:[%s50] sm:%s3]
    %s52 = scalar_lea.vmem [#allocation0], 4016
    %53 = vst [vmem:[%s52] sm:%s3] %v51
    %s54 = smul.addr 2, 501
    %s55 = scalar_lea.vmem %s0, %s54
    %v56 = vld [vmem:[%s55] sm:%s3]
    %s57 = scalar_lea.vmem [#allocation0], 4008
    %58 = vst [vmem:[%s57] sm:%s3] %v56
    %s59 = smul.addr 2, 500
    %s60 = scalar_lea.vmem %s0, %s59
    %v61 = vld [vmem:[%s60] sm:%s3]
    %s62 = scalar_lea.vmem [#allocation0], 4000
    %63 = vst [vmem:[%s62] sm:%s3] %v61
    %s64 = smul.addr 2, 499
    %s65 = scalar_lea.vmem %s0, %s64
    %v66 = vld [vmem:[%s65] sm:%s3]
    %s67 = scalar_lea.vmem [#allocation0], 3992
    %68 = vst [vmem:[%s67] sm:%s3] %v66
    %s69 = smul.addr 2, 498
    %s70 = scalar_lea.vmem %s0, %s69
    %v71 = vld [vmem:[%s70] sm:%s3]
    %s72 = scalar_lea.vmem [#allocation0], 3984
    %73 = vst [vmem:[%s72] sm:%s3] %v71
    %s74 = smul.addr 2, 497
    %s75 = scalar_lea.vmem %s0, %s74
    %v76 = vld [vmem:[%s75] sm:%s3]
    %s77 = scalar_lea.vmem [#allocation0], 3976
    %78 = vst [vmem:[%s77] sm:%s3] %v76
    %s79 = smul.addr 2, 496
    %s80 = scalar_lea.vmem %s0, %s79
    %v81 = vld [vmem:[%s80] sm:%s3]
    %s82 = scalar_lea.vmem [#allocation0], 3968
    %83 = vst [vmem:[%s82] sm:%s3] %v81
    %s84 = smul.addr 2, 495
    %s85 = scalar_lea.vmem %s0, %s84
    %v86 = vld [vmem:[%s85] sm:%s3]
    %s87 = scalar_lea.vmem [#allocation0], 3960
    %88 = vst [vmem:[%s87] sm:%s3] %v86
    %s89 = smul.addr 2, 494
    %s90 = scalar_lea.vmem %s0, %s89
    %v91 = vld [vmem:[%s90] sm:%s3]
    %s92 = scalar_lea.vmem [#allocation0], 3952
    %93 = vst [vmem:[%s92] sm:%s3] %v91
    %s94 = smul.addr 2, 493
    %s95 = scalar_lea.vmem %s0, %s94
    %v96 = vld [vmem:[%s95] sm:%s3]
    %s97 = scalar_lea.vmem [#allocation0], 3944
    %98 = vst [vmem:[%s97] sm:%s3] %v96
    %s99 = smul.addr 2, 492
    %s100 = scalar_lea.vmem %s0, %s99
    %v101 = vld [vmem:[%s100] sm:%s3]
    %s102 = scalar_lea.vmem [#allocation0], 3936
    %103 = vst [vmem:[%s102] sm:%s3] %v101
    %s104 = smul.addr 2, 491
    %s105 = scalar_lea.vmem %s0, %s104
    %v106 = vld [vmem:[%s105] sm:%s3]
    %s107 = scalar_lea.vmem [#allocation0], 3928
    %108 = vst [vmem:[%s107] sm:%s3] %v106
    %s109 = smul.addr 2, 490
    %s110 = scalar_lea.vmem %s0, %s109
    %v111 = vld [vmem:[%s110] sm:%s3]
    %s112 = scalar_lea.vmem [#allocation0], 3920
    %113 = vst [vmem:[%s112] sm:%s3] %v111
    %s114 = smul.addr 2, 489
    %s115 = scalar_lea.vmem %s0, %s114
    %v116 = vld [vmem:[%s115] sm:%s3]
    %s117 = scalar_lea.vmem [#allocation0], 3912
    %118 = vst [vmem:[%s117] sm:%s3] %v116
    %s119 = smul.addr 2, 488
    %s120 = scalar_lea.vmem %s0, %s119
    %v121 = vld [vmem:[%s120] sm:%s3]
    %s122 = scalar_lea.vmem [#allocation0], 3904
    %123 = vst [vmem:[%s122] sm:%s3] %v121
    %s124 = smul.addr 2, 487
    %s125 = scalar_lea.vmem %s0, %s124
    %v126 = vld [vmem:[%s125] sm:%s3]
    %s127 = scalar_lea.vmem [#allocation0], 3896
    %128 = vst [vmem:[%s127] sm:%s3] %v126
    %s129 = smul.addr 2, 486
    %s130 = scalar_lea.vmem %s0, %s129
    %v131 = vld [vmem:[%s130] sm:%s3]
    %s132 = scalar_lea.vmem [#allocation0], 3888
    %133 = vst [vmem:[%s132] sm:%s3] %v131
    %s134 = smul.addr 2, 485
    %s135 = scalar_lea.vmem %s0, %s134
    %v136 = vld [vmem:[%s135] sm:%s3]
    %s137 = scalar_lea.vmem [#allocation0], 3880
    %138 = vst [vmem:[%s137] sm:%s3] %v136
    %s139 = smul.addr 2, 484
    %s140 = scalar_lea.vmem %s0, %s139
    %v141 = vld [vmem:[%s140] sm:%s3]
    %s142 = scalar_lea.vmem [#allocation0], 3872
    %143 = vst [vmem:[%s142] sm:%s3] %v141
    %s144 = smul.addr 2, 483
    %s145 = scalar_lea.vmem %s0, %s144
    %v146 = vld [vmem:[%s145] sm:%s3]
    %s147 = scalar_lea.vmem [#allocation0], 3864
    %148 = vst [vmem:[%s147] sm:%s3] %v146
    %s149 = smul.addr 2, 482
    %s150 = scalar_lea.vmem %s0, %s149
    %v151 = vld [vmem:[%s150] sm:%s3]
    %s152 = scalar_lea.vmem [#allocation0], 3856
    %153 = vst [vmem:[%s152] sm:%s3] %v151
    %s154 = smul.addr 2, 481
    %s155 = scalar_lea.vmem %s0, %s154
    %v156 = vld [vmem:[%s155] sm:%s3]
    %s157 = scalar_lea.vmem [#allocation0], 3848
    %158 = vst [vmem:[%s157] sm:%s3] %v156
    %s159 = smul.addr 2, 480
    %s160 = scalar_lea.vmem %s0, %s159
    %v161 = vld [vmem:[%s160] sm:%s3]
    %s162 = scalar_lea.vmem [#allocation0], 3840
    %163 = vst [vmem:[%s162] sm:%s3] %v161
    %s164 = smul.addr 2, 479
    %s165 = scalar_lea.vmem %s0, %s164
    %v166 = vld [vmem:[%s165] sm:%s3]
    %s167 = scalar_lea.vmem [#allocation0], 3832
    %168 = vst [vmem:[%s167] sm:%s3] %v166
    %s169 = smul.addr 2, 478
    %s170 = scalar_lea.vmem %s0, %s169
    %v171 = vld [vmem:[%s170] sm:%s3]
    %s172 = scalar_lea.vmem [#allocation0], 3824
    %173 = vst [vmem:[%s172] sm:%s3] %v171
    %s174 = smul.addr 2, 477
    %s175 = scalar_lea.vmem %s0, %s174
    %v176 = vld [vmem:[%s175] sm:%s3]
    %s177 = scalar_lea.vmem [#allocation0], 3816
    %178 = vst [vmem:[%s177] sm:%s3] %v176
    %s179 = smul.addr 2, 476
    %s180 = scalar_lea.vmem %s0, %s179
    %v181 = vld [vmem:[%s180] sm:%s3]
    %s182 = scalar_lea.vmem [#allocation0], 3808
    %183 = vst [vmem:[%s182] sm:%s3] %v181
    %s184 = smul.addr 2, 475
    %s185 = scalar_lea.vmem %s0, %s184
    %v186 = vld [vmem:[%s185] sm:%s3]
    %s187 = scalar_lea.vmem [#allocation0], 3800
    %188 = vst [vmem:[%s187] sm:%s3] %v186
    %s189 = smul.addr 2, 474
    %s190 = scalar_lea.vmem %s0, %s189
    %v191 = vld [vmem:[%s190] sm:%s3]
    %s192 = scalar_lea.vmem [#allocation0], 3792
    %193 = vst [vmem:[%s192] sm:%s3] %v191
    %s194 = smul.addr 2, 473
    %s195 = scalar_lea.vmem %s0, %s194
    %v196 = vld [vmem:[%s195] sm:%s3]
    %s197 = scalar_lea.vmem [#allocation0], 3784
    %198 = vst [vmem:[%s197] sm:%s3] %v196
    %s199 = smul.addr 2, 472
    %s200 = scalar_lea.vmem %s0, %s199
    %v201 = vld [vmem:[%s200] sm:%s3]
    %s202 = scalar_lea.vmem [#allocation0], 3776
    %203 = vst [vmem:[%s202] sm:%s3] %v201
    %s204 = smul.addr 2, 471
    %s205 = scalar_lea.vmem %s0, %s204
    %v206 = vld [vmem:[%s205] sm:%s3]
    %s207 = scalar_lea.vmem [#allocation0], 3768
    %208 = vst [vmem:[%s207] sm:%s3] %v206
    %s209 = smul.addr 2, 470
    %s210 = scalar_lea.vmem %s0, %s209
    %v211 = vld [vmem:[%s210] sm:%s3]
    %s212 = scalar_lea.vmem [#allocation0], 3760
    %213 = vst [vmem:[%s212] sm:%s3] %v211
    %s214 = smul.addr 2, 469
    %s215 = scalar_lea.vmem %s0, %s214
    %v216 = vld [vmem:[%s215] sm:%s3]
    %s217 = scalar_lea.vmem [#allocation0], 3752
    %218 = vst [vmem:[%s217] sm:%s3] %v216
    %s219 = smul.addr 2, 468
    %s220 = scalar_lea.vmem %s0, %s219
    %v221 = vld [vmem:[%s220] sm:%s3]
    %s222 = scalar_lea.vmem [#allocation0], 3744
    %223 = vst [vmem:[%s222] sm:%s3] %v221
    %s224 = smul.addr 2, 467
    %s225 = scalar_lea.vmem %s0, %s224
    %v226 = vld [vmem:[%s225] sm:%s3]
    %s227 = scalar_lea.vmem [#allocation0], 3736
    %228 = vst [vmem:[%s227] sm:%s3] %v226
    %s229 = smul.addr 2, 466
    %s230 = scalar_lea.vmem %s0, %s229
    %v231 = vld [vmem:[%s230] sm:%s3]
    %s232 = scalar_lea.vmem [#allocation0], 3728
    %233 = vst [vmem:[%s232] sm:%s3] %v231
    %s234 = smul.addr 2, 465
    %s235 = scalar_lea.vmem %s0, %s234
    %v236 = vld [vmem:[%s235] sm:%s3]
    %s237 = scalar_lea.vmem [#allocation0], 3720
    %238 = vst [vmem:[%s237] sm:%s3] %v236
    %s239 = smul.addr 2, 464
    %s240 = scalar_lea.vmem %s0, %s239
    %v241 = vld [vmem:[%s240] sm:%s3]
    %s242 = scalar_lea.vmem [#allocation0], 3712
    %243 = vst [vmem:[%s242] sm:%s3] %v241
    %s244 = smul.addr 2, 463
    %s245 = scalar_lea.vmem %s0, %s244
    %v246 = vld [vmem:[%s245] sm:%s3]
    %s247 = scalar_lea.vmem [#allocation0], 3704
    %248 = vst [vmem:[%s247] sm:%s3] %v246
    %s249 = smul.addr 2, 462
    %s250 = scalar_lea.vmem %s0, %s249
    %v251 = vld [vmem:[%s250] sm:%s3]
    %s252 = scalar_lea.vmem [#allocation0], 3696
    %253 = vst [vmem:[%s252] sm:%s3] %v251
    %s254 = smul.addr 2, 461
    %s255 = scalar_lea.vmem %s0, %s254
    %v256 = vld [vmem:[%s255] sm:%s3]
    %s257 = scalar_lea.vmem [#allocation0], 3688
    %258 = vst [vmem:[%s257] sm:%s3] %v256
    %s259 = smul.addr 2, 460
    %s260 = scalar_lea.vmem %s0, %s259
    %v261 = vld [vmem:[%s260] sm:%s3]
    %s262 = scalar_lea.vmem [#allocation0], 3680
    %263 = vst [vmem:[%s262] sm:%s3] %v261
    %s264 = smul.addr 2, 459
    %s265 = scalar_lea.vmem %s0, %s264
    %v266 = vld [vmem:[%s265] sm:%s3]
    %s267 = scalar_lea.vmem [#allocation0], 3672
    %268 = vst [vmem:[%s267] sm:%s3] %v266
    %s269 = smul.addr 2, 458
    %s270 = scalar_lea.vmem %s0, %s269
    %v271 = vld [vmem:[%s270] sm:%s3]
    %s272 = scalar_lea.vmem [#allocation0], 3664
    %273 = vst [vmem:[%s272] sm:%s3] %v271
    %s274 = smul.addr 2, 457
    %s275 = scalar_lea.vmem %s0, %s274
    %v276 = vld [vmem:[%s275] sm:%s3]
    %s277 = scalar_lea.vmem [#allocation0], 3656
    %278 = vst [vmem:[%s277] sm:%s3] %v276
    %s279 = smul.addr 2, 456
    %s280 = scalar_lea.vmem %s0, %s279
    %v281 = vld [vmem:[%s280] sm:%s3]
    %s282 = scalar_lea.vmem [#allocation0], 3648
    %283 = vst [vmem:[%s282] sm:%s3] %v281
    %s284 = smul.addr 2, 455
    %s285 = scalar_lea.vmem %s0, %s284
    %v286 = vld [vmem:[%s285] sm:%s3]
    %s287 = scalar_lea.vmem [#allocation0], 3640
    %288 = vst [vmem:[%s287] sm:%s3] %v286
    %s289 = smul.addr 2, 454
    %s290 = scalar_lea.vmem %s0, %s289
    %v291 = vld [vmem:[%s290] sm:%s3]
    %s292 = scalar_lea.vmem [#allocation0], 3632
    %293 = vst [vmem:[%s292] sm:%s3] %v291
    %s294 = smul.addr 2, 453
    %s295 = scalar_lea.vmem %s0, %s294
    %v296 = vld [vmem:[%s295] sm:%s3]
    %s297 = scalar_lea.vmem [#allocation0], 3624
    %298 = vst [vmem:[%s297] sm:%s3] %v296
    %s299 = smul.addr 2, 452
    %s300 = scalar_lea.vmem %s0, %s299
    %v301 = vld [vmem:[%s300] sm:%s3]
    %s302 = scalar_lea.vmem [#allocation0], 3616
    %303 = vst [vmem:[%s302] sm:%s3] %v301
    %s304 = smul.addr 2, 451
    %s305 = scalar_lea.vmem %s0, %s304
    %v306 = vld [vmem:[%s305] sm:%s3]
    %s307 = scalar_lea.vmem [#allocation0], 3608
    %308 = vst [vmem:[%s307] sm:%s3] %v306
    %s309 = smul.addr 2, 450
    %s310 = scalar_lea.vmem %s0, %s309
    %v311 = vld [vmem:[%s310] sm:%s3]
    %s312 = scalar_lea.vmem [#allocation0], 3600
    %313 = vst [vmem:[%s312] sm:%s3] %v311
    %s314 = smul.addr 2, 449
    %s315 = scalar_lea.vmem %s0, %s314
    %v316 = vld [vmem:[%s315] sm:%s3]
    %s317 = scalar_lea.vmem [#allocation0], 3592
    %318 = vst [vmem:[%s317] sm:%s3] %v316
    %s319 = smul.addr 2, 448
    %s320 = scalar_lea.vmem %s0, %s319
    %v321 = vld [vmem:[%s320] sm:%s3]
    %s322 = scalar_lea.vmem [#allocation0], 3584
    %323 = vst [vmem:[%s322] sm:%s3] %v321
    %s324 = smul.addr 2, 447
    %s325 = scalar_lea.vmem %s0, %s324
    %v326 = vld [vmem:[%s325] sm:%s3]
    %s327 = scalar_lea.vmem [#allocation0], 3576
    %328 = vst [vmem:[%s327] sm:%s3] %v326
    %s329 = smul.addr 2, 446
    %s330 = scalar_lea.vmem %s0, %s329
    %v331 = vld [vmem:[%s330] sm:%s3]
    %s332 = scalar_lea.vmem [#allocation0], 3568
    %333 = vst [vmem:[%s332] sm:%s3] %v331
    %s334 = smul.addr 2, 445
    %s335 = scalar_lea.vmem %s0, %s334
    %v336 = vld [vmem:[%s335] sm:%s3]
    %s337 = scalar_lea.vmem [#allocation0], 3560
    %338 = vst [vmem:[%s337] sm:%s3] %v336
    %s339 = smul.addr 2, 444
    %s340 = scalar_lea.vmem %s0, %s339
    %v341 = vld [vmem:[%s340] sm:%s3]
    %s342 = scalar_lea.vmem [#allocation0], 3552
    %343 = vst [vmem:[%s342] sm:%s3] %v341
    %s344 = smul.addr 2, 443
    %s345 = scalar_lea.vmem %s0, %s344
    %v346 = vld [vmem:[%s345] sm:%s3]
    %s347 = scalar_lea.vmem [#allocation0], 3544
    %348 = vst [vmem:[%s347] sm:%s3] %v346
    %s349 = smul.addr 2, 442
    %s350 = scalar_lea.vmem %s0, %s349
    %v351 = vld [vmem:[%s350] sm:%s3]
    %s352 = scalar_lea.vmem [#allocation0], 3536
    %353 = vst [vmem:[%s352] sm:%s3] %v351
    %s354 = smul.addr 2, 441
    %s355 = scalar_lea.vmem %s0, %s354
    %v356 = vld [vmem:[%s355] sm:%s3]
    %s357 = scalar_lea.vmem [#allocation0], 3528
    %358 = vst [vmem:[%s357] sm:%s3] %v356
    %s359 = smul.addr 2, 440
    %s360 = scalar_lea.vmem %s0, %s359
    %v361 = vld [vmem:[%s360] sm:%s3]
    %s362 = scalar_lea.vmem [#allocation0], 3520
    %363 = vst [vmem:[%s362] sm:%s3] %v361
    %s364 = smul.addr 2, 439
    %s365 = scalar_lea.vmem %s0, %s364
    %v366 = vld [vmem:[%s365] sm:%s3]
    %s367 = scalar_lea.vmem [#allocation0], 3512
    %368 = vst [vmem:[%s367] sm:%s3] %v366
    %s369 = smul.addr 2, 438
    %s370 = scalar_lea.vmem %s0, %s369
    %v371 = vld [vmem:[%s370] sm:%s3]
    %s372 = scalar_lea.vmem [#allocation0], 3504
    %373 = vst [vmem:[%s372] sm:%s3] %v371
    %s374 = smul.addr 2, 437
    %s375 = scalar_lea.vmem %s0, %s374
    %v376 = vld [vmem:[%s375] sm:%s3]
    %s377 = scalar_lea.vmem [#allocation0], 3496
    %378 = vst [vmem:[%s377] sm:%s3] %v376
    %s379 = smul.addr 2, 436
    %s380 = scalar_lea.vmem %s0, %s379
    %v381 = vld [vmem:[%s380] sm:%s3]
    %s382 = scalar_lea.vmem [#allocation0], 3488
    %383 = vst [vmem:[%s382] sm:%s3] %v381
    %s384 = smul.addr 2, 435
    %s385 = scalar_lea.vmem %s0, %s384
    %v386 = vld [vmem:[%s385] sm:%s3]
    %s387 = scalar_lea.vmem [#allocation0], 3480
    %388 = vst [vmem:[%s387] sm:%s3] %v386
    %s389 = smul.addr 2, 434
    %s390 = scalar_lea.vmem %s0, %s389
    %v391 = vld [vmem:[%s390] sm:%s3]
    %s392 = scalar_lea.vmem [#allocation0], 3472
    %393 = vst [vmem:[%s392] sm:%s3] %v391
    %s394 = smul.addr 2, 433
    %s395 = scalar_lea.vmem %s0, %s394
    %v396 = vld [vmem:[%s395] sm:%s3]
    %s397 = scalar_lea.vmem [#allocation0], 3464
    %398 = vst [vmem:[%s397] sm:%s3] %v396
    %s399 = smul.addr 2, 432
    %s400 = scalar_lea.vmem %s0, %s399
    %v401 = vld [vmem:[%s400] sm:%s3]
    %s402 = scalar_lea.vmem [#allocation0], 3456
    %403 = vst [vmem:[%s402] sm:%s3] %v401
    %s404 = smul.addr 2, 431
    %s405 = scalar_lea.vmem %s0, %s404
    %v406 = vld [vmem:[%s405] sm:%s3]
    %s407 = scalar_lea.vmem [#allocation0], 3448
    %408 = vst [vmem:[%s407] sm:%s3] %v406
    %s409 = smul.addr 2, 430
    %s410 = scalar_lea.vmem %s0, %s409
    %v411 = vld [vmem:[%s410] sm:%s3]
    %s412 = scalar_lea.vmem [#allocation0], 3440
    %413 = vst [vmem:[%s412] sm:%s3] %v411
    %s414 = smul.addr 2, 429
    %s415 = scalar_lea.vmem %s0, %s414
    %v416 = vld [vmem:[%s415] sm:%s3]
    %s417 = scalar_lea.vmem [#allocation0], 3432
    %418 = vst [vmem:[%s417] sm:%s3] %v416
    %s419 = smul.addr 2, 428
    %s420 = scalar_lea.vmem %s0, %s419
    %v421 = vld [vmem:[%s420] sm:%s3]
    %s422 = scalar_lea.vmem [#allocation0], 3424
    %423 = vst [vmem:[%s422] sm:%s3] %v421
    %s424 = smul.addr 2, 427
    %s425 = scalar_lea.vmem %s0, %s424
    %v426 = vld [vmem:[%s425] sm:%s3]
    %s427 = scalar_lea.vmem [#allocation0], 3416
    %428 = vst [vmem:[%s427] sm:%s3] %v426
    %s429 = smul.addr 2, 426
    %s430 = scalar_lea.vmem %s0, %s429
    %v431 = vld [vmem:[%s430] sm:%s3]
    %s432 = scalar_lea.vmem [#allocation0], 3408
    %433 = vst [vmem:[%s432] sm:%s3] %v431
    %s434 = smul.addr 2, 425
    %s435 = scalar_lea.vmem %s0, %s434
    %v436 = vld [vmem:[%s435] sm:%s3]
    %s437 = scalar_lea.vmem [#allocation0], 3400
    %438 = vst [vmem:[%s437] sm:%s3] %v436
    %s439 = smul.addr 2, 424
    %s440 = scalar_lea.vmem %s0, %s439
    %v441 = vld [vmem:[%s440] sm:%s3]
    %s442 = scalar_lea.vmem [#allocation0], 3392
    %443 = vst [vmem:[%s442] sm:%s3] %v441
    %s444 = smul.addr 2, 423
    %s445 = scalar_lea.vmem %s0, %s444
    %v446 = vld [vmem:[%s445] sm:%s3]
    %s447 = scalar_lea.vmem [#allocation0], 3384
    %448 = vst [vmem:[%s447] sm:%s3] %v446
    %s449 = smul.addr 2, 422
    %s450 = scalar_lea.vmem %s0, %s449
    %v451 = vld [vmem:[%s450] sm:%s3]
    %s452 = scalar_lea.vmem [#allocation0], 3376
    %453 = vst [vmem:[%s452] sm:%s3] %v451
    %s454 = smul.addr 2, 421
    %s455 = scalar_lea.vmem %s0, %s454
    %v456 = vld [vmem:[%s455] sm:%s3]
    %s457 = scalar_lea.vmem [#allocation0], 3368
    %458 = vst [vmem:[%s457] sm:%s3] %v456
    %s459 = smul.addr 2, 420
    %s460 = scalar_lea.vmem %s0, %s459
    %v461 = vld [vmem:[%s460] sm:%s3]
    %s462 = scalar_lea.vmem [#allocation0], 3360
    %463 = vst [vmem:[%s462] sm:%s3] %v461
    %s464 = smul.addr 2, 419
    %s465 = scalar_lea.vmem %s0, %s464
    %v466 = vld [vmem:[%s465] sm:%s3]
    %s467 = scalar_lea.vmem [#allocation0], 3352
    %468 = vst [vmem:[%s467] sm:%s3] %v466
    %s469 = smul.addr 2, 418
    %s470 = scalar_lea.vmem %s0, %s469
    %v471 = vld [vmem:[%s470] sm:%s3]
    %s472 = scalar_lea.vmem [#allocation0], 3344
    %473 = vst [vmem:[%s472] sm:%s3] %v471
    %s474 = smul.addr 2, 417
    %s475 = scalar_lea.vmem %s0, %s474
    %v476 = vld [vmem:[%s475] sm:%s3]
    %s477 = scalar_lea.vmem [#allocation0], 3336
    %478 = vst [vmem:[%s477] sm:%s3] %v476
    %s479 = smul.addr 2, 416
    %s480 = scalar_lea.vmem %s0, %s479
    %v481 = vld [vmem:[%s480] sm:%s3]
    %s482 = scalar_lea.vmem [#allocation0], 3328
    %483 = vst [vmem:[%s482] sm:%s3] %v481
    %s484 = smul.addr 2, 415
    %s485 = scalar_lea.vmem %s0, %s484
    %v486 = vld [vmem:[%s485] sm:%s3]
    %s487 = scalar_lea.vmem [#allocation0], 3320
    %488 = vst [vmem:[%s487] sm:%s3] %v486
    %s489 = smul.addr 2, 414
    %s490 = scalar_lea.vmem %s0, %s489
    %v491 = vld [vmem:[%s490] sm:%s3]
    %s492 = scalar_lea.vmem [#allocation0], 3312
    %493 = vst [vmem:[%s492] sm:%s3] %v491
    %s494 = smul.addr 2, 413
    %s495 = scalar_lea.vmem %s0, %s494
    %v496 = vld [vmem:[%s495] sm:%s3]
    %s497 = scalar_lea.vmem [#allocation0], 3304
    %498 = vst [vmem:[%s497] sm:%s3] %v496
    %s499 = smul.addr 2, 412
    %s500 = scalar_lea.vmem %s0, %s499
    %v501 = vld [vmem:[%s500] sm:%s3]
    %s502 = scalar_lea.vmem [#allocation0], 3296
    %503 = vst [vmem:[%s502] sm:%s3] %v501
    %s504 = smul.addr 2, 411
    %s505 = scalar_lea.vmem %s0, %s504
    %v506 = vld [vmem:[%s505] sm:%s3]
    %s507 = scalar_lea.vmem [#allocation0], 3288
    %508 = vst [vmem:[%s507] sm:%s3] %v506
    %s509 = smul.addr 2, 410
    %s510 = scalar_lea.vmem %s0, %s509
    %v511 = vld [vmem:[%s510] sm:%s3]
    %s512 = scalar_lea.vmem [#allocation0], 3280
    %513 = vst [vmem:[%s512] sm:%s3] %v511
    %s514 = smul.addr 2, 409
    %s515 = scalar_lea.vmem %s0, %s514
    %v516 = vld [vmem:[%s515] sm:%s3]
    %s517 = scalar_lea.vmem [#allocation0], 3272
    %518 = vst [vmem:[%s517] sm:%s3] %v516
    %s519 = smul.addr 2, 408
    %s520 = scalar_lea.vmem %s0, %s519
    %v521 = vld [vmem:[%s520] sm:%s3]
    %s522 = scalar_lea.vmem [#allocation0], 3264
    %523 = vst [vmem:[%s522] sm:%s3] %v521
    %s524 = smul.addr 2, 407
    %s525 = scalar_lea.vmem %s0, %s524
    %v526 = vld [vmem:[%s525] sm:%s3]
    %s527 = scalar_lea.vmem [#allocation0], 3256
    %528 = vst [vmem:[%s527] sm:%s3] %v526
    %s529 = smul.addr 2, 406
    %s530 = scalar_lea.vmem %s0, %s529
    %v531 = vld [vmem:[%s530] sm:%s3]
    %s532 = scalar_lea.vmem [#allocation0], 3248
    %533 = vst [vmem:[%s532] sm:%s3] %v531
    %s534 = smul.addr 2, 405
    %s535 = scalar_lea.vmem %s0, %s534
    %v536 = vld [vmem:[%s535] sm:%s3]
    %s537 = scalar_lea.vmem [#allocation0], 3240
    %538 = vst [vmem:[%s537] sm:%s3] %v536
    %s539 = smul.addr 2, 404
    %s540 = scalar_lea.vmem %s0, %s539
    %v541 = vld [vmem:[%s540] sm:%s3]
    %s542 = scalar_lea.vmem [#allocation0], 3232
    %543 = vst [vmem:[%s542] sm:%s3] %v541
    %s544 = smul.addr 2, 403
    %s545 = scalar_lea.vmem %s0, %s544
    %v546 = vld [vmem:[%s545] sm:%s3]
    %s547 = scalar_lea.vmem [#allocation0], 3224
    %548 = vst [vmem:[%s547] sm:%s3] %v546
    %s549 = smul.addr 2, 402
    %s550 = scalar_lea.vmem %s0, %s549
    %v551 = vld [vmem:[%s550] sm:%s3]
    %s552 = scalar_lea.vmem [#allocation0], 3216
    %553 = vst [vmem:[%s552] sm:%s3] %v551
    %s554 = smul.addr 2, 401
    %s555 = scalar_lea.vmem %s0, %s554
    %v556 = vld [vmem:[%s555] sm:%s3]
    %s557 = scalar_lea.vmem [#allocation0], 3208
    %558 = vst [vmem:[%s557] sm:%s3] %v556
    %s559 = smul.addr 2, 400
    %s560 = scalar_lea.vmem %s0, %s559
    %v561 = vld [vmem:[%s560] sm:%s3]
    %s562 = scalar_lea.vmem [#allocation0], 3200
    %563 = vst [vmem:[%s562] sm:%s3] %v561
    %s564 = smul.addr 2, 399
    %s565 = scalar_lea.vmem %s0, %s564
    %v566 = vld [vmem:[%s565] sm:%s3]
    %s567 = scalar_lea.vmem [#allocation0], 3192
    %568 = vst [vmem:[%s567] sm:%s3] %v566
    %s569 = smul.addr 2, 398
    %s570 = scalar_lea.vmem %s0, %s569
    %v571 = vld [vmem:[%s570] sm:%s3]
    %s572 = scalar_lea.vmem [#allocation0], 3184
    %573 = vst [vmem:[%s572] sm:%s3] %v571
    %s574 = smul.addr 2, 397
    %s575 = scalar_lea.vmem %s0, %s574
    %v576 = vld [vmem:[%s575] sm:%s3]
    %s577 = scalar_lea.vmem [#allocation0], 3176
    %578 = vst [vmem:[%s577] sm:%s3] %v576
    %s579 = smul.addr 2, 396
    %s580 = scalar_lea.vmem %s0, %s579
    %v581 = vld [vmem:[%s580] sm:%s3]
    %s582 = scalar_lea.vmem [#allocation0], 3168
    %583 = vst [vmem:[%s582] sm:%s3] %v581
    %s584 = smul.addr 2, 395
    %s585 = scalar_lea.vmem %s0, %s584
    %v586 = vld [vmem:[%s585] sm:%s3]
    %s587 = scalar_lea.vmem [#allocation0], 3160
    %588 = vst [vmem:[%s587] sm:%s3] %v586
    %s589 = smul.addr 2, 394
    %s590 = scalar_lea.vmem %s0, %s589
    %v591 = vld [vmem:[%s590] sm:%s3]
    %s592 = scalar_lea.vmem [#allocation0], 3152
    %593 = vst [vmem:[%s592] sm:%s3] %v591
    %s594 = smul.addr 2, 393
    %s595 = scalar_lea.vmem %s0, %s594
    %v596 = vld [vmem:[%s595] sm:%s3]
    %s597 = scalar_lea.vmem [#allocation0], 3144
    %598 = vst [vmem:[%s597] sm:%s3] %v596
    %s599 = smul.addr 2, 392
    %s600 = scalar_lea.vmem %s0, %s599
    %v601 = vld [vmem:[%s600] sm:%s3]
    %s602 = scalar_lea.vmem [#allocation0], 3136
    %603 = vst [vmem:[%s602] sm:%s3] %v601
    %s604 = smul.addr 2, 391
    %s605 = scalar_lea.vmem %s0, %s604
    %v606 = vld [vmem:[%s605] sm:%s3]
    %s607 = scalar_lea.vmem [#allocation0], 3128
    %608 = vst [vmem:[%s607] sm:%s3] %v606
    %s609 = smul.addr 2, 390
    %s610 = scalar_lea.vmem %s0, %s609
    %v611 = vld [vmem:[%s610] sm:%s3]
    %s612 = scalar_lea.vmem [#allocation0], 3120
    %613 = vst [vmem:[%s612] sm:%s3] %v611
    %s614 = smul.addr 2, 389
    %s615 = scalar_lea.vmem %s0, %s614
    %v616 = vld [vmem:[%s615] sm:%s3]
    %s617 = scalar_lea.vmem [#allocation0], 3112
    %618 = vst [vmem:[%s617] sm:%s3] %v616
    %s619 = smul.addr 2, 388
    %s620 = scalar_lea.vmem %s0, %s619
    %v621 = vld [vmem:[%s620] sm:%s3]
    %s622 = scalar_lea.vmem [#allocation0], 3104
    %623 = vst [vmem:[%s622] sm:%s3] %v621
    %s624 = smul.addr 2, 387
    %s625 = scalar_lea.vmem %s0, %s624
    %v626 = vld [vmem:[%s625] sm:%s3]
    %s627 = scalar_lea.vmem [#allocation0], 3096
    %628 = vst [vmem:[%s627] sm:%s3] %v626
    %s629 = smul.addr 2, 386
    %s630 = scalar_lea.vmem %s0, %s629
    %v631 = vld [vmem:[%s630] sm:%s3]
    %s632 = scalar_lea.vmem [#allocation0], 3088
    %633 = vst [vmem:[%s632] sm:%s3] %v631
    %s634 = smul.addr 2, 385
    %s635 = scalar_lea.vmem %s0, %s634
    %v636 = vld [vmem:[%s635] sm:%s3]
    %s637 = scalar_lea.vmem [#allocation0], 3080
    %638 = vst [vmem:[%s637] sm:%s3] %v636
    %s639 = smul.addr 2, 384
    %s640 = scalar_lea.vmem %s0, %s639
    %v641 = vld [vmem:[%s640] sm:%s3]
    %s642 = scalar_lea.vmem [#allocation0], 3072
    %643 = vst [vmem:[%s642] sm:%s3] %v641
    %s644 = smul.addr 2, 383
    %s645 = scalar_lea.vmem %s0, %s644
    %v646 = vld [vmem:[%s645] sm:%s3]
    %s647 = scalar_lea.vmem [#allocation0], 3064
    %648 = vst [vmem:[%s647] sm:%s3] %v646
    %s649 = smul.addr 2, 382
    %s650 = scalar_lea.vmem %s0, %s649
    %v651 = vld [vmem:[%s650] sm:%s3]
    %s652 = scalar_lea.vmem [#allocation0], 3056
    %653 = vst [vmem:[%s652] sm:%s3] %v651
    %s654 = smul.addr 2, 381
    %s655 = scalar_lea.vmem %s0, %s654
    %v656 = vld [vmem:[%s655] sm:%s3]
    %s657 = scalar_lea.vmem [#allocation0], 3048
    %658 = vst [vmem:[%s657] sm:%s3] %v656
    %s659 = smul.addr 2, 380
    %s660 = scalar_lea.vmem %s0, %s659
    %v661 = vld [vmem:[%s660] sm:%s3]
    %s662 = scalar_lea.vmem [#allocation0], 3040
    %663 = vst [vmem:[%s662] sm:%s3] %v661
    %s664 = smul.addr 2, 379
    %s665 = scalar_lea.vmem %s0, %s664
    %v666 = vld [vmem:[%s665] sm:%s3]
    %s667 = scalar_lea.vmem [#allocation0], 3032
    %668 = vst [vmem:[%s667] sm:%s3] %v666
    %s669 = smul.addr 2, 378
    %s670 = scalar_lea.vmem %s0, %s669
    %v671 = vld [vmem:[%s670] sm:%s3]
    %s672 = scalar_lea.vmem [#allocation0], 3024
    %673 = vst [vmem:[%s672] sm:%s3] %v671
    %s674 = smul.addr 2, 377
    %s675 = scalar_lea.vmem %s0, %s674
    %v676 = vld [vmem:[%s675] sm:%s3]
    %s677 = scalar_lea.vmem [#allocation0], 3016
    %678 = vst [vmem:[%s677] sm:%s3] %v676
    %s679 = smul.addr 2, 376
    %s680 = scalar_lea.vmem %s0, %s679
    %v681 = vld [vmem:[%s680] sm:%s3]
    %s682 = scalar_lea.vmem [#allocation0], 3008
    %683 = vst [vmem:[%s682] sm:%s3] %v681
    %s684 = smul.addr 2, 375
    %s685 = scalar_lea.vmem %s0, %s684
    %v686 = vld [vmem:[%s685] sm:%s3]
    %s687 = scalar_lea.vmem [#allocation0], 3000
    %688 = vst [vmem:[%s687] sm:%s3] %v686
    %s689 = smul.addr 2, 374
    %s690 = scalar_lea.vmem %s0, %s689
    %v691 = vld [vmem:[%s690] sm:%s3]
    %s692 = scalar_lea.vmem [#allocation0], 2992
    %693 = vst [vmem:[%s692] sm:%s3] %v691
    %s694 = smul.addr 2, 373
    %s695 = scalar_lea.vmem %s0, %s694
    %v696 = vld [vmem:[%s695] sm:%s3]
    %s697 = scalar_lea.vmem [#allocation0], 2984
    %698 = vst [vmem:[%s697] sm:%s3] %v696
    %s699 = smul.addr 2, 372
    %s700 = scalar_lea.vmem %s0, %s699
    %v701 = vld [vmem:[%s700] sm:%s3]
    %s702 = scalar_lea.vmem [#allocation0], 2976
    %703 = vst [vmem:[%s702] sm:%s3] %v701
    %s704 = smul.addr 2, 371
    %s705 = scalar_lea.vmem %s0, %s704
    %v706 = vld [vmem:[%s705] sm:%s3]
    %s707 = scalar_lea.vmem [#allocation0], 2968
    %708 = vst [vmem:[%s707] sm:%s3] %v706
    %s709 = smul.addr 2, 370
    %s710 = scalar_lea.vmem %s0, %s709
    %v711 = vld [vmem:[%s710] sm:%s3]
    %s712 = scalar_lea.vmem [#allocation0], 2960
    %713 = vst [vmem:[%s712] sm:%s3] %v711
    %s714 = smul.addr 2, 369
    %s715 = scalar_lea.vmem %s0, %s714
    %v716 = vld [vmem:[%s715] sm:%s3]
    %s717 = scalar_lea.vmem [#allocation0], 2952
    %718 = vst [vmem:[%s717] sm:%s3] %v716
    %s719 = smul.addr 2, 368
    %s720 = scalar_lea.vmem %s0, %s719
    %v721 = vld [vmem:[%s720] sm:%s3]
    %s722 = scalar_lea.vmem [#allocation0], 2944
    %723 = vst [vmem:[%s722] sm:%s3] %v721
    %s724 = smul.addr 2, 367
    %s725 = scalar_lea.vmem %s0, %s724
    %v726 = vld [vmem:[%s725] sm:%s3]
    %s727 = scalar_lea.vmem [#allocation0], 2936
    %728 = vst [vmem:[%s727] sm:%s3] %v726
    %s729 = smul.addr 2, 366
    %s730 = scalar_lea.vmem %s0, %s729
    %v731 = vld [vmem:[%s730] sm:%s3]
    %s732 = scalar_lea.vmem [#allocation0], 2928
    %733 = vst [vmem:[%s732] sm:%s3] %v731
    %s734 = smul.addr 2, 365
    %s735 = scalar_lea.vmem %s0, %s734
    %v736 = vld [vmem:[%s735] sm:%s3]
    %s737 = scalar_lea.vmem [#allocation0], 2920
    %738 = vst [vmem:[%s737] sm:%s3] %v736
    %s739 = smul.addr 2, 364
    %s740 = scalar_lea.vmem %s0, %s739
    %v741 = vld [vmem:[%s740] sm:%s3]
    %s742 = scalar_lea.vmem [#allocation0], 2912
    %743 = vst [vmem:[%s742] sm:%s3] %v741
    %s744 = smul.addr 2, 363
    %s745 = scalar_lea.vmem %s0, %s744
    %v746 = vld [vmem:[%s745] sm:%s3]
    %s747 = scalar_lea.vmem [#allocation0], 2904
    %748 = vst [vmem:[%s747] sm:%s3] %v746
    %s749 = smul.addr 2, 362
    %s750 = scalar_lea.vmem %s0, %s749
    %v751 = vld [vmem:[%s750] sm:%s3]
    %s752 = scalar_lea.vmem [#allocation0], 2896
    %753 = vst [vmem:[%s752] sm:%s3] %v751
    %s754 = smul.addr 2, 361
    %s755 = scalar_lea.vmem %s0, %s754
    %v756 = vld [vmem:[%s755] sm:%s3]
    %s757 = scalar_lea.vmem [#allocation0], 2888
    %758 = vst [vmem:[%s757] sm:%s3] %v756
    %s759 = smul.addr 2, 360
    %s760 = scalar_lea.vmem %s0, %s759
    %v761 = vld [vmem:[%s760] sm:%s3]
    %s762 = scalar_lea.vmem [#allocation0], 2880
    %763 = vst [vmem:[%s762] sm:%s3] %v761
    %s764 = smul.addr 2, 359
    %s765 = scalar_lea.vmem %s0, %s764
    %v766 = vld [vmem:[%s765] sm:%s3]
    %s767 = scalar_lea.vmem [#allocation0], 2872
    %768 = vst [vmem:[%s767] sm:%s3] %v766
    %s769 = smul.addr 2, 358
    %s770 = scalar_lea.vmem %s0, %s769
    %v771 = vld [vmem:[%s770] sm:%s3]
    %s772 = scalar_lea.vmem [#allocation0], 2864
    %773 = vst [vmem:[%s772] sm:%s3] %v771
    %s774 = smul.addr 2, 357
    %s775 = scalar_lea.vmem %s0, %s774
    %v776 = vld [vmem:[%s775] sm:%s3]
    %s777 = scalar_lea.vmem [#allocation0], 2856
    %778 = vst [vmem:[%s777] sm:%s3] %v776
    %s779 = smul.addr 2, 356
    %s780 = scalar_lea.vmem %s0, %s779
    %v781 = vld [vmem:[%s780] sm:%s3]
    %s782 = scalar_lea.vmem [#allocation0], 2848
    %783 = vst [vmem:[%s782] sm:%s3] %v781
    %s784 = smul.addr 2, 355
    %s785 = scalar_lea.vmem %s0, %s784
    %v786 = vld [vmem:[%s785] sm:%s3]
    %s787 = scalar_lea.vmem [#allocation0], 2840
    %788 = vst [vmem:[%s787] sm:%s3] %v786
    %s789 = smul.addr 2, 354
    %s790 = scalar_lea.vmem %s0, %s789
    %v791 = vld [vmem:[%s790] sm:%s3]
    %s792 = scalar_lea.vmem [#allocation0], 2832
    %793 = vst [vmem:[%s792] sm:%s3] %v791
    %s794 = smul.addr 2, 353
    %s795 = scalar_lea.vmem %s0, %s794
    %v796 = vld [vmem:[%s795] sm:%s3]
    %s797 = scalar_lea.vmem [#allocation0], 2824
    %798 = vst [vmem:[%s797] sm:%s3] %v796
    %s799 = smul.addr 2, 352
    %s800 = scalar_lea.vmem %s0, %s799
    %v801 = vld [vmem:[%s800] sm:%s3]
    %s802 = scalar_lea.vmem [#allocation0], 2816
    %803 = vst [vmem:[%s802] sm:%s3] %v801
    %s804 = smul.addr 2, 351
    %s805 = scalar_lea.vmem %s0, %s804
    %v806 = vld [vmem:[%s805] sm:%s3]
    %s807 = scalar_lea.vmem [#allocation0], 2808
    %808 = vst [vmem:[%s807] sm:%s3] %v806
    %s809 = smul.addr 2, 350
    %s810 = scalar_lea.vmem %s0, %s809
    %v811 = vld [vmem:[%s810] sm:%s3]
    %s812 = scalar_lea.vmem [#allocation0], 2800
    %813 = vst [vmem:[%s812] sm:%s3] %v811
    %s814 = smul.addr 2, 349
    %s815 = scalar_lea.vmem %s0, %s814
    %v816 = vld [vmem:[%s815] sm:%s3]
    %s817 = scalar_lea.vmem [#allocation0], 2792
    %818 = vst [vmem:[%s817] sm:%s3] %v816
    %s819 = smul.addr 2, 348
    %s820 = scalar_lea.vmem %s0, %s819
    %v821 = vld [vmem:[%s820] sm:%s3]
    %s822 = scalar_lea.vmem [#allocation0], 2784
    %823 = vst [vmem:[%s822] sm:%s3] %v821
    %s824 = smul.addr 2, 347
    %s825 = scalar_lea.vmem %s0, %s824
    %v826 = vld [vmem:[%s825] sm:%s3]
    %s827 = scalar_lea.vmem [#allocation0], 2776
    %828 = vst [vmem:[%s827] sm:%s3] %v826
    %s829 = smul.addr 2, 346
    %s830 = scalar_lea.vmem %s0, %s829
    %v831 = vld [vmem:[%s830] sm:%s3]
    %s832 = scalar_lea.vmem [#allocation0], 2768
    %833 = vst [vmem:[%s832] sm:%s3] %v831
    %s834 = smul.addr 2, 345
    %s835 = scalar_lea.vmem %s0, %s834
    %v836 = vld [vmem:[%s835] sm:%s3]
    %s837 = scalar_lea.vmem [#allocation0], 2760
    %838 = vst [vmem:[%s837] sm:%s3] %v836
    %s839 = smul.addr 2, 344
    %s840 = scalar_lea.vmem %s0, %s839
    %v841 = vld [vmem:[%s840] sm:%s3]
    %s842 = scalar_lea.vmem [#allocation0], 2752
    %843 = vst [vmem:[%s842] sm:%s3] %v841
    %s844 = smul.addr 2, 343
    %s845 = scalar_lea.vmem %s0, %s844
    %v846 = vld [vmem:[%s845] sm:%s3]
    %s847 = scalar_lea.vmem [#allocation0], 2744
    %848 = vst [vmem:[%s847] sm:%s3] %v846
    %s849 = smul.addr 2, 342
    %s850 = scalar_lea.vmem %s0, %s849
    %v851 = vld [vmem:[%s850] sm:%s3]
    %s852 = scalar_lea.vmem [#allocation0], 2736
    %853 = vst [vmem:[%s852] sm:%s3] %v851
    %s854 = smul.addr 2, 341
    %s855 = scalar_lea.vmem %s0, %s854
    %v856 = vld [vmem:[%s855] sm:%s3]
    %s857 = scalar_lea.vmem [#allocation0], 2728
    %858 = vst [vmem:[%s857] sm:%s3] %v856
    %s859 = smul.addr 2, 340
    %s860 = scalar_lea.vmem %s0, %s859
    %v861 = vld [vmem:[%s860] sm:%s3]
    %s862 = scalar_lea.vmem [#allocation0], 2720
    %863 = vst [vmem:[%s862] sm:%s3] %v861
    %s864 = smul.addr 2, 339
    %s865 = scalar_lea.vmem %s0, %s864
    %v866 = vld [vmem:[%s865] sm:%s3]
    %s867 = scalar_lea.vmem [#allocation0], 2712
    %868 = vst [vmem:[%s867] sm:%s3] %v866
    %s869 = smul.addr 2, 338
    %s870 = scalar_lea.vmem %s0, %s869
    %v871 = vld [vmem:[%s870] sm:%s3]
    %s872 = scalar_lea.vmem [#allocation0], 2704
    %873 = vst [vmem:[%s872] sm:%s3] %v871
    %s874 = smul.addr 2, 337
    %s875 = scalar_lea.vmem %s0, %s874
    %v876 = vld [vmem:[%s875] sm:%s3]
    %s877 = scalar_lea.vmem [#allocation0], 2696
    %878 = vst [vmem:[%s877] sm:%s3] %v876
    %s879 = smul.addr 2, 336
    %s880 = scalar_lea.vmem %s0, %s879
    %v881 = vld [vmem:[%s880] sm:%s3]
    %s882 = scalar_lea.vmem [#allocation0], 2688
    %883 = vst [vmem:[%s882] sm:%s3] %v881
    %s884 = smul.addr 2, 335
    %s885 = scalar_lea.vmem %s0, %s884
    %v886 = vld [vmem:[%s885] sm:%s3]
    %s887 = scalar_lea.vmem [#allocation0], 2680
    %888 = vst [vmem:[%s887] sm:%s3] %v886
    %s889 = smul.addr 2, 334
    %s890 = scalar_lea.vmem %s0, %s889
    %v891 = vld [vmem:[%s890] sm:%s3]
    %s892 = scalar_lea.vmem [#allocation0], 2672
    %893 = vst [vmem:[%s892] sm:%s3] %v891
    %s894 = smul.addr 2, 333
    %s895 = scalar_lea.vmem %s0, %s894
    %v896 = vld [vmem:[%s895] sm:%s3]
    %s897 = scalar_lea.vmem [#allocation0], 2664
    %898 = vst [vmem:[%s897] sm:%s3] %v896
    %s899 = smul.addr 2, 332
    %s900 = scalar_lea.vmem %s0, %s899
    %v901 = vld [vmem:[%s900] sm:%s3]
    %s902 = scalar_lea.vmem [#allocation0], 2656
    %903 = vst [vmem:[%s902] sm:%s3] %v901
    %s904 = smul.addr 2, 331
    %s905 = scalar_lea.vmem %s0, %s904
    %v906 = vld [vmem:[%s905] sm:%s3]
    %s907 = scalar_lea.vmem [#allocation0], 2648
    %908 = vst [vmem:[%s907] sm:%s3] %v906
    %s909 = smul.addr 2, 330
    %s910 = scalar_lea.vmem %s0, %s909
    %v911 = vld [vmem:[%s910] sm:%s3]
    %s912 = scalar_lea.vmem [#allocation0], 2640
    %913 = vst [vmem:[%s912] sm:%s3] %v911
    %s914 = smul.addr 2, 329
    %s915 = scalar_lea.vmem %s0, %s914
    %v916 = vld [vmem:[%s915] sm:%s3]
    %s917 = scalar_lea.vmem [#allocation0], 2632
    %918 = vst [vmem:[%s917] sm:%s3] %v916
    %s919 = smul.addr 2, 328
    %s920 = scalar_lea.vmem %s0, %s919
    %v921 = vld [vmem:[%s920] sm:%s3]
    %s922 = scalar_lea.vmem [#allocation0], 2624
    %923 = vst [vmem:[%s922] sm:%s3] %v921
    %s924 = smul.addr 2, 327
    %s925 = scalar_lea.vmem %s0, %s924
    %v926 = vld [vmem:[%s925] sm:%s3]
    %s927 = scalar_lea.vmem [#allocation0], 2616
    %928 = vst [vmem:[%s927] sm:%s3] %v926
    %s929 = smul.addr 2, 326
    %s930 = scalar_lea.vmem %s0, %s929
    %v931 = vld [vmem:[%s930] sm:%s3]
    %s932 = scalar_lea.vmem [#allocation0], 2608
    %933 = vst [vmem:[%s932] sm:%s3] %v931
    %s934 = smul.addr 2, 325
    %s935 = scalar_lea.vmem %s0, %s934
    %v936 = vld [vmem:[%s935] sm:%s3]
    %s937 = scalar_lea.vmem [#allocation0], 2600
    %938 = vst [vmem:[%s937] sm:%s3] %v936
    %s939 = smul.addr 2, 324
    %s940 = scalar_lea.vmem %s0, %s939
    %v941 = vld [vmem:[%s940] sm:%s3]
    %s942 = scalar_lea.vmem [#allocation0], 2592
    %943 = vst [vmem:[%s942] sm:%s3] %v941
    %s944 = smul.addr 2, 323
    %s945 = scalar_lea.vmem %s0, %s944
    %v946 = vld [vmem:[%s945] sm:%s3]
    %s947 = scalar_lea.vmem [#allocation0], 2584
    %948 = vst [vmem:[%s947] sm:%s3] %v946
    %s949 = smul.addr 2, 322
    %s950 = scalar_lea.vmem %s0, %s949
    %v951 = vld [vmem:[%s950] sm:%s3]
    %s952 = scalar_lea.vmem [#allocation0], 2576
    %953 = vst [vmem:[%s952] sm:%s3] %v951
    %s954 = smul.addr 2, 321
    %s955 = scalar_lea.vmem %s0, %s954
    %v956 = vld [vmem:[%s955] sm:%s3]
    %s957 = scalar_lea.vmem [#allocation0], 2568
    %958 = vst [vmem:[%s957] sm:%s3] %v956
    %s959 = smul.addr 2, 320
    %s960 = scalar_lea.vmem %s0, %s959
    %v961 = vld [vmem:[%s960] sm:%s3]
    %s962 = scalar_lea.vmem [#allocation0], 2560
    %963 = vst [vmem:[%s962] sm:%s3] %v961
    %s964 = smul.addr 2, 319
    %s965 = scalar_lea.vmem %s0, %s964
    %v966 = vld [vmem:[%s965] sm:%s3]
    %s967 = scalar_lea.vmem [#allocation0], 2552
    %968 = vst [vmem:[%s967] sm:%s3] %v966
    %s969 = smul.addr 2, 318
    %s970 = scalar_lea.vmem %s0, %s969
    %v971 = vld [vmem:[%s970] sm:%s3]
    %s972 = scalar_lea.vmem [#allocation0], 2544
    %973 = vst [vmem:[%s972] sm:%s3] %v971
    %s974 = smul.addr 2, 317
    %s975 = scalar_lea.vmem %s0, %s974
    %v976 = vld [vmem:[%s975] sm:%s3]
    %s977 = scalar_lea.vmem [#allocation0], 2536
    %978 = vst [vmem:[%s977] sm:%s3] %v976
    %s979 = smul.addr 2, 316
    %s980 = scalar_lea.vmem %s0, %s979
    %v981 = vld [vmem:[%s980] sm:%s3]
    %s982 = scalar_lea.vmem [#allocation0], 2528
    %983 = vst [vmem:[%s982] sm:%s3] %v981
    %s984 = smul.addr 2, 315
    %s985 = scalar_lea.vmem %s0, %s984
    %v986 = vld [vmem:[%s985] sm:%s3]
    %s987 = scalar_lea.vmem [#allocation0], 2520
    %988 = vst [vmem:[%s987] sm:%s3] %v986
    %s989 = smul.addr 2, 314
    %s990 = scalar_lea.vmem %s0, %s989
    %v991 = vld [vmem:[%s990] sm:%s3]
    %s992 = scalar_lea.vmem [#allocation0], 2512
    %993 = vst [vmem:[%s992] sm:%s3] %v991
    %s994 = smul.addr 2, 313
    %s995 = scalar_lea.vmem %s0, %s994
    %v996 = vld [vmem:[%s995] sm:%s3]
    %s997 = scalar_lea.vmem [#allocation0], 2504
    %998 = vst [vmem:[%s997] sm:%s3] %v996
    %s999 = smul.addr 2, 312
    %s1000 = scalar_lea.vmem %s0, %s999
    %v1001 = vld [vmem:[%s1000] sm:%s3]
    %s1002 = scalar_lea.vmem [#allocation0], 2496
    %1003 = vst [vmem:[%s1002] sm:%s3] %v1001
    %s1004 = smul.addr 2, 311
    %s1005 = scalar_lea.vmem %s0, %s1004
    %v1006 = vld [vmem:[%s1005] sm:%s3]
    %s1007 = scalar_lea.vmem [#allocation0], 2488
    %1008 = vst [vmem:[%s1007] sm:%s3] %v1006
    %s1009 = smul.addr 2, 310
    %s1010 = scalar_lea.vmem %s0, %s1009
    %v1011 = vld [vmem:[%s1010] sm:%s3]
    %s1012 = scalar_lea.vmem [#allocation0], 2480
    %1013 = vst [vmem:[%s1012] sm:%s3] %v1011
    %s1014 = smul.addr 2, 309
    %s1015 = scalar_lea.vmem %s0, %s1014
    %v1016 = vld [vmem:[%s1015] sm:%s3]
    %s1017 = scalar_lea.vmem [#allocation0], 2472
    %1018 = vst [vmem:[%s1017] sm:%s3] %v1016
    %s1019 = smul.addr 2, 308
    %s1020 = scalar_lea.vmem %s0, %s1019
    %v1021 = vld [vmem:[%s1020] sm:%s3]
    %s1022 = scalar_lea.vmem [#allocation0], 2464
    %1023 = vst [vmem:[%s1022] sm:%s3] %v1021
    %s1024 = smul.addr 2, 307
    %s1025 = scalar_lea.vmem %s0, %s1024
    %v1026 = vld [vmem:[%s1025] sm:%s3]
    %s1027 = scalar_lea.vmem [#allocation0], 2456
    %1028 = vst [vmem:[%s1027] sm:%s3] %v1026
    %s1029 = smul.addr 2, 306
    %s1030 = scalar_lea.vmem %s0, %s1029
    %v1031 = vld [vmem:[%s1030] sm:%s3]
    %s1032 = scalar_lea.vmem [#allocation0], 2448
    %1033 = vst [vmem:[%s1032] sm:%s3] %v1031
    %s1034 = smul.addr 2, 305
    %s1035 = scalar_lea.vmem %s0, %s1034
    %v1036 = vld [vmem:[%s1035] sm:%s3]
    %s1037 = scalar_lea.vmem [#allocation0], 2440
    %1038 = vst [vmem:[%s1037] sm:%s3] %v1036
    %s1039 = smul.addr 2, 304
    %s1040 = scalar_lea.vmem %s0, %s1039
    %v1041 = vld [vmem:[%s1040] sm:%s3]
    %s1042 = scalar_lea.vmem [#allocation0], 2432
    %1043 = vst [vmem:[%s1042] sm:%s3] %v1041
    %s1044 = smul.addr 2, 303
    %s1045 = scalar_lea.vmem %s0, %s1044
    %v1046 = vld [vmem:[%s1045] sm:%s3]
    %s1047 = scalar_lea.vmem [#allocation0], 2424
    %1048 = vst [vmem:[%s1047] sm:%s3] %v1046
    %s1049 = smul.addr 2, 302
    %s1050 = scalar_lea.vmem %s0, %s1049
    %v1051 = vld [vmem:[%s1050] sm:%s3]
    %s1052 = scalar_lea.vmem [#allocation0], 2416
    %1053 = vst [vmem:[%s1052] sm:%s3] %v1051
    %s1054 = smul.addr 2, 301
    %s1055 = scalar_lea.vmem %s0, %s1054
    %v1056 = vld [vmem:[%s1055] sm:%s3]
    %s1057 = scalar_lea.vmem [#allocation0], 2408
    %1058 = vst [vmem:[%s1057] sm:%s3] %v1056
    %s1059 = smul.addr 2, 300
    %s1060 = scalar_lea.vmem %s0, %s1059
    %v1061 = vld [vmem:[%s1060] sm:%s3]
    %s1062 = scalar_lea.vmem [#allocation0], 2400
    %1063 = vst [vmem:[%s1062] sm:%s3] %v1061
    %s1064 = smul.addr 2, 299
    %s1065 = scalar_lea.vmem %s0, %s1064
    %v1066 = vld [vmem:[%s1065] sm:%s3]
    %s1067 = scalar_lea.vmem [#allocation0], 2392
    %1068 = vst [vmem:[%s1067] sm:%s3] %v1066
    %s1069 = smul.addr 2, 298
    %s1070 = scalar_lea.vmem %s0, %s1069
    %v1071 = vld [vmem:[%s1070] sm:%s3]
    %s1072 = scalar_lea.vmem [#allocation0], 2384
    %1073 = vst [vmem:[%s1072] sm:%s3] %v1071
    %s1074 = smul.addr 2, 297
    %s1075 = scalar_lea.vmem %s0, %s1074
    %v1076 = vld [vmem:[%s1075] sm:%s3]
    %s1077 = scalar_lea.vmem [#allocation0], 2376
    %1078 = vst [vmem:[%s1077] sm:%s3] %v1076
    %s1079 = smul.addr 2, 296
    %s1080 = scalar_lea.vmem %s0, %s1079
    %v1081 = vld [vmem:[%s1080] sm:%s3]
    %s1082 = scalar_lea.vmem [#allocation0], 2368
    %1083 = vst [vmem:[%s1082] sm:%s3] %v1081
    %s1084 = smul.addr 2, 295
    %s1085 = scalar_lea.vmem %s0, %s1084
    %v1086 = vld [vmem:[%s1085] sm:%s3]
    %s1087 = scalar_lea.vmem [#allocation0], 2360
    %1088 = vst [vmem:[%s1087] sm:%s3] %v1086
    %s1089 = smul.addr 2, 294
    %s1090 = scalar_lea.vmem %s0, %s1089
    %v1091 = vld [vmem:[%s1090] sm:%s3]
    %s1092 = scalar_lea.vmem [#allocation0], 2352
    %1093 = vst [vmem:[%s1092] sm:%s3] %v1091
    %s1094 = smul.addr 2, 293
    %s1095 = scalar_lea.vmem %s0, %s1094
    %v1096 = vld [vmem:[%s1095] sm:%s3]
    %s1097 = scalar_lea.vmem [#allocation0], 2344
    %1098 = vst [vmem:[%s1097] sm:%s3] %v1096
    %s1099 = smul.addr 2, 292
    %s1100 = scalar_lea.vmem %s0, %s1099
    %v1101 = vld [vmem:[%s1100] sm:%s3]
    %s1102 = scalar_lea.vmem [#allocation0], 2336
    %1103 = vst [vmem:[%s1102] sm:%s3] %v1101
    %s1104 = smul.addr 2, 291
    %s1105 = scalar_lea.vmem %s0, %s1104
    %v1106 = vld [vmem:[%s1105] sm:%s3]
    %s1107 = scalar_lea.vmem [#allocation0], 2328
    %1108 = vst [vmem:[%s1107] sm:%s3] %v1106
    %s1109 = smul.addr 2, 290
    %s1110 = scalar_lea.vmem %s0, %s1109
    %v1111 = vld [vmem:[%s1110] sm:%s3]
    %s1112 = scalar_lea.vmem [#allocation0], 2320
    %1113 = vst [vmem:[%s1112] sm:%s3] %v1111
    %s1114 = smul.addr 2, 289
    %s1115 = scalar_lea.vmem %s0, %s1114
    %v1116 = vld [vmem:[%s1115] sm:%s3]
    %s1117 = scalar_lea.vmem [#allocation0], 2312
    %1118 = vst [vmem:[%s1117] sm:%s3] %v1116
    %s1119 = smul.addr 2, 288
    %s1120 = scalar_lea.vmem %s0, %s1119
    %v1121 = vld [vmem:[%s1120] sm:%s3]
    %s1122 = scalar_lea.vmem [#allocation0], 2304
    %1123 = vst [vmem:[%s1122] sm:%s3] %v1121
    %s1124 = smul.addr 2, 287
    %s1125 = scalar_lea.vmem %s0, %s1124
    %v1126 = vld [vmem:[%s1125] sm:%s3]
    %s1127 = scalar_lea.vmem [#allocation0], 2296
    %1128 = vst [vmem:[%s1127] sm:%s3] %v1126
    %s1129 = smul.addr 2, 286
    %s1130 = scalar_lea.vmem %s0, %s1129
    %v1131 = vld [vmem:[%s1130] sm:%s3]
    %s1132 = scalar_lea.vmem [#allocation0], 2288
    %1133 = vst [vmem:[%s1132] sm:%s3] %v1131
    %s1134 = smul.addr 2, 285
    %s1135 = scalar_lea.vmem %s0, %s1134
    %v1136 = vld [vmem:[%s1135] sm:%s3]
    %s1137 = scalar_lea.vmem [#allocation0], 2280
    %1138 = vst [vmem:[%s1137] sm:%s3] %v1136
    %s1139 = smul.addr 2, 284
    %s1140 = scalar_lea.vmem %s0, %s1139
    %v1141 = vld [vmem:[%s1140] sm:%s3]
    %s1142 = scalar_lea.vmem [#allocation0], 2272
    %1143 = vst [vmem:[%s1142] sm:%s3] %v1141
    %s1144 = smul.addr 2, 283
    %s1145 = scalar_lea.vmem %s0, %s1144
    %v1146 = vld [vmem:[%s1145] sm:%s3]
    %s1147 = scalar_lea.vmem [#allocation0], 2264
    %1148 = vst [vmem:[%s1147] sm:%s3] %v1146
    %s1149 = smul.addr 2, 282
    %s1150 = scalar_lea.vmem %s0, %s1149
    %v1151 = vld [vmem:[%s1150] sm:%s3]
    %s1152 = scalar_lea.vmem [#allocation0], 2256
    %1153 = vst [vmem:[%s1152] sm:%s3] %v1151
    %s1154 = smul.addr 2, 281
    %s1155 = scalar_lea.vmem %s0, %s1154
    %v1156 = vld [vmem:[%s1155] sm:%s3]
    %s1157 = scalar_lea.vmem [#allocation0], 2248
    %1158 = vst [vmem:[%s1157] sm:%s3] %v1156
    %s1159 = smul.addr 2, 280
    %s1160 = scalar_lea.vmem %s0, %s1159
    %v1161 = vld [vmem:[%s1160] sm:%s3]
    %s1162 = scalar_lea.vmem [#allocation0], 2240
    %1163 = vst [vmem:[%s1162] sm:%s3] %v1161
    %s1164 = smul.addr 2, 279
    %s1165 = scalar_lea.vmem %s0, %s1164
    %v1166 = vld [vmem:[%s1165] sm:%s3]
    %s1167 = scalar_lea.vmem [#allocation0], 2232
    %1168 = vst [vmem:[%s1167] sm:%s3] %v1166
    %s1169 = smul.addr 2, 278
    %s1170 = scalar_lea.vmem %s0, %s1169
    %v1171 = vld [vmem:[%s1170] sm:%s3]
    %s1172 = scalar_lea.vmem [#allocation0], 2224
    %1173 = vst [vmem:[%s1172] sm:%s3] %v1171
    %s1174 = smul.addr 2, 277
    %s1175 = scalar_lea.vmem %s0, %s1174
    %v1176 = vld [vmem:[%s1175] sm:%s3]
    %s1177 = scalar_lea.vmem [#allocation0], 2216
    %1178 = vst [vmem:[%s1177] sm:%s3] %v1176
    %s1179 = smul.addr 2, 276
    %s1180 = scalar_lea.vmem %s0, %s1179
    %v1181 = vld [vmem:[%s1180] sm:%s3]
    %s1182 = scalar_lea.vmem [#allocation0], 2208
    %1183 = vst [vmem:[%s1182] sm:%s3] %v1181
    %s1184 = smul.addr 2, 275
    %s1185 = scalar_lea.vmem %s0, %s1184
    %v1186 = vld [vmem:[%s1185] sm:%s3]
    %s1187 = scalar_lea.vmem [#allocation0], 2200
    %1188 = vst [vmem:[%s1187] sm:%s3] %v1186
    %s1189 = smul.addr 2, 274
    %s1190 = scalar_lea.vmem %s0, %s1189
    %v1191 = vld [vmem:[%s1190] sm:%s3]
    %s1192 = scalar_lea.vmem [#allocation0], 2192
    %1193 = vst [vmem:[%s1192] sm:%s3] %v1191
    %s1194 = smul.addr 2, 273
    %s1195 = scalar_lea.vmem %s0, %s1194
    %v1196 = vld [vmem:[%s1195] sm:%s3]
    %s1197 = scalar_lea.vmem [#allocation0], 2184
    %1198 = vst [vmem:[%s1197] sm:%s3] %v1196
    %s1199 = smul.addr 2, 272
    %s1200 = scalar_lea.vmem %s0, %s1199
    %v1201 = vld [vmem:[%s1200] sm:%s3]
    %s1202 = scalar_lea.vmem [#allocation0], 2176
    %1203 = vst [vmem:[%s1202] sm:%s3] %v1201
    %s1204 = smul.addr 2, 271
    %s1205 = scalar_lea.vmem %s0, %s1204
    %v1206 = vld [vmem:[%s1205] sm:%s3]
    %s1207 = scalar_lea.vmem [#allocation0], 2168
    %1208 = vst [vmem:[%s1207] sm:%s3] %v1206
    %s1209 = smul.addr 2, 270
    %s1210 = scalar_lea.vmem %s0, %s1209
    %v1211 = vld [vmem:[%s1210] sm:%s3]
    %s1212 = scalar_lea.vmem [#allocation0], 2160
    %1213 = vst [vmem:[%s1212] sm:%s3] %v1211
    %s1214 = smul.addr 2, 269
    %s1215 = scalar_lea.vmem %s0, %s1214
    %v1216 = vld [vmem:[%s1215] sm:%s3]
    %s1217 = scalar_lea.vmem [#allocation0], 2152
    %1218 = vst [vmem:[%s1217] sm:%s3] %v1216
    %s1219 = smul.addr 2, 268
    %s1220 = scalar_lea.vmem %s0, %s1219
    %v1221 = vld [vmem:[%s1220] sm:%s3]
    %s1222 = scalar_lea.vmem [#allocation0], 2144
    %1223 = vst [vmem:[%s1222] sm:%s3] %v1221
    %s1224 = smul.addr 2, 267
    %s1225 = scalar_lea.vmem %s0, %s1224
    %v1226 = vld [vmem:[%s1225] sm:%s3]
    %s1227 = scalar_lea.vmem [#allocation0], 2136
    %1228 = vst [vmem:[%s1227] sm:%s3] %v1226
    %s1229 = smul.addr 2, 266
    %s1230 = scalar_lea.vmem %s0, %s1229
    %v1231 = vld [vmem:[%s1230] sm:%s3]
    %s1232 = scalar_lea.vmem [#allocation0], 2128
    %1233 = vst [vmem:[%s1232] sm:%s3] %v1231
    %s1234 = smul.addr 2, 265
    %s1235 = scalar_lea.vmem %s0, %s1234
    %v1236 = vld [vmem:[%s1235] sm:%s3]
    %s1237 = scalar_lea.vmem [#allocation0], 2120
    %1238 = vst [vmem:[%s1237] sm:%s3] %v1236
    %s1239 = smul.addr 2, 264
    %s1240 = scalar_lea.vmem %s0, %s1239
    %v1241 = vld [vmem:[%s1240] sm:%s3]
    %s1242 = scalar_lea.vmem [#allocation0], 2112
    %1243 = vst [vmem:[%s1242] sm:%s3] %v1241
    %s1244 = smul.addr 2, 263
    %s1245 = scalar_lea.vmem %s0, %s1244
    %v1246 = vld [vmem:[%s1245] sm:%s3]
    %s1247 = scalar_lea.vmem [#allocation0], 2104
    %1248 = vst [vmem:[%s1247] sm:%s3] %v1246
    %s1249 = smul.addr 2, 262
    %s1250 = scalar_lea.vmem %s0, %s1249
    %v1251 = vld [vmem:[%s1250] sm:%s3]
    %s1252 = scalar_lea.vmem [#allocation0], 2096
    %1253 = vst [vmem:[%s1252] sm:%s3] %v1251
    %s1254 = smul.addr 2, 261
    %s1255 = scalar_lea.vmem %s0, %s1254
    %v1256 = vld [vmem:[%s1255] sm:%s3]
    %s1257 = scalar_lea.vmem [#allocation0], 2088
    %1258 = vst [vmem:[%s1257] sm:%s3] %v1256
    %s1259 = smul.addr 2, 260
    %s1260 = scalar_lea.vmem %s0, %s1259
    %v1261 = vld [vmem:[%s1260] sm:%s3]
    %s1262 = scalar_lea.vmem [#allocation0], 2080
    %1263 = vst [vmem:[%s1262] sm:%s3] %v1261
    %s1264 = smul.addr 2, 259
    %s1265 = scalar_lea.vmem %s0, %s1264
    %v1266 = vld [vmem:[%s1265] sm:%s3]
    %s1267 = scalar_lea.vmem [#allocation0], 2072
    %1268 = vst [vmem:[%s1267] sm:%s3] %v1266
    %s1269 = smul.addr 2, 258
    %s1270 = scalar_lea.vmem %s0, %s1269
    %v1271 = vld [vmem:[%s1270] sm:%s3]
    %s1272 = scalar_lea.vmem [#allocation0], 2064
    %1273 = vst [vmem:[%s1272] sm:%s3] %v1271
    %s1274 = smul.addr 2, 257
    %s1275 = scalar_lea.vmem %s0, %s1274
    %v1276 = vld [vmem:[%s1275] sm:%s3]
    %s1277 = scalar_lea.vmem [#allocation0], 2056
    %1278 = vst [vmem:[%s1277] sm:%s3] %v1276
    %s1279 = smul.addr 2, 256
    %s1280 = scalar_lea.vmem %s0, %s1279
    %v1281 = vld [vmem:[%s1280] sm:%s3]
    %s1282 = scalar_lea.vmem [#allocation0], 2048
    %1283 = vst [vmem:[%s1282] sm:%s3] %v1281
    %s1284 = smul.addr 2, 255
    %s1285 = scalar_lea.vmem %s0, %s1284
    %v1286 = vld [vmem:[%s1285] sm:%s3]
    %s1287 = scalar_lea.vmem [#allocation0], 2040
    %1288 = vst [vmem:[%s1287] sm:%s3] %v1286
    %s1289 = smul.addr 2, 254
    %s1290 = scalar_lea.vmem %s0, %s1289
    %v1291 = vld [vmem:[%s1290] sm:%s3]
    %s1292 = scalar_lea.vmem [#allocation0], 2032
    %1293 = vst [vmem:[%s1292] sm:%s3] %v1291
    %s1294 = smul.addr 2, 253
    %s1295 = scalar_lea.vmem %s0, %s1294
    %v1296 = vld [vmem:[%s1295] sm:%s3]
    %s1297 = scalar_lea.vmem [#allocation0], 2024
    %1298 = vst [vmem:[%s1297] sm:%s3] %v1296
    %s1299 = smul.addr 2, 252
    %s1300 = scalar_lea.vmem %s0, %s1299
    %v1301 = vld [vmem:[%s1300] sm:%s3]
    %s1302 = scalar_lea.vmem [#allocation0], 2016
    %1303 = vst [vmem:[%s1302] sm:%s3] %v1301
    %s1304 = smul.addr 2, 251
    %s1305 = scalar_lea.vmem %s0, %s1304
    %v1306 = vld [vmem:[%s1305] sm:%s3]
    %s1307 = scalar_lea.vmem [#allocation0], 2008
    %1308 = vst [vmem:[%s1307] sm:%s3] %v1306
    %s1309 = smul.addr 2, 250
    %s1310 = scalar_lea.vmem %s0, %s1309
    %v1311 = vld [vmem:[%s1310] sm:%s3]
    %s1312 = scalar_lea.vmem [#allocation0], 2000
    %1313 = vst [vmem:[%s1312] sm:%s3] %v1311
    %s1314 = smul.addr 2, 249
    %s1315 = scalar_lea.vmem %s0, %s1314
    %v1316 = vld [vmem:[%s1315] sm:%s3]
    %s1317 = scalar_lea.vmem [#allocation0], 1992
    %1318 = vst [vmem:[%s1317] sm:%s3] %v1316
    %s1319 = smul.addr 2, 248
    %s1320 = scalar_lea.vmem %s0, %s1319
    %v1321 = vld [vmem:[%s1320] sm:%s3]
    %s1322 = scalar_lea.vmem [#allocation0], 1984
    %1323 = vst [vmem:[%s1322] sm:%s3] %v1321
    %s1324 = smul.addr 2, 247
    %s1325 = scalar_lea.vmem %s0, %s1324
    %v1326 = vld [vmem:[%s1325] sm:%s3]
    %s1327 = scalar_lea.vmem [#allocation0], 1976
    %1328 = vst [vmem:[%s1327] sm:%s3] %v1326
    %s1329 = smul.addr 2, 246
    %s1330 = scalar_lea.vmem %s0, %s1329
    %v1331 = vld [vmem:[%s1330] sm:%s3]
    %s1332 = scalar_lea.vmem [#allocation0], 1968
    %1333 = vst [vmem:[%s1332] sm:%s3] %v1331
    %s1334 = smul.addr 2, 245
    %s1335 = scalar_lea.vmem %s0, %s1334
    %v1336 = vld [vmem:[%s1335] sm:%s3]
    %s1337 = scalar_lea.vmem [#allocation0], 1960
    %1338 = vst [vmem:[%s1337] sm:%s3] %v1336
    %s1339 = smul.addr 2, 244
    %s1340 = scalar_lea.vmem %s0, %s1339
    %v1341 = vld [vmem:[%s1340] sm:%s3]
    %s1342 = scalar_lea.vmem [#allocation0], 1952
    %1343 = vst [vmem:[%s1342] sm:%s3] %v1341
    %s1344 = smul.addr 2, 243
    %s1345 = scalar_lea.vmem %s0, %s1344
    %v1346 = vld [vmem:[%s1345] sm:%s3]
    %s1347 = scalar_lea.vmem [#allocation0], 1944
    %1348 = vst [vmem:[%s1347] sm:%s3] %v1346
    %s1349 = smul.addr 2, 242
    %s1350 = scalar_lea.vmem %s0, %s1349
    %v1351 = vld [vmem:[%s1350] sm:%s3]
    %s1352 = scalar_lea.vmem [#allocation0], 1936
    %1353 = vst [vmem:[%s1352] sm:%s3] %v1351
    %s1354 = smul.addr 2, 241
    %s1355 = scalar_lea.vmem %s0, %s1354
    %v1356 = vld [vmem:[%s1355] sm:%s3]
    %s1357 = scalar_lea.vmem [#allocation0], 1928
    %1358 = vst [vmem:[%s1357] sm:%s3] %v1356
    %s1359 = smul.addr 2, 240
    %s1360 = scalar_lea.vmem %s0, %s1359
    %v1361 = vld [vmem:[%s1360] sm:%s3]
    %s1362 = scalar_lea.vmem [#allocation0], 1920
    %1363 = vst [vmem:[%s1362] sm:%s3] %v1361
    %s1364 = smul.addr 2, 239
    %s1365 = scalar_lea.vmem %s0, %s1364
    %v1366 = vld [vmem:[%s1365] sm:%s3]
    %s1367 = scalar_lea.vmem [#allocation0], 1912
    %1368 = vst [vmem:[%s1367] sm:%s3] %v1366
    %s1369 = smul.addr 2, 238
    %s1370 = scalar_lea.vmem %s0, %s1369
    %v1371 = vld [vmem:[%s1370] sm:%s3]
    %s1372 = scalar_lea.vmem [#allocation0], 1904
    %1373 = vst [vmem:[%s1372] sm:%s3] %v1371
    %s1374 = smul.addr 2, 237
    %s1375 = scalar_lea.vmem %s0, %s1374
    %v1376 = vld [vmem:[%s1375] sm:%s3]
    %s1377 = scalar_lea.vmem [#allocation0], 1896
    %1378 = vst [vmem:[%s1377] sm:%s3] %v1376
    %s1379 = smul.addr 2, 236
    %s1380 = scalar_lea.vmem %s0, %s1379
    %v1381 = vld [vmem:[%s1380] sm:%s3]
    %s1382 = scalar_lea.vmem [#allocation0], 1888
    %1383 = vst [vmem:[%s1382] sm:%s3] %v1381
    %s1384 = smul.addr 2, 235
    %s1385 = scalar_lea.vmem %s0, %s1384
    %v1386 = vld [vmem:[%s1385] sm:%s3]
    %s1387 = scalar_lea.vmem [#allocation0], 1880
    %1388 = vst [vmem:[%s1387] sm:%s3] %v1386
    %s1389 = smul.addr 2, 234
    %s1390 = scalar_lea.vmem %s0, %s1389
    %v1391 = vld [vmem:[%s1390] sm:%s3]
    %s1392 = scalar_lea.vmem [#allocation0], 1872
    %1393 = vst [vmem:[%s1392] sm:%s3] %v1391
    %s1394 = smul.addr 2, 233
    %s1395 = scalar_lea.vmem %s0, %s1394
    %v1396 = vld [vmem:[%s1395] sm:%s3]
    %s1397 = scalar_lea.vmem [#allocation0], 1864
    %1398 = vst [vmem:[%s1397] sm:%s3] %v1396
    %s1399 = smul.addr 2, 232
    %s1400 = scalar_lea.vmem %s0, %s1399
    %v1401 = vld [vmem:[%s1400] sm:%s3]
    %s1402 = scalar_lea.vmem [#allocation0], 1856
    %1403 = vst [vmem:[%s1402] sm:%s3] %v1401
    %s1404 = smul.addr 2, 231
    %s1405 = scalar_lea.vmem %s0, %s1404
    %v1406 = vld [vmem:[%s1405] sm:%s3]
    %s1407 = scalar_lea.vmem [#allocation0], 1848
    %1408 = vst [vmem:[%s1407] sm:%s3] %v1406
    %s1409 = smul.addr 2, 230
    %s1410 = scalar_lea.vmem %s0, %s1409
    %v1411 = vld [vmem:[%s1410] sm:%s3]
    %s1412 = scalar_lea.vmem [#allocation0], 1840
    %1413 = vst [vmem:[%s1412] sm:%s3] %v1411
    %s1414 = smul.addr 2, 229
    %s1415 = scalar_lea.vmem %s0, %s1414
    %v1416 = vld [vmem:[%s1415] sm:%s3]
    %s1417 = scalar_lea.vmem [#allocation0], 1832
    %1418 = vst [vmem:[%s1417] sm:%s3] %v1416
    %s1419 = smul.addr 2, 228
    %s1420 = scalar_lea.vmem %s0, %s1419
    %v1421 = vld [vmem:[%s1420] sm:%s3]
    %s1422 = scalar_lea.vmem [#allocation0], 1824
    %1423 = vst [vmem:[%s1422] sm:%s3] %v1421
    %s1424 = smul.addr 2, 227
    %s1425 = scalar_lea.vmem %s0, %s1424
    %v1426 = vld [vmem:[%s1425] sm:%s3]
    %s1427 = scalar_lea.vmem [#allocation0], 1816
    %1428 = vst [vmem:[%s1427] sm:%s3] %v1426
    %s1429 = smul.addr 2, 226
    %s1430 = scalar_lea.vmem %s0, %s1429
    %v1431 = vld [vmem:[%s1430] sm:%s3]
    %s1432 = scalar_lea.vmem [#allocation0], 1808
    %1433 = vst [vmem:[%s1432] sm:%s3] %v1431
    %s1434 = smul.addr 2, 225
    %s1435 = scalar_lea.vmem %s0, %s1434
    %v1436 = vld [vmem:[%s1435] sm:%s3]
    %s1437 = scalar_lea.vmem [#allocation0], 1800
    %1438 = vst [vmem:[%s1437] sm:%s3] %v1436
    %s1439 = smul.addr 2, 224
    %s1440 = scalar_lea.vmem %s0, %s1439
    %v1441 = vld [vmem:[%s1440] sm:%s3]
    %s1442 = scalar_lea.vmem [#allocation0], 1792
    %1443 = vst [vmem:[%s1442] sm:%s3] %v1441
    %s1444 = smul.addr 2, 223
    %s1445 = scalar_lea.vmem %s0, %s1444
    %v1446 = vld [vmem:[%s1445] sm:%s3]
    %s1447 = scalar_lea.vmem [#allocation0], 1784
    %1448 = vst [vmem:[%s1447] sm:%s3] %v1446
    %s1449 = smul.addr 2, 222
    %s1450 = scalar_lea.vmem %s0, %s1449
    %v1451 = vld [vmem:[%s1450] sm:%s3]
    %s1452 = scalar_lea.vmem [#allocation0], 1776
    %1453 = vst [vmem:[%s1452] sm:%s3] %v1451
    %s1454 = smul.addr 2, 221
    %s1455 = scalar_lea.vmem %s0, %s1454
    %v1456 = vld [vmem:[%s1455] sm:%s3]
    %s1457 = scalar_lea.vmem [#allocation0], 1768
    %1458 = vst [vmem:[%s1457] sm:%s3] %v1456
    %s1459 = smul.addr 2, 220
    %s1460 = scalar_lea.vmem %s0, %s1459
    %v1461 = vld [vmem:[%s1460] sm:%s3]
    %s1462 = scalar_lea.vmem [#allocation0], 1760
    %1463 = vst [vmem:[%s1462] sm:%s3] %v1461
    %s1464 = smul.addr 2, 219
    %s1465 = scalar_lea.vmem %s0, %s1464
    %v1466 = vld [vmem:[%s1465] sm:%s3]
    %s1467 = scalar_lea.vmem [#allocation0], 1752
    %1468 = vst [vmem:[%s1467] sm:%s3] %v1466
    %s1469 = smul.addr 2, 218
    %s1470 = scalar_lea.vmem %s0, %s1469
    %v1471 = vld [vmem:[%s1470] sm:%s3]
    %s1472 = scalar_lea.vmem [#allocation0], 1744
    %1473 = vst [vmem:[%s1472] sm:%s3] %v1471
    %s1474 = smul.addr 2, 217
    %s1475 = scalar_lea.vmem %s0, %s1474
    %v1476 = vld [vmem:[%s1475] sm:%s3]
    %s1477 = scalar_lea.vmem [#allocation0], 1736
    %1478 = vst [vmem:[%s1477] sm:%s3] %v1476
    %s1479 = smul.addr 2, 216
    %s1480 = scalar_lea.vmem %s0, %s1479
    %v1481 = vld [vmem:[%s1480] sm:%s3]
    %s1482 = scalar_lea.vmem [#allocation0], 1728
    %1483 = vst [vmem:[%s1482] sm:%s3] %v1481
    %s1484 = smul.addr 2, 215
    %s1485 = scalar_lea.vmem %s0, %s1484
    %v1486 = vld [vmem:[%s1485] sm:%s3]
    %s1487 = scalar_lea.vmem [#allocation0], 1720
    %1488 = vst [vmem:[%s1487] sm:%s3] %v1486
    %s1489 = smul.addr 2, 214
    %s1490 = scalar_lea.vmem %s0, %s1489
    %v1491 = vld [vmem:[%s1490] sm:%s3]
    %s1492 = scalar_lea.vmem [#allocation0], 1712
    %1493 = vst [vmem:[%s1492] sm:%s3] %v1491
    %s1494 = smul.addr 2, 213
    %s1495 = scalar_lea.vmem %s0, %s1494
    %v1496 = vld [vmem:[%s1495] sm:%s3]
    %s1497 = scalar_lea.vmem [#allocation0], 1704
    %1498 = vst [vmem:[%s1497] sm:%s3] %v1496
    %s1499 = smul.addr 2, 212
    %s1500 = scalar_lea.vmem %s0, %s1499
    %v1501 = vld [vmem:[%s1500] sm:%s3]
    %s1502 = scalar_lea.vmem [#allocation0], 1696
    %1503 = vst [vmem:[%s1502] sm:%s3] %v1501
    %s1504 = smul.addr 2, 211
    %s1505 = scalar_lea.vmem %s0, %s1504
    %v1506 = vld [vmem:[%s1505] sm:%s3]
    %s1507 = scalar_lea.vmem [#allocation0], 1688
    %1508 = vst [vmem:[%s1507] sm:%s3] %v1506
    %s1509 = smul.addr 2, 210
    %s1510 = scalar_lea.vmem %s0, %s1509
    %v1511 = vld [vmem:[%s1510] sm:%s3]
    %s1512 = scalar_lea.vmem [#allocation0], 1680
    %1513 = vst [vmem:[%s1512] sm:%s3] %v1511
    %s1514 = smul.addr 2, 209
    %s1515 = scalar_lea.vmem %s0, %s1514
    %v1516 = vld [vmem:[%s1515] sm:%s3]
    %s1517 = scalar_lea.vmem [#allocation0], 1672
    %1518 = vst [vmem:[%s1517] sm:%s3] %v1516
    %s1519 = smul.addr 2, 208
    %s1520 = scalar_lea.vmem %s0, %s1519
    %v1521 = vld [vmem:[%s1520] sm:%s3]
    %s1522 = scalar_lea.vmem [#allocation0], 1664
    %1523 = vst [vmem:[%s1522] sm:%s3] %v1521
    %s1524 = smul.addr 2, 207
    %s1525 = scalar_lea.vmem %s0, %s1524
    %v1526 = vld [vmem:[%s1525] sm:%s3]
    %s1527 = scalar_lea.vmem [#allocation0], 1656
    %1528 = vst [vmem:[%s1527] sm:%s3] %v1526
    %s1529 = smul.addr 2, 206
    %s1530 = scalar_lea.vmem %s0, %s1529
    %v1531 = vld [vmem:[%s1530] sm:%s3]
    %s1532 = scalar_lea.vmem [#allocation0], 1648
    %1533 = vst [vmem:[%s1532] sm:%s3] %v1531
    %s1534 = smul.addr 2, 205
    %s1535 = scalar_lea.vmem %s0, %s1534
    %v1536 = vld [vmem:[%s1535] sm:%s3]
    %s1537 = scalar_lea.vmem [#allocation0], 1640
    %1538 = vst [vmem:[%s1537] sm:%s3] %v1536
    %s1539 = smul.addr 2, 204
    %s1540 = scalar_lea.vmem %s0, %s1539
    %v1541 = vld [vmem:[%s1540] sm:%s3]
    %s1542 = scalar_lea.vmem [#allocation0], 1632
    %1543 = vst [vmem:[%s1542] sm:%s3] %v1541
    %s1544 = smul.addr 2, 203
    %s1545 = scalar_lea.vmem %s0, %s1544
    %v1546 = vld [vmem:[%s1545] sm:%s3]
    %s1547 = scalar_lea.vmem [#allocation0], 1624
    %1548 = vst [vmem:[%s1547] sm:%s3] %v1546
    %s1549 = smul.addr 2, 202
    %s1550 = scalar_lea.vmem %s0, %s1549
    %v1551 = vld [vmem:[%s1550] sm:%s3]
    %s1552 = scalar_lea.vmem [#allocation0], 1616
    %1553 = vst [vmem:[%s1552] sm:%s3] %v1551
    %s1554 = smul.addr 2, 201
    %s1555 = scalar_lea.vmem %s0, %s1554
    %v1556 = vld [vmem:[%s1555] sm:%s3]
    %s1557 = scalar_lea.vmem [#allocation0], 1608
    %1558 = vst [vmem:[%s1557] sm:%s3] %v1556
    %s1559 = smul.addr 2, 200
    %s1560 = scalar_lea.vmem %s0, %s1559
    %v1561 = vld [vmem:[%s1560] sm:%s3]
    %s1562 = scalar_lea.vmem [#allocation0], 1600
    %1563 = vst [vmem:[%s1562] sm:%s3] %v1561
    %s1564 = smul.addr 2, 199
    %s1565 = scalar_lea.vmem %s0, %s1564
    %v1566 = vld [vmem:[%s1565] sm:%s3]
    %s1567 = scalar_lea.vmem [#allocation0], 1592
    %1568 = vst [vmem:[%s1567] sm:%s3] %v1566
    %s1569 = smul.addr 2, 198
    %s1570 = scalar_lea.vmem %s0, %s1569
    %v1571 = vld [vmem:[%s1570] sm:%s3]
    %s1572 = scalar_lea.vmem [#allocation0], 1584
    %1573 = vst [vmem:[%s1572] sm:%s3] %v1571
    %s1574 = smul.addr 2, 197
    %s1575 = scalar_lea.vmem %s0, %s1574
    %v1576 = vld [vmem:[%s1575] sm:%s3]
    %s1577 = scalar_lea.vmem [#allocation0], 1576
    %1578 = vst [vmem:[%s1577] sm:%s3] %v1576
    %s1579 = smul.addr 2, 196
    %s1580 = scalar_lea.vmem %s0, %s1579
    %v1581 = vld [vmem:[%s1580] sm:%s3]
    %s1582 = scalar_lea.vmem [#allocation0], 1568
    %1583 = vst [vmem:[%s1582] sm:%s3] %v1581
    %s1584 = smul.addr 2, 195
    %s1585 = scalar_lea.vmem %s0, %s1584
    %v1586 = vld [vmem:[%s1585] sm:%s3]
    %s1587 = scalar_lea.vmem [#allocation0], 1560
    %1588 = vst [vmem:[%s1587] sm:%s3] %v1586
    %s1589 = smul.addr 2, 194
    %s1590 = scalar_lea.vmem %s0, %s1589
    %v1591 = vld [vmem:[%s1590] sm:%s3]
    %s1592 = scalar_lea.vmem [#allocation0], 1552
    %1593 = vst [vmem:[%s1592] sm:%s3] %v1591
    %s1594 = smul.addr 2, 193
    %s1595 = scalar_lea.vmem %s0, %s1594
    %v1596 = vld [vmem:[%s1595] sm:%s3]
    %s1597 = scalar_lea.vmem [#allocation0], 1544
    %1598 = vst [vmem:[%s1597] sm:%s3] %v1596
    %s1599 = smul.addr 2, 192
    %s1600 = scalar_lea.vmem %s0, %s1599
    %v1601 = vld [vmem:[%s1600] sm:%s3]
    %s1602 = scalar_lea.vmem [#allocation0], 1536
    %1603 = vst [vmem:[%s1602] sm:%s3] %v1601
    %s1604 = smul.addr 2, 191
    %s1605 = scalar_lea.vmem %s0, %s1604
    %v1606 = vld [vmem:[%s1605] sm:%s3]
    %s1607 = scalar_lea.vmem [#allocation0], 1528
    %1608 = vst [vmem:[%s1607] sm:%s3] %v1606
    %s1609 = smul.addr 2, 190
    %s1610 = scalar_lea.vmem %s0, %s1609
    %v1611 = vld [vmem:[%s1610] sm:%s3]
    %s1612 = scalar_lea.vmem [#allocation0], 1520
    %1613 = vst [vmem:[%s1612] sm:%s3] %v1611
    %s1614 = smul.addr 2, 189
    %s1615 = scalar_lea.vmem %s0, %s1614
    %v1616 = vld [vmem:[%s1615] sm:%s3]
    %s1617 = scalar_lea.vmem [#allocation0], 1512
    %1618 = vst [vmem:[%s1617] sm:%s3] %v1616
    %s1619 = smul.addr 2, 188
    %s1620 = scalar_lea.vmem %s0, %s1619
    %v1621 = vld [vmem:[%s1620] sm:%s3]
    %s1622 = scalar_lea.vmem [#allocation0], 1504
    %1623 = vst [vmem:[%s1622] sm:%s3] %v1621
    %s1624 = smul.addr 2, 187
    %s1625 = scalar_lea.vmem %s0, %s1624
    %v1626 = vld [vmem:[%s1625] sm:%s3]
    %s1627 = scalar_lea.vmem [#allocation0], 1496
    %1628 = vst [vmem:[%s1627] sm:%s3] %v1626
    %s1629 = smul.addr 2, 186
    %s1630 = scalar_lea.vmem %s0, %s1629
    %v1631 = vld [vmem:[%s1630] sm:%s3]
    %s1632 = scalar_lea.vmem [#allocation0], 1488
    %1633 = vst [vmem:[%s1632] sm:%s3] %v1631
    %s1634 = smul.addr 2, 185
    %s1635 = scalar_lea.vmem %s0, %s1634
    %v1636 = vld [vmem:[%s1635] sm:%s3]
    %s1637 = scalar_lea.vmem [#allocation0], 1480
    %1638 = vst [vmem:[%s1637] sm:%s3] %v1636
    %s1639 = smul.addr 2, 184
    %s1640 = scalar_lea.vmem %s0, %s1639
    %v1641 = vld [vmem:[%s1640] sm:%s3]
    %s1642 = scalar_lea.vmem [#allocation0], 1472
    %1643 = vst [vmem:[%s1642] sm:%s3] %v1641
    %s1644 = smul.addr 2, 183
    %s1645 = scalar_lea.vmem %s0, %s1644
    %v1646 = vld [vmem:[%s1645] sm:%s3]
    %s1647 = scalar_lea.vmem [#allocation0], 1464
    %1648 = vst [vmem:[%s1647] sm:%s3] %v1646
    %s1649 = smul.addr 2, 182
    %s1650 = scalar_lea.vmem %s0, %s1649
    %v1651 = vld [vmem:[%s1650] sm:%s3]
    %s1652 = scalar_lea.vmem [#allocation0], 1456
    %1653 = vst [vmem:[%s1652] sm:%s3] %v1651
    %s1654 = smul.addr 2, 181
    %s1655 = scalar_lea.vmem %s0, %s1654
    %v1656 = vld [vmem:[%s1655] sm:%s3]
    %s1657 = scalar_lea.vmem [#allocation0], 1448
    %1658 = vst [vmem:[%s1657] sm:%s3] %v1656
    %s1659 = smul.addr 2, 180
    %s1660 = scalar_lea.vmem %s0, %s1659
    %v1661 = vld [vmem:[%s1660] sm:%s3]
    %s1662 = scalar_lea.vmem [#allocation0], 1440
    %1663 = vst [vmem:[%s1662] sm:%s3] %v1661
    %s1664 = smul.addr 2, 179
    %s1665 = scalar_lea.vmem %s0, %s1664
    %v1666 = vld [vmem:[%s1665] sm:%s3]
    %s1667 = scalar_lea.vmem [#allocation0], 1432
    %1668 = vst [vmem:[%s1667] sm:%s3] %v1666
    %s1669 = smul.addr 2, 178
    %s1670 = scalar_lea.vmem %s0, %s1669
    %v1671 = vld [vmem:[%s1670] sm:%s3]
    %s1672 = scalar_lea.vmem [#allocation0], 1424
    %1673 = vst [vmem:[%s1672] sm:%s3] %v1671
    %s1674 = smul.addr 2, 177
    %s1675 = scalar_lea.vmem %s0, %s1674
    %v1676 = vld [vmem:[%s1675] sm:%s3]
    %s1677 = scalar_lea.vmem [#allocation0], 1416
    %1678 = vst [vmem:[%s1677] sm:%s3] %v1676
    %s1679 = smul.addr 2, 176
    %s1680 = scalar_lea.vmem %s0, %s1679
    %v1681 = vld [vmem:[%s1680] sm:%s3]
    %s1682 = scalar_lea.vmem [#allocation0], 1408
    %1683 = vst [vmem:[%s1682] sm:%s3] %v1681
    %s1684 = smul.addr 2, 175
    %s1685 = scalar_lea.vmem %s0, %s1684
    %v1686 = vld [vmem:[%s1685] sm:%s3]
    %s1687 = scalar_lea.vmem [#allocation0], 1400
    %1688 = vst [vmem:[%s1687] sm:%s3] %v1686
    %s1689 = smul.addr 2, 174
    %s1690 = scalar_lea.vmem %s0, %s1689
    %v1691 = vld [vmem:[%s1690] sm:%s3]
    %s1692 = scalar_lea.vmem [#allocation0], 1392
    %1693 = vst [vmem:[%s1692] sm:%s3] %v1691
    %s1694 = smul.addr 2, 173
    %s1695 = scalar_lea.vmem %s0, %s1694
    %v1696 = vld [vmem:[%s1695] sm:%s3]
    %s1697 = scalar_lea.vmem [#allocation0], 1384
    %1698 = vst [vmem:[%s1697] sm:%s3] %v1696
    %s1699 = smul.addr 2, 172
    %s1700 = scalar_lea.vmem %s0, %s1699
    %v1701 = vld [vmem:[%s1700] sm:%s3]
    %s1702 = scalar_lea.vmem [#allocation0], 1376
    %1703 = vst [vmem:[%s1702] sm:%s3] %v1701
    %s1704 = smul.addr 2, 171
    %s1705 = scalar_lea.vmem %s0, %s1704
    %v1706 = vld [vmem:[%s1705] sm:%s3]
    %s1707 = scalar_lea.vmem [#allocation0], 1368
    %1708 = vst [vmem:[%s1707] sm:%s3] %v1706
    %s1709 = smul.addr 2, 170
    %s1710 = scalar_lea.vmem %s0, %s1709
    %v1711 = vld [vmem:[%s1710] sm:%s3]
    %s1712 = scalar_lea.vmem [#allocation0], 1360
    %1713 = vst [vmem:[%s1712] sm:%s3] %v1711
    %s1714 = smul.addr 2, 169
    %s1715 = scalar_lea.vmem %s0, %s1714
    %v1716 = vld [vmem:[%s1715] sm:%s3]
    %s1717 = scalar_lea.vmem [#allocation0], 1352
    %1718 = vst [vmem:[%s1717] sm:%s3] %v1716
    %s1719 = smul.addr 2, 168
    %s1720 = scalar_lea.vmem %s0, %s1719
    %v1721 = vld [vmem:[%s1720] sm:%s3]
    %s1722 = scalar_lea.vmem [#allocation0], 1344
    %1723 = vst [vmem:[%s1722] sm:%s3] %v1721
    %s1724 = smul.addr 2, 167
    %s1725 = scalar_lea.vmem %s0, %s1724
    %v1726 = vld [vmem:[%s1725] sm:%s3]
    %s1727 = scalar_lea.vmem [#allocation0], 1336
    %1728 = vst [vmem:[%s1727] sm:%s3] %v1726
    %s1729 = smul.addr 2, 166
    %s1730 = scalar_lea.vmem %s0, %s1729
    %v1731 = vld [vmem:[%s1730] sm:%s3]
    %s1732 = scalar_lea.vmem [#allocation0], 1328
    %1733 = vst [vmem:[%s1732] sm:%s3] %v1731
    %s1734 = smul.addr 2, 165
    %s1735 = scalar_lea.vmem %s0, %s1734
    %v1736 = vld [vmem:[%s1735] sm:%s3]
    %s1737 = scalar_lea.vmem [#allocation0], 1320
    %1738 = vst [vmem:[%s1737] sm:%s3] %v1736
    %s1739 = smul.addr 2, 164
    %s1740 = scalar_lea.vmem %s0, %s1739
    %v1741 = vld [vmem:[%s1740] sm:%s3]
    %s1742 = scalar_lea.vmem [#allocation0], 1312
    %1743 = vst [vmem:[%s1742] sm:%s3] %v1741
    %s1744 = smul.addr 2, 163
    %s1745 = scalar_lea.vmem %s0, %s1744
    %v1746 = vld [vmem:[%s1745] sm:%s3]
    %s1747 = scalar_lea.vmem [#allocation0], 1304
    %1748 = vst [vmem:[%s1747] sm:%s3] %v1746
    %s1749 = smul.addr 2, 162
    %s1750 = scalar_lea.vmem %s0, %s1749
    %v1751 = vld [vmem:[%s1750] sm:%s3]
    %s1752 = scalar_lea.vmem [#allocation0], 1296
    %1753 = vst [vmem:[%s1752] sm:%s3] %v1751
    %s1754 = smul.addr 2, 161
    %s1755 = scalar_lea.vmem %s0, %s1754
    %v1756 = vld [vmem:[%s1755] sm:%s3]
    %s1757 = scalar_lea.vmem [#allocation0], 1288
    %1758 = vst [vmem:[%s1757] sm:%s3] %v1756
    %s1759 = smul.addr 2, 160
    %s1760 = scalar_lea.vmem %s0, %s1759
    %v1761 = vld [vmem:[%s1760] sm:%s3]
    %s1762 = scalar_lea.vmem [#allocation0], 1280
    %1763 = vst [vmem:[%s1762] sm:%s3] %v1761
    %s1764 = smul.addr 2, 159
    %s1765 = scalar_lea.vmem %s0, %s1764
    %v1766 = vld [vmem:[%s1765] sm:%s3]
    %s1767 = scalar_lea.vmem [#allocation0], 1272
    %1768 = vst [vmem:[%s1767] sm:%s3] %v1766
    %s1769 = smul.addr 2, 158
    %s1770 = scalar_lea.vmem %s0, %s1769
    %v1771 = vld [vmem:[%s1770] sm:%s3]
    %s1772 = scalar_lea.vmem [#allocation0], 1264
    %1773 = vst [vmem:[%s1772] sm:%s3] %v1771
    %s1774 = smul.addr 2, 157
    %s1775 = scalar_lea.vmem %s0, %s1774
    %v1776 = vld [vmem:[%s1775] sm:%s3]
    %s1777 = scalar_lea.vmem [#allocation0], 1256
    %1778 = vst [vmem:[%s1777] sm:%s3] %v1776
    %s1779 = smul.addr 2, 156
    %s1780 = scalar_lea.vmem %s0, %s1779
    %v1781 = vld [vmem:[%s1780] sm:%s3]
    %s1782 = scalar_lea.vmem [#allocation0], 1248
    %1783 = vst [vmem:[%s1782] sm:%s3] %v1781
    %s1784 = smul.addr 2, 155
    %s1785 = scalar_lea.vmem %s0, %s1784
    %v1786 = vld [vmem:[%s1785] sm:%s3]
    %s1787 = scalar_lea.vmem [#allocation0], 1240
    %1788 = vst [vmem:[%s1787] sm:%s3] %v1786
    %s1789 = smul.addr 2, 154
    %s1790 = scalar_lea.vmem %s0, %s1789
    %v1791 = vld [vmem:[%s1790] sm:%s3]
    %s1792 = scalar_lea.vmem [#allocation0], 1232
    %1793 = vst [vmem:[%s1792] sm:%s3] %v1791
    %s1794 = smul.addr 2, 153
    %s1795 = scalar_lea.vmem %s0, %s1794
    %v1796 = vld [vmem:[%s1795] sm:%s3]
    %s1797 = scalar_lea.vmem [#allocation0], 1224
    %1798 = vst [vmem:[%s1797] sm:%s3] %v1796
    %s1799 = smul.addr 2, 152
    %s1800 = scalar_lea.vmem %s0, %s1799
    %v1801 = vld [vmem:[%s1800] sm:%s3]
    %s1802 = scalar_lea.vmem [#allocation0], 1216
    %1803 = vst [vmem:[%s1802] sm:%s3] %v1801
    %s1804 = smul.addr 2, 151
    %s1805 = scalar_lea.vmem %s0, %s1804
    %v1806 = vld [vmem:[%s1805] sm:%s3]
    %s1807 = scalar_lea.vmem [#allocation0], 1208
    %1808 = vst [vmem:[%s1807] sm:%s3] %v1806
    %s1809 = smul.addr 2, 150
    %s1810 = scalar_lea.vmem %s0, %s1809
    %v1811 = vld [vmem:[%s1810] sm:%s3]
    %s1812 = scalar_lea.vmem [#allocation0], 1200
    %1813 = vst [vmem:[%s1812] sm:%s3] %v1811
    %s1814 = smul.addr 2, 149
    %s1815 = scalar_lea.vmem %s0, %s1814
    %v1816 = vld [vmem:[%s1815] sm:%s3]
    %s1817 = scalar_lea.vmem [#allocation0], 1192
    %1818 = vst [vmem:[%s1817] sm:%s3] %v1816
    %s1819 = smul.addr 2, 148
    %s1820 = scalar_lea.vmem %s0, %s1819
    %v1821 = vld [vmem:[%s1820] sm:%s3]
    %s1822 = scalar_lea.vmem [#allocation0], 1184
    %1823 = vst [vmem:[%s1822] sm:%s3] %v1821
    %s1824 = smul.addr 2, 147
    %s1825 = scalar_lea.vmem %s0, %s1824
    %v1826 = vld [vmem:[%s1825] sm:%s3]
    %s1827 = scalar_lea.vmem [#allocation0], 1176
    %1828 = vst [vmem:[%s1827] sm:%s3] %v1826
    %s1829 = smul.addr 2, 146
    %s1830 = scalar_lea.vmem %s0, %s1829
    %v1831 = vld [vmem:[%s1830] sm:%s3]
    %s1832 = scalar_lea.vmem [#allocation0], 1168
    %1833 = vst [vmem:[%s1832] sm:%s3] %v1831
    %s1834 = smul.addr 2, 145
    %s1835 = scalar_lea.vmem %s0, %s1834
    %v1836 = vld [vmem:[%s1835] sm:%s3]
    %s1837 = scalar_lea.vmem [#allocation0], 1160
    %1838 = vst [vmem:[%s1837] sm:%s3] %v1836
    %s1839 = smul.addr 2, 144
    %s1840 = scalar_lea.vmem %s0, %s1839
    %v1841 = vld [vmem:[%s1840] sm:%s3]
    %s1842 = scalar_lea.vmem [#allocation0], 1152
    %1843 = vst [vmem:[%s1842] sm:%s3] %v1841
    %s1844 = smul.addr 2, 143
    %s1845 = scalar_lea.vmem %s0, %s1844
    %v1846 = vld [vmem:[%s1845] sm:%s3]
    %s1847 = scalar_lea.vmem [#allocation0], 1144
    %1848 = vst [vmem:[%s1847] sm:%s3] %v1846
    %s1849 = smul.addr 2, 142
    %s1850 = scalar_lea.vmem %s0, %s1849
    %v1851 = vld [vmem:[%s1850] sm:%s3]
    %s1852 = scalar_lea.vmem [#allocation0], 1136
    %1853 = vst [vmem:[%s1852] sm:%s3] %v1851
    %s1854 = smul.addr 2, 141
    %s1855 = scalar_lea.vmem %s0, %s1854
    %v1856 = vld [vmem:[%s1855] sm:%s3]
    %s1857 = scalar_lea.vmem [#allocation0], 1128
    %1858 = vst [vmem:[%s1857] sm:%s3] %v1856
    %s1859 = smul.addr 2, 140
    %s1860 = scalar_lea.vmem %s0, %s1859
    %v1861 = vld [vmem:[%s1860] sm:%s3]
    %s1862 = scalar_lea.vmem [#allocation0], 1120
    %1863 = vst [vmem:[%s1862] sm:%s3] %v1861
    %s1864 = smul.addr 2, 139
    %s1865 = scalar_lea.vmem %s0, %s1864
    %v1866 = vld [vmem:[%s1865] sm:%s3]
    %s1867 = scalar_lea.vmem [#allocation0], 1112
    %1868 = vst [vmem:[%s1867] sm:%s3] %v1866
    %s1869 = smul.addr 2, 138
    %s1870 = scalar_lea.vmem %s0, %s1869
    %v1871 = vld [vmem:[%s1870] sm:%s3]
    %s1872 = scalar_lea.vmem [#allocation0], 1104
    %1873 = vst [vmem:[%s1872] sm:%s3] %v1871
    %s1874 = smul.addr 2, 137
    %s1875 = scalar_lea.vmem %s0, %s1874
    %v1876 = vld [vmem:[%s1875] sm:%s3]
    %s1877 = scalar_lea.vmem [#allocation0], 1096
    %1878 = vst [vmem:[%s1877] sm:%s3] %v1876
    %s1879 = smul.addr 2, 136
    %s1880 = scalar_lea.vmem %s0, %s1879
    %v1881 = vld [vmem:[%s1880] sm:%s3]
    %s1882 = scalar_lea.vmem [#allocation0], 1088
    %1883 = vst [vmem:[%s1882] sm:%s3] %v1881
    %s1884 = smul.addr 2, 135
    %s1885 = scalar_lea.vmem %s0, %s1884
    %v1886 = vld [vmem:[%s1885] sm:%s3]
    %s1887 = scalar_lea.vmem [#allocation0], 1080
    %1888 = vst [vmem:[%s1887] sm:%s3] %v1886
    %s1889 = smul.addr 2, 134
    %s1890 = scalar_lea.vmem %s0, %s1889
    %v1891 = vld [vmem:[%s1890] sm:%s3]
    %s1892 = scalar_lea.vmem [#allocation0], 1072
    %1893 = vst [vmem:[%s1892] sm:%s3] %v1891
    %s1894 = smul.addr 2, 133
    %s1895 = scalar_lea.vmem %s0, %s1894
    %v1896 = vld [vmem:[%s1895] sm:%s3]
    %s1897 = scalar_lea.vmem [#allocation0], 1064
    %1898 = vst [vmem:[%s1897] sm:%s3] %v1896
    %s1899 = smul.addr 2, 132
    %s1900 = scalar_lea.vmem %s0, %s1899
    %v1901 = vld [vmem:[%s1900] sm:%s3]
    %s1902 = scalar_lea.vmem [#allocation0], 1056
    %1903 = vst [vmem:[%s1902] sm:%s3] %v1901
    %s1904 = smul.addr 2, 131
    %s1905 = scalar_lea.vmem %s0, %s1904
    %v1906 = vld [vmem:[%s1905] sm:%s3]
    %s1907 = scalar_lea.vmem [#allocation0], 1048
    %1908 = vst [vmem:[%s1907] sm:%s3] %v1906
    %s1909 = smul.addr 2, 130
    %s1910 = scalar_lea.vmem %s0, %s1909
    %v1911 = vld [vmem:[%s1910] sm:%s3]
    %s1912 = scalar_lea.vmem [#allocation0], 1040
    %1913 = vst [vmem:[%s1912] sm:%s3] %v1911
    %s1914 = smul.addr 2, 129
    %s1915 = scalar_lea.vmem %s0, %s1914
    %v1916 = vld [vmem:[%s1915] sm:%s3]
    %s1917 = scalar_lea.vmem [#allocation0], 1032
    %1918 = vst [vmem:[%s1917] sm:%s3] %v1916
    %s1919 = smul.addr 2, 128
    %s1920 = scalar_lea.vmem %s0, %s1919
    %v1921 = vld [vmem:[%s1920] sm:%s3]
    %s1922 = scalar_lea.vmem [#allocation0], 1024
    %1923 = vst [vmem:[%s1922] sm:%s3] %v1921
    %s1924 = smul.addr 2, 127
    %s1925 = scalar_lea.vmem %s0, %s1924
    %v1926 = vld [vmem:[%s1925] sm:%s3]
    %s1927 = scalar_lea.vmem [#allocation0], 1016
    %1928 = vst [vmem:[%s1927] sm:%s3] %v1926
    %s1929 = smul.addr 2, 126
    %s1930 = scalar_lea.vmem %s0, %s1929
    %v1931 = vld [vmem:[%s1930] sm:%s3]
    %s1932 = scalar_lea.vmem [#allocation0], 1008
    %1933 = vst [vmem:[%s1932] sm:%s3] %v1931
    %s1934 = smul.addr 2, 125
    %s1935 = scalar_lea.vmem %s0, %s1934
    %v1936 = vld [vmem:[%s1935] sm:%s3]
    %s1937 = scalar_lea.vmem [#allocation0], 1000
    %1938 = vst [vmem:[%s1937] sm:%s3] %v1936
    %s1939 = smul.addr 2, 124
    %s1940 = scalar_lea.vmem %s0, %s1939
    %v1941 = vld [vmem:[%s1940] sm:%s3]
    %s1942 = scalar_lea.vmem [#allocation0], 992
    %1943 = vst [vmem:[%s1942] sm:%s3] %v1941
    %s1944 = smul.addr 2, 123
    %s1945 = scalar_lea.vmem %s0, %s1944
    %v1946 = vld [vmem:[%s1945] sm:%s3]
    %s1947 = scalar_lea.vmem [#allocation0], 984
    %1948 = vst [vmem:[%s1947] sm:%s3] %v1946
    %s1949 = smul.addr 2, 122
    %s1950 = scalar_lea.vmem %s0, %s1949
    %v1951 = vld [vmem:[%s1950] sm:%s3]
    %s1952 = scalar_lea.vmem [#allocation0], 976
    %1953 = vst [vmem:[%s1952] sm:%s3] %v1951
    %s1954 = smul.addr 2, 121
    %s1955 = scalar_lea.vmem %s0, %s1954
    %v1956 = vld [vmem:[%s1955] sm:%s3]
    %s1957 = scalar_lea.vmem [#allocation0], 968
    %1958 = vst [vmem:[%s1957] sm:%s3] %v1956
    %s1959 = smul.addr 2, 120
    %s1960 = scalar_lea.vmem %s0, %s1959
    %v1961 = vld [vmem:[%s1960] sm:%s3]
    %s1962 = scalar_lea.vmem [#allocation0], 960
    %1963 = vst [vmem:[%s1962] sm:%s3] %v1961
    %s1964 = smul.addr 2, 119
    %s1965 = scalar_lea.vmem %s0, %s1964
    %v1966 = vld [vmem:[%s1965] sm:%s3]
    %s1967 = scalar_lea.vmem [#allocation0], 952
    %1968 = vst [vmem:[%s1967] sm:%s3] %v1966
    %s1969 = smul.addr 2, 118
    %s1970 = scalar_lea.vmem %s0, %s1969
    %v1971 = vld [vmem:[%s1970] sm:%s3]
    %s1972 = scalar_lea.vmem [#allocation0], 944
    %1973 = vst [vmem:[%s1972] sm:%s3] %v1971
    %s1974 = smul.addr 2, 117
    %s1975 = scalar_lea.vmem %s0, %s1974
    %v1976 = vld [vmem:[%s1975] sm:%s3]
    %s1977 = scalar_lea.vmem [#allocation0], 936
    %1978 = vst [vmem:[%s1977] sm:%s3] %v1976
    %s1979 = smul.addr 2, 116
    %s1980 = scalar_lea.vmem %s0, %s1979
    %v1981 = vld [vmem:[%s1980] sm:%s3]
    %s1982 = scalar_lea.vmem [#allocation0], 928
    %1983 = vst [vmem:[%s1982] sm:%s3] %v1981
    %s1984 = smul.addr 2, 115
    %s1985 = scalar_lea.vmem %s0, %s1984
    %v1986 = vld [vmem:[%s1985] sm:%s3]
    %s1987 = scalar_lea.vmem [#allocation0], 920
    %1988 = vst [vmem:[%s1987] sm:%s3] %v1986
    %s1989 = smul.addr 2, 114
    %s1990 = scalar_lea.vmem %s0, %s1989
    %v1991 = vld [vmem:[%s1990] sm:%s3]
    %s1992 = scalar_lea.vmem [#allocation0], 912
    %1993 = vst [vmem:[%s1992] sm:%s3] %v1991
    %s1994 = smul.addr 2, 113
    %s1995 = scalar_lea.vmem %s0, %s1994
    %v1996 = vld [vmem:[%s1995] sm:%s3]
    %s1997 = scalar_lea.vmem [#allocation0], 904
    %1998 = vst [vmem:[%s1997] sm:%s3] %v1996
    %s1999 = smul.addr 2, 112
    %s2000 = scalar_lea.vmem %s0, %s1999
    %v2001 = vld [vmem:[%s2000] sm:%s3]
    %s2002 = scalar_lea.vmem [#allocation0], 896
    %2003 = vst [vmem:[%s2002] sm:%s3] %v2001
    %s2004 = smul.addr 2, 111
    %s2005 = scalar_lea.vmem %s0, %s2004
    %v2006 = vld [vmem:[%s2005] sm:%s3]
    %s2007 = scalar_lea.vmem [#allocation0], 888
    %2008 = vst [vmem:[%s2007] sm:%s3] %v2006
    %s2009 = smul.addr 2, 110
    %s2010 = scalar_lea.vmem %s0, %s2009
    %v2011 = vld [vmem:[%s2010] sm:%s3]
    %s2012 = scalar_lea.vmem [#allocation0], 880
    %2013 = vst [vmem:[%s2012] sm:%s3] %v2011
    %s2014 = smul.addr 2, 109
    %s2015 = scalar_lea.vmem %s0, %s2014
    %v2016 = vld [vmem:[%s2015] sm:%s3]
    %s2017 = scalar_lea.vmem [#allocation0], 872
    %2018 = vst [vmem:[%s2017] sm:%s3] %v2016
    %s2019 = smul.addr 2, 108
    %s2020 = scalar_lea.vmem %s0, %s2019
    %v2021 = vld [vmem:[%s2020] sm:%s3]
    %s2022 = scalar_lea.vmem [#allocation0], 864
    %2023 = vst [vmem:[%s2022] sm:%s3] %v2021
    %s2024 = smul.addr 2, 107
    %s2025 = scalar_lea.vmem %s0, %s2024
    %v2026 = vld [vmem:[%s2025] sm:%s3]
    %s2027 = scalar_lea.vmem [#allocation0], 856
    %2028 = vst [vmem:[%s2027] sm:%s3] %v2026
    %s2029 = smul.addr 2, 106
    %s2030 = scalar_lea.vmem %s0, %s2029
    %v2031 = vld [vmem:[%s2030] sm:%s3]
    %s2032 = scalar_lea.vmem [#allocation0], 848
    %2033 = vst [vmem:[%s2032] sm:%s3] %v2031
    %s2034 = smul.addr 2, 105
    %s2035 = scalar_lea.vmem %s0, %s2034
    %v2036 = vld [vmem:[%s2035] sm:%s3]
    %s2037 = scalar_lea.vmem [#allocation0], 840
    %2038 = vst [vmem:[%s2037] sm:%s3] %v2036
    %s2039 = smul.addr 2, 104
    %s2040 = scalar_lea.vmem %s0, %s2039
    %v2041 = vld [vmem:[%s2040] sm:%s3]
    %s2042 = scalar_lea.vmem [#allocation0], 832
    %2043 = vst [vmem:[%s2042] sm:%s3] %v2041
    %s2044 = smul.addr 2, 103
    %s2045 = scalar_lea.vmem %s0, %s2044
    %v2046 = vld [vmem:[%s2045] sm:%s3]
    %s2047 = scalar_lea.vmem [#allocation0], 824
    %2048 = vst [vmem:[%s2047] sm:%s3] %v2046
    %s2049 = smul.addr 2, 102
    %s2050 = scalar_lea.vmem %s0, %s2049
    %v2051 = vld [vmem:[%s2050] sm:%s3]
    %s2052 = scalar_lea.vmem [#allocation0], 816
    %2053 = vst [vmem:[%s2052] sm:%s3] %v2051
    %s2054 = smul.addr 2, 101
    %s2055 = scalar_lea.vmem %s0, %s2054
    %v2056 = vld [vmem:[%s2055] sm:%s3]
    %s2057 = scalar_lea.vmem [#allocation0], 808
    %2058 = vst [vmem:[%s2057] sm:%s3] %v2056
    %s2059 = smul.addr 2, 100
    %s2060 = scalar_lea.vmem %s0, %s2059
    %v2061 = vld [vmem:[%s2060] sm:%s3]
    %s2062 = scalar_lea.vmem [#allocation0], 800
    %2063 = vst [vmem:[%s2062] sm:%s3] %v2061
    %s2064 = smul.addr 2, 99
    %s2065 = scalar_lea.vmem %s0, %s2064
    %v2066 = vld [vmem:[%s2065] sm:%s3]
    %s2067 = scalar_lea.vmem [#allocation0], 792
    %2068 = vst [vmem:[%s2067] sm:%s3] %v2066
    %s2069 = smul.addr 2, 98
    %s2070 = scalar_lea.vmem %s0, %s2069
    %v2071 = vld [vmem:[%s2070] sm:%s3]
    %s2072 = scalar_lea.vmem [#allocation0], 784
    %2073 = vst [vmem:[%s2072] sm:%s3] %v2071
    %s2074 = smul.addr 2, 97
    %s2075 = scalar_lea.vmem %s0, %s2074
    %v2076 = vld [vmem:[%s2075] sm:%s3]
    %s2077 = scalar_lea.vmem [#allocation0], 776
    %2078 = vst [vmem:[%s2077] sm:%s3] %v2076
    %s2079 = smul.addr 2, 96
    %s2080 = scalar_lea.vmem %s0, %s2079
    %v2081 = vld [vmem:[%s2080] sm:%s3]
    %s2082 = scalar_lea.vmem [#allocation0], 768
    %2083 = vst [vmem:[%s2082] sm:%s3] %v2081
    %s2084 = smul.addr 2, 95
    %s2085 = scalar_lea.vmem %s0, %s2084
    %v2086 = vld [vmem:[%s2085] sm:%s3]
    %s2087 = scalar_lea.vmem [#allocation0], 760
    %2088 = vst [vmem:[%s2087] sm:%s3] %v2086
    %s2089 = smul.addr 2, 94
    %s2090 = scalar_lea.vmem %s0, %s2089
    %v2091 = vld [vmem:[%s2090] sm:%s3]
    %s2092 = scalar_lea.vmem [#allocation0], 752
    %2093 = vst [vmem:[%s2092] sm:%s3] %v2091
    %s2094 = smul.addr 2, 93
    %s2095 = scalar_lea.vmem %s0, %s2094
    %v2096 = vld [vmem:[%s2095] sm:%s3]
    %s2097 = scalar_lea.vmem [#allocation0], 744
    %2098 = vst [vmem:[%s2097] sm:%s3] %v2096
    %s2099 = smul.addr 2, 92
    %s2100 = scalar_lea.vmem %s0, %s2099
    %v2101 = vld [vmem:[%s2100] sm:%s3]
    %s2102 = scalar_lea.vmem [#allocation0], 736
    %2103 = vst [vmem:[%s2102] sm:%s3] %v2101
    %s2104 = smul.addr 2, 91
    %s2105 = scalar_lea.vmem %s0, %s2104
    %v2106 = vld [vmem:[%s2105] sm:%s3]
    %s2107 = scalar_lea.vmem [#allocation0], 728
    %2108 = vst [vmem:[%s2107] sm:%s3] %v2106
    %s2109 = smul.addr 2, 90
    %s2110 = scalar_lea.vmem %s0, %s2109
    %v2111 = vld [vmem:[%s2110] sm:%s3]
    %s2112 = scalar_lea.vmem [#allocation0], 720
    %2113 = vst [vmem:[%s2112] sm:%s3] %v2111
    %s2114 = smul.addr 2, 89
    %s2115 = scalar_lea.vmem %s0, %s2114
    %v2116 = vld [vmem:[%s2115] sm:%s3]
    %s2117 = scalar_lea.vmem [#allocation0], 712
    %2118 = vst [vmem:[%s2117] sm:%s3] %v2116
    %s2119 = smul.addr 2, 88
    %s2120 = scalar_lea.vmem %s0, %s2119
    %v2121 = vld [vmem:[%s2120] sm:%s3]
    %s2122 = scalar_lea.vmem [#allocation0], 704
    %2123 = vst [vmem:[%s2122] sm:%s3] %v2121
    %s2124 = smul.addr 2, 87
    %s2125 = scalar_lea.vmem %s0, %s2124
    %v2126 = vld [vmem:[%s2125] sm:%s3]
    %s2127 = scalar_lea.vmem [#allocation0], 696
    %2128 = vst [vmem:[%s2127] sm:%s3] %v2126
    %s2129 = smul.addr 2, 86
    %s2130 = scalar_lea.vmem %s0, %s2129
    %v2131 = vld [vmem:[%s2130] sm:%s3]
    %s2132 = scalar_lea.vmem [#allocation0], 688
    %2133 = vst [vmem:[%s2132] sm:%s3] %v2131
    %s2134 = smul.addr 2, 85
    %s2135 = scalar_lea.vmem %s0, %s2134
    %v2136 = vld [vmem:[%s2135] sm:%s3]
    %s2137 = scalar_lea.vmem [#allocation0], 680
    %2138 = vst [vmem:[%s2137] sm:%s3] %v2136
    %s2139 = smul.addr 2, 84
    %s2140 = scalar_lea.vmem %s0, %s2139
    %v2141 = vld [vmem:[%s2140] sm:%s3]
    %s2142 = scalar_lea.vmem [#allocation0], 672
    %2143 = vst [vmem:[%s2142] sm:%s3] %v2141
    %s2144 = smul.addr 2, 83
    %s2145 = scalar_lea.vmem %s0, %s2144
    %v2146 = vld [vmem:[%s2145] sm:%s3]
    %s2147 = scalar_lea.vmem [#allocation0], 664
    %2148 = vst [vmem:[%s2147] sm:%s3] %v2146
    %s2149 = smul.addr 2, 82
    %s2150 = scalar_lea.vmem %s0, %s2149
    %v2151 = vld [vmem:[%s2150] sm:%s3]
    %s2152 = scalar_lea.vmem [#allocation0], 656
    %2153 = vst [vmem:[%s2152] sm:%s3] %v2151
    %s2154 = smul.addr 2, 81
    %s2155 = scalar_lea.vmem %s0, %s2154
    %v2156 = vld [vmem:[%s2155] sm:%s3]
    %s2157 = scalar_lea.vmem [#allocation0], 648
    %2158 = vst [vmem:[%s2157] sm:%s3] %v2156
    %s2159 = smul.addr 2, 80
    %s2160 = scalar_lea.vmem %s0, %s2159
    %v2161 = vld [vmem:[%s2160] sm:%s3]
    %s2162 = scalar_lea.vmem [#allocation0], 640
    %2163 = vst [vmem:[%s2162] sm:%s3] %v2161
    %s2164 = smul.addr 2, 79
    %s2165 = scalar_lea.vmem %s0, %s2164
    %v2166 = vld [vmem:[%s2165] sm:%s3]
    %s2167 = scalar_lea.vmem [#allocation0], 632
    %2168 = vst [vmem:[%s2167] sm:%s3] %v2166
    %s2169 = smul.addr 2, 78
    %s2170 = scalar_lea.vmem %s0, %s2169
    %v2171 = vld [vmem:[%s2170] sm:%s3]
    %s2172 = scalar_lea.vmem [#allocation0], 624
    %2173 = vst [vmem:[%s2172] sm:%s3] %v2171
    %s2174 = smul.addr 2, 77
    %s2175 = scalar_lea.vmem %s0, %s2174
    %v2176 = vld [vmem:[%s2175] sm:%s3]
    %s2177 = scalar_lea.vmem [#allocation0], 616
    %2178 = vst [vmem:[%s2177] sm:%s3] %v2176
    %s2179 = smul.addr 2, 76
    %s2180 = scalar_lea.vmem %s0, %s2179
    %v2181 = vld [vmem:[%s2180] sm:%s3]
    %s2182 = scalar_lea.vmem [#allocation0], 608
    %2183 = vst [vmem:[%s2182] sm:%s3] %v2181
    %s2184 = smul.addr 2, 75
    %s2185 = scalar_lea.vmem %s0, %s2184
    %v2186 = vld [vmem:[%s2185] sm:%s3]
    %s2187 = scalar_lea.vmem [#allocation0], 600
    %2188 = vst [vmem:[%s2187] sm:%s3] %v2186
    %s2189 = smul.addr 2, 74
    %s2190 = scalar_lea.vmem %s0, %s2189
    %v2191 = vld [vmem:[%s2190] sm:%s3]
    %s2192 = scalar_lea.vmem [#allocation0], 592
    %2193 = vst [vmem:[%s2192] sm:%s3] %v2191
    %s2194 = smul.addr 2, 73
    %s2195 = scalar_lea.vmem %s0, %s2194
    %v2196 = vld [vmem:[%s2195] sm:%s3]
    %s2197 = scalar_lea.vmem [#allocation0], 584
    %2198 = vst [vmem:[%s2197] sm:%s3] %v2196
    %s2199 = smul.addr 2, 72
    %s2200 = scalar_lea.vmem %s0, %s2199
    %v2201 = vld [vmem:[%s2200] sm:%s3]
    %s2202 = scalar_lea.vmem [#allocation0], 576
    %2203 = vst [vmem:[%s2202] sm:%s3] %v2201
    %s2204 = smul.addr 2, 71
    %s2205 = scalar_lea.vmem %s0, %s2204
    %v2206 = vld [vmem:[%s2205] sm:%s3]
    %s2207 = scalar_lea.vmem [#allocation0], 568
    %2208 = vst [vmem:[%s2207] sm:%s3] %v2206
    %s2209 = smul.addr 2, 70
    %s2210 = scalar_lea.vmem %s0, %s2209
    %v2211 = vld [vmem:[%s2210] sm:%s3]
    %s2212 = scalar_lea.vmem [#allocation0], 560
    %2213 = vst [vmem:[%s2212] sm:%s3] %v2211
    %s2214 = smul.addr 2, 69
    %s2215 = scalar_lea.vmem %s0, %s2214
    %v2216 = vld [vmem:[%s2215] sm:%s3]
    %s2217 = scalar_lea.vmem [#allocation0], 552
    %2218 = vst [vmem:[%s2217] sm:%s3] %v2216
    %s2219 = smul.addr 2, 68
    %s2220 = scalar_lea.vmem %s0, %s2219
    %v2221 = vld [vmem:[%s2220] sm:%s3]
    %s2222 = scalar_lea.vmem [#allocation0], 544
    %2223 = vst [vmem:[%s2222] sm:%s3] %v2221
    %s2224 = smul.addr 2, 67
    %s2225 = scalar_lea.vmem %s0, %s2224
    %v2226 = vld [vmem:[%s2225] sm:%s3]
    %s2227 = scalar_lea.vmem [#allocation0], 536
    %2228 = vst [vmem:[%s2227] sm:%s3] %v2226
    %s2229 = smul.addr 2, 66
    %s2230 = scalar_lea.vmem %s0, %s2229
    %v2231 = vld [vmem:[%s2230] sm:%s3]
    %s2232 = scalar_lea.vmem [#allocation0], 528
    %2233 = vst [vmem:[%s2232] sm:%s3] %v2231
    %s2234 = smul.addr 2, 65
    %s2235 = scalar_lea.vmem %s0, %s2234
    %v2236 = vld [vmem:[%s2235] sm:%s3]
    %s2237 = scalar_lea.vmem [#allocation0], 520
    %2238 = vst [vmem:[%s2237] sm:%s3] %v2236
    %s2239 = smul.addr 2, 64
    %s2240 = scalar_lea.vmem %s0, %s2239
    %v2241 = vld [vmem:[%s2240] sm:%s3]
    %s2242 = scalar_lea.vmem [#allocation0], 512
    %2243 = vst [vmem:[%s2242] sm:%s3] %v2241
    %s2244 = smul.addr 2, 63
    %s2245 = scalar_lea.vmem %s0, %s2244
    %v2246 = vld [vmem:[%s2245] sm:%s3]
    %s2247 = scalar_lea.vmem [#allocation0], 504
    %2248 = vst [vmem:[%s2247] sm:%s3] %v2246
    %s2249 = smul.addr 2, 62
    %s2250 = scalar_lea.vmem %s0, %s2249
    %v2251 = vld [vmem:[%s2250] sm:%s3]
    %s2252 = scalar_lea.vmem [#allocation0], 496
    %2253 = vst [vmem:[%s2252] sm:%s3] %v2251
    %s2254 = smul.addr 2, 61
    %s2255 = scalar_lea.vmem %s0, %s2254
    %v2256 = vld [vmem:[%s2255] sm:%s3]
    %s2257 = scalar_lea.vmem [#allocation0], 488
    %2258 = vst [vmem:[%s2257] sm:%s3] %v2256
    %s2259 = smul.addr 2, 60
    %s2260 = scalar_lea.vmem %s0, %s2259
    %v2261 = vld [vmem:[%s2260] sm:%s3]
    %s2262 = scalar_lea.vmem [#allocation0], 480
    %2263 = vst [vmem:[%s2262] sm:%s3] %v2261
    %s2264 = smul.addr 2, 59
    %s2265 = scalar_lea.vmem %s0, %s2264
    %v2266 = vld [vmem:[%s2265] sm:%s3]
    %s2267 = scalar_lea.vmem [#allocation0], 472
    %2268 = vst [vmem:[%s2267] sm:%s3] %v2266
    %s2269 = smul.addr 2, 58
    %s2270 = scalar_lea.vmem %s0, %s2269
    %v2271 = vld [vmem:[%s2270] sm:%s3]
    %s2272 = scalar_lea.vmem [#allocation0], 464
    %2273 = vst [vmem:[%s2272] sm:%s3] %v2271
    %s2274 = smul.addr 2, 57
    %s2275 = scalar_lea.vmem %s0, %s2274
    %v2276 = vld [vmem:[%s2275] sm:%s3]
    %s2277 = scalar_lea.vmem [#allocation0], 456
    %2278 = vst [vmem:[%s2277] sm:%s3] %v2276
    %s2279 = smul.addr 2, 56
    %s2280 = scalar_lea.vmem %s0, %s2279
    %v2281 = vld [vmem:[%s2280] sm:%s3]
    %s2282 = scalar_lea.vmem [#allocation0], 448
    %2283 = vst [vmem:[%s2282] sm:%s3] %v2281
    %s2284 = smul.addr 2, 55
    %s2285 = scalar_lea.vmem %s0, %s2284
    %v2286 = vld [vmem:[%s2285] sm:%s3]
    %s2287 = scalar_lea.vmem [#allocation0], 440
    %2288 = vst [vmem:[%s2287] sm:%s3] %v2286
    %s2289 = smul.addr 2, 54
    %s2290 = scalar_lea.vmem %s0, %s2289
    %v2291 = vld [vmem:[%s2290] sm:%s3]
    %s2292 = scalar_lea.vmem [#allocation0], 432
    %2293 = vst [vmem:[%s2292] sm:%s3] %v2291
    %s2294 = smul.addr 2, 53
    %s2295 = scalar_lea.vmem %s0, %s2294
    %v2296 = vld [vmem:[%s2295] sm:%s3]
    %s2297 = scalar_lea.vmem [#allocation0], 424
    %2298 = vst [vmem:[%s2297] sm:%s3] %v2296
    %s2299 = smul.addr 2, 52
    %s2300 = scalar_lea.vmem %s0, %s2299
    %v2301 = vld [vmem:[%s2300] sm:%s3]
    %s2302 = scalar_lea.vmem [#allocation0], 416
    %2303 = vst [vmem:[%s2302] sm:%s3] %v2301
    %s2304 = smul.addr 2, 51
    %s2305 = scalar_lea.vmem %s0, %s2304
    %v2306 = vld [vmem:[%s2305] sm:%s3]
    %s2307 = scalar_lea.vmem [#allocation0], 408
    %2308 = vst [vmem:[%s2307] sm:%s3] %v2306
    %s2309 = smul.addr 2, 50
    %s2310 = scalar_lea.vmem %s0, %s2309
    %v2311 = vld [vmem:[%s2310] sm:%s3]
    %s2312 = scalar_lea.vmem [#allocation0], 400
    %2313 = vst [vmem:[%s2312] sm:%s3] %v2311
    %s2314 = smul.addr 2, 49
    %s2315 = scalar_lea.vmem %s0, %s2314
    %v2316 = vld [vmem:[%s2315] sm:%s3]
    %s2317 = scalar_lea.vmem [#allocation0], 392
    %2318 = vst [vmem:[%s2317] sm:%s3] %v2316
    %s2319 = smul.addr 2, 48
    %s2320 = scalar_lea.vmem %s0, %s2319
    %v2321 = vld [vmem:[%s2320] sm:%s3]
    %s2322 = scalar_lea.vmem [#allocation0], 384
    %2323 = vst [vmem:[%s2322] sm:%s3] %v2321
    %s2324 = smul.addr 2, 47
    %s2325 = scalar_lea.vmem %s0, %s2324
    %v2326 = vld [vmem:[%s2325] sm:%s3]
    %s2327 = scalar_lea.vmem [#allocation0], 376
    %2328 = vst [vmem:[%s2327] sm:%s3] %v2326
    %s2329 = smul.addr 2, 46
    %s2330 = scalar_lea.vmem %s0, %s2329
    %v2331 = vld [vmem:[%s2330] sm:%s3]
    %s2332 = scalar_lea.vmem [#allocation0], 368
    %2333 = vst [vmem:[%s2332] sm:%s3] %v2331
    %s2334 = smul.addr 2, 45
    %s2335 = scalar_lea.vmem %s0, %s2334
    %v2336 = vld [vmem:[%s2335] sm:%s3]
    %s2337 = scalar_lea.vmem [#allocation0], 360
    %2338 = vst [vmem:[%s2337] sm:%s3] %v2336
    %s2339 = smul.addr 2, 44
    %s2340 = scalar_lea.vmem %s0, %s2339
    %v2341 = vld [vmem:[%s2340] sm:%s3]
    %s2342 = scalar_lea.vmem [#allocation0], 352
    %2343 = vst [vmem:[%s2342] sm:%s3] %v2341
    %s2344 = smul.addr 2, 43
    %s2345 = scalar_lea.vmem %s0, %s2344
    %v2346 = vld [vmem:[%s2345] sm:%s3]
    %s2347 = scalar_lea.vmem [#allocation0], 344
    %2348 = vst [vmem:[%s2347] sm:%s3] %v2346
    %s2349 = smul.addr 2, 42
    %s2350 = scalar_lea.vmem %s0, %s2349
    %v2351 = vld [vmem:[%s2350] sm:%s3]
    %s2352 = scalar_lea.vmem [#allocation0], 336
    %2353 = vst [vmem:[%s2352] sm:%s3] %v2351
    %s2354 = smul.addr 2, 41
    %s2355 = scalar_lea.vmem %s0, %s2354
    %v2356 = vld [vmem:[%s2355] sm:%s3]
    %s2357 = scalar_lea.vmem [#allocation0], 328
    %2358 = vst [vmem:[%s2357] sm:%s3] %v2356
    %s2359 = smul.addr 2, 40
    %s2360 = scalar_lea.vmem %s0, %s2359
    %v2361 = vld [vmem:[%s2360] sm:%s3]
    %s2362 = scalar_lea.vmem [#allocation0], 320
    %2363 = vst [vmem:[%s2362] sm:%s3] %v2361
    %s2364 = smul.addr 2, 39
    %s2365 = scalar_lea.vmem %s0, %s2364
    %v2366 = vld [vmem:[%s2365] sm:%s3]
    %s2367 = scalar_lea.vmem [#allocation0], 312
    %2368 = vst [vmem:[%s2367] sm:%s3] %v2366
    %s2369 = smul.addr 2, 38
    %s2370 = scalar_lea.vmem %s0, %s2369
    %v2371 = vld [vmem:[%s2370] sm:%s3]
    %s2372 = scalar_lea.vmem [#allocation0], 304
    %2373 = vst [vmem:[%s2372] sm:%s3] %v2371
    %s2374 = smul.addr 2, 37
    %s2375 = scalar_lea.vmem %s0, %s2374
    %v2376 = vld [vmem:[%s2375] sm:%s3]
    %s2377 = scalar_lea.vmem [#allocation0], 296
    %2378 = vst [vmem:[%s2377] sm:%s3] %v2376
    %s2379 = smul.addr 2, 36
    %s2380 = scalar_lea.vmem %s0, %s2379
    %v2381 = vld [vmem:[%s2380] sm:%s3]
    %s2382 = scalar_lea.vmem [#allocation0], 288
    %2383 = vst [vmem:[%s2382] sm:%s3] %v2381
    %s2384 = smul.addr 2, 35
    %s2385 = scalar_lea.vmem %s0, %s2384
    %v2386 = vld [vmem:[%s2385] sm:%s3]
    %s2387 = scalar_lea.vmem [#allocation0], 280
    %2388 = vst [vmem:[%s2387] sm:%s3] %v2386
    %s2389 = smul.addr 2, 34
    %s2390 = scalar_lea.vmem %s0, %s2389
    %v2391 = vld [vmem:[%s2390] sm:%s3]
    %s2392 = scalar_lea.vmem [#allocation0], 272
    %2393 = vst [vmem:[%s2392] sm:%s3] %v2391
    %s2394 = smul.addr 2, 33
    %s2395 = scalar_lea.vmem %s0, %s2394
    %v2396 = vld [vmem:[%s2395] sm:%s3]
    %s2397 = scalar_lea.vmem [#allocation0], 264
    %2398 = vst [vmem:[%s2397] sm:%s3] %v2396
    %s2399 = smul.addr 2, 32
    %s2400 = scalar_lea.vmem %s0, %s2399
    %v2401 = vld [vmem:[%s2400] sm:%s3]
    %s2402 = scalar_lea.vmem [#allocation0], 256
    %2403 = vst [vmem:[%s2402] sm:%s3] %v2401
    %s2404 = smul.addr 2, 31
    %s2405 = scalar_lea.vmem %s0, %s2404
    %v2406 = vld [vmem:[%s2405] sm:%s3]
    %s2407 = scalar_lea.vmem [#allocation0], 248
    %2408 = vst [vmem:[%s2407] sm:%s3] %v2406
    %s2409 = smul.addr 2, 30
    %s2410 = scalar_lea.vmem %s0, %s2409
    %v2411 = vld [vmem:[%s2410] sm:%s3]
    %s2412 = scalar_lea.vmem [#allocation0], 240
    %2413 = vst [vmem:[%s2412] sm:%s3] %v2411
    %s2414 = smul.addr 2, 29
    %s2415 = scalar_lea.vmem %s0, %s2414
    %v2416 = vld [vmem:[%s2415] sm:%s3]
    %s2417 = scalar_lea.vmem [#allocation0], 232
    %2418 = vst [vmem:[%s2417] sm:%s3] %v2416
    %s2419 = smul.addr 2, 28
    %s2420 = scalar_lea.vmem %s0, %s2419
    %v2421 = vld [vmem:[%s2420] sm:%s3]
    %s2422 = scalar_lea.vmem [#allocation0], 224
    %2423 = vst [vmem:[%s2422] sm:%s3] %v2421
    %s2424 = smul.addr 2, 27
    %s2425 = scalar_lea.vmem %s0, %s2424
    %v2426 = vld [vmem:[%s2425] sm:%s3]
    %s2427 = scalar_lea.vmem [#allocation0], 216
    %2428 = vst [vmem:[%s2427] sm:%s3] %v2426
    %s2429 = smul.addr 2, 26
    %s2430 = scalar_lea.vmem %s0, %s2429
    %v2431 = vld [vmem:[%s2430] sm:%s3]
    %s2432 = scalar_lea.vmem [#allocation0], 208
    %2433 = vst [vmem:[%s2432] sm:%s3] %v2431
    %s2434 = smul.addr 2, 25
    %s2435 = scalar_lea.vmem %s0, %s2434
    %v2436 = vld [vmem:[%s2435] sm:%s3]
    %s2437 = scalar_lea.vmem [#allocation0], 200
    %2438 = vst [vmem:[%s2437] sm:%s3] %v2436
    %s2439 = smul.addr 2, 24
    %s2440 = scalar_lea.vmem %s0, %s2439
    %v2441 = vld [vmem:[%s2440] sm:%s3]
    %s2442 = scalar_lea.vmem [#allocation0], 192
    %2443 = vst [vmem:[%s2442] sm:%s3] %v2441
    %s2444 = smul.addr 2, 23
    %s2445 = scalar_lea.vmem %s0, %s2444
    %v2446 = vld [vmem:[%s2445] sm:%s3]
    %s2447 = scalar_lea.vmem [#allocation0], 184
    %2448 = vst [vmem:[%s2447] sm:%s3] %v2446
    %s2449 = smul.addr 2, 22
    %s2450 = scalar_lea.vmem %s0, %s2449
    %v2451 = vld [vmem:[%s2450] sm:%s3]
    %s2452 = scalar_lea.vmem [#allocation0], 176
    %2453 = vst [vmem:[%s2452] sm:%s3] %v2451
    %s2454 = smul.addr 2, 21
    %s2455 = scalar_lea.vmem %s0, %s2454
    %v2456 = vld [vmem:[%s2455] sm:%s3]
    %s2457 = scalar_lea.vmem [#allocation0], 168
    %2458 = vst [vmem:[%s2457] sm:%s3] %v2456
    %s2459 = smul.addr 2, 20
    %s2460 = scalar_lea.vmem %s0, %s2459
    %v2461 = vld [vmem:[%s2460] sm:%s3]
    %s2462 = scalar_lea.vmem [#allocation0], 160
    %2463 = vst [vmem:[%s2462] sm:%s3] %v2461
    %s2464 = smul.addr 2, 19
    %s2465 = scalar_lea.vmem %s0, %s2464
    %v2466 = vld [vmem:[%s2465] sm:%s3]
    %s2467 = scalar_lea.vmem [#allocation0], 152
    %2468 = vst [vmem:[%s2467] sm:%s3] %v2466
    %s2469 = smul.addr 2, 18
    %s2470 = scalar_lea.vmem %s0, %s2469
    %v2471 = vld [vmem:[%s2470] sm:%s3]
    %s2472 = scalar_lea.vmem [#allocation0], 144
    %2473 = vst [vmem:[%s2472] sm:%s3] %v2471
    %s2474 = smul.addr 2, 17
    %s2475 = scalar_lea.vmem %s0, %s2474
    %v2476 = vld [vmem:[%s2475] sm:%s3]
    %s2477 = scalar_lea.vmem [#allocation0], 136
    %2478 = vst [vmem:[%s2477] sm:%s3] %v2476
    %s2479 = smul.addr 2, 16
    %s2480 = scalar_lea.vmem %s0, %s2479
    %v2481 = vld [vmem:[%s2480] sm:%s3]
    %s2482 = scalar_lea.vmem [#allocation0], 128
    %2483 = vst [vmem:[%s2482] sm:%s3] %v2481
    %s2484 = smul.addr 2, 15
    %s2485 = scalar_lea.vmem %s0, %s2484
    %v2486 = vld [vmem:[%s2485] sm:%s3]
    %s2487 = scalar_lea.vmem [#allocation0], 120
    %2488 = vst [vmem:[%s2487] sm:%s3] %v2486
    %s2489 = smul.addr 2, 14
    %s2490 = scalar_lea.vmem %s0, %s2489
    %v2491 = vld [vmem:[%s2490] sm:%s3]
    %s2492 = scalar_lea.vmem [#allocation0], 112
    %2493 = vst [vmem:[%s2492] sm:%s3] %v2491
    %s2494 = smul.addr 2, 13
    %s2495 = scalar_lea.vmem %s0, %s2494
    %v2496 = vld [vmem:[%s2495] sm:%s3]
    %s2497 = scalar_lea.vmem [#allocation0], 104
    %2498 = vst [vmem:[%s2497] sm:%s3] %v2496
    %s2499 = smul.addr 2, 12
    %s2500 = scalar_lea.vmem %s0, %s2499
    %v2501 = vld [vmem:[%s2500] sm:%s3]
    %s2502 = scalar_lea.vmem [#allocation0], 96
    %2503 = vst [vmem:[%s2502] sm:%s3] %v2501
    %s2504 = smul.addr 2, 11
    %s2505 = scalar_lea.vmem %s0, %s2504
    %v2506 = vld [vmem:[%s2505] sm:%s3]
    %s2507 = scalar_lea.vmem [#allocation0], 88
    %2508 = vst [vmem:[%s2507] sm:%s3] %v2506
    %s2509 = smul.addr 2, 10
    %s2510 = scalar_lea.vmem %s0, %s2509
    %v2511 = vld [vmem:[%s2510] sm:%s3]
    %s2512 = scalar_lea.vmem [#allocation0], 80
    %2513 = vst [vmem:[%s2512] sm:%s3] %v2511
    %s2514 = smul.addr 2, 9
    %s2515 = scalar_lea.vmem %s0, %s2514
    %v2516 = vld [vmem:[%s2515] sm:%s3]
    %s2517 = scalar_lea.vmem [#allocation0], 72
    %2518 = vst [vmem:[%s2517] sm:%s3] %v2516
    %s2519 = smul.addr 2, 8
    %s2520 = scalar_lea.vmem %s0, %s2519
    %v2521 = vld [vmem:[%s2520] sm:%s3]
    %s2522 = scalar_lea.vmem [#allocation0], 64
    %2523 = vst [vmem:[%s2522] sm:%s3] %v2521
    %s2524 = smul.addr 2, 7
    %s2525 = scalar_lea.vmem %s0, %s2524
    %v2526 = vld [vmem:[%s2525] sm:%s3]
    %s2527 = scalar_lea.vmem [#allocation0], 56
    %2528 = vst [vmem:[%s2527] sm:%s3] %v2526
    %s2529 = smul.addr 2, 6
    %s2530 = scalar_lea.vmem %s0, %s2529
    %v2531 = vld [vmem:[%s2530] sm:%s3]
    %s2532 = scalar_lea.vmem [#allocation0], 48
    %2533 = vst [vmem:[%s2532] sm:%s3] %v2531
    %s2534 = smul.addr 2, 5
    %s2535 = scalar_lea.vmem %s0, %s2534
    %v2536 = vld [vmem:[%s2535] sm:%s3]
    %s2537 = scalar_lea.vmem [#allocation0], 40
    %2538 = vst [vmem:[%s2537] sm:%s3] %v2536
    %s2539 = smul.addr 2, 4
    %s2540 = scalar_lea.vmem %s0, %s2539
    %v2541 = vld [vmem:[%s2540] sm:%s3]
    %s2542 = scalar_lea.vmem [#allocation0], 32
    %2543 = vst [vmem:[%s2542] sm:%s3] %v2541
    %s2544 = smul.addr 2, 3
    %s2545 = scalar_lea.vmem %s0, %s2544
    %v2546 = vld [vmem:[%s2545] sm:%s3]
    %s2547 = scalar_lea.vmem [#allocation0], 24
    %2548 = vst [vmem:[%s2547] sm:%s3] %v2546
    %s2549 = smul.addr 2, 2
    %s2550 = scalar_lea.vmem %s0, %s2549
    %v2551 = vld [vmem:[%s2550] sm:%s3]
    %s2552 = scalar_lea.vmem [#allocation0], 16
    %2553 = vst [vmem:[%s2552] sm:%s3] %v2551
    %s2554 = scalar_lea.vmem %s0, 2
    %v2555 = vld [vmem:[%s2554] sm:%s3]
    %s2556 = scalar_lea.vmem [#allocation0], 8
    %2557 = vst [vmem:[%s2556] sm:%s3] %v2555
    %v2558 = vld [vmem:[%s0] sm:%s3]
    %2559 = vst [vmem:[#allocation0] sm:%s3] %v2558
    %v2560 = vld [vmem:[#allocation0] ss:$8 sm:$0xf]
    %v2561 = vld [vmem:[#allocation0] ss:$8 sm:$0xf0]
    %vm2562 = vcmask 1047556
    %v2563 = vsel %vm2562, %v2561, %v2560
    %vm2564 = vcmask 523264
    %2565 = vst.msk [vmem:[%s1] sm:$0xff] %vm2564, %v2563
    %s2566 = scalar_lea.vmem [#allocation0], 64
    %v2567 = vld [vmem:[%s2566] ss:$8 sm:$0xf]
    %s2568 = scalar_lea.vmem [#allocation0], 64
    %v2569 = vld [vmem:[%s2568] ss:$8 sm:$0xf0]
    %vm2570 = vcmask 1047556
    %v2571 = vsel %vm2570, %v2569, %v2567
    %vm2572 = vcmask 523264
    %s2573 = scalar_lea.vmem %s1, 8
    %2574 = vst.msk [vmem:[%s2573] sm:$0xff] %vm2572, %v2571
    %s2575 = scalar_lea.vmem [#allocation0], 128
    %v2576 = vld [vmem:[%s2575] ss:$8 sm:$0xf]
    %s2577 = scalar_lea.vmem [#allocation0], 128
    %v2578 = vld [vmem:[%s2577] ss:$8 sm:$0xf0]
    %vm2579 = vcmask 1047556
    %v2580 = vsel %vm2579, %v2578, %v2576
    %vm2581 = vcmask 523264
    %s2582 = scalar_lea.vmem %s1, 16
    %2583 = vst.msk [vmem:[%s2582] sm:$0xff] %vm2581, %v2580
    %s2584 = scalar_lea.vmem [#allocation0], 192
    %v2585 = vld [vmem:[%s2584] ss:$8 sm:$0xf]
    %s2586 = scalar_lea.vmem [#allocation0], 192
    %v2587 = vld [vmem:[%s2586] ss:$8 sm:$0xf0]
    %vm2588 = vcmask 1047556
    %v2589 = vsel %vm2588, %v2587, %v2585
    %vm2590 = vcmask 523264
    %s2591 = scalar_lea.vmem %s1, 24
    %2592 = vst.msk [vmem:[%s2591] sm:$0xff] %vm2590, %v2589
    %s2593 = scalar_lea.vmem [#allocation0], 256
    %v2594 = vld [vmem:[%s2593] ss:$8 sm:$0xf]
    %s2595 = scalar_lea.vmem [#allocation0], 256
    %v2596 = vld [vmem:[%s2595] ss:$8 sm:$0xf0]
    %vm2597 = vcmask 1047556
    %v2598 = vsel %vm2597, %v2596, %v2594
    %vm2599 = vcmask 523264
    %s2600 = scalar_lea.vmem %s1, 32
    %2601 = vst.msk [vmem:[%s2600] sm:$0xff] %vm2599, %v2598
    %s2602 = scalar_lea.vmem [#allocation0], 320
    %v2603 = vld [vmem:[%s2602] ss:$8 sm:$0xf]
    %s2604 = scalar_lea.vmem [#allocation0], 320
    %v2605 = vld [vmem:[%s2604] ss:$8 sm:$0xf0]
    %vm2606 = vcmask 1047556
    %v2607 = vsel %vm2606, %v2605, %v2603
    %vm2608 = vcmask 523264
    %s2609 = scalar_lea.vmem %s1, 40
    %2610 = vst.msk [vmem:[%s2609] sm:$0xff] %vm2608, %v2607
    %s2611 = scalar_lea.vmem [#allocation0], 384
    %v2612 = vld [vmem:[%s2611] ss:$8 sm:$0xf]
    %s2613 = scalar_lea.vmem [#allocation0], 384
    %v2614 = vld [vmem:[%s2613] ss:$8 sm:$0xf0]
    %vm2615 = vcmask 1047556
    %v2616 = vsel %vm2615, %v2614, %v2612
    %vm2617 = vcmask 523264
    %s2618 = scalar_lea.vmem %s1, 48
    %2619 = vst.msk [vmem:[%s2618] sm:$0xff] %vm2617, %v2616
    %s2620 = scalar_lea.vmem [#allocation0], 448
    %v2621 = vld [vmem:[%s2620] ss:$8 sm:$0xf]
    %s2622 = scalar_lea.vmem [#allocation0], 448
    %v2623 = vld [vmem:[%s2622] ss:$8 sm:$0xf0]
    %vm2624 = vcmask 1047556
    %v2625 = vsel %vm2624, %v2623, %v2621
    %vm2626 = vcmask 523264
    %s2627 = scalar_lea.vmem %s1, 56
    %2628 = vst.msk [vmem:[%s2627] sm:$0xff] %vm2626, %v2625
    %s2629 = scalar_lea.vmem [#allocation0], 512
    %v2630 = vld [vmem:[%s2629] ss:$8 sm:$0xf]
    %s2631 = scalar_lea.vmem [#allocation0], 512
    %v2632 = vld [vmem:[%s2631] ss:$8 sm:$0xf0]
    %vm2633 = vcmask 1047556
    %v2634 = vsel %vm2633, %v2632, %v2630
    %vm2635 = vcmask 523264
    %s2636 = scalar_lea.vmem %s1, 64
    %2637 = vst.msk [vmem:[%s2636] sm:$0xff] %vm2635, %v2634
    %s2638 = scalar_lea.vmem [#allocation0], 576
    %v2639 = vld [vmem:[%s2638] ss:$8 sm:$0xf]
    %s2640 = scalar_lea.vmem [#allocation0], 576
    %v2641 = vld [vmem:[%s2640] ss:$8 sm:$0xf0]
    %vm2642 = vcmask 1047556
    %v2643 = vsel %vm2642, %v2641, %v2639
    %vm2644 = vcmask 523264
    %s2645 = scalar_lea.vmem %s1, 72
    %2646 = vst.msk [vmem:[%s2645] sm:$0xff] %vm2644, %v2643
    %s2647 = scalar_lea.vmem [#allocation0], 640
    %v2648 = vld [vmem:[%s2647] ss:$8 sm:$0xf]
    %s2649 = scalar_lea.vmem [#allocation0], 640
    %v2650 = vld [vmem:[%s2649] ss:$8 sm:$0xf0]
    %vm2651 = vcmask 1047556
    %v2652 = vsel %vm2651, %v2650, %v2648
    %vm2653 = vcmask 523264
    %s2654 = scalar_lea.vmem %s1, 80
    %2655 = vst.msk [vmem:[%s2654] sm:$0xff] %vm2653, %v2652
    %s2656 = scalar_lea.vmem [#allocation0], 704
    %v2657 = vld [vmem:[%s2656] ss:$8 sm:$0xf]
    %s2658 = scalar_lea.vmem [#allocation0], 704
    %v2659 = vld [vmem:[%s2658] ss:$8 sm:$0xf0]
    %vm2660 = vcmask 1047556
    %v2661 = vsel %vm2660, %v2659, %v2657
    %vm2662 = vcmask 523264
    %s2663 = scalar_lea.vmem %s1, 88
    %2664 = vst.msk [vmem:[%s2663] sm:$0xff] %vm2662, %v2661
    %s2665 = scalar_lea.vmem [#allocation0], 768
    %v2666 = vld [vmem:[%s2665] ss:$8 sm:$0xf]
    %s2667 = scalar_lea.vmem [#allocation0], 768
    %v2668 = vld [vmem:[%s2667] ss:$8 sm:$0xf0]
    %vm2669 = vcmask 1047556
    %v2670 = vsel %vm2669, %v2668, %v2666
    %vm2671 = vcmask 523264
    %s2672 = scalar_lea.vmem %s1, 96
    %2673 = vst.msk [vmem:[%s2672] sm:$0xff] %vm2671, %v2670
    %s2674 = scalar_lea.vmem [#allocation0], 832
    %v2675 = vld [vmem:[%s2674] ss:$8 sm:$0xf]
    %s2676 = scalar_lea.vmem [#allocation0], 832
    %v2677 = vld [vmem:[%s2676] ss:$8 sm:$0xf0]
    %vm2678 = vcmask 1047556
    %v2679 = vsel %vm2678, %v2677, %v2675
    %vm2680 = vcmask 523264
    %s2681 = scalar_lea.vmem %s1, 104
    %2682 = vst.msk [vmem:[%s2681] sm:$0xff] %vm2680, %v2679
    %s2683 = scalar_lea.vmem [#allocation0], 896
    %v2684 = vld [vmem:[%s2683] ss:$8 sm:$0xf]
    %s2685 = scalar_lea.vmem [#allocation0], 896
    %v2686 = vld [vmem:[%s2685] ss:$8 sm:$0xf0]
    %vm2687 = vcmask 1047556
    %v2688 = vsel %vm2687, %v2686, %v2684
    %vm2689 = vcmask 523264
    %s2690 = scalar_lea.vmem %s1, 112
    %2691 = vst.msk [vmem:[%s2690] sm:$0xff] %vm2689, %v2688
    %s2692 = scalar_lea.vmem [#allocation0], 960
    %v2693 = vld [vmem:[%s2692] ss:$8 sm:$0xf]
    %s2694 = scalar_lea.vmem [#allocation0], 960
    %v2695 = vld [vmem:[%s2694] ss:$8 sm:$0xf0]
    %vm2696 = vcmask 1047556
    %v2697 = vsel %vm2696, %v2695, %v2693
    %vm2698 = vcmask 523264
    %s2699 = scalar_lea.vmem %s1, 120
    %2700 = vst.msk [vmem:[%s2699] sm:$0xff] %vm2698, %v2697
    %s2701 = scalar_lea.vmem [#allocation0], 1024
    %v2702 = vld [vmem:[%s2701] ss:$8 sm:$0xf]
    %s2703 = scalar_lea.vmem [#allocation0], 1024
    %v2704 = vld [vmem:[%s2703] ss:$8 sm:$0xf0]
    %vm2705 = vcmask 1047556
    %v2706 = vsel %vm2705, %v2704, %v2702
    %vm2707 = vcmask 523264
    %s2708 = scalar_lea.vmem %s1, 128
    %2709 = vst.msk [vmem:[%s2708] sm:$0xff] %vm2707, %v2706
    %s2710 = scalar_lea.vmem [#allocation0], 1088
    %v2711 = vld [vmem:[%s2710] ss:$8 sm:$0xf]
    %s2712 = scalar_lea.vmem [#allocation0], 1088
    %v2713 = vld [vmem:[%s2712] ss:$8 sm:$0xf0]
    %vm2714 = vcmask 1047556
    %v2715 = vsel %vm2714, %v2713, %v2711
    %vm2716 = vcmask 523264
    %s2717 = scalar_lea.vmem %s1, 136
    %2718 = vst.msk [vmem:[%s2717] sm:$0xff] %vm2716, %v2715
    %s2719 = scalar_lea.vmem [#allocation0], 1152
    %v2720 = vld [vmem:[%s2719] ss:$8 sm:$0xf]
    %s2721 = scalar_lea.vmem [#allocation0], 1152
    %v2722 = vld [vmem:[%s2721] ss:$8 sm:$0xf0]
    %vm2723 = vcmask 1047556
    %v2724 = vsel %vm2723, %v2722, %v2720
    %vm2725 = vcmask 523264
    %s2726 = scalar_lea.vmem %s1, 144
    %2727 = vst.msk [vmem:[%s2726] sm:$0xff] %vm2725, %v2724
    %s2728 = scalar_lea.vmem [#allocation0], 1216
    %v2729 = vld [vmem:[%s2728] ss:$8 sm:$0xf]
    %s2730 = scalar_lea.vmem [#allocation0], 1216
    %v2731 = vld [vmem:[%s2730] ss:$8 sm:$0xf0]
    %vm2732 = vcmask 1047556
    %v2733 = vsel %vm2732, %v2731, %v2729
    %vm2734 = vcmask 523264
    %s2735 = scalar_lea.vmem %s1, 152
    %2736 = vst.msk [vmem:[%s2735] sm:$0xff] %vm2734, %v2733
    %s2737 = scalar_lea.vmem [#allocation0], 1280
    %v2738 = vld [vmem:[%s2737] ss:$8 sm:$0xf]
    %s2739 = scalar_lea.vmem [#allocation0], 1280
    %v2740 = vld [vmem:[%s2739] ss:$8 sm:$0xf0]
    %vm2741 = vcmask 1047556
    %v2742 = vsel %vm2741, %v2740, %v2738
    %vm2743 = vcmask 523264
    %s2744 = scalar_lea.vmem %s1, 160
    %2745 = vst.msk [vmem:[%s2744] sm:$0xff] %vm2743, %v2742
    %s2746 = scalar_lea.vmem [#allocation0], 1344
    %v2747 = vld [vmem:[%s2746] ss:$8 sm:$0xf]
    %s2748 = scalar_lea.vmem [#allocation0], 1344
    %v2749 = vld [vmem:[%s2748] ss:$8 sm:$0xf0]
    %vm2750 = vcmask 1047556
    %v2751 = vsel %vm2750, %v2749, %v2747
    %vm2752 = vcmask 523264
    %s2753 = scalar_lea.vmem %s1, 168
    %2754 = vst.msk [vmem:[%s2753] sm:$0xff] %vm2752, %v2751
    %s2755 = scalar_lea.vmem [#allocation0], 1408
    %v2756 = vld [vmem:[%s2755] ss:$8 sm:$0xf]
    %s2757 = scalar_lea.vmem [#allocation0], 1408
    %v2758 = vld [vmem:[%s2757] ss:$8 sm:$0xf0]
    %vm2759 = vcmask 1047556
    %v2760 = vsel %vm2759, %v2758, %v2756
    %vm2761 = vcmask 523264
    %s2762 = scalar_lea.vmem %s1, 176
    %2763 = vst.msk [vmem:[%s2762] sm:$0xff] %vm2761, %v2760
    %s2764 = scalar_lea.vmem [#allocation0], 1472
    %v2765 = vld [vmem:[%s2764] ss:$8 sm:$0xf]
    %s2766 = scalar_lea.vmem [#allocation0], 1472
    %v2767 = vld [vmem:[%s2766] ss:$8 sm:$0xf0]
    %vm2768 = vcmask 1047556
    %v2769 = vsel %vm2768, %v2767, %v2765
    %vm2770 = vcmask 523264
    %s2771 = scalar_lea.vmem %s1, 184
    %2772 = vst.msk [vmem:[%s2771] sm:$0xff] %vm2770, %v2769
    %s2773 = scalar_lea.vmem [#allocation0], 1536
    %v2774 = vld [vmem:[%s2773] ss:$8 sm:$0xf]
    %s2775 = scalar_lea.vmem [#allocation0], 1536
    %v2776 = vld [vmem:[%s2775] ss:$8 sm:$0xf0]
    %vm2777 = vcmask 1047556
    %v2778 = vsel %vm2777, %v2776, %v2774
    %vm2779 = vcmask 523264
    %s2780 = scalar_lea.vmem %s1, 192
    %2781 = vst.msk [vmem:[%s2780] sm:$0xff] %vm2779, %v2778
    %s2782 = scalar_lea.vmem [#allocation0], 1600
    %v2783 = vld [vmem:[%s2782] ss:$8 sm:$0xf]
    %s2784 = scalar_lea.vmem [#allocation0], 1600
    %v2785 = vld [vmem:[%s2784] ss:$8 sm:$0xf0]
    %vm2786 = vcmask 1047556
    %v2787 = vsel %vm2786, %v2785, %v2783
    %vm2788 = vcmask 523264
    %s2789 = scalar_lea.vmem %s1, 200
    %2790 = vst.msk [vmem:[%s2789] sm:$0xff] %vm2788, %v2787
    %s2791 = scalar_lea.vmem [#allocation0], 1664
    %v2792 = vld [vmem:[%s2791] ss:$8 sm:$0xf]
    %s2793 = scalar_lea.vmem [#allocation0], 1664
    %v2794 = vld [vmem:[%s2793] ss:$8 sm:$0xf0]
    %vm2795 = vcmask 1047556
    %v2796 = vsel %vm2795, %v2794, %v2792
    %vm2797 = vcmask 523264
    %s2798 = scalar_lea.vmem %s1, 208
    %2799 = vst.msk [vmem:[%s2798] sm:$0xff] %vm2797, %v2796
    %s2800 = scalar_lea.vmem [#allocation0], 1728
    %v2801 = vld [vmem:[%s2800] ss:$8 sm:$0xf]
    %s2802 = scalar_lea.vmem [#allocation0], 1728
    %v2803 = vld [vmem:[%s2802] ss:$8 sm:$0xf0]
    %vm2804 = vcmask 1047556
    %v2805 = vsel %vm2804, %v2803, %v2801
    %vm2806 = vcmask 523264
    %s2807 = scalar_lea.vmem %s1, 216
    %2808 = vst.msk [vmem:[%s2807] sm:$0xff] %vm2806, %v2805
    %s2809 = scalar_lea.vmem [#allocation0], 1792
    %v2810 = vld [vmem:[%s2809] ss:$8 sm:$0xf]
    %s2811 = scalar_lea.vmem [#allocation0], 1792
    %v2812 = vld [vmem:[%s2811] ss:$8 sm:$0xf0]
    %vm2813 = vcmask 1047556
    %v2814 = vsel %vm2813, %v2812, %v2810
    %vm2815 = vcmask 523264
    %s2816 = scalar_lea.vmem %s1, 224
    %2817 = vst.msk [vmem:[%s2816] sm:$0xff] %vm2815, %v2814
    %s2818 = scalar_lea.vmem [#allocation0], 1856
    %v2819 = vld [vmem:[%s2818] ss:$8 sm:$0xf]
    %s2820 = scalar_lea.vmem [#allocation0], 1856
    %v2821 = vld [vmem:[%s2820] ss:$8 sm:$0xf0]
    %vm2822 = vcmask 1047556
    %v2823 = vsel %vm2822, %v2821, %v2819
    %vm2824 = vcmask 523264
    %s2825 = scalar_lea.vmem %s1, 232
    %2826 = vst.msk [vmem:[%s2825] sm:$0xff] %vm2824, %v2823
    %s2827 = scalar_lea.vmem [#allocation0], 1920
    %v2828 = vld [vmem:[%s2827] ss:$8 sm:$0xf]
    %s2829 = scalar_lea.vmem [#allocation0], 1920
    %v2830 = vld [vmem:[%s2829] ss:$8 sm:$0xf0]
    %vm2831 = vcmask 1047556
    %v2832 = vsel %vm2831, %v2830, %v2828
    %vm2833 = vcmask 523264
    %s2834 = scalar_lea.vmem %s1, 240
    %2835 = vst.msk [vmem:[%s2834] sm:$0xff] %vm2833, %v2832
    %s2836 = scalar_lea.vmem [#allocation0], 1984
    %v2837 = vld [vmem:[%s2836] ss:$8 sm:$0xf]
    %s2838 = scalar_lea.vmem [#allocation0], 1984
    %v2839 = vld [vmem:[%s2838] ss:$8 sm:$0xf0]
    %vm2840 = vcmask 1047556
    %v2841 = vsel %vm2840, %v2839, %v2837
    %vm2842 = vcmask 523264
    %s2843 = scalar_lea.vmem %s1, 248
    %2844 = vst.msk [vmem:[%s2843] sm:$0xff] %vm2842, %v2841
    %s2845 = scalar_lea.vmem [#allocation0], 2048
    %v2846 = vld [vmem:[%s2845] ss:$8 sm:$0xf]
    %s2847 = scalar_lea.vmem [#allocation0], 2048
    %v2848 = vld [vmem:[%s2847] ss:$8 sm:$0xf0]
    %vm2849 = vcmask 1047556
    %v2850 = vsel %vm2849, %v2848, %v2846
    %vm2851 = vcmask 523264
    %s2852 = scalar_lea.vmem %s1, 256
    %2853 = vst.msk [vmem:[%s2852] sm:$0xff] %vm2851, %v2850
    %s2854 = scalar_lea.vmem [#allocation0], 2112
    %v2855 = vld [vmem:[%s2854] ss:$8 sm:$0xf]
    %s2856 = scalar_lea.vmem [#allocation0], 2112
    %v2857 = vld [vmem:[%s2856] ss:$8 sm:$0xf0]
    %vm2858 = vcmask 1047556
    %v2859 = vsel %vm2858, %v2857, %v2855
    %vm2860 = vcmask 523264
    %s2861 = scalar_lea.vmem %s1, 264
    %2862 = vst.msk [vmem:[%s2861] sm:$0xff] %vm2860, %v2859
    %s2863 = scalar_lea.vmem [#allocation0], 2176
    %v2864 = vld [vmem:[%s2863] ss:$8 sm:$0xf]
    %s2865 = scalar_lea.vmem [#allocation0], 2176
    %v2866 = vld [vmem:[%s2865] ss:$8 sm:$0xf0]
    %vm2867 = vcmask 1047556
    %v2868 = vsel %vm2867, %v2866, %v2864
    %vm2869 = vcmask 523264
    %s2870 = scalar_lea.vmem %s1, 272
    %2871 = vst.msk [vmem:[%s2870] sm:$0xff] %vm2869, %v2868
    %s2872 = scalar_lea.vmem [#allocation0], 2240
    %v2873 = vld [vmem:[%s2872] ss:$8 sm:$0xf]
    %s2874 = scalar_lea.vmem [#allocation0], 2240
    %v2875 = vld [vmem:[%s2874] ss:$8 sm:$0xf0]
    %vm2876 = vcmask 1047556
    %v2877 = vsel %vm2876, %v2875, %v2873
    %vm2878 = vcmask 523264
    %s2879 = scalar_lea.vmem %s1, 280
    %2880 = vst.msk [vmem:[%s2879] sm:$0xff] %vm2878, %v2877
    %s2881 = scalar_lea.vmem [#allocation0], 2304
    %v2882 = vld [vmem:[%s2881] ss:$8 sm:$0xf]
    %s2883 = scalar_lea.vmem [#allocation0], 2304
    %v2884 = vld [vmem:[%s2883] ss:$8 sm:$0xf0]
    %vm2885 = vcmask 1047556
    %v2886 = vsel %vm2885, %v2884, %v2882
    %vm2887 = vcmask 523264
    %s2888 = scalar_lea.vmem %s1, 288
    %2889 = vst.msk [vmem:[%s2888] sm:$0xff] %vm2887, %v2886
    %s2890 = scalar_lea.vmem [#allocation0], 2368
    %v2891 = vld [vmem:[%s2890] ss:$8 sm:$0xf]
    %s2892 = scalar_lea.vmem [#allocation0], 2368
    %v2893 = vld [vmem:[%s2892] ss:$8 sm:$0xf0]
    %vm2894 = vcmask 1047556
    %v2895 = vsel %vm2894, %v2893, %v2891
    %vm2896 = vcmask 523264
    %s2897 = scalar_lea.vmem %s1, 296
    %2898 = vst.msk [vmem:[%s2897] sm:$0xff] %vm2896, %v2895
    %s2899 = scalar_lea.vmem [#allocation0], 2432
    %v2900 = vld [vmem:[%s2899] ss:$8 sm:$0xf]
    %s2901 = scalar_lea.vmem [#allocation0], 2432
    %v2902 = vld [vmem:[%s2901] ss:$8 sm:$0xf0]
    %vm2903 = vcmask 1047556
    %v2904 = vsel %vm2903, %v2902, %v2900
    %vm2905 = vcmask 523264
    %s2906 = scalar_lea.vmem %s1, 304
    %2907 = vst.msk [vmem:[%s2906] sm:$0xff] %vm2905, %v2904
    %s2908 = scalar_lea.vmem [#allocation0], 2496
    %v2909 = vld [vmem:[%s2908] ss:$8 sm:$0xf]
    %s2910 = scalar_lea.vmem [#allocation0], 2496
    %v2911 = vld [vmem:[%s2910] ss:$8 sm:$0xf0]
    %vm2912 = vcmask 1047556
    %v2913 = vsel %vm2912, %v2911, %v2909
    %vm2914 = vcmask 523264
    %s2915 = scalar_lea.vmem %s1, 312
    %2916 = vst.msk [vmem:[%s2915] sm:$0xff] %vm2914, %v2913
    %s2917 = scalar_lea.vmem [#allocation0], 2560
    %v2918 = vld [vmem:[%s2917] ss:$8 sm:$0xf]
    %s2919 = scalar_lea.vmem [#allocation0], 2560
    %v2920 = vld [vmem:[%s2919] ss:$8 sm:$0xf0]
    %vm2921 = vcmask 1047556
    %v2922 = vsel %vm2921, %v2920, %v2918
    %vm2923 = vcmask 523264
    %s2924 = scalar_lea.vmem %s1, 320
    %2925 = vst.msk [vmem:[%s2924] sm:$0xff] %vm2923, %v2922
    %s2926 = scalar_lea.vmem [#allocation0], 2624
    %v2927 = vld [vmem:[%s2926] ss:$8 sm:$0xf]
    %s2928 = scalar_lea.vmem [#allocation0], 2624
    %v2929 = vld [vmem:[%s2928] ss:$8 sm:$0xf0]
    %vm2930 = vcmask 1047556
    %v2931 = vsel %vm2930, %v2929, %v2927
    %vm2932 = vcmask 523264
    %s2933 = scalar_lea.vmem %s1, 328
    %2934 = vst.msk [vmem:[%s2933] sm:$0xff] %vm2932, %v2931
    %s2935 = scalar_lea.vmem [#allocation0], 2688
    %v2936 = vld [vmem:[%s2935] ss:$8 sm:$0xf]
    %s2937 = scalar_lea.vmem [#allocation0], 2688
    %v2938 = vld [vmem:[%s2937] ss:$8 sm:$0xf0]
    %vm2939 = vcmask 1047556
    %v2940 = vsel %vm2939, %v2938, %v2936
    %vm2941 = vcmask 523264
    %s2942 = scalar_lea.vmem %s1, 336
    %2943 = vst.msk [vmem:[%s2942] sm:$0xff] %vm2941, %v2940
    %s2944 = scalar_lea.vmem [#allocation0], 2752
    %v2945 = vld [vmem:[%s2944] ss:$8 sm:$0xf]
    %s2946 = scalar_lea.vmem [#allocation0], 2752
    %v2947 = vld [vmem:[%s2946] ss:$8 sm:$0xf0]
    %vm2948 = vcmask 1047556
    %v2949 = vsel %vm2948, %v2947, %v2945
    %vm2950 = vcmask 523264
    %s2951 = scalar_lea.vmem %s1, 344
    %2952 = vst.msk [vmem:[%s2951] sm:$0xff] %vm2950, %v2949
    %s2953 = scalar_lea.vmem [#allocation0], 2816
    %v2954 = vld [vmem:[%s2953] ss:$8 sm:$0xf]
    %s2955 = scalar_lea.vmem [#allocation0], 2816
    %v2956 = vld [vmem:[%s2955] ss:$8 sm:$0xf0]
    %vm2957 = vcmask 1047556
    %v2958 = vsel %vm2957, %v2956, %v2954
    %vm2959 = vcmask 523264
    %s2960 = scalar_lea.vmem %s1, 352
    %2961 = vst.msk [vmem:[%s2960] sm:$0xff] %vm2959, %v2958
    %s2962 = scalar_lea.vmem [#allocation0], 2880
    %v2963 = vld [vmem:[%s2962] ss:$8 sm:$0xf]
    %s2964 = scalar_lea.vmem [#allocation0], 2880
    %v2965 = vld [vmem:[%s2964] ss:$8 sm:$0xf0]
    %vm2966 = vcmask 1047556
    %v2967 = vsel %vm2966, %v2965, %v2963
    %vm2968 = vcmask 523264
    %s2969 = scalar_lea.vmem %s1, 360
    %2970 = vst.msk [vmem:[%s2969] sm:$0xff] %vm2968, %v2967
    %s2971 = scalar_lea.vmem [#allocation0], 2944
    %v2972 = vld [vmem:[%s2971] ss:$8 sm:$0xf]
    %s2973 = scalar_lea.vmem [#allocation0], 2944
    %v2974 = vld [vmem:[%s2973] ss:$8 sm:$0xf0]
    %vm2975 = vcmask 1047556
    %v2976 = vsel %vm2975, %v2974, %v2972
    %vm2977 = vcmask 523264
    %s2978 = scalar_lea.vmem %s1, 368
    %2979 = vst.msk [vmem:[%s2978] sm:$0xff] %vm2977, %v2976
    %s2980 = scalar_lea.vmem [#allocation0], 3008
    %v2981 = vld [vmem:[%s2980] ss:$8 sm:$0xf]
    %s2982 = scalar_lea.vmem [#allocation0], 3008
    %v2983 = vld [vmem:[%s2982] ss:$8 sm:$0xf0]
    %vm2984 = vcmask 1047556
    %v2985 = vsel %vm2984, %v2983, %v2981
    %vm2986 = vcmask 523264
    %s2987 = scalar_lea.vmem %s1, 376
    %2988 = vst.msk [vmem:[%s2987] sm:$0xff] %vm2986, %v2985
    %s2989 = scalar_lea.vmem [#allocation0], 3072
    %v2990 = vld [vmem:[%s2989] ss:$8 sm:$0xf]
    %s2991 = scalar_lea.vmem [#allocation0], 3072
    %v2992 = vld [vmem:[%s2991] ss:$8 sm:$0xf0]
    %vm2993 = vcmask 1047556
    %v2994 = vsel %vm2993, %v2992, %v2990
    %vm2995 = vcmask 523264
    %s2996 = scalar_lea.vmem %s1, 384
    %2997 = vst.msk [vmem:[%s2996] sm:$0xff] %vm2995, %v2994
    %s2998 = scalar_lea.vmem [#allocation0], 3136
    %v2999 = vld [vmem:[%s2998] ss:$8 sm:$0xf]
    %s3000 = scalar_lea.vmem [#allocation0], 3136
    %v3001 = vld [vmem:[%s3000] ss:$8 sm:$0xf0]
    %vm3002 = vcmask 1047556
    %v3003 = vsel %vm3002, %v3001, %v2999
    %vm3004 = vcmask 523264
    %s3005 = scalar_lea.vmem %s1, 392
    %3006 = vst.msk [vmem:[%s3005] sm:$0xff] %vm3004, %v3003
    %s3007 = scalar_lea.vmem [#allocation0], 3200
    %v3008 = vld [vmem:[%s3007] ss:$8 sm:$0xf]
    %s3009 = scalar_lea.vmem [#allocation0], 3200
    %v3010 = vld [vmem:[%s3009] ss:$8 sm:$0xf0]
    %vm3011 = vcmask 1047556
    %v3012 = vsel %vm3011, %v3010, %v3008
    %vm3013 = vcmask 523264
    %s3014 = scalar_lea.vmem %s1, 400
    %3015 = vst.msk [vmem:[%s3014] sm:$0xff] %vm3013, %v3012
    %s3016 = scalar_lea.vmem [#allocation0], 3264
    %v3017 = vld [vmem:[%s3016] ss:$8 sm:$0xf]
    %s3018 = scalar_lea.vmem [#allocation0], 3264
    %v3019 = vld [vmem:[%s3018] ss:$8 sm:$0xf0]
    %vm3020 = vcmask 1047556
    %v3021 = vsel %vm3020, %v3019, %v3017
    %vm3022 = vcmask 523264
    %s3023 = scalar_lea.vmem %s1, 408
    %3024 = vst.msk [vmem:[%s3023] sm:$0xff] %vm3022, %v3021
    %s3025 = scalar_lea.vmem [#allocation0], 3328
    %v3026 = vld [vmem:[%s3025] ss:$8 sm:$0xf]
    %s3027 = scalar_lea.vmem [#allocation0], 3328
    %v3028 = vld [vmem:[%s3027] ss:$8 sm:$0xf0]
    %vm3029 = vcmask 1047556
    %v3030 = vsel %vm3029, %v3028, %v3026
    %vm3031 = vcmask 523264
    %s3032 = scalar_lea.vmem %s1, 416
    %3033 = vst.msk [vmem:[%s3032] sm:$0xff] %vm3031, %v3030
    %s3034 = scalar_lea.vmem [#allocation0], 3392
    %v3035 = vld [vmem:[%s3034] ss:$8 sm:$0xf]
    %s3036 = scalar_lea.vmem [#allocation0], 3392
    %v3037 = vld [vmem:[%s3036] ss:$8 sm:$0xf0]
    %vm3038 = vcmask 1047556
    %v3039 = vsel %vm3038, %v3037, %v3035
    %vm3040 = vcmask 523264
    %s3041 = scalar_lea.vmem %s1, 424
    %3042 = vst.msk [vmem:[%s3041] sm:$0xff] %vm3040, %v3039
    %s3043 = scalar_lea.vmem [#allocation0], 3456
    %v3044 = vld [vmem:[%s3043] ss:$8 sm:$0xf]
    %s3045 = scalar_lea.vmem [#allocation0], 3456
    %v3046 = vld [vmem:[%s3045] ss:$8 sm:$0xf0]
    %vm3047 = vcmask 1047556
    %v3048 = vsel %vm3047, %v3046, %v3044
    %vm3049 = vcmask 523264
    %s3050 = scalar_lea.vmem %s1, 432
    %3051 = vst.msk [vmem:[%s3050] sm:$0xff] %vm3049, %v3048
    %s3052 = scalar_lea.vmem [#allocation0], 3520
    %v3053 = vld [vmem:[%s3052] ss:$8 sm:$0xf]
    %s3054 = scalar_lea.vmem [#allocation0], 3520
    %v3055 = vld [vmem:[%s3054] ss:$8 sm:$0xf0]
    %vm3056 = vcmask 1047556
    %v3057 = vsel %vm3056, %v3055, %v3053
    %vm3058 = vcmask 523264
    %s3059 = scalar_lea.vmem %s1, 440
    %3060 = vst.msk [vmem:[%s3059] sm:$0xff] %vm3058, %v3057
    %s3061 = scalar_lea.vmem [#allocation0], 3584
    %v3062 = vld [vmem:[%s3061] ss:$8 sm:$0xf]
    %s3063 = scalar_lea.vmem [#allocation0], 3584
    %v3064 = vld [vmem:[%s3063] ss:$8 sm:$0xf0]
    %vm3065 = vcmask 1047556
    %v3066 = vsel %vm3065, %v3064, %v3062
    %vm3067 = vcmask 523264
    %s3068 = scalar_lea.vmem %s1, 448
    %3069 = vst.msk [vmem:[%s3068] sm:$0xff] %vm3067, %v3066
    %s3070 = scalar_lea.vmem [#allocation0], 3648
    %v3071 = vld [vmem:[%s3070] ss:$8 sm:$0xf]
    %s3072 = scalar_lea.vmem [#allocation0], 3648
    %v3073 = vld [vmem:[%s3072] ss:$8 sm:$0xf0]
    %vm3074 = vcmask 1047556
    %v3075 = vsel %vm3074, %v3073, %v3071
    %vm3076 = vcmask 523264
    %s3077 = scalar_lea.vmem %s1, 456
    %3078 = vst.msk [vmem:[%s3077] sm:$0xff] %vm3076, %v3075
    %s3079 = scalar_lea.vmem [#allocation0], 3712
    %v3080 = vld [vmem:[%s3079] ss:$8 sm:$0xf]
    %s3081 = scalar_lea.vmem [#allocation0], 3712
    %v3082 = vld [vmem:[%s3081] ss:$8 sm:$0xf0]
    %vm3083 = vcmask 1047556
    %v3084 = vsel %vm3083, %v3082, %v3080
    %vm3085 = vcmask 523264
    %s3086 = scalar_lea.vmem %s1, 464
    %3087 = vst.msk [vmem:[%s3086] sm:$0xff] %vm3085, %v3084
    %s3088 = scalar_lea.vmem [#allocation0], 3776
    %v3089 = vld [vmem:[%s3088] ss:$8 sm:$0xf]
    %s3090 = scalar_lea.vmem [#allocation0], 3776
    %v3091 = vld [vmem:[%s3090] ss:$8 sm:$0xf0]
    %vm3092 = vcmask 1047556
    %v3093 = vsel %vm3092, %v3091, %v3089
    %vm3094 = vcmask 523264
    %s3095 = scalar_lea.vmem %s1, 472
    %3096 = vst.msk [vmem:[%s3095] sm:$0xff] %vm3094, %v3093
    %s3097 = scalar_lea.vmem [#allocation0], 3840
    %v3098 = vld [vmem:[%s3097] ss:$8 sm:$0xf]
    %s3099 = scalar_lea.vmem [#allocation0], 3840
    %v3100 = vld [vmem:[%s3099] ss:$8 sm:$0xf0]
    %vm3101 = vcmask 1047556
    %v3102 = vsel %vm3101, %v3100, %v3098
    %vm3103 = vcmask 523264
    %s3104 = scalar_lea.vmem %s1, 480
    %3105 = vst.msk [vmem:[%s3104] sm:$0xff] %vm3103, %v3102
    %s3106 = scalar_lea.vmem [#allocation0], 3904
    %v3107 = vld [vmem:[%s3106] ss:$8 sm:$0xf]
    %s3108 = scalar_lea.vmem [#allocation0], 3904
    %v3109 = vld [vmem:[%s3108] ss:$8 sm:$0xf0]
    %vm3110 = vcmask 1047556
    %v3111 = vsel %vm3110, %v3109, %v3107
    %vm3112 = vcmask 523264
    %s3113 = scalar_lea.vmem %s1, 488
    %3114 = vst.msk [vmem:[%s3113] sm:$0xff] %vm3112, %v3111
    %s3115 = scalar_lea.vmem [#allocation0], 3968
    %v3116 = vld [vmem:[%s3115] ss:$8 sm:$0xf]
    %s3117 = scalar_lea.vmem [#allocation0], 3968
    %v3118 = vld [vmem:[%s3117] ss:$8 sm:$0xf0]
    %vm3119 = vcmask 1047556
    %v3120 = vsel %vm3119, %v3118, %v3116
    %vm3121 = vcmask 523264
    %s3122 = scalar_lea.vmem %s1, 496
    %3123 = vst.msk [vmem:[%s3122] sm:$0xff] %vm3121, %v3120
    %s3124 = scalar_lea.vmem [#allocation0], 4032
    %v3125 = vld [vmem:[%s3124] ss:$8 sm:$0xf]
    %s3126 = scalar_lea.vmem [#allocation0], 4032
    %v3127 = vld [vmem:[%s3126] ss:$8 sm:$0xf0]
    %vm3128 = vcmask 1047556
    %v3129 = vsel %vm3128, %v3127, %v3125
    %vm3130 = vcmask 523264
    %s3131 = scalar_lea.vmem %s1, 504
    %3132 = vst.msk [vmem:[%s3131] sm:$0xff] %vm3130, %v3129
    %s3133 = scalar_lea.vmem [#allocation0], 1
    %v3134 = vld [vmem:[%s3133] ss:$8 sm:$0xf]
    %s3135 = scalar_lea.vmem [#allocation0], 1
    %v3136 = vld [vmem:[%s3135] ss:$8 sm:$0xf0]
    %vm3137 = vcmask 1047556
    %v3138 = vsel %vm3137, %v3136, %v3134
    %3139 = vrot.lane.b32.xlu0 %v3138, 64
    %v3140 = vpop.permute.xlu0 %3139
    %vm3141 = vcmask 1048064
    %3142 = vst.msk [vmem:[%s1] sm:$0xff] %vm3141, %v3140
    %s3143 = scalar_lea.vmem [#allocation0], 257
    %v3144 = vld [vmem:[%s3143] ss:$8 sm:$0xf]
    %s3145 = scalar_lea.vmem [#allocation0], 257
    %v3146 = vld [vmem:[%s3145] ss:$8 sm:$0xf0]
    %vm3147 = vcmask 1047556
    %v3148 = vsel %vm3147, %v3146, %v3144
    %3149 = vrot.lane.b32.xlu0 %v3148, 64
    %v3150 = vpop.permute.xlu0 %3149
    %vm3151 = vcmask 1048064
    %s3152 = scalar_lea.vmem %s1, 32
    %3153 = vst.msk [vmem:[%s3152] sm:$0xff] %vm3151, %v3150
    %s3154 = scalar_lea.vmem [#allocation0], 513
    %v3155 = vld [vmem:[%s3154] ss:$8 sm:$0xf]
    %s3156 = scalar_lea.vmem [#allocation0], 513
    %v3157 = vld [vmem:[%s3156] ss:$8 sm:$0xf0]
    %vm3158 = vcmask 1047556
    %v3159 = vsel %vm3158, %v3157, %v3155
    %3160 = vrot.lane.b32.xlu0 %v3159, 64
    %v3161 = vpop.permute.xlu0 %3160
    %vm3162 = vcmask 1048064
    %s3163 = scalar_lea.vmem %s1, 64
    %3164 = vst.msk [vmem:[%s3163] sm:$0xff] %vm3162, %v3161
    %s3165 = scalar_lea.vmem [#allocation0], 769
    %v3166 = vld [vmem:[%s3165] ss:$8 sm:$0xf]
    %s3167 = scalar_lea.vmem [#allocation0], 769
    %v3168 = vld [vmem:[%s3167] ss:$8 sm:$0xf0]
    %vm3169 = vcmask 1047556
    %v3170 = vsel %vm3169, %v3168, %v3166
    %3171 = vrot.lane.b32.xlu0 %v3170, 64
    %v3172 = vpop.permute.xlu0 %3171
    %vm3173 = vcmask 1048064
    %s3174 = scalar_lea.vmem %s1, 96
    %3175 = vst.msk [vmem:[%s3174] sm:$0xff] %vm3173, %v3172
    %s3176 = scalar_lea.vmem [#allocation0], 1025
    %v3177 = vld [vmem:[%s3176] ss:$8 sm:$0xf]
    %s3178 = scalar_lea.vmem [#allocation0], 1025
    %v3179 = vld [vmem:[%s3178] ss:$8 sm:$0xf0]
    %vm3180 = vcmask 1047556
    %v3181 = vsel %vm3180, %v3179, %v3177
    %3182 = vrot.lane.b32.xlu0 %v3181, 64
    %v3183 = vpop.permute.xlu0 %3182
    %vm3184 = vcmask 1048064
    %s3185 = scalar_lea.vmem %s1, 128
    %3186 = vst.msk [vmem:[%s3185] sm:$0xff] %vm3184, %v3183
    %s3187 = scalar_lea.vmem [#allocation0], 1281
    %v3188 = vld [vmem:[%s3187] ss:$8 sm:$0xf]
    %s3189 = scalar_lea.vmem [#allocation0], 1281
    %v3190 = vld [vmem:[%s3189] ss:$8 sm:$0xf0]
    %vm3191 = vcmask 1047556
    %v3192 = vsel %vm3191, %v3190, %v3188
    %3193 = vrot.lane.b32.xlu0 %v3192, 64
    %v3194 = vpop.permute.xlu0 %3193
    %vm3195 = vcmask 1048064
    %s3196 = scalar_lea.vmem %s1, 160
    %3197 = vst.msk [vmem:[%s3196] sm:$0xff] %vm3195, %v3194
    %s3198 = scalar_lea.vmem [#allocation0], 1537
    %v3199 = vld [vmem:[%s3198] ss:$8 sm:$0xf]
    %s3200 = scalar_lea.vmem [#allocation0], 1537
    %v3201 = vld [vmem:[%s3200] ss:$8 sm:$0xf0]
    %vm3202 = vcmask 1047556
    %v3203 = vsel %vm3202, %v3201, %v3199
    %3204 = vrot.lane.b32.xlu0 %v3203, 64
    %v3205 = vpop.permute.xlu0 %3204
    %vm3206 = vcmask 1048064
    %s3207 = scalar_lea.vmem %s1, 192
    %3208 = vst.msk [vmem:[%s3207] sm:$0xff] %vm3206, %v3205
    %s3209 = scalar_lea.vmem [#allocation0], 1793
    %v3210 = vld [vmem:[%s3209] ss:$8 sm:$0xf]
    %s3211 = scalar_lea.vmem [#allocation0], 1793
    %v3212 = vld [vmem:[%s3211] ss:$8 sm:$0xf0]
    %vm3213 = vcmask 1047556
    %v3214 = vsel %vm3213, %v3212, %v3210
    %3215 = vrot.lane.b32.xlu0 %v3214, 64
    %v3216 = vpop.permute.xlu0 %3215
    %vm3217 = vcmask 1048064
    %s3218 = scalar_lea.vmem %s1, 224
    %3219 = vst.msk [vmem:[%s3218] sm:$0xff] %vm3217, %v3216
    %s3220 = scalar_lea.vmem [#allocation0], 2049
    %v3221 = vld [vmem:[%s3220] ss:$8 sm:$0xf]
    %s3222 = scalar_lea.vmem [#allocation0], 2049
    %v3223 = vld [vmem:[%s3222] ss:$8 sm:$0xf0]
    %vm3224 = vcmask 1047556
    %v3225 = vsel %vm3224, %v3223, %v3221
    %3226 = vrot.lane.b32.xlu0 %v3225, 64
    %v3227 = vpop.permute.xlu0 %3226
    %vm3228 = vcmask 1048064
    %s3229 = scalar_lea.vmem %s1, 256
    %3230 = vst.msk [vmem:[%s3229] sm:$0xff] %vm3228, %v3227
    %s3231 = scalar_lea.vmem [#allocation0], 2305
    %v3232 = vld [vmem:[%s3231] ss:$8 sm:$0xf]
    %s3233 = scalar_lea.vmem [#allocation0], 2305
    %v3234 = vld [vmem:[%s3233] ss:$8 sm:$0xf0]
    %vm3235 = vcmask 1047556
    %v3236 = vsel %vm3235, %v3234, %v3232
    %3237 = vrot.lane.b32.xlu0 %v3236, 64
    %v3238 = vpop.permute.xlu0 %3237
    %vm3239 = vcmask 1048064
    %s3240 = scalar_lea.vmem %s1, 288
    %3241 = vst.msk [vmem:[%s3240] sm:$0xff] %vm3239, %v3238
    %s3242 = scalar_lea.vmem [#allocation0], 2561
    %v3243 = vld [vmem:[%s3242] ss:$8 sm:$0xf]
    %s3244 = scalar_lea.vmem [#allocation0], 2561
    %v3245 = vld [vmem:[%s3244] ss:$8 sm:$0xf0]
    %vm3246 = vcmask 1047556
    %v3247 = vsel %vm3246, %v3245, %v3243
    %3248 = vrot.lane.b32.xlu0 %v3247, 64
    %v3249 = vpop.permute.xlu0 %3248
    %vm3250 = vcmask 1048064
    %s3251 = scalar_lea.vmem %s1, 320
    %3252 = vst.msk [vmem:[%s3251] sm:$0xff] %vm3250, %v3249
    %s3253 = scalar_lea.vmem [#allocation0], 2817
    %v3254 = vld [vmem:[%s3253] ss:$8 sm:$0xf]
    %s3255 = scalar_lea.vmem [#allocation0], 2817
    %v3256 = vld [vmem:[%s3255] ss:$8 sm:$0xf0]
    %vm3257 = vcmask 1047556
    %v3258 = vsel %vm3257, %v3256, %v3254
    %3259 = vrot.lane.b32.xlu0 %v3258, 64
    %v3260 = vpop.permute.xlu0 %3259
    %vm3261 = vcmask 1048064
    %s3262 = scalar_lea.vmem %s1, 352
    %3263 = vst.msk [vmem:[%s3262] sm:$0xff] %vm3261, %v3260
    %s3264 = scalar_lea.vmem [#allocation0], 3073
    %v3265 = vld [vmem:[%s3264] ss:$8 sm:$0xf]
    %s3266 = scalar_lea.vmem [#allocation0], 3073
    %v3267 = vld [vmem:[%s3266] ss:$8 sm:$0xf0]
    %vm3268 = vcmask 1047556
    %v3269 = vsel %vm3268, %v3267, %v3265
    %3270 = vrot.lane.b32.xlu0 %v3269, 64
    %v3271 = vpop.permute.xlu0 %3270
    %vm3272 = vcmask 1048064
    %s3273 = scalar_lea.vmem %s1, 384
    %3274 = vst.msk [vmem:[%s3273] sm:$0xff] %vm3272, %v3271
    %s3275 = scalar_lea.vmem [#allocation0], 3329
    %v3276 = vld [vmem:[%s3275] ss:$8 sm:$0xf]
    %s3277 = scalar_lea.vmem [#allocation0], 3329
    %v3278 = vld [vmem:[%s3277] ss:$8 sm:$0xf0]
    %vm3279 = vcmask 1047556
    %v3280 = vsel %vm3279, %v3278, %v3276
    %3281 = vrot.lane.b32.xlu0 %v3280, 64
    %v3282 = vpop.permute.xlu0 %3281
    %vm3283 = vcmask 1048064
    %s3284 = scalar_lea.vmem %s1, 416
    %3285 = vst.msk [vmem:[%s3284] sm:$0xff] %vm3283, %v3282
    %s3286 = scalar_lea.vmem [#allocation0], 3585
    %v3287 = vld [vmem:[%s3286] ss:$8 sm:$0xf]
    %s3288 = scalar_lea.vmem [#allocation0], 3585
    %v3289 = vld [vmem:[%s3288] ss:$8 sm:$0xf0]
    %vm3290 = vcmask 1047556
    %v3291 = vsel %vm3290, %v3289, %v3287
    %3292 = vrot.lane.b32.xlu0 %v3291, 64
    %v3293 = vpop.permute.xlu0 %3292
    %vm3294 = vcmask 1048064
    %s3295 = scalar_lea.vmem %s1, 448
    %3296 = vst.msk [vmem:[%s3295] sm:$0xff] %vm3294, %v3293
    %s3297 = scalar_lea.vmem [#allocation0], 3841
    %v3298 = vld [vmem:[%s3297] ss:$8 sm:$0xf]
    %s3299 = scalar_lea.vmem [#allocation0], 3841
    %v3300 = vld [vmem:[%s3299] ss:$8 sm:$0xf0]
    %vm3301 = vcmask 1047556
    %v3302 = vsel %vm3301, %v3300, %v3298
    %3303 = vrot.lane.b32.xlu0 %v3302, 64
    %v3304 = vpop.permute.xlu0 %3303
    %vm3305 = vcmask 1048064
    %s3306 = scalar_lea.vmem %s1, 480
    %3307 = vst.msk [vmem:[%s3306] sm:$0xff] %vm3305, %v3304
    %s3308 = scalar_lea.vmem [#allocation0], 65
    %v3309 = vld [vmem:[%s3308] ss:$8 sm:$0xf]
    %s3310 = scalar_lea.vmem [#allocation0], 65
    %v3311 = vld [vmem:[%s3310] ss:$8 sm:$0xf0]
    %vm3312 = vcmask 1047556
    %v3313 = vsel %vm3312, %v3311, %v3309
    %3314 = vrot.lane.b32.xlu0 %v3313, 64
    %v3315 = vpop.permute.xlu0 %3314
    %vm3316 = vcmask 1048064
    %s3317 = scalar_lea.vmem %s1, 8
    %3318 = vst.msk [vmem:[%s3317] sm:$0xff] %vm3316, %v3315
    %s3319 = scalar_lea.vmem [#allocation0], 321
    %v3320 = vld [vmem:[%s3319] ss:$8 sm:$0xf]
    %s3321 = scalar_lea.vmem [#allocation0], 321
    %v3322 = vld [vmem:[%s3321] ss:$8 sm:$0xf0]
    %vm3323 = vcmask 1047556
    %v3324 = vsel %vm3323, %v3322, %v3320
    %3325 = vrot.lane.b32.xlu0 %v3324, 64
    %v3326 = vpop.permute.xlu0 %3325
    %vm3327 = vcmask 1048064
    %s3328 = scalar_lea.vmem %s1, 40
    %3329 = vst.msk [vmem:[%s3328] sm:$0xff] %vm3327, %v3326
    %s3330 = scalar_lea.vmem [#allocation0], 577
    %v3331 = vld [vmem:[%s3330] ss:$8 sm:$0xf]
    %s3332 = scalar_lea.vmem [#allocation0], 577
    %v3333 = vld [vmem:[%s3332] ss:$8 sm:$0xf0]
    %vm3334 = vcmask 1047556
    %v3335 = vsel %vm3334, %v3333, %v3331
    %3336 = vrot.lane.b32.xlu0 %v3335, 64
    %v3337 = vpop.permute.xlu0 %3336
    %vm3338 = vcmask 1048064
    %s3339 = scalar_lea.vmem %s1, 72
    %3340 = vst.msk [vmem:[%s3339] sm:$0xff] %vm3338, %v3337
    %s3341 = scalar_lea.vmem [#allocation0], 833
    %v3342 = vld [vmem:[%s3341] ss:$8 sm:$0xf]
    %s3343 = scalar_lea.vmem [#allocation0], 833
    %v3344 = vld [vmem:[%s3343] ss:$8 sm:$0xf0]
    %vm3345 = vcmask 1047556
    %v3346 = vsel %vm3345, %v3344, %v3342
    %3347 = vrot.lane.b32.xlu0 %v3346, 64
    %v3348 = vpop.permute.xlu0 %3347
    %vm3349 = vcmask 1048064
    %s3350 = scalar_lea.vmem %s1, 104
    %3351 = vst.msk [vmem:[%s3350] sm:$0xff] %vm3349, %v3348
    %s3352 = scalar_lea.vmem [#allocation0], 1089
    %v3353 = vld [vmem:[%s3352] ss:$8 sm:$0xf]
    %s3354 = scalar_lea.vmem [#allocation0], 1089
    %v3355 = vld [vmem:[%s3354] ss:$8 sm:$0xf0]
    %vm3356 = vcmask 1047556
    %v3357 = vsel %vm3356, %v3355, %v3353
    %3358 = vrot.lane.b32.xlu0 %v3357, 64
    %v3359 = vpop.permute.xlu0 %3358
    %vm3360 = vcmask 1048064
    %s3361 = scalar_lea.vmem %s1, 136
    %3362 = vst.msk [vmem:[%s3361] sm:$0xff] %vm3360, %v3359
    %s3363 = scalar_lea.vmem [#allocation0], 1345
    %v3364 = vld [vmem:[%s3363] ss:$8 sm:$0xf]
    %s3365 = scalar_lea.vmem [#allocation0], 1345
    %v3366 = vld [vmem:[%s3365] ss:$8 sm:$0xf0]
    %vm3367 = vcmask 1047556
    %v3368 = vsel %vm3367, %v3366, %v3364
    %3369 = vrot.lane.b32.xlu0 %v3368, 64
    %v3370 = vpop.permute.xlu0 %3369
    %vm3371 = vcmask 1048064
    %s3372 = scalar_lea.vmem %s1, 168
    %3373 = vst.msk [vmem:[%s3372] sm:$0xff] %vm3371, %v3370
    %s3374 = scalar_lea.vmem [#allocation0], 1601
    %v3375 = vld [vmem:[%s3374] ss:$8 sm:$0xf]
    %s3376 = scalar_lea.vmem [#allocation0], 1601
    %v3377 = vld [vmem:[%s3376] ss:$8 sm:$0xf0]
    %vm3378 = vcmask 1047556
    %v3379 = vsel %vm3378, %v3377, %v3375
    %3380 = vrot.lane.b32.xlu0 %v3379, 64
    %v3381 = vpop.permute.xlu0 %3380
    %vm3382 = vcmask 1048064
    %s3383 = scalar_lea.vmem %s1, 200
    %3384 = vst.msk [vmem:[%s3383] sm:$0xff] %vm3382, %v3381
    %s3385 = scalar_lea.vmem [#allocation0], 1857
    %v3386 = vld [vmem:[%s3385] ss:$8 sm:$0xf]
    %s3387 = scalar_lea.vmem [#allocation0], 1857
    %v3388 = vld [vmem:[%s3387] ss:$8 sm:$0xf0]
    %vm3389 = vcmask 1047556
    %v3390 = vsel %vm3389, %v3388, %v3386
    %3391 = vrot.lane.b32.xlu0 %v3390, 64
    %v3392 = vpop.permute.xlu0 %3391
    %vm3393 = vcmask 1048064
    %s3394 = scalar_lea.vmem %s1, 232
    %3395 = vst.msk [vmem:[%s3394] sm:$0xff] %vm3393, %v3392
    %s3396 = scalar_lea.vmem [#allocation0], 2113
    %v3397 = vld [vmem:[%s3396] ss:$8 sm:$0xf]
    %s3398 = scalar_lea.vmem [#allocation0], 2113
    %v3399 = vld [vmem:[%s3398] ss:$8 sm:$0xf0]
    %vm3400 = vcmask 1047556
    %v3401 = vsel %vm3400, %v3399, %v3397
    %3402 = vrot.lane.b32.xlu0 %v3401, 64
    %v3403 = vpop.permute.xlu0 %3402
    %vm3404 = vcmask 1048064
    %s3405 = scalar_lea.vmem %s1, 264
    %3406 = vst.msk [vmem:[%s3405] sm:$0xff] %vm3404, %v3403
    %s3407 = scalar_lea.vmem [#allocation0], 2369
    %v3408 = vld [vmem:[%s3407] ss:$8 sm:$0xf]
    %s3409 = scalar_lea.vmem [#allocation0], 2369
    %v3410 = vld [vmem:[%s3409] ss:$8 sm:$0xf0]
    %vm3411 = vcmask 1047556
    %v3412 = vsel %vm3411, %v3410, %v3408
    %3413 = vrot.lane.b32.xlu0 %v3412, 64
    %v3414 = vpop.permute.xlu0 %3413
    %vm3415 = vcmask 1048064
    %s3416 = scalar_lea.vmem %s1, 296
    %3417 = vst.msk [vmem:[%s3416] sm:$0xff] %vm3415, %v3414
    %s3418 = scalar_lea.vmem [#allocation0], 2625
    %v3419 = vld [vmem:[%s3418] ss:$8 sm:$0xf]
    %s3420 = scalar_lea.vmem [#allocation0], 2625
    %v3421 = vld [vmem:[%s3420] ss:$8 sm:$0xf0]
    %vm3422 = vcmask 1047556
    %v3423 = vsel %vm3422, %v3421, %v3419
    %3424 = vrot.lane.b32.xlu0 %v3423, 64
    %v3425 = vpop.permute.xlu0 %3424
    %vm3426 = vcmask 1048064
    %s3427 = scalar_lea.vmem %s1, 328
    %3428 = vst.msk [vmem:[%s3427] sm:$0xff] %vm3426, %v3425
    %s3429 = scalar_lea.vmem [#allocation0], 2881
    %v3430 = vld [vmem:[%s3429] ss:$8 sm:$0xf]
    %s3431 = scalar_lea.vmem [#allocation0], 2881
    %v3432 = vld [vmem:[%s3431] ss:$8 sm:$0xf0]
    %vm3433 = vcmask 1047556
    %v3434 = vsel %vm3433, %v3432, %v3430
    %3435 = vrot.lane.b32.xlu0 %v3434, 64
    %v3436 = vpop.permute.xlu0 %3435
    %vm3437 = vcmask 1048064
    %s3438 = scalar_lea.vmem %s1, 360
    %3439 = vst.msk [vmem:[%s3438] sm:$0xff] %vm3437, %v3436
    %s3440 = scalar_lea.vmem [#allocation0], 3137
    %v3441 = vld [vmem:[%s3440] ss:$8 sm:$0xf]
    %s3442 = scalar_lea.vmem [#allocation0], 3137
    %v3443 = vld [vmem:[%s3442] ss:$8 sm:$0xf0]
    %vm3444 = vcmask 1047556
    %v3445 = vsel %vm3444, %v3443, %v3441
    %3446 = vrot.lane.b32.xlu0 %v3445, 64
    %v3447 = vpop.permute.xlu0 %3446
    %vm3448 = vcmask 1048064
    %s3449 = scalar_lea.vmem %s1, 392
    %3450 = vst.msk [vmem:[%s3449] sm:$0xff] %vm3448, %v3447
    %s3451 = scalar_lea.vmem [#allocation0], 3393
    %v3452 = vld [vmem:[%s3451] ss:$8 sm:$0xf]
    %s3453 = scalar_lea.vmem [#allocation0], 3393
    %v3454 = vld [vmem:[%s3453] ss:$8 sm:$0xf0]
    %vm3455 = vcmask 1047556
    %v3456 = vsel %vm3455, %v3454, %v3452
    %3457 = vrot.lane.b32.xlu0 %v3456, 64
    %v3458 = vpop.permute.xlu0 %3457
    %vm3459 = vcmask 1048064
    %s3460 = scalar_lea.vmem %s1, 424
    %3461 = vst.msk [vmem:[%s3460] sm:$0xff] %vm3459, %v3458
    %s3462 = scalar_lea.vmem [#allocation0], 3649
    %v3463 = vld [vmem:[%s3462] ss:$8 sm:$0xf]
    %s3464 = scalar_lea.vmem [#allocation0], 3649
    %v3465 = vld [vmem:[%s3464] ss:$8 sm:$0xf0]
    %vm3466 = vcmask 1047556
    %v3467 = vsel %vm3466, %v3465, %v3463
    %3468 = vrot.lane.b32.xlu0 %v3467, 64
    %v3469 = vpop.permute.xlu0 %3468
    %vm3470 = vcmask 1048064
    %s3471 = scalar_lea.vmem %s1, 456
    %3472 = vst.msk [vmem:[%s3471] sm:$0xff] %vm3470, %v3469
    %s3473 = scalar_lea.vmem [#allocation0], 3905
    %v3474 = vld [vmem:[%s3473] ss:$8 sm:$0xf]
    %s3475 = scalar_lea.vmem [#allocation0], 3905
    %v3476 = vld [vmem:[%s3475] ss:$8 sm:$0xf0]
    %vm3477 = vcmask 1047556
    %v3478 = vsel %vm3477, %v3476, %v3474
    %3479 = vrot.lane.b32.xlu0 %v3478, 64
    %v3480 = vpop.permute.xlu0 %3479
    %vm3481 = vcmask 1048064
    %s3482 = scalar_lea.vmem %s1, 488
    %3483 = vst.msk [vmem:[%s3482] sm:$0xff] %vm3481, %v3480
    %s3484 = scalar_lea.vmem [#allocation0], 129
    %v3485 = vld [vmem:[%s3484] ss:$8 sm:$0xf]
    %s3486 = scalar_lea.vmem [#allocation0], 129
    %v3487 = vld [vmem:[%s3486] ss:$8 sm:$0xf0]
    %vm3488 = vcmask 1047556
    %v3489 = vsel %vm3488, %v3487, %v3485
    %3490 = vrot.lane.b32.xlu0 %v3489, 64
    %v3491 = vpop.permute.xlu0 %3490
    %vm3492 = vcmask 1048064
    %s3493 = scalar_lea.vmem %s1, 16
    %3494 = vst.msk [vmem:[%s3493] sm:$0xff] %vm3492, %v3491
    %s3495 = scalar_lea.vmem [#allocation0], 385
    %v3496 = vld [vmem:[%s3495] ss:$8 sm:$0xf]
    %s3497 = scalar_lea.vmem [#allocation0], 385
    %v3498 = vld [vmem:[%s3497] ss:$8 sm:$0xf0]
    %vm3499 = vcmask 1047556
    %v3500 = vsel %vm3499, %v3498, %v3496
    %3501 = vrot.lane.b32.xlu0 %v3500, 64
    %v3502 = vpop.permute.xlu0 %3501
    %vm3503 = vcmask 1048064
    %s3504 = scalar_lea.vmem %s1, 48
    %3505 = vst.msk [vmem:[%s3504] sm:$0xff] %vm3503, %v3502
    %s3506 = scalar_lea.vmem [#allocation0], 641
    %v3507 = vld [vmem:[%s3506] ss:$8 sm:$0xf]
    %s3508 = scalar_lea.vmem [#allocation0], 641
    %v3509 = vld [vmem:[%s3508] ss:$8 sm:$0xf0]
    %vm3510 = vcmask 1047556
    %v3511 = vsel %vm3510, %v3509, %v3507
    %3512 = vrot.lane.b32.xlu0 %v3511, 64
    %v3513 = vpop.permute.xlu0 %3512
    %vm3514 = vcmask 1048064
    %s3515 = scalar_lea.vmem %s1, 80
    %3516 = vst.msk [vmem:[%s3515] sm:$0xff] %vm3514, %v3513
    %s3517 = scalar_lea.vmem [#allocation0], 897
    %v3518 = vld [vmem:[%s3517] ss:$8 sm:$0xf]
    %s3519 = scalar_lea.vmem [#allocation0], 897
    %v3520 = vld [vmem:[%s3519] ss:$8 sm:$0xf0]
    %vm3521 = vcmask 1047556
    %v3522 = vsel %vm3521, %v3520, %v3518
    %3523 = vrot.lane.b32.xlu0 %v3522, 64
    %v3524 = vpop.permute.xlu0 %3523
    %vm3525 = vcmask 1048064
    %s3526 = scalar_lea.vmem %s1, 112
    %3527 = vst.msk [vmem:[%s3526] sm:$0xff] %vm3525, %v3524
    %s3528 = scalar_lea.vmem [#allocation0], 1153
    %v3529 = vld [vmem:[%s3528] ss:$8 sm:$0xf]
    %s3530 = scalar_lea.vmem [#allocation0], 1153
    %v3531 = vld [vmem:[%s3530] ss:$8 sm:$0xf0]
    %vm3532 = vcmask 1047556
    %v3533 = vsel %vm3532, %v3531, %v3529
    %3534 = vrot.lane.b32.xlu0 %v3533, 64
    %v3535 = vpop.permute.xlu0 %3534
    %vm3536 = vcmask 1048064
    %s3537 = scalar_lea.vmem %s1, 144
    %3538 = vst.msk [vmem:[%s3537] sm:$0xff] %vm3536, %v3535
    %s3539 = scalar_lea.vmem [#allocation0], 1409
    %v3540 = vld [vmem:[%s3539] ss:$8 sm:$0xf]
    %s3541 = scalar_lea.vmem [#allocation0], 1409
    %v3542 = vld [vmem:[%s3541] ss:$8 sm:$0xf0]
    %vm3543 = vcmask 1047556
    %v3544 = vsel %vm3543, %v3542, %v3540
    %3545 = vrot.lane.b32.xlu0 %v3544, 64
    %v3546 = vpop.permute.xlu0 %3545
    %vm3547 = vcmask 1048064
    %s3548 = scalar_lea.vmem %s1, 176
    %3549 = vst.msk [vmem:[%s3548] sm:$0xff] %vm3547, %v3546
    %s3550 = scalar_lea.vmem [#allocation0], 1665
    %v3551 = vld [vmem:[%s3550] ss:$8 sm:$0xf]
    %s3552 = scalar_lea.vmem [#allocation0], 1665
    %v3553 = vld [vmem:[%s3552] ss:$8 sm:$0xf0]
    %vm3554 = vcmask 1047556
    %v3555 = vsel %vm3554, %v3553, %v3551
    %3556 = vrot.lane.b32.xlu0 %v3555, 64
    %v3557 = vpop.permute.xlu0 %3556
    %vm3558 = vcmask 1048064
    %s3559 = scalar_lea.vmem %s1, 208
    %3560 = vst.msk [vmem:[%s3559] sm:$0xff] %vm3558, %v3557
    %s3561 = scalar_lea.vmem [#allocation0], 1921
    %v3562 = vld [vmem:[%s3561] ss:$8 sm:$0xf]
    %s3563 = scalar_lea.vmem [#allocation0], 1921
    %v3564 = vld [vmem:[%s3563] ss:$8 sm:$0xf0]
    %vm3565 = vcmask 1047556
    %v3566 = vsel %vm3565, %v3564, %v3562
    %3567 = vrot.lane.b32.xlu0 %v3566, 64
    %v3568 = vpop.permute.xlu0 %3567
    %vm3569 = vcmask 1048064
    %s3570 = scalar_lea.vmem %s1, 240
    %3571 = vst.msk [vmem:[%s3570] sm:$0xff] %vm3569, %v3568
    %s3572 = scalar_lea.vmem [#allocation0], 2177
    %v3573 = vld [vmem:[%s3572] ss:$8 sm:$0xf]
    %s3574 = scalar_lea.vmem [#allocation0], 2177
    %v3575 = vld [vmem:[%s3574] ss:$8 sm:$0xf0]
    %vm3576 = vcmask 1047556
    %v3577 = vsel %vm3576, %v3575, %v3573
    %3578 = vrot.lane.b32.xlu0 %v3577, 64
    %v3579 = vpop.permute.xlu0 %3578
    %vm3580 = vcmask 1048064
    %s3581 = scalar_lea.vmem %s1, 272
    %3582 = vst.msk [vmem:[%s3581] sm:$0xff] %vm3580, %v3579
    %s3583 = scalar_lea.vmem [#allocation0], 2433
    %v3584 = vld [vmem:[%s3583] ss:$8 sm:$0xf]
    %s3585 = scalar_lea.vmem [#allocation0], 2433
    %v3586 = vld [vmem:[%s3585] ss:$8 sm:$0xf0]
    %vm3587 = vcmask 1047556
    %v3588 = vsel %vm3587, %v3586, %v3584
    %3589 = vrot.lane.b32.xlu0 %v3588, 64
    %v3590 = vpop.permute.xlu0 %3589
    %vm3591 = vcmask 1048064
    %s3592 = scalar_lea.vmem %s1, 304
    %3593 = vst.msk [vmem:[%s3592] sm:$0xff] %vm3591, %v3590
    %s3594 = scalar_lea.vmem [#allocation0], 2689
    %v3595 = vld [vmem:[%s3594] ss:$8 sm:$0xf]
    %s3596 = scalar_lea.vmem [#allocation0], 2689
    %v3597 = vld [vmem:[%s3596] ss:$8 sm:$0xf0]
    %vm3598 = vcmask 1047556
    %v3599 = vsel %vm3598, %v3597, %v3595
    %3600 = vrot.lane.b32.xlu0 %v3599, 64
    %v3601 = vpop.permute.xlu0 %3600
    %vm3602 = vcmask 1048064
    %s3603 = scalar_lea.vmem %s1, 336
    %3604 = vst.msk [vmem:[%s3603] sm:$0xff] %vm3602, %v3601
    %s3605 = scalar_lea.vmem [#allocation0], 2945
    %v3606 = vld [vmem:[%s3605] ss:$8 sm:$0xf]
    %s3607 = scalar_lea.vmem [#allocation0], 2945
    %v3608 = vld [vmem:[%s3607] ss:$8 sm:$0xf0]
    %vm3609 = vcmask 1047556
    %v3610 = vsel %vm3609, %v3608, %v3606
    %3611 = vrot.lane.b32.xlu0 %v3610, 64
    %v3612 = vpop.permute.xlu0 %3611
    %vm3613 = vcmask 1048064
    %s3614 = scalar_lea.vmem %s1, 368
    %3615 = vst.msk [vmem:[%s3614] sm:$0xff] %vm3613, %v3612
    %s3616 = scalar_lea.vmem [#allocation0], 3201
    %v3617 = vld [vmem:[%s3616] ss:$8 sm:$0xf]
    %s3618 = scalar_lea.vmem [#allocation0], 3201
    %v3619 = vld [vmem:[%s3618] ss:$8 sm:$0xf0]
    %vm3620 = vcmask 1047556
    %v3621 = vsel %vm3620, %v3619, %v3617
    %3622 = vrot.lane.b32.xlu0 %v3621, 64
    %v3623 = vpop.permute.xlu0 %3622
    %vm3624 = vcmask 1048064
    %s3625 = scalar_lea.vmem %s1, 400
    %3626 = vst.msk [vmem:[%s3625] sm:$0xff] %vm3624, %v3623
    %s3627 = scalar_lea.vmem [#allocation0], 3457
    %v3628 = vld [vmem:[%s3627] ss:$8 sm:$0xf]
    %s3629 = scalar_lea.vmem [#allocation0], 3457
    %v3630 = vld [vmem:[%s3629] ss:$8 sm:$0xf0]
    %vm3631 = vcmask 1047556
    %v3632 = vsel %vm3631, %v3630, %v3628
    %3633 = vrot.lane.b32.xlu0 %v3632, 64
    %v3634 = vpop.permute.xlu0 %3633
    %vm3635 = vcmask 1048064
    %s3636 = scalar_lea.vmem %s1, 432
    %3637 = vst.msk [vmem:[%s3636] sm:$0xff] %vm3635, %v3634
    %s3638 = scalar_lea.vmem [#allocation0], 3713
    %v3639 = vld [vmem:[%s3638] ss:$8 sm:$0xf]
    %s3640 = scalar_lea.vmem [#allocation0], 3713
    %v3641 = vld [vmem:[%s3640] ss:$8 sm:$0xf0]
    %vm3642 = vcmask 1047556
    %v3643 = vsel %vm3642, %v3641, %v3639
    %3644 = vrot.lane.b32.xlu0 %v3643, 64
    %v3645 = vpop.permute.xlu0 %3644
    %vm3646 = vcmask 1048064
    %s3647 = scalar_lea.vmem %s1, 464
    %3648 = vst.msk [vmem:[%s3647] sm:$0xff] %vm3646, %v3645
    %s3649 = scalar_lea.vmem [#allocation0], 3969
    %v3650 = vld [vmem:[%s3649] ss:$8 sm:$0xf]
    %s3651 = scalar_lea.vmem [#allocation0], 3969
    %v3652 = vld [vmem:[%s3651] ss:$8 sm:$0xf0]
    %vm3653 = vcmask 1047556
    %v3654 = vsel %vm3653, %v3652, %v3650
    %3655 = vrot.lane.b32.xlu0 %v3654, 64
    %v3656 = vpop.permute.xlu0 %3655
    %vm3657 = vcmask 1048064
    %s3658 = scalar_lea.vmem %s1, 496
    %3659 = vst.msk [vmem:[%s3658] sm:$0xff] %vm3657, %v3656
    %s3660 = scalar_lea.vmem [#allocation0], 193
    %v3661 = vld [vmem:[%s3660] ss:$8 sm:$0xf]
    %s3662 = scalar_lea.vmem [#allocation0], 193
    %v3663 = vld [vmem:[%s3662] ss:$8 sm:$0xf0]
    %vm3664 = vcmask 1047556
    %v3665 = vsel %vm3664, %v3663, %v3661
    %3666 = vrot.lane.b32.xlu0 %v3665, 64
    %v3667 = vpop.permute.xlu0 %3666
    %vm3668 = vcmask 1048064
    %s3669 = scalar_lea.vmem %s1, 24
    %3670 = vst.msk [vmem:[%s3669] sm:$0xff] %vm3668, %v3667
    %s3671 = scalar_lea.vmem [#allocation0], 449
    %v3672 = vld [vmem:[%s3671] ss:$8 sm:$0xf]
    %s3673 = scalar_lea.vmem [#allocation0], 449
    %v3674 = vld [vmem:[%s3673] ss:$8 sm:$0xf0]
    %vm3675 = vcmask 1047556
    %v3676 = vsel %vm3675, %v3674, %v3672
    %3677 = vrot.lane.b32.xlu0 %v3676, 64
    %v3678 = vpop.permute.xlu0 %3677
    %vm3679 = vcmask 1048064
    %s3680 = scalar_lea.vmem %s1, 56
    %3681 = vst.msk [vmem:[%s3680] sm:$0xff] %vm3679, %v3678
    %s3682 = scalar_lea.vmem [#allocation0], 705
    %v3683 = vld [vmem:[%s3682] ss:$8 sm:$0xf]
    %s3684 = scalar_lea.vmem [#allocation0], 705
    %v3685 = vld [vmem:[%s3684] ss:$8 sm:$0xf0]
    %vm3686 = vcmask 1047556
    %v3687 = vsel %vm3686, %v3685, %v3683
    %3688 = vrot.lane.b32.xlu0 %v3687, 64
    %v3689 = vpop.permute.xlu0 %3688
    %vm3690 = vcmask 1048064
    %s3691 = scalar_lea.vmem %s1, 88
    %3692 = vst.msk [vmem:[%s3691] sm:$0xff] %vm3690, %v3689
    %s3693 = scalar_lea.vmem [#allocation0], 961
    %v3694 = vld [vmem:[%s3693] ss:$8 sm:$0xf]
    %s3695 = scalar_lea.vmem [#allocation0], 961
    %v3696 = vld [vmem:[%s3695] ss:$8 sm:$0xf0]
    %vm3697 = vcmask 1047556
    %v3698 = vsel %vm3697, %v3696, %v3694
    %3699 = vrot.lane.b32.xlu0 %v3698, 64
    %v3700 = vpop.permute.xlu0 %3699
    %vm3701 = vcmask 1048064
    %s3702 = scalar_lea.vmem %s1, 120
    %3703 = vst.msk [vmem:[%s3702] sm:$0xff] %vm3701, %v3700
    %s3704 = scalar_lea.vmem [#allocation0], 1217
    %v3705 = vld [vmem:[%s3704] ss:$8 sm:$0xf]
    %s3706 = scalar_lea.vmem [#allocation0], 1217
    %v3707 = vld [vmem:[%s3706] ss:$8 sm:$0xf0]
    %vm3708 = vcmask 1047556
    %v3709 = vsel %vm3708, %v3707, %v3705
    %3710 = vrot.lane.b32.xlu0 %v3709, 64
    %v3711 = vpop.permute.xlu0 %3710
    %vm3712 = vcmask 1048064
    %s3713 = scalar_lea.vmem %s1, 152
    %3714 = vst.msk [vmem:[%s3713] sm:$0xff] %vm3712, %v3711
    %s3715 = scalar_lea.vmem [#allocation0], 1473
    %v3716 = vld [vmem:[%s3715] ss:$8 sm:$0xf]
    %s3717 = scalar_lea.vmem [#allocation0], 1473
    %v3718 = vld [vmem:[%s3717] ss:$8 sm:$0xf0]
    %vm3719 = vcmask 1047556
    %v3720 = vsel %vm3719, %v3718, %v3716
    %3721 = vrot.lane.b32.xlu0 %v3720, 64
    %v3722 = vpop.permute.xlu0 %3721
    %vm3723 = vcmask 1048064
    %s3724 = scalar_lea.vmem %s1, 184
    %3725 = vst.msk [vmem:[%s3724] sm:$0xff] %vm3723, %v3722
    %s3726 = scalar_lea.vmem [#allocation0], 1729
    %v3727 = vld [vmem:[%s3726] ss:$8 sm:$0xf]
    %s3728 = scalar_lea.vmem [#allocation0], 1729
    %v3729 = vld [vmem:[%s3728] ss:$8 sm:$0xf0]
    %vm3730 = vcmask 1047556
    %v3731 = vsel %vm3730, %v3729, %v3727
    %3732 = vrot.lane.b32.xlu0 %v3731, 64
    %v3733 = vpop.permute.xlu0 %3732
    %vm3734 = vcmask 1048064
    %s3735 = scalar_lea.vmem %s1, 216
    %3736 = vst.msk [vmem:[%s3735] sm:$0xff] %vm3734, %v3733
    %s3737 = scalar_lea.vmem [#allocation0], 1985
    %v3738 = vld [vmem:[%s3737] ss:$8 sm:$0xf]
    %s3739 = scalar_lea.vmem [#allocation0], 1985
    %v3740 = vld [vmem:[%s3739] ss:$8 sm:$0xf0]
    %vm3741 = vcmask 1047556
    %v3742 = vsel %vm3741, %v3740, %v3738
    %3743 = vrot.lane.b32.xlu0 %v3742, 64
    %v3744 = vpop.permute.xlu0 %3743
    %vm3745 = vcmask 1048064
    %s3746 = scalar_lea.vmem %s1, 248
    %3747 = vst.msk [vmem:[%s3746] sm:$0xff] %vm3745, %v3744
    %s3748 = scalar_lea.vmem [#allocation0], 2241
    %v3749 = vld [vmem:[%s3748] ss:$8 sm:$0xf]
    %s3750 = scalar_lea.vmem [#allocation0], 2241
    %v3751 = vld [vmem:[%s3750] ss:$8 sm:$0xf0]
    %vm3752 = vcmask 1047556
    %v3753 = vsel %vm3752, %v3751, %v3749
    %3754 = vrot.lane.b32.xlu0 %v3753, 64
    %v3755 = vpop.permute.xlu0 %3754
    %vm3756 = vcmask 1048064
    %s3757 = scalar_lea.vmem %s1, 280
    %3758 = vst.msk [vmem:[%s3757] sm:$0xff] %vm3756, %v3755
    %s3759 = scalar_lea.vmem [#allocation0], 2497
    %v3760 = vld [vmem:[%s3759] ss:$8 sm:$0xf]
    %s3761 = scalar_lea.vmem [#allocation0], 2497
    %v3762 = vld [vmem:[%s3761] ss:$8 sm:$0xf0]
    %vm3763 = vcmask 1047556
    %v3764 = vsel %vm3763, %v3762, %v3760
    %3765 = vrot.lane.b32.xlu0 %v3764, 64
    %v3766 = vpop.permute.xlu0 %3765
    %vm3767 = vcmask 1048064
    %s3768 = scalar_lea.vmem %s1, 312
    %3769 = vst.msk [vmem:[%s3768] sm:$0xff] %vm3767, %v3766
    %s3770 = scalar_lea.vmem [#allocation0], 2753
    %v3771 = vld [vmem:[%s3770] ss:$8 sm:$0xf]
    %s3772 = scalar_lea.vmem [#allocation0], 2753
    %v3773 = vld [vmem:[%s3772] ss:$8 sm:$0xf0]
    %vm3774 = vcmask 1047556
    %v3775 = vsel %vm3774, %v3773, %v3771
    %3776 = vrot.lane.b32.xlu0 %v3775, 64
    %v3777 = vpop.permute.xlu0 %3776
    %vm3778 = vcmask 1048064
    %s3779 = scalar_lea.vmem %s1, 344
    %3780 = vst.msk [vmem:[%s3779] sm:$0xff] %vm3778, %v3777
    %s3781 = scalar_lea.vmem [#allocation0], 3009
    %v3782 = vld [vmem:[%s3781] ss:$8 sm:$0xf]
    %s3783 = scalar_lea.vmem [#allocation0], 3009
    %v3784 = vld [vmem:[%s3783] ss:$8 sm:$0xf0]
    %vm3785 = vcmask 1047556
    %v3786 = vsel %vm3785, %v3784, %v3782
    %3787 = vrot.lane.b32.xlu0 %v3786, 64
    %v3788 = vpop.permute.xlu0 %3787
    %vm3789 = vcmask 1048064
    %s3790 = scalar_lea.vmem %s1, 376
    %3791 = vst.msk [vmem:[%s3790] sm:$0xff] %vm3789, %v3788
    %s3792 = scalar_lea.vmem [#allocation0], 3265
    %v3793 = vld [vmem:[%s3792] ss:$8 sm:$0xf]
    %s3794 = scalar_lea.vmem [#allocation0], 3265
    %v3795 = vld [vmem:[%s3794] ss:$8 sm:$0xf0]
    %vm3796 = vcmask 1047556
    %v3797 = vsel %vm3796, %v3795, %v3793
    %3798 = vrot.lane.b32.xlu0 %v3797, 64
    %v3799 = vpop.permute.xlu0 %3798
    %vm3800 = vcmask 1048064
    %s3801 = scalar_lea.vmem %s1, 408
    %3802 = vst.msk [vmem:[%s3801] sm:$0xff] %vm3800, %v3799
    %s3803 = scalar_lea.vmem [#allocation0], 3521
    %v3804 = vld [vmem:[%s3803] ss:$8 sm:$0xf]
    %s3805 = scalar_lea.vmem [#allocation0], 3521
    %v3806 = vld [vmem:[%s3805] ss:$8 sm:$0xf0]
    %vm3807 = vcmask 1047556
    %v3808 = vsel %vm3807, %v3806, %v3804
    %3809 = vrot.lane.b32.xlu0 %v3808, 64
    %v3810 = vpop.permute.xlu0 %3809
    %vm3811 = vcmask 1048064
    %s3812 = scalar_lea.vmem %s1, 440
    %3813 = vst.msk [vmem:[%s3812] sm:$0xff] %vm3811, %v3810
    %s3814 = scalar_lea.vmem [#allocation0], 3777
    %v3815 = vld [vmem:[%s3814] ss:$8 sm:$0xf]
    %s3816 = scalar_lea.vmem [#allocation0], 3777
    %v3817 = vld [vmem:[%s3816] ss:$8 sm:$0xf0]
    %vm3818 = vcmask 1047556
    %v3819 = vsel %vm3818, %v3817, %v3815
    %3820 = vrot.lane.b32.xlu0 %v3819, 64
    %v3821 = vpop.permute.xlu0 %3820
    %vm3822 = vcmask 1048064
    %s3823 = scalar_lea.vmem %s1, 472
    %3824 = vst.msk [vmem:[%s3823] sm:$0xff] %vm3822, %v3821
    %s3825 = scalar_lea.vmem [#allocation0], 4033
    %v3826 = vld [vmem:[%s3825] ss:$8 sm:$0xf]
    %s3827 = scalar_lea.vmem [#allocation0], 4033
    %v3828 = vld [vmem:[%s3827] ss:$8 sm:$0xf0]
    %vm3829 = vcmask 1047556
    %v3830 = vsel %vm3829, %v3828, %v3826
    %3831 = vrot.lane.b32.xlu0 %v3830, 64
    %v3832 = vpop.permute.xlu0 %3831
    %vm3833 = vcmask 1048064
    %s3834 = scalar_lea.vmem %s1, 504
    %3835 = vst.msk [vmem:[%s3834] sm:$0xff] %vm3833, %v3832

// kernel: conv_rnn_encoder.1
$region0: #{conv_rnn_encoder.1}
  #allocation0 [shape = 'u32[]', space=smem, size = 0x4, offset = 0x4, fixed_abs, tag = 'smem constant byte address 0x4 - core index']
  #allocation1 [shape = 'u32[144,128]{1,0:T(1,128)}', space=vmem, size = 0x12000, scoped, tag = 'internal scratch']
  %s0 = inlined_call_operand.vmem [shape: bf16[4,32,128], index: 0, kind: input, shape index: {}]
  %s1 = inlined_call_operand.vmem [shape: bf16[32,32], index: 1, kind: input, shape index: {}]
  %s2 = inlined_call_operand.vmem [shape: f32[32,1], index: 2, kind: input, shape index: {}]
  %s3 = inlined_call_operand.vmem [shape: bf16[32,32], index: 3, kind: input, shape index: {}]
  %s4 = inlined_call_operand.vmem [shape: f32[32,1], index: 4, kind: input, shape index: {}]
  %s5 = inlined_call_operand.vmem [shape: f32[16,32,128], index: 5, kind: input, shape index: {}]
  %s6 = inlined_call_operand.vmem [shape: f32[16,1], index: 6, kind: input, shape index: {}]
  %s7 = inlined_call_operand.vmem [shape: f32[16,16], index: 7, kind: input, shape index: {}]
  %s8 = inlined_call_operand.vmem [shape: f32[16,1], index: 8, kind: input, shape index: {}]
  %s9 = inlined_call_operand.vmem [shape: f32[128,2], index: 9, kind: input, shape index: {}]
  %s10 = inlined_call_operand.vmem [shape: f32[32,128], index: 10, kind: output, shape index: {0}]
  %s11 = inlined_call_operand.vmem [shape: f32[16,2], index: 11, kind: output, shape index: {1}]
  %12 = xla_tuple %s10, %s11
  %s13 = sld [smem:[#allocation0]]
  $region58: #{conv_rnn_encoder.1} parent=0
    _
  %s15 = ssub.s32 1, %s13
  %s16 = scalar_select 0, %s15, %s13
  // Predicated region
  $region2: #{conv_rnn_encoder.1} parent=0 // pred_check
    _
  $region3: #{conv_rnn_encoder.1} parent=0 // pred_check_branch
    %18 = sbr.rel (0) target = $region5
  $region4: #{conv_rnn_encoder.1} parent=0 // pred_region
    _
  $region5: #{conv_rnn_encoder.1} parent=0 // pred_fallthru
    _
  // Predicated region
  $region6: #{conv_rnn_encoder.1} parent=0 // pred_check
    _
  $region7: #{conv_rnn_encoder.1} parent=0 // pred_check_branch
    %20 = sbr.rel (0) target = $region9
  $region8: #{conv_rnn_encoder.1} parent=0 // pred_region
    _
  $region9: #{conv_rnn_encoder.1} parent=0 // pred_fallthru
    _
  // Predicated region
  $region10: #{conv_rnn_encoder.1} parent=0 // pred_check
    _
  $region11: #{conv_rnn_encoder.1} parent=0 // pred_check_branch
    %22 = sbr.rel (0) target = $region13
  $region12: #{conv_rnn_encoder.1} parent=0 // pred_region
    _
  $region13: #{conv_rnn_encoder.1} parent=0 // pred_fallthru
    _
  // Predicated region
  $region14: #{conv_rnn_encoder.1} parent=0 // pred_check
    _
  $region15: #{conv_rnn_encoder.1} parent=0 // pred_check_branch
    %24 = sbr.rel (0) target = $region17
  $region16: #{conv_rnn_encoder.1} parent=0 // pred_region
    _
  $region17: #{conv_rnn_encoder.1} parent=0 // pred_fallthru
    _
  // Predicated region
  $region18: #{conv_rnn_encoder.1} parent=0 // pred_check
    _
  $region19: #{conv_rnn_encoder.1} parent=0 // pred_check_branch
    %26 = sbr.rel (0) target = $region21
  $region20: #{conv_rnn_encoder.1} parent=0 // pred_region
    _
  $region21: #{conv_rnn_encoder.1} parent=0 // pred_fallthru
    _
  // Predicated region
  $region22: #{conv_rnn_encoder.1} parent=0 // pred_check
    _
  $region23: #{conv_rnn_encoder.1} parent=0 // pred_check_branch
    %28 = sbr.rel (0) target = $region25
  $region24: #{conv_rnn_encoder.1} parent=0 // pred_region
    _
  $region25: #{conv_rnn_encoder.1} parent=0 // pred_fallthru
    _
  // Predicated region
  $region26: #{conv_rnn_encoder.1} parent=0 // pred_check
    _
  $region27: #{conv_rnn_encoder.1} parent=0 // pred_check_branch
    %30 = sbr.rel (0) target = $region29
  $region28: #{conv_rnn_encoder.1} parent=0 // pred_region
    _
  $region29: #{conv_rnn_encoder.1} parent=0 // pred_fallthru
    _
  // Predicated region
  $region30: #{conv_rnn_encoder.1} parent=0 // pred_check
    _
  $region31: #{conv_rnn_encoder.1} parent=0 // pred_check_branch
    %32 = sbr.rel (0) target = $region33
  $region32: #{conv_rnn_encoder.1} parent=0 // pred_region
    _
  $region33: #{conv_rnn_encoder.1} parent=0 // pred_fallthru
    _
  // Predicated region
  $region34: #{conv_rnn_encoder.1} parent=0 // pred_check
    _
  $region35: #{conv_rnn_encoder.1} parent=0 // pred_check_branch
    %34 = sbr.rel (0) target = $region37
  $region36: #{conv_rnn_encoder.1} parent=0 // pred_region
    _
  $region37: #{conv_rnn_encoder.1} parent=0 // pred_fallthru
    _
  // Predicated region
  $region38: #{conv_rnn_encoder.1} parent=0 // pred_check
    _
  $region39: #{conv_rnn_encoder.1} parent=0 // pred_check_branch
    %36 = sbr.rel (0) target = $region41
  $region40: #{conv_rnn_encoder.1} parent=0 // pred_region
    _
  $region41: #{conv_rnn_encoder.1} parent=0 // pred_fallthru
    _
  %v38 = vld [vmem:[%s1] sm:$0xf]
  %v39 = vld [vmem:[%s1 + $0x4] sm:$0xf]
  %v40 = vld [vmem:[%s1 + $0x8] sm:$0xf]
  %v41 = vld [vmem:[%s1 + $0xc] sm:$0xf]
  %v42 = vld [vmem:[%s3] sm:$0xf]
  %v43 = vld [vmem:[%s3 + $0x4] sm:$0xf]
  %v44 = vld [vmem:[%s3 + $0x8] sm:$0xf]
  %v45 = vld [vmem:[%s3 + $0xc] sm:$0xf]
  %v46 = vld [vmem:[%s7] sm:$0xff]
  %v47 = vld [vmem:[%s7 + $0x8] sm:$0xff]
  %v48 = vld [vmem:[%s9] sm:$0xff]
  %v49 = vld [vmem:[%s9 + $0x8] sm:$0xff]
  %v50 = vld [vmem:[%s9 + $0x10] sm:$0xff]
  %v51 = vld [vmem:[%s9 + $0x18] sm:$0xff]
  %v52 = vld [vmem:[%s9 + $0x20] sm:$0xff]
  %v53 = vld [vmem:[%s9 + $0x28] sm:$0xff]
  %v54 = vld [vmem:[%s9 + $0x30] sm:$0xff]
  %v55 = vld [vmem:[%s9 + $0x38] sm:$0xff]
  %v56 = vld [vmem:[%s9 + $0x40] sm:$0xff]
  %v57 = vld [vmem:[%s9 + $0x48] sm:$0xff]
  %v58 = vld [vmem:[%s9 + $0x50] sm:$0xff]
  %v59 = vld [vmem:[%s9 + $0x58] sm:$0xff]
  %v60 = vld [vmem:[%s9 + $0x60] sm:$0xff]
  %v61 = vld [vmem:[%s9 + $0x68] sm:$0xff]
  %v62 = vld [vmem:[%s9 + $0x70] sm:$0xff]
  %v63 = vld [vmem:[%s9 + $0x78] sm:$0xff]
  %v64 = vld [vmem:[%s2] sm:$0xff]
  %v65 = vld [vmem:[%s2 + $0x8] sm:$0xff]
  %v66 = vld [vmem:[%s2 + $0x10] sm:$0xff]
  %v67 = vld [vmem:[%s2 + $0x18] sm:$0xff]
  %v68 = vld [vmem:[%s4] sm:$0xff]
  %v69 = vld [vmem:[%s4 + $0x8] sm:$0xff]
  %v70 = vld [vmem:[%s4 + $0x10] sm:$0xff]
  %v71 = vld [vmem:[%s4 + $0x18] sm:$0xff]
  %v72 = vld [vmem:[%s6] sm:$0xff]
  %v73 = vld [vmem:[%s6 + $0x8] sm:$0xff]
  %v74 = vld [vmem:[%s8] sm:$0xff]
  %v75 = vld [vmem:[%s8 + $0x8] sm:$0xff]
  %v76 = vld [vmem:[%s0] sm:$0xf]
  %v77 = vld [vmem:[%s0 + $0x4] sm:$0xf]
  %v78 = vld [vmem:[%s0 + $0x8] sm:$0xf]
  %v79 = vld [vmem:[%s0 + $0xc] sm:$0xf]
  %81 = vset.pattern.permute.xlu0 0
  %82 = vperm.xlu0 %81, %v64
  %v83 = vpop.permute.xlu0 %82
  %86 = vset.pattern.permute.xlu0 0
  %87 = vperm.xlu0 %86, %v65
  %v88 = vpop.permute.xlu0 %87
  %91 = vset.pattern.permute.xlu0 0
  %92 = vperm.xlu0 %91, %v66
  %v93 = vpop.permute.xlu0 %92
  %96 = vset.pattern.permute.xlu0 0
  %97 = vperm.xlu0 %96, %v67
  %v98 = vpop.permute.xlu0 %97
  %v104 = vunpack.c.l.b16 %v38
  %v105 = vunpack.c.l.b16 %v39
  %v106 = vunpack.c.l.b16 %v40
  %v107 = vunpack.c.l.b16 %v41
  %v108 = vpack.c.b16 %v105, %v104
  %v109 = vpack.c.b16 %v107, %v106
  %v114 = vunpack.c.l.b16 %v76
  %v115 = vunpack.c.l.b16 %v77
  %v116 = vunpack.c.l.b16 %v78
  %v117 = vunpack.c.l.b16 %v79
  %v118 = vpack.c.b16 %v115, %v114
  %v119 = vpack.c.b16 %v117, %v116
  %vm122 = vcmask 261120
  %v124 = vsel %vm122, %v108, 0
  %v127 = vsel %vm122, %v109, 0
  %129 = vmatprep.subr.bf16.mxu0 0
  %130 = vmatpush1.bf16.msra.mxu0 %v118
  %131 = vmatprep.subr.bf16.mxu0 0
  %132 = vmatpush1.bf16.msra.mxu0 %v119
  %133 = vmatprep.subr.bf16.mxu0 0
  %134 = vmatpush1.bf16.msra.mxu0 0
  %135 = vmatprep.subr.bf16.mxu0 0
  %136 = vmatpush1.bf16.msra.mxu0 0
  %137 = vmatprep.subr.bf16.mxu0 0
  %138 = vmatpush1.bf16.msra.mxu0 0
  %139 = vmatprep.subr.bf16.mxu0 0
  %140 = vmatpush1.bf16.msra.mxu0 0
  %141 = vmatprep.subr.bf16.mxu0 0
  %142 = vmatpush1.bf16.msra.mxu0 0
  %143 = vmatprep.subr.bf16.mxu0 0
  %144 = vmatpush1.bf16.msra.mxu0 0
  %145 = vmatprep.subr.bf16.mxu0 0
  %146 = vmatpush1.bf16.msra.mxu0 0
  %147 = vmatprep.subr.bf16.mxu0 0
  %148 = vmatpush1.bf16.msra.mxu0 0
  %149 = vmatprep.subr.bf16.mxu0 0
  %150 = vmatpush1.bf16.msra.mxu0 0
  %151 = vmatprep.subr.bf16.mxu0 0
  %152 = vmatpush1.bf16.msra.mxu0 0
  %153 = vmatprep.subr.bf16.mxu0 0
  %154 = vmatpush1.bf16.msra.mxu0 0
  %155 = vmatprep.subr.bf16.mxu0 0
  %156 = vmatpush1.bf16.msra.mxu0 0
  %157 = vmatprep.subr.bf16.mxu0 0
  %158 = vmatpush1.bf16.msra.mxu0 0
  %159 = vmatprep.subr.bf16.mxu0 0
  %160 = vmatpush1.bf16.msra.mxu0 0
  %161 = vmatprep.mubr.bf16.mxu0 0
  %162 = vmatmul.mubr.bf16.gmra.mrb[0].mxu0 %v124
  %v163 = vpop.f32.mrb[0].mxu0
  %v164 = vadd.f32 %v83, %v163
  %v165 = vpop.f32.mrb[0].mxu0
  %v166 = vpop.f32.mrb[0].mxu0
  %v167 = vadd.f32 %v88, %v166
  %v168 = vpop.f32.mrb[0].mxu0
  %169 = vmatprep.mubr.bf16.mxu0 0
  %170 = vmatmul.mubr.bf16.gmra.mrb[0].mxu0 %v127
  %v171 = vpop.f32.mrb[0].mxu0
  %v172 = vadd.f32 %v93, %v171
  %v173 = vpop.f32.mrb[0].mxu0
  %v174 = vpop.f32.mrb[0].mxu0
  %v175 = vadd.f32 %v98, %v174
  %v176 = vpop.f32.mrb[0].mxu0
  %177 = vdwg.mxu0
  %v178 = vmax.f32 %v164, 0.0
  %v179 = vmax.f32 %v167, 0.0
  %v180 = vmax.f32 %v172, 0.0
  %v181 = vmax.f32 %v175, 0.0
  %v182 = vld [vmem:[%s5] sm:$0xff]
  %v183 = vld [vmem:[%s5 + $0x8] sm:$0xff]
  %v184 = vld [vmem:[%s5 + $0x10] sm:$0xff]
  %v185 = vld [vmem:[%s5 + $0x18] sm:$0xff]
  %v186 = vmul.f32 %v182, %v178
  %v187 = vmul.f32 %v183, %v179
  %v188 = vmul.f32 %v184, %v180
  %v189 = vmul.f32 %v185, %v181
  %v190 = vadd.f32 %v186, %v187
  %v191 = vadd.f32 %v190, %v188
  %v192 = vadd.f32 %v191, %v189
  %v193 = vrot.slane %v192, 4
  %v194 = vadd.f32 %v192, %v193
  %v195 = vrot.slane %v194, 2
  %v196 = vadd.f32 %v194, %v195
  %v197 = vrot.slane %v196, 1
  %v198 = vadd.f32 %v196, %v197
  %s199 = scalar_lea.vmem %s5, 32
  %v200 = vld [vmem:[%s199] sm:$0xff]
  %v201 = vld [vmem:[%s199 + $0x8] sm:$0xff]
  %v202 = vld [vmem:[%s199 + $0x10] sm:$0xff]
  %v203 = vld [vmem:[%s199 + $0x18] sm:$0xff]
  %v204 = vmul.f32 %v200, %v178
  %v205 = vmul.f32 %v201, %v179
  %v206 = vmul.f32 %v202, %v180
  %v207 = vmul.f32 %v203, %v181
  %v208 = vadd.f32 %v204, %v205
  %v209 = vadd.f32 %v208, %v206
  %v210 = vadd.f32 %v209, %v207
  %v211 = vrot.slane %v210, 4
  %v212 = vadd.f32 %v210, %v211
  %v213 = vrot.slane %v212, 2
  %v214 = vadd.f32 %v212, %v213
  %v215 = vrot.slane %v214, 1
  %v216 = vadd.f32 %v214, %v215
  %s217 = scalar_lea.vmem %s5, 64
  %v218 = vld [vmem:[%s217] sm:$0xff]
  %v219 = vld [vmem:[%s217 + $0x8] sm:$0xff]
  %v220 = vld [vmem:[%s217 + $0x10] sm:$0xff]
  %v221 = vld [vmem:[%s217 + $0x18] sm:$0xff]
  %v222 = vmul.f32 %v218, %v178
  %v223 = vmul.f32 %v219, %v179
  %v224 = vmul.f32 %v220, %v180
  %v225 = vmul.f32 %v221, %v181
  %v226 = vadd.f32 %v222, %v223
  %v227 = vadd.f32 %v226, %v224
  %v228 = vadd.f32 %v227, %v225
  %v229 = vrot.slane %v228, 4
  %v230 = vadd.f32 %v228, %v229
  %v231 = vrot.slane %v230, 2
  %v232 = vadd.f32 %v230, %v231
  %v233 = vrot.slane %v232, 1
  %v234 = vadd.f32 %v232, %v233
  %s235 = scalar_lea.vmem %s5, 96
  %v236 = vld [vmem:[%s235] sm:$0xff]
  %v237 = vld [vmem:[%s235 + $0x8] sm:$0xff]
  %v238 = vld [vmem:[%s235 + $0x10] sm:$0xff]
  %v239 = vld [vmem:[%s235 + $0x18] sm:$0xff]
  %v240 = vmul.f32 %v236, %v178
  %v241 = vmul.f32 %v237, %v179
  %v242 = vmul.f32 %v238, %v180
  %v243 = vmul.f32 %v239, %v181
  %v244 = vadd.f32 %v240, %v241
  %v245 = vadd.f32 %v244, %v242
  %v246 = vadd.f32 %v245, %v243
  %v247 = vrot.slane %v246, 4
  %v248 = vadd.f32 %v246, %v247
  %v249 = vrot.slane %v248, 2
  %v250 = vadd.f32 %v248, %v249
  %v251 = vrot.slane %v250, 1
  %v252 = vadd.f32 %v250, %v251
  %s253 = scalar_lea.vmem %s5, 128
  %v254 = vld [vmem:[%s253] sm:$0xff]
  %v255 = vld [vmem:[%s253 + $0x8] sm:$0xff]
  %v256 = vld [vmem:[%s253 + $0x10] sm:$0xff]
  %v257 = vld [vmem:[%s253 + $0x18] sm:$0xff]
  %v258 = vmul.f32 %v254, %v178
  %v259 = vmul.f32 %v255, %v179
  %v260 = vmul.f32 %v256, %v180
  %v261 = vmul.f32 %v257, %v181
  %v262 = vadd.f32 %v258, %v259
  %v263 = vadd.f32 %v262, %v260
  %v264 = vadd.f32 %v263, %v261
  %v265 = vrot.slane %v264, 4
  %v266 = vadd.f32 %v264, %v265
  %v267 = vrot.slane %v266, 2
  %v268 = vadd.f32 %v266, %v267
  %v269 = vrot.slane %v268, 1
  %v270 = vadd.f32 %v268, %v269
  %s271 = scalar_lea.vmem %s5, 160
  %v272 = vld [vmem:[%s271] sm:$0xff]
  %v273 = vld [vmem:[%s271 + $0x8] sm:$0xff]
  %v274 = vld [vmem:[%s271 + $0x10] sm:$0xff]
  %v275 = vld [vmem:[%s271 + $0x18] sm:$0xff]
  %v276 = vmul.f32 %v272, %v178
  %v277 = vmul.f32 %v273, %v179
  %v278 = vmul.f32 %v274, %v180
  %v279 = vmul.f32 %v275, %v181
  %v280 = vadd.f32 %v276, %v277
  %v281 = vadd.f32 %v280, %v278
  %v282 = vadd.f32 %v281, %v279
  %v283 = vrot.slane %v282, 4
  %v284 = vadd.f32 %v282, %v283
  %v285 = vrot.slane %v284, 2
  %v286 = vadd.f32 %v284, %v285
  %v287 = vrot.slane %v286, 1
  %v288 = vadd.f32 %v286, %v287
  %s289 = scalar_lea.vmem %s5, 192
  %v290 = vld [vmem:[%s289] sm:$0xff]
  %v291 = vld [vmem:[%s289 + $0x8] sm:$0xff]
  %v292 = vld [vmem:[%s289 + $0x10] sm:$0xff]
  %v293 = vld [vmem:[%s289 + $0x18] sm:$0xff]
  %v294 = vmul.f32 %v290, %v178
  %v295 = vmul.f32 %v291, %v179
  %v296 = vmul.f32 %v292, %v180
  %v297 = vmul.f32 %v293, %v181
  %v298 = vadd.f32 %v294, %v295
  %v299 = vadd.f32 %v298, %v296
  %v300 = vadd.f32 %v299, %v297
  %v301 = vrot.slane %v300, 4
  %v302 = vadd.f32 %v300, %v301
  %v303 = vrot.slane %v302, 2
  %v304 = vadd.f32 %v302, %v303
  %v305 = vrot.slane %v304, 1
  %v306 = vadd.f32 %v304, %v305
  %s307 = scalar_lea.vmem %s5, 224
  %v308 = vld [vmem:[%s307] sm:$0xff]
  %v309 = vld [vmem:[%s307 + $0x8] sm:$0xff]
  %v310 = vld [vmem:[%s307 + $0x10] sm:$0xff]
  %v311 = vld [vmem:[%s307 + $0x18] sm:$0xff]
  %v312 = vmul.f32 %v308, %v178
  %v313 = vmul.f32 %v309, %v179
  %v314 = vmul.f32 %v310, %v180
  %v315 = vmul.f32 %v311, %v181
  %v316 = vadd.f32 %v312, %v313
  %v317 = vadd.f32 %v316, %v314
  %v318 = vadd.f32 %v317, %v315
  %v319 = vrot.slane %v318, 4
  %v320 = vadd.f32 %v318, %v319
  %v321 = vrot.slane %v320, 2
  %v322 = vadd.f32 %v320, %v321
  %v323 = vrot.slane %v322, 1
  %v324 = vadd.f32 %v322, %v323
  %s325 = scalar_lea.vmem %s5, 256
  %v326 = vld [vmem:[%s325] sm:$0xff]
  %v327 = vld [vmem:[%s325 + $0x8] sm:$0xff]
  %v328 = vld [vmem:[%s325 + $0x10] sm:$0xff]
  %v329 = vld [vmem:[%s325 + $0x18] sm:$0xff]
  %v330 = vmul.f32 %v326, %v178
  %v331 = vmul.f32 %v327, %v179
  %v332 = vmul.f32 %v328, %v180
  %v333 = vmul.f32 %v329, %v181
  %v334 = vadd.f32 %v330, %v331
  %v335 = vadd.f32 %v334, %v332
  %v336 = vadd.f32 %v335, %v333
  %v337 = vrot.slane %v336, 4
  %v338 = vadd.f32 %v336, %v337
  %v339 = vrot.slane %v338, 2
  %v340 = vadd.f32 %v338, %v339
  %v341 = vrot.slane %v340, 1
  %v342 = vadd.f32 %v340, %v341
  %s343 = scalar_lea.vmem %s5, 288
  %v344 = vld [vmem:[%s343] sm:$0xff]
  %v345 = vld [vmem:[%s343 + $0x8] sm:$0xff]
  %v346 = vld [vmem:[%s343 + $0x10] sm:$0xff]
  %v347 = vld [vmem:[%s343 + $0x18] sm:$0xff]
  %v348 = vmul.f32 %v344, %v178
  %v349 = vmul.f32 %v345, %v179
  %v350 = vmul.f32 %v346, %v180
  %v351 = vmul.f32 %v347, %v181
  %v352 = vadd.f32 %v348, %v349
  %v353 = vadd.f32 %v352, %v350
  %v354 = vadd.f32 %v353, %v351
  %v355 = vrot.slane %v354, 4
  %v356 = vadd.f32 %v354, %v355
  %v357 = vrot.slane %v356, 2
  %v358 = vadd.f32 %v356, %v357
  %v359 = vrot.slane %v358, 1
  %v360 = vadd.f32 %v358, %v359
  %s361 = scalar_lea.vmem %s5, 320
  %v362 = vld [vmem:[%s361] sm:$0xff]
  %v363 = vld [vmem:[%s361 + $0x8] sm:$0xff]
  %v364 = vld [vmem:[%s361 + $0x10] sm:$0xff]
  %v365 = vld [vmem:[%s361 + $0x18] sm:$0xff]
  %v366 = vmul.f32 %v362, %v178
  %v367 = vmul.f32 %v363, %v179
  %v368 = vmul.f32 %v364, %v180
  %v369 = vmul.f32 %v365, %v181
  %v370 = vadd.f32 %v366, %v367
  %v371 = vadd.f32 %v370, %v368
  %v372 = vadd.f32 %v371, %v369
  %v373 = vrot.slane %v372, 4
  %v374 = vadd.f32 %v372, %v373
  %v375 = vrot.slane %v374, 2
  %v376 = vadd.f32 %v374, %v375
  %v377 = vrot.slane %v376, 1
  %v378 = vadd.f32 %v376, %v377
  %s379 = scalar_lea.vmem %s5, 352
  %v380 = vld [vmem:[%s379] sm:$0xff]
  %v381 = vld [vmem:[%s379 + $0x8] sm:$0xff]
  %v382 = vld [vmem:[%s379 + $0x10] sm:$0xff]
  %v383 = vld [vmem:[%s379 + $0x18] sm:$0xff]
  %v384 = vmul.f32 %v380, %v178
  %v385 = vmul.f32 %v381, %v179
  %v386 = vmul.f32 %v382, %v180
  %v387 = vmul.f32 %v383, %v181
  %v388 = vadd.f32 %v384, %v385
  %v389 = vadd.f32 %v388, %v386
  %v390 = vadd.f32 %v389, %v387
  %v391 = vrot.slane %v390, 4
  %v392 = vadd.f32 %v390, %v391
  %v393 = vrot.slane %v392, 2
  %v394 = vadd.f32 %v392, %v393
  %v395 = vrot.slane %v394, 1
  %v396 = vadd.f32 %v394, %v395
  %s397 = scalar_lea.vmem %s5, 384
  %v398 = vld [vmem:[%s397] sm:$0xff]
  %v399 = vld [vmem:[%s397 + $0x8] sm:$0xff]
  %v400 = vld [vmem:[%s397 + $0x10] sm:$0xff]
  %v401 = vld [vmem:[%s397 + $0x18] sm:$0xff]
  %v402 = vmul.f32 %v398, %v178
  %v403 = vmul.f32 %v399, %v179
  %v404 = vmul.f32 %v400, %v180
  %v405 = vmul.f32 %v401, %v181
  %v406 = vadd.f32 %v402, %v403
  %v407 = vadd.f32 %v406, %v404
  %v408 = vadd.f32 %v407, %v405
  %v409 = vrot.slane %v408, 4
  %v410 = vadd.f32 %v408, %v409
  %v411 = vrot.slane %v410, 2
  %v412 = vadd.f32 %v410, %v411
  %v413 = vrot.slane %v412, 1
  %v414 = vadd.f32 %v412, %v413
  %s415 = scalar_lea.vmem %s5, 416
  %v416 = vld [vmem:[%s415] sm:$0xff]
  %v417 = vld [vmem:[%s415 + $0x8] sm:$0xff]
  %v418 = vld [vmem:[%s415 + $0x10] sm:$0xff]
  %v419 = vld [vmem:[%s415 + $0x18] sm:$0xff]
  %v420 = vmul.f32 %v416, %v178
  %v421 = vmul.f32 %v417, %v179
  %v422 = vmul.f32 %v418, %v180
  %v423 = vmul.f32 %v419, %v181
  %v424 = vadd.f32 %v420, %v421
  %v425 = vadd.f32 %v424, %v422
  %v426 = vadd.f32 %v425, %v423
  %v427 = vrot.slane %v426, 4
  %v428 = vadd.f32 %v426, %v427
  %v429 = vrot.slane %v428, 2
  %v430 = vadd.f32 %v428, %v429
  %v431 = vrot.slane %v430, 1
  %v432 = vadd.f32 %v430, %v431
  %s433 = scalar_lea.vmem %s5, 448
  %v434 = vld [vmem:[%s433] sm:$0xff]
  %v435 = vld [vmem:[%s433 + $0x8] sm:$0xff]
  %v436 = vld [vmem:[%s433 + $0x10] sm:$0xff]
  %v437 = vld [vmem:[%s433 + $0x18] sm:$0xff]
  %v438 = vmul.f32 %v434, %v178
  %v439 = vmul.f32 %v435, %v179
  %v440 = vmul.f32 %v436, %v180
  %v441 = vmul.f32 %v437, %v181
  %v442 = vadd.f32 %v438, %v439
  %v443 = vadd.f32 %v442, %v440
  %v444 = vadd.f32 %v443, %v441
  %v445 = vrot.slane %v444, 4
  %v446 = vadd.f32 %v444, %v445
  %v447 = vrot.slane %v446, 2
  %v448 = vadd.f32 %v446, %v447
  %v449 = vrot.slane %v448, 1
  %v450 = vadd.f32 %v448, %v449
  %s451 = scalar_lea.vmem %s5, 480
  %v452 = vld [vmem:[%s451] sm:$0xff]
  %v453 = vld [vmem:[%s451 + $0x8] sm:$0xff]
  %v454 = vld [vmem:[%s451 + $0x10] sm:$0xff]
  %v455 = vld [vmem:[%s451 + $0x18] sm:$0xff]
  %v456 = vmul.f32 %v452, %v178
  %v457 = vmul.f32 %v453, %v179
  %v458 = vmul.f32 %v454, %v180
  %v459 = vmul.f32 %v455, %v181
  %v460 = vadd.f32 %v456, %v457
  %v461 = vadd.f32 %v460, %v458
  %v462 = vadd.f32 %v461, %v459
  %v463 = vrot.slane %v462, 4
  %v464 = vadd.f32 %v462, %v463
  %v465 = vrot.slane %v464, 2
  %v466 = vadd.f32 %v464, %v465
  %v467 = vrot.slane %v466, 1
  %v468 = vadd.f32 %v466, %v467
  %vm469 = vcmask 1040384
  %v470 = vsel %vm469, %v198, %v216
  %vm471 = vcmask 1041408
  %v472 = vsel %vm471, %v470, %v234
  %vm473 = vcmask 1042432
  %v474 = vsel %vm473, %v472, %v252
  %vm475 = vcmask 1043456
  %v476 = vsel %vm475, %v474, %v270
  %vm477 = vcmask 1044480
  %v478 = vsel %vm477, %v476, %v288
  %vm479 = vcmask 1045504
  %v480 = vsel %vm479, %v478, %v306
  %vm481 = vcmask 1046528
  %v482 = vsel %vm481, %v480, %v324
  %v483 = vsel %vm469, %v342, %v360
  %v484 = vsel %vm471, %v483, %v378
  %v485 = vsel %vm473, %v484, %v396
  %v486 = vsel %vm475, %v485, %v414
  %v487 = vsel %vm477, %v486, %v432
  %v488 = vsel %vm479, %v487, %v450
  %v489 = vsel %vm481, %v488, %v468
  %491 = vset.pattern.permute.xlu0 0
  %492 = vperm.xlu0 %491, %v72
  %v493 = vpop.permute.xlu0 %492
  %496 = vset.pattern.permute.xlu0 0
  %497 = vperm.xlu0 %496, %v73
  %v498 = vpop.permute.xlu0 %497
  %500 = vmatprep.subr.mxu0 0.0
  %501 = vmatpush1.msra.mxu0 %v48
  %502 = vmatprep.subr.mxu0 0.0
  %503 = vmatpush1.msra.mxu0 %v49
  %504 = vmatprep.subr.mxu0 0.0
  %505 = vmatpush1.msra.mxu0 %v50
  %506 = vmatprep.subr.mxu0 0.0
  %507 = vmatpush1.msra.mxu0 %v51
  %508 = vmatprep.subr.mxu0 0.0
  %509 = vmatpush1.msra.mxu0 %v52
  %510 = vmatprep.subr.mxu0 0.0
  %511 = vmatpush1.msra.mxu0 %v53
  %512 = vmatprep.subr.mxu0 0.0
  %513 = vmatpush1.msra.mxu0 %v54
  %514 = vmatprep.subr.mxu0 0.0
  %515 = vmatpush1.msra.mxu0 %v55
  %516 = vmatprep.subr.mxu0 0.0
  %517 = vmatpush1.msra.mxu0 %v56
  %518 = vmatprep.subr.mxu0 0.0
  %519 = vmatpush1.msra.mxu0 %v57
  %520 = vmatprep.subr.mxu0 0.0
  %521 = vmatpush1.msra.mxu0 %v58
  %522 = vmatprep.subr.mxu0 0.0
  %523 = vmatpush1.msra.mxu0 %v59
  %524 = vmatprep.subr.mxu0 0.0
  %525 = vmatpush1.msra.mxu0 %v60
  %526 = vmatprep.subr.mxu0 0.0
  %527 = vmatpush1.msra.mxu0 %v61
  %528 = vmatprep.subr.mxu0 0.0
  %529 = vmatpush1.msra.mxu0 %v62
  %530 = vmatprep.subr.mxu0 0.0
  %531 = vmatpush1.msra.mxu0 %v63
  %532 = vmatprep.subr.mxu0 0.0
  %533 = vmatpush1.msra.mxu0 0.0
  %534 = vmatprep.subr.mxu0 0.0
  %535 = vmatpush1.msra.mxu0 0.0
  %536 = vmatprep.subr.mxu0 0.0
  %537 = vmatpush1.msra.mxu0 0.0
  %538 = vmatprep.subr.mxu0 0.0
  %539 = vmatpush1.msra.mxu0 0.0
  %540 = vmatprep.subr.mxu0 0.0
  %541 = vmatpush1.msra.mxu0 0.0
  %542 = vmatprep.subr.mxu0 0.0
  %543 = vmatpush1.msra.mxu0 0.0
  %544 = vmatprep.subr.mxu0 0.0
  %545 = vmatpush1.msra.mxu0 0.0
  %546 = vmatprep.subr.mxu0 0.0
  %547 = vmatpush1.msra.mxu0 0.0
  %548 = vmatprep.subr.mxu0 0.0
  %549 = vmatpush1.msra.mxu0 0.0
  %550 = vmatprep.subr.mxu0 0.0
  %551 = vmatpush1.msra.mxu0 0.0
  %552 = vmatprep.subr.mxu0 0.0
  %553 = vmatpush1.msra.mxu0 0.0
  %554 = vmatprep.subr.mxu0 0.0
  %555 = vmatpush1.msra.mxu0 0.0
  %556 = vmatprep.subr.mxu0 0.0
  %557 = vmatpush1.msra.mxu0 0.0
  %558 = vmatprep.subr.mxu0 0.0
  %559 = vmatpush1.msra.mxu0 0.0
  %560 = vmatprep.subr.mxu0 0.0
  %561 = vmatpush1.msra.mxu0 0.0
  %562 = vmatprep.subr.mxu0 0.0
  %563 = vmatpush1.msra.mxu0 0.0
  %564 = vmatprep.mubr.f32.mxu0 0.0
  %565 = vmatmul.mubr.f32.gmra.mrb[0].mxu0 %v482
  %v566 = vpop.f32.mrb[0].mxu0
  %v567 = vadd.f32 %v493, %v566
  %v568 = vpop.f32.mrb[0].mxu0
  %569 = vmatprep.mubr.f32.mxu0 0.0
  %570 = vmatmul.mubr.f32.gmra.mrb[0].mxu0 %v489
  %v571 = vpop.f32.mrb[0].mxu0
  %v572 = vadd.f32 %v498, %v571
  %v573 = vpop.f32.mrb[0].mxu0
  %574 = vdwg.mxu0
  %v575 = vmax.f32 %v567, 0.0
  %v576 = vmax.f32 %v572, 0.0
  %s577 = scalar_lea.vmem %s0, 16
  %v578 = vld [vmem:[%s577] sm:$0xf]
  %v579 = vld [vmem:[%s577 + $0x4] sm:$0xf]
  %v580 = vld [vmem:[%s577 + $0x8] sm:$0xf]
  %v581 = vld [vmem:[%s577 + $0xc] sm:$0xf]
  %v586 = vunpack.c.l.b16 %v578
  %v587 = vunpack.c.l.b16 %v579
  %v588 = vunpack.c.l.b16 %v580
  %v589 = vunpack.c.l.b16 %v581
  %v590 = vpack.c.b16 %v587, %v586
  %v591 = vpack.c.b16 %v589, %v588
  %594 = vmatprep.subr.bf16.mxu0 0
  %595 = vmatpush1.bf16.msra.mxu0 %v590
  %596 = vmatprep.subr.bf16.mxu0 0
  %597 = vmatpush1.bf16.msra.mxu0 %v591
  %598 = vmatprep.subr.bf16.mxu0 0
  %599 = vmatpush1.bf16.msra.mxu0 0
  %600 = vmatprep.subr.bf16.mxu0 0
  %601 = vmatpush1.bf16.msra.mxu0 0
  %602 = vmatprep.subr.bf16.mxu0 0
  %603 = vmatpush1.bf16.msra.mxu0 0
  %604 = vmatprep.subr.bf16.mxu0 0
  %605 = vmatpush1.bf16.msra.mxu0 0
  %606 = vmatprep.subr.bf16.mxu0 0
  %607 = vmatpush1.bf16.msra.mxu0 0
  %608 = vmatprep.subr.bf16.mxu0 0
  %609 = vmatpush1.bf16.msra.mxu0 0
  %610 = vmatprep.subr.bf16.mxu0 0
  %611 = vmatpush1.bf16.msra.mxu0 0
  %612 = vmatprep.subr.bf16.mxu0 0
  %613 = vmatpush1.bf16.msra.mxu0 0
  %614 = vmatprep.subr.bf16.mxu0 0
  %615 = vmatpush1.bf16.msra.mxu0 0
  %616 = vmatprep.subr.bf16.mxu0 0
  %617 = vmatpush1.bf16.msra.mxu0 0
  %618 = vmatprep.subr.bf16.mxu0 0
  %619 = vmatpush1.bf16.msra.mxu0 0
  %620 = vmatprep.subr.bf16.mxu0 0
  %621 = vmatpush1.bf16.msra.mxu0 0
  %622 = vmatprep.subr.bf16.mxu0 0
  %623 = vmatpush1.bf16.msra.mxu0 0
  %624 = vmatprep.subr.bf16.mxu0 0
  %625 = vmatpush1.bf16.msra.mxu0 0
  %626 = vmatprep.mubr.bf16.mxu0 0
  %627 = vmatmul.mubr.bf16.gmra.mrb[0].mxu0 %v124
  %v628 = vpop.f32.mrb[0].mxu0
  %v629 = vadd.f32 %v83, %v628
  %v630 = vpop.f32.mrb[0].mxu0
  %v631 = vpop.f32.mrb[0].mxu0
  %v632 = vadd.f32 %v88, %v631
  %v633 = vpop.f32.mrb[0].mxu0
  %634 = vmatprep.mubr.bf16.mxu0 0
  %635 = vmatmul.mubr.bf16.gmra.mrb[0].mxu0 %v127
  %v636 = vpop.f32.mrb[0].mxu0
  %v637 = vadd.f32 %v93, %v636
  %v638 = vpop.f32.mrb[0].mxu0
  %v639 = vpop.f32.mrb[0].mxu0
  %v640 = vadd.f32 %v98, %v639
  %v641 = vpop.f32.mrb[0].mxu0
  %642 = vdwg.mxu0
  %v643 = vpack.c.bf16 %v179, %v178
  %v644 = vpack.c.bf16 %v181, %v180
  %646 = vset.pattern.permute.xlu0 0
  %647 = vperm.xlu0 %646, %v68
  %v648 = vpop.permute.xlu0 %647
  %651 = vset.pattern.permute.xlu0 0
  %652 = vperm.xlu0 %651, %v69
  %v653 = vpop.permute.xlu0 %652
  %656 = vset.pattern.permute.xlu0 0
  %657 = vperm.xlu0 %656, %v70
  %v658 = vpop.permute.xlu0 %657
  %661 = vset.pattern.permute.xlu0 0
  %662 = vperm.xlu0 %661, %v71
  %v663 = vpop.permute.xlu0 %662
  %v669 = vunpack.c.l.b16 %v42
  %v670 = vunpack.c.l.b16 %v43
  %v671 = vunpack.c.l.b16 %v44
  %v672 = vunpack.c.l.b16 %v45
  %v673 = vpack.c.b16 %v670, %v669
  %v674 = vpack.c.b16 %v672, %v671
  %v676 = vsel %vm122, %v673, 0
  %v679 = vsel %vm122, %v674, 0
  %681 = vmatprep.subr.bf16.mxu0 0
  %682 = vmatpush1.bf16.msra.mxu0 %v643
  %683 = vmatprep.subr.bf16.mxu0 0
  %684 = vmatpush1.bf16.msra.mxu0 %v644
  %685 = vmatprep.subr.bf16.mxu0 0
  %686 = vmatpush1.bf16.msra.mxu0 0
  %687 = vmatprep.subr.bf16.mxu0 0
  %688 = vmatpush1.bf16.msra.mxu0 0
  %689 = vmatprep.subr.bf16.mxu0 0
  %690 = vmatpush1.bf16.msra.mxu0 0
  %691 = vmatprep.subr.bf16.mxu0 0
  %692 = vmatpush1.bf16.msra.mxu0 0
  %693 = vmatprep.subr.bf16.mxu0 0
  %694 = vmatpush1.bf16.msra.mxu0 0
  %695 = vmatprep.subr.bf16.mxu0 0
  %696 = vmatpush1.bf16.msra.mxu0 0
  %697 = vmatprep.subr.bf16.mxu0 0
  %698 = vmatpush1.bf16.msra.mxu0 0
  %699 = vmatprep.subr.bf16.mxu0 0
  %700 = vmatpush1.bf16.msra.mxu0 0
  %701 = vmatprep.subr.bf16.mxu0 0
  %702 = vmatpush1.bf16.msra.mxu0 0
  %703 = vmatprep.subr.bf16.mxu0 0
  %704 = vmatpush1.bf16.msra.mxu0 0
  %705 = vmatprep.subr.bf16.mxu0 0
  %706 = vmatpush1.bf16.msra.mxu0 0
  %707 = vmatprep.subr.bf16.mxu0 0
  %708 = vmatpush1.bf16.msra.mxu0 0
  %709 = vmatprep.subr.bf16.mxu0 0
  %710 = vmatpush1.bf16.msra.mxu0 0
  %711 = vmatprep.subr.bf16.mxu0 0
  %712 = vmatpush1.bf16.msra.mxu0 0
  %713 = vmatprep.mubr.bf16.mxu0 0
  %714 = vmatmul.mubr.bf16.gmra.mrb[0].mxu0 %v676
  %v715 = vpop.f32.mrb[0].mxu0
  %v716 = vadd.f32 %v648, %v715
  %v717 = vpop.f32.mrb[0].mxu0
  %v718 = vpop.f32.mrb[0].mxu0
  %v719 = vadd.f32 %v653, %v718
  %v720 = vpop.f32.mrb[0].mxu0
  %721 = vmatprep.mubr.bf16.mxu0 0
  %722 = vmatmul.mubr.bf16.gmra.mrb[0].mxu0 %v679
  %v723 = vpop.f32.mrb[0].mxu0
  %v724 = vadd.f32 %v658, %v723
  %v725 = vpop.f32.mrb[0].mxu0
  %v726 = vpop.f32.mrb[0].mxu0
  %v727 = vadd.f32 %v663, %v726
  %v728 = vpop.f32.mrb[0].mxu0
  %729 = vdwg.mxu0
  %v730 = vadd.f32 %v629, %v716
  %v731 = vadd.f32 %v632, %v719
  %v732 = vadd.f32 %v637, %v724
  %v733 = vadd.f32 %v640, %v727
  %v734 = vmax.f32 %v730, 0.0
  %v735 = vmax.f32 %v731, 0.0
  %v736 = vmax.f32 %v732, 0.0
  %v737 = vmax.f32 %v733, 0.0
  %v738 = vmul.f32 %v182, %v734
  %v739 = vmul.f32 %v183, %v735
  %v740 = vmul.f32 %v184, %v736
  %v741 = vmul.f32 %v185, %v737
  %v742 = vadd.f32 %v738, %v739
  %v743 = vadd.f32 %v742, %v740
  %v744 = vadd.f32 %v743, %v741
  %v745 = vrot.slane %v744, 4
  %v746 = vadd.f32 %v744, %v745
  %v747 = vrot.slane %v746, 2
  %v748 = vadd.f32 %v746, %v747
  %v749 = vrot.slane %v748, 1
  %v750 = vadd.f32 %v748, %v749
  %v751 = vmul.f32 %v200, %v734
  %v752 = vmul.f32 %v201, %v735
  %v753 = vmul.f32 %v202, %v736
  %v754 = vmul.f32 %v203, %v737
  %v755 = vadd.f32 %v751, %v752
  %v756 = vadd.f32 %v755, %v753
  %v757 = vadd.f32 %v756, %v754
  %v758 = vrot.slane %v757, 4
  %v759 = vadd.f32 %v757, %v758
  %v760 = vrot.slane %v759, 2
  %v761 = vadd.f32 %v759, %v760
  %v762 = vrot.slane %v761, 1
  %v763 = vadd.f32 %v761, %v762
  %v764 = vmul.f32 %v218, %v734
  %v765 = vmul.f32 %v219, %v735
  %v766 = vmul.f32 %v220, %v736
  %v767 = vmul.f32 %v221, %v737
  %v768 = vadd.f32 %v764, %v765
  %v769 = vadd.f32 %v768, %v766
  %v770 = vadd.f32 %v769, %v767
  %v771 = vrot.slane %v770, 4
  %v772 = vadd.f32 %v770, %v771
  %v773 = vrot.slane %v772, 2
  %v774 = vadd.f32 %v772, %v773
  %v775 = vrot.slane %v774, 1
  %v776 = vadd.f32 %v774, %v775
  %v777 = vmul.f32 %v236, %v734
  %v778 = vmul.f32 %v237, %v735
  %v779 = vmul.f32 %v238, %v736
  %v780 = vmul.f32 %v239, %v737
  %v781 = vadd.f32 %v777, %v778
  %v782 = vadd.f32 %v781, %v779
  %v783 = vadd.f32 %v782, %v780
  %v784 = vrot.slane %v783, 4
  %v785 = vadd.f32 %v783, %v784
  %v786 = vrot.slane %v785, 2
  %v787 = vadd.f32 %v785, %v786
  %v788 = vrot.slane %v787, 1
  %v789 = vadd.f32 %v787, %v788
  %v790 = vmul.f32 %v254, %v734
  %v791 = vmul.f32 %v255, %v735
  %v792 = vmul.f32 %v256, %v736
  %v793 = vmul.f32 %v257, %v737
  %v794 = vadd.f32 %v790, %v791
  %v795 = vadd.f32 %v794, %v792
  %v796 = vadd.f32 %v795, %v793
  %v797 = vrot.slane %v796, 4
  %v798 = vadd.f32 %v796, %v797
  %v799 = vrot.slane %v798, 2
  %v800 = vadd.f32 %v798, %v799
  %v801 = vrot.slane %v800, 1
  %v802 = vadd.f32 %v800, %v801
  %v803 = vmul.f32 %v272, %v734
  %v804 = vmul.f32 %v273, %v735
  %v805 = vmul.f32 %v274, %v736
  %v806 = vmul.f32 %v275, %v737
  %v807 = vadd.f32 %v803, %v804
  %v808 = vadd.f32 %v807, %v805
  %v809 = vadd.f32 %v808, %v806
  %v810 = vrot.slane %v809, 4
  %v811 = vadd.f32 %v809, %v810
  %v812 = vrot.slane %v811, 2
  %v813 = vadd.f32 %v811, %v812
  %v814 = vrot.slane %v813, 1
  %v815 = vadd.f32 %v813, %v814
  %v816 = vmul.f32 %v290, %v734
  %v817 = vmul.f32 %v291, %v735
  %v818 = vmul.f32 %v292, %v736
  %v819 = vmul.f32 %v293, %v737
  %v820 = vadd.f32 %v816, %v817
  %v821 = vadd.f32 %v820, %v818
  %v822 = vadd.f32 %v821, %v819
  %v823 = vrot.slane %v822, 4
  %v824 = vadd.f32 %v822, %v823
  %v825 = vrot.slane %v824, 2
  %v826 = vadd.f32 %v824, %v825
  %v827 = vrot.slane %v826, 1
  %v828 = vadd.f32 %v826, %v827
  %v829 = vmul.f32 %v308, %v734
  %v830 = vmul.f32 %v309, %v735
  %v831 = vmul.f32 %v310, %v736
  %v832 = vmul.f32 %v311, %v737
  %v833 = vadd.f32 %v829, %v830
  %v834 = vadd.f32 %v833, %v831
  %v835 = vadd.f32 %v834, %v832
  %v836 = vrot.slane %v835, 4
  %v837 = vadd.f32 %v835, %v836
  %v838 = vrot.slane %v837, 2
  %v839 = vadd.f32 %v837, %v838
  %v840 = vrot.slane %v839, 1
  %v841 = vadd.f32 %v839, %v840
  %v842 = vmul.f32 %v326, %v734
  %v843 = vmul.f32 %v327, %v735
  %v844 = vmul.f32 %v328, %v736
  %v845 = vmul.f32 %v329, %v737
  %v846 = vadd.f32 %v842, %v843
  %v847 = vadd.f32 %v846, %v844
  %v848 = vadd.f32 %v847, %v845
  %v849 = vrot.slane %v848, 4
  %v850 = vadd.f32 %v848, %v849
  %v851 = vrot.slane %v850, 2
  %v852 = vadd.f32 %v850, %v851
  %v853 = vrot.slane %v852, 1
  %v854 = vadd.f32 %v852, %v853
  %v855 = vmul.f32 %v344, %v734
  %v856 = vmul.f32 %v345, %v735
  %v857 = vmul.f32 %v346, %v736
  %v858 = vmul.f32 %v347, %v737
  %v859 = vadd.f32 %v855, %v856
  %v860 = vadd.f32 %v859, %v857
  %v861 = vadd.f32 %v860, %v858
  %v862 = vrot.slane %v861, 4
  %v863 = vadd.f32 %v861, %v862
  %v864 = vrot.slane %v863, 2
  %v865 = vadd.f32 %v863, %v864
  %v866 = vrot.slane %v865, 1
  %v867 = vadd.f32 %v865, %v866
  %v868 = vmul.f32 %v362, %v734
  %v869 = vmul.f32 %v363, %v735
  %v870 = vmul.f32 %v364, %v736
  %v871 = vmul.f32 %v365, %v737
  %v872 = vadd.f32 %v868, %v869
  %v873 = vadd.f32 %v872, %v870
  %v874 = vadd.f32 %v873, %v871
  %v875 = vrot.slane %v874, 4
  %v876 = vadd.f32 %v874, %v875
  %v877 = vrot.slane %v876, 2
  %v878 = vadd.f32 %v876, %v877
  %v879 = vrot.slane %v878, 1
  %v880 = vadd.f32 %v878, %v879
  %v881 = vmul.f32 %v380, %v734
  %v882 = vmul.f32 %v381, %v735
  %v883 = vmul.f32 %v382, %v736
  %v884 = vmul.f32 %v383, %v737
  %v885 = vadd.f32 %v881, %v882
  %v886 = vadd.f32 %v885, %v883
  %v887 = vadd.f32 %v886, %v884
  %v888 = vrot.slane %v887, 4
  %v889 = vadd.f32 %v887, %v888
  %v890 = vrot.slane %v889, 2
  %v891 = vadd.f32 %v889, %v890
  %v892 = vrot.slane %v891, 1
  %v893 = vadd.f32 %v891, %v892
  %v894 = vmul.f32 %v398, %v734
  %v895 = vmul.f32 %v399, %v735
  %v896 = vmul.f32 %v400, %v736
  %v897 = vmul.f32 %v401, %v737
  %v898 = vadd.f32 %v894, %v895
  %v899 = vadd.f32 %v898, %v896
  %v900 = vadd.f32 %v899, %v897
  %v901 = vrot.slane %v900, 4
  %v902 = vadd.f32 %v900, %v901
  %v903 = vrot.slane %v902, 2
  %v904 = vadd.f32 %v902, %v903
  %v905 = vrot.slane %v904, 1
  %v906 = vadd.f32 %v904, %v905
  %v907 = vmul.f32 %v416, %v734
  %v908 = vmul.f32 %v417, %v735
  %v909 = vmul.f32 %v418, %v736
  %v910 = vmul.f32 %v419, %v737
  %v911 = vadd.f32 %v907, %v908
  %v912 = vadd.f32 %v911, %v909
  %v913 = vadd.f32 %v912, %v910
  %v914 = vrot.slane %v913, 4
  %v915 = vadd.f32 %v913, %v914
  %v916 = vrot.slane %v915, 2
  %v917 = vadd.f32 %v915, %v916
  %v918 = vrot.slane %v917, 1
  %v919 = vadd.f32 %v917, %v918
  %v920 = vmul.f32 %v434, %v734
  %v921 = vmul.f32 %v435, %v735
  %v922 = vmul.f32 %v436, %v736
  %v923 = vmul.f32 %v437, %v737
  %v924 = vadd.f32 %v920, %v921
  %v925 = vadd.f32 %v924, %v922
  %v926 = vadd.f32 %v925, %v923
  %v927 = vrot.slane %v926, 4
  %v928 = vadd.f32 %v926, %v927
  %v929 = vrot.slane %v928, 2
  %v930 = vadd.f32 %v928, %v929
  %v931 = vrot.slane %v930, 1
  %v932 = vadd.f32 %v930, %v931
  %v933 = vmul.f32 %v452, %v734
  %v934 = vmul.f32 %v453, %v735
  %v935 = vmul.f32 %v454, %v736
  %v936 = vmul.f32 %v455, %v737
  %v937 = vadd.f32 %v933, %v934
  %v938 = vadd.f32 %v937, %v935
  %v939 = vadd.f32 %v938, %v936
  %v940 = vrot.slane %v939, 4
  %v941 = vadd.f32 %v939, %v940
  %v942 = vrot.slane %v941, 2
  %v943 = vadd.f32 %v941, %v942
  %v944 = vrot.slane %v943, 1
  %v945 = vadd.f32 %v943, %v944
  %v946 = vsel %vm469, %v750, %v763
  %v947 = vsel %vm471, %v946, %v776
  %v948 = vsel %vm473, %v947, %v789
  %v949 = vsel %vm475, %v948, %v802
  %v950 = vsel %vm477, %v949, %v815
  %v951 = vsel %vm479, %v950, %v828
  %v952 = vsel %vm481, %v951, %v841
  %v953 = vsel %vm469, %v854, %v867
  %v954 = vsel %vm471, %v953, %v880
  %v955 = vsel %vm473, %v954, %v893
  %v956 = vsel %vm475, %v955, %v906
  %v957 = vsel %vm477, %v956, %v919
  %v958 = vsel %vm479, %v957, %v932
  %v959 = vsel %vm481, %v958, %v945
  %960 = vmatprep.subr.mxu0 0.0
  %961 = vmatpush1.msra.mxu0 %v48
  %962 = vmatprep.subr.mxu0 0.0
  %963 = vmatpush1.msra.mxu0 %v49
  %964 = vmatprep.subr.mxu0 0.0
  %965 = vmatpush1.msra.mxu0 %v50
  %966 = vmatprep.subr.mxu0 0.0
  %967 = vmatpush1.msra.mxu0 %v51
  %968 = vmatprep.subr.mxu0 0.0
  %969 = vmatpush1.msra.mxu0 %v52
  %970 = vmatprep.subr.mxu0 0.0
  %971 = vmatpush1.msra.mxu0 %v53
  %972 = vmatprep.subr.mxu0 0.0
  %973 = vmatpush1.msra.mxu0 %v54
  %974 = vmatprep.subr.mxu0 0.0
  %975 = vmatpush1.msra.mxu0 %v55
  %976 = vmatprep.subr.mxu0 0.0
  %977 = vmatpush1.msra.mxu0 %v56
  %978 = vmatprep.subr.mxu0 0.0
  %979 = vmatpush1.msra.mxu0 %v57
  %980 = vmatprep.subr.mxu0 0.0
  %981 = vmatpush1.msra.mxu0 %v58
  %982 = vmatprep.subr.mxu0 0.0
  %983 = vmatpush1.msra.mxu0 %v59
  %984 = vmatprep.subr.mxu0 0.0
  %985 = vmatpush1.msra.mxu0 %v60
  %986 = vmatprep.subr.mxu0 0.0
  %987 = vmatpush1.msra.mxu0 %v61
  %988 = vmatprep.subr.mxu0 0.0
  %989 = vmatpush1.msra.mxu0 %v62
  %990 = vmatprep.subr.mxu0 0.0
  %991 = vmatpush1.msra.mxu0 %v63
  %992 = vmatprep.subr.mxu0 0.0
  %993 = vmatpush1.msra.mxu0 0.0
  %994 = vmatprep.subr.mxu0 0.0
  %995 = vmatpush1.msra.mxu0 0.0
  %996 = vmatprep.subr.mxu0 0.0
  %997 = vmatpush1.msra.mxu0 0.0
  %998 = vmatprep.subr.mxu0 0.0
  %999 = vmatpush1.msra.mxu0 0.0
  %1000 = vmatprep.subr.mxu0 0.0
  %1001 = vmatpush1.msra.mxu0 0.0
  %1002 = vmatprep.subr.mxu0 0.0
  %1003 = vmatpush1.msra.mxu0 0.0
  %1004 = vmatprep.subr.mxu0 0.0
  %1005 = vmatpush1.msra.mxu0 0.0
  %1006 = vmatprep.subr.mxu0 0.0
  %1007 = vmatpush1.msra.mxu0 0.0
  %1008 = vmatprep.subr.mxu0 0.0
  %1009 = vmatpush1.msra.mxu0 0.0
  %1010 = vmatprep.subr.mxu0 0.0
  %1011 = vmatpush1.msra.mxu0 0.0
  %1012 = vmatprep.subr.mxu0 0.0
  %1013 = vmatpush1.msra.mxu0 0.0
  %1014 = vmatprep.subr.mxu0 0.0
  %1015 = vmatpush1.msra.mxu0 0.0
  %1016 = vmatprep.subr.mxu0 0.0
  %1017 = vmatpush1.msra.mxu0 0.0
  %1018 = vmatprep.subr.mxu0 0.0
  %1019 = vmatpush1.msra.mxu0 0.0
  %1020 = vmatprep.subr.mxu0 0.0
  %1021 = vmatpush1.msra.mxu0 0.0
  %1022 = vmatprep.subr.mxu0 0.0
  %1023 = vmatpush1.msra.mxu0 0.0
  %1024 = vmatprep.mubr.f32.mxu0 0.0
  %1025 = vmatmul.mubr.f32.gmra.mrb[0].mxu0 %v952
  %v1026 = vpop.f32.mrb[0].mxu0
  %v1027 = vadd.f32 %v493, %v1026
  %v1028 = vpop.f32.mrb[0].mxu0
  %1029 = vmatprep.mubr.f32.mxu0 0.0
  %1030 = vmatmul.mubr.f32.gmra.mrb[0].mxu0 %v959
  %v1031 = vpop.f32.mrb[0].mxu0
  %v1032 = vadd.f32 %v498, %v1031
  %v1033 = vpop.f32.mrb[0].mxu0
  %1034 = vdwg.mxu0
  %v1035 = vmax.f32 %v1027, 0.0
  %v1036 = vmax.f32 %v1032, 0.0
  %1038 = vset.pattern.permute.xlu0 0
  %1039 = vperm.xlu0 %1038, %v74
  %v1040 = vpop.permute.xlu0 %1039
  %1043 = vset.pattern.permute.xlu0 0
  %1044 = vperm.xlu0 %1043, %v75
  %v1045 = vpop.permute.xlu0 %1044
  %vm1047 = vcmask 130048
  %v1049 = vsel %vm1047, %v46, 0
  %v1052 = vsel %vm1047, %v47, 0
  %1054 = vmatprep.subr.mxu0 0.0
  %1055 = vmatpush1.msra.mxu0 %v575
  %1056 = vmatprep.subr.mxu0 0.0
  %1057 = vmatpush1.msra.mxu0 %v576
  %1058 = vmatprep.subr.mxu0 0.0
  %1059 = vmatpush1.msra.mxu0 0.0
  %1060 = vmatprep.subr.mxu0 0.0
  %1061 = vmatpush1.msra.mxu0 0.0
  %1062 = vmatprep.subr.mxu0 0.0
  %1063 = vmatpush1.msra.mxu0 0.0
  %1064 = vmatprep.subr.mxu0 0.0
  %1065 = vmatpush1.msra.mxu0 0.0
  %1066 = vmatprep.subr.mxu0 0.0
  %1067 = vmatpush1.msra.mxu0 0.0
  %1068 = vmatprep.subr.mxu0 0.0
  %1069 = vmatpush1.msra.mxu0 0.0
  %1070 = vmatprep.subr.mxu0 0.0
  %1071 = vmatpush1.msra.mxu0 0.0
  %1072 = vmatprep.subr.mxu0 0.0
  %1073 = vmatpush1.msra.mxu0 0.0
  %1074 = vmatprep.subr.mxu0 0.0
  %1075 = vmatpush1.msra.mxu0 0.0
  %1076 = vmatprep.subr.mxu0 0.0
  %1077 = vmatpush1.msra.mxu0 0.0
  %1078 = vmatprep.subr.mxu0 0.0
  %1079 = vmatpush1.msra.mxu0 0.0
  %1080 = vmatprep.subr.mxu0 0.0
  %1081 = vmatpush1.msra.mxu0 0.0
  %1082 = vmatprep.subr.mxu0 0.0
  %1083 = vmatpush1.msra.mxu0 0.0
  %1084 = vmatprep.subr.mxu0 0.0
  %1085 = vmatpush1.msra.mxu0 0.0
  %1086 = vmatprep.subr.mxu0 0.0
  %1087 = vmatpush1.msra.mxu0 0.0
  %1088 = vmatprep.subr.mxu0 0.0
  %1089 = vmatpush1.msra.mxu0 0.0
  %1090 = vmatprep.subr.mxu0 0.0
  %1091 = vmatpush1.msra.mxu0 0.0
  %1092 = vmatprep.subr.mxu0 0.0
  %1093 = vmatpush1.msra.mxu0 0.0
  %1094 = vmatprep.subr.mxu0 0.0
  %1095 = vmatpush1.msra.mxu0 0.0
  %1096 = vmatprep.subr.mxu0 0.0
  %1097 = vmatpush1.msra.mxu0 0.0
  %1098 = vmatprep.subr.mxu0 0.0
  %1099 = vmatpush1.msra.mxu0 0.0
  %1100 = vmatprep.subr.mxu0 0.0
  %1101 = vmatpush1.msra.mxu0 0.0
  %1102 = vmatprep.subr.mxu0 0.0
  %1103 = vmatpush1.msra.mxu0 0.0
  %1104 = vmatprep.subr.mxu0 0.0
  %1105 = vmatpush1.msra.mxu0 0.0
  %1106 = vmatprep.subr.mxu0 0.0
  %1107 = vmatpush1.msra.mxu0 0.0
  %1108 = vmatprep.subr.mxu0 0.0
  %1109 = vmatpush1.msra.mxu0 0.0
  %1110 = vmatprep.subr.mxu0 0.0
  %1111 = vmatpush1.msra.mxu0 0.0
  %1112 = vmatprep.subr.mxu0 0.0
  %1113 = vmatpush1.msra.mxu0 0.0
  %1114 = vmatprep.subr.mxu0 0.0
  %1115 = vmatpush1.msra.mxu0 0.0
  %1116 = vmatprep.subr.mxu0 0.0
  %1117 = vmatpush1.msra.mxu0 0.0
  %1118 = vmatprep.mubr.f32.mxu0 0.0
  %1119 = vmatmul.mubr.f32.gmra.mrb[0].mxu0 %v1049
  %v1120 = vpop.f32.mrb[0].mxu0
  %v1121 = vadd.f32 %v1040, %v1120
  %v1122 = vpop.f32.mrb[0].mxu0
  %1123 = vmatprep.mubr.f32.mxu0 0.0
  %1124 = vmatmul.mubr.f32.gmra.mrb[0].mxu0 %v1052
  %v1125 = vpop.f32.mrb[0].mxu0
  %v1126 = vadd.f32 %v1045, %v1125
  %v1127 = vpop.f32.mrb[0].mxu0
  %1128 = vdwg.mxu0
  %v1129 = vadd.f32 %v1035, %v1121
  %v1130 = vadd.f32 %v1036, %v1126
  %v1131 = vmax.f32 %v1129, 0.0
  %v1132 = vmax.f32 %v1130, 0.0
  %s1133 = scalar_lea.vmem %s0, 32
  %v1134 = vld [vmem:[%s1133] sm:$0xf]
  %v1135 = vld [vmem:[%s1133 + $0x4] sm:$0xf]
  %v1136 = vld [vmem:[%s1133 + $0x8] sm:$0xf]
  %v1137 = vld [vmem:[%s1133 + $0xc] sm:$0xf]
  %v1142 = vunpack.c.l.b16 %v1134
  %v1143 = vunpack.c.l.b16 %v1135
  %v1144 = vunpack.c.l.b16 %v1136
  %v1145 = vunpack.c.l.b16 %v1137
  %v1146 = vpack.c.b16 %v1143, %v1142
  %v1147 = vpack.c.b16 %v1145, %v1144
  %1150 = vmatprep.subr.bf16.mxu0 0
  %1151 = vmatpush1.bf16.msra.mxu0 %v1146
  %1152 = vmatprep.subr.bf16.mxu0 0
  %1153 = vmatpush1.bf16.msra.mxu0 %v1147
  %1154 = vmatprep.subr.bf16.mxu0 0
  %1155 = vmatpush1.bf16.msra.mxu0 0
  %1156 = vmatprep.subr.bf16.mxu0 0
  %1157 = vmatpush1.bf16.msra.mxu0 0
  %1158 = vmatprep.subr.bf16.mxu0 0
  %1159 = vmatpush1.bf16.msra.mxu0 0
  %1160 = vmatprep.subr.bf16.mxu0 0
  %1161 = vmatpush1.bf16.msra.mxu0 0
  %1162 = vmatprep.subr.bf16.mxu0 0
  %1163 = vmatpush1.bf16.msra.mxu0 0
  %1164 = vmatprep.subr.bf16.mxu0 0
  %1165 = vmatpush1.bf16.msra.mxu0 0
  %1166 = vmatprep.subr.bf16.mxu0 0
  %1167 = vmatpush1.bf16.msra.mxu0 0
  %1168 = vmatprep.subr.bf16.mxu0 0
  %1169 = vmatpush1.bf16.msra.mxu0 0
  %1170 = vmatprep.subr.bf16.mxu0 0
  %1171 = vmatpush1.bf16.msra.mxu0 0
  %1172 = vmatprep.subr.bf16.mxu0 0
  %1173 = vmatpush1.bf16.msra.mxu0 0
  %1174 = vmatprep.subr.bf16.mxu0 0
  %1175 = vmatpush1.bf16.msra.mxu0 0
  %1176 = vmatprep.subr.bf16.mxu0 0
  %1177 = vmatpush1.bf16.msra.mxu0 0
  %1178 = vmatprep.subr.bf16.mxu0 0
  %1179 = vmatpush1.bf16.msra.mxu0 0
  %1180 = vmatprep.subr.bf16.mxu0 0
  %1181 = vmatpush1.bf16.msra.mxu0 0
  %1182 = vmatprep.mubr.bf16.mxu0 0
  %1183 = vmatmul.mubr.bf16.gmra.mrb[0].mxu0 %v124
  %v1184 = vpop.f32.mrb[0].mxu0
  %v1185 = vadd.f32 %v83, %v1184
  %v1186 = vpop.f32.mrb[0].mxu0
  %v1187 = vpop.f32.mrb[0].mxu0
  %v1188 = vadd.f32 %v88, %v1187
  %v1189 = vpop.f32.mrb[0].mxu0
  %1190 = vmatprep.mubr.bf16.mxu0 0
  %1191 = vmatmul.mubr.bf16.gmra.mrb[0].mxu0 %v127
  %v1192 = vpop.f32.mrb[0].mxu0
  %v1193 = vadd.f32 %v93, %v1192
  %v1194 = vpop.f32.mrb[0].mxu0
  %v1195 = vpop.f32.mrb[0].mxu0
  %v1196 = vadd.f32 %v98, %v1195
  %v1197 = vpop.f32.mrb[0].mxu0
  %1198 = vdwg.mxu0
  %v1199 = vpack.c.bf16 %v735, %v734
  %v1200 = vpack.c.bf16 %v737, %v736
  %1201 = vmatprep.subr.bf16.mxu0 0
  %1202 = vmatpush1.bf16.msra.mxu0 %v1199
  %1203 = vmatprep.subr.bf16.mxu0 0
  %1204 = vmatpush1.bf16.msra.mxu0 %v1200
  %1205 = vmatprep.subr.bf16.mxu0 0
  %1206 = vmatpush1.bf16.msra.mxu0 0
  %1207 = vmatprep.subr.bf16.mxu0 0
  %1208 = vmatpush1.bf16.msra.mxu0 0
  %1209 = vmatprep.subr.bf16.mxu0 0
  %1210 = vmatpush1.bf16.msra.mxu0 0
  %1211 = vmatprep.subr.bf16.mxu0 0
  %1212 = vmatpush1.bf16.msra.mxu0 0
  %1213 = vmatprep.subr.bf16.mxu0 0
  %1214 = vmatpush1.bf16.msra.mxu0 0
  %1215 = vmatprep.subr.bf16.mxu0 0
  %1216 = vmatpush1.bf16.msra.mxu0 0
  %1217 = vmatprep.subr.bf16.mxu0 0
  %1218 = vmatpush1.bf16.msra.mxu0 0
  %1219 = vmatprep.subr.bf16.mxu0 0
  %1220 = vmatpush1.bf16.msra.mxu0 0
  %1221 = vmatprep.subr.bf16.mxu0 0
  %1222 = vmatpush1.bf16.msra.mxu0 0
  %1223 = vmatprep.subr.bf16.mxu0 0
  %1224 = vmatpush1.bf16.msra.mxu0 0
  %1225 = vmatprep.subr.bf16.mxu0 0
  %1226 = vmatpush1.bf16.msra.mxu0 0
  %1227 = vmatprep.subr.bf16.mxu0 0
  %1228 = vmatpush1.bf16.msra.mxu0 0
  %1229 = vmatprep.subr.bf16.mxu0 0
  %1230 = vmatpush1.bf16.msra.mxu0 0
  %1231 = vmatprep.subr.bf16.mxu0 0
  %1232 = vmatpush1.bf16.msra.mxu0 0
  %1233 = vmatprep.mubr.bf16.mxu0 0
  %1234 = vmatmul.mubr.bf16.gmra.mrb[0].mxu0 %v676
  %v1235 = vpop.f32.mrb[0].mxu0
  %v1236 = vadd.f32 %v648, %v1235
  %v1237 = vpop.f32.mrb[0].mxu0
  %v1238 = vpop.f32.mrb[0].mxu0
  %v1239 = vadd.f32 %v653, %v1238
  %v1240 = vpop.f32.mrb[0].mxu0
  %1241 = vmatprep.mubr.bf16.mxu0 0
  %1242 = vmatmul.mubr.bf16.gmra.mrb[0].mxu0 %v679
  %v1243 = vpop.f32.mrb[0].mxu0
  %v1244 = vadd.f32 %v658, %v1243
  %v1245 = vpop.f32.mrb[0].mxu0
  %v1246 = vpop.f32.mrb[0].mxu0
  %v1247 = vadd.f32 %v663, %v1246
  %v1248 = vpop.f32.mrb[0].mxu0
  %1249 = vdwg.mxu0
  %v1250 = vadd.f32 %v1185, %v1236
  %v1251 = vadd.f32 %v1188, %v1239
  %v1252 = vadd.f32 %v1193, %v1244
  %v1253 = vadd.f32 %v1196, %v1247
  %v1254 = vmax.f32 %v1250, 0.0
  %v1255 = vmax.f32 %v1251, 0.0
  %v1256 = vmax.f32 %v1252, 0.0
  %v1257 = vmax.f32 %v1253, 0.0
  %v1258 = vmul.f32 %v182, %v1254
  %v1259 = vmul.f32 %v183, %v1255
  %v1260 = vmul.f32 %v184, %v1256
  %v1261 = vmul.f32 %v185, %v1257
  %v1262 = vadd.f32 %v1258, %v1259
  %v1263 = vadd.f32 %v1262, %v1260
  %v1264 = vadd.f32 %v1263, %v1261
  %v1265 = vrot.slane %v1264, 4
  %v1266 = vadd.f32 %v1264, %v1265
  %v1267 = vrot.slane %v1266, 2
  %v1268 = vadd.f32 %v1266, %v1267
  %v1269 = vrot.slane %v1268, 1
  %v1270 = vadd.f32 %v1268, %v1269
  %v1271 = vmul.f32 %v200, %v1254
  %v1272 = vmul.f32 %v201, %v1255
  %v1273 = vmul.f32 %v202, %v1256
  %v1274 = vmul.f32 %v203, %v1257
  %v1275 = vadd.f32 %v1271, %v1272
  %v1276 = vadd.f32 %v1275, %v1273
  %v1277 = vadd.f32 %v1276, %v1274
  %v1278 = vrot.slane %v1277, 4
  %v1279 = vadd.f32 %v1277, %v1278
  %v1280 = vrot.slane %v1279, 2
  %v1281 = vadd.f32 %v1279, %v1280
  %v1282 = vrot.slane %v1281, 1
  %v1283 = vadd.f32 %v1281, %v1282
  %v1284 = vmul.f32 %v218, %v1254
  %v1285 = vmul.f32 %v219, %v1255
  %v1286 = vmul.f32 %v220, %v1256
  %v1287 = vmul.f32 %v221, %v1257
  %v1288 = vadd.f32 %v1284, %v1285
  %v1289 = vadd.f32 %v1288, %v1286
  %v1290 = vadd.f32 %v1289, %v1287
  %v1291 = vrot.slane %v1290, 4
  %v1292 = vadd.f32 %v1290, %v1291
  %v1293 = vrot.slane %v1292, 2
  %v1294 = vadd.f32 %v1292, %v1293
  %v1295 = vrot.slane %v1294, 1
  %v1296 = vadd.f32 %v1294, %v1295
  %v1297 = vmul.f32 %v236, %v1254
  %v1298 = vmul.f32 %v237, %v1255
  %v1299 = vmul.f32 %v238, %v1256
  %v1300 = vmul.f32 %v239, %v1257
  %v1301 = vadd.f32 %v1297, %v1298
  %v1302 = vadd.f32 %v1301, %v1299
  %v1303 = vadd.f32 %v1302, %v1300
  %v1304 = vrot.slane %v1303, 4
  %v1305 = vadd.f32 %v1303, %v1304
  %v1306 = vrot.slane %v1305, 2
  %v1307 = vadd.f32 %v1305, %v1306
  %v1308 = vrot.slane %v1307, 1
  %v1309 = vadd.f32 %v1307, %v1308
  %v1310 = vmul.f32 %v254, %v1254
  %v1311 = vmul.f32 %v255, %v1255
  %v1312 = vmul.f32 %v256, %v1256
  %v1313 = vmul.f32 %v257, %v1257
  %v1314 = vadd.f32 %v1310, %v1311
  %v1315 = vadd.f32 %v1314, %v1312
  %v1316 = vadd.f32 %v1315, %v1313
  %v1317 = vrot.slane %v1316, 4
  %v1318 = vadd.f32 %v1316, %v1317
  %v1319 = vrot.slane %v1318, 2
  %v1320 = vadd.f32 %v1318, %v1319
  %v1321 = vrot.slane %v1320, 1
  %v1322 = vadd.f32 %v1320, %v1321
  %v1323 = vmul.f32 %v272, %v1254
  %v1324 = vmul.f32 %v273, %v1255
  %v1325 = vmul.f32 %v274, %v1256
  %v1326 = vmul.f32 %v275, %v1257
  %v1327 = vadd.f32 %v1323, %v1324
  %v1328 = vadd.f32 %v1327, %v1325
  %v1329 = vadd.f32 %v1328, %v1326
  %v1330 = vrot.slane %v1329, 4
  %v1331 = vadd.f32 %v1329, %v1330
  %v1332 = vrot.slane %v1331, 2
  %v1333 = vadd.f32 %v1331, %v1332
  %v1334 = vrot.slane %v1333, 1
  %v1335 = vadd.f32 %v1333, %v1334
  %v1336 = vmul.f32 %v290, %v1254
  %v1337 = vmul.f32 %v291, %v1255
  %v1338 = vmul.f32 %v292, %v1256
  %v1339 = vmul.f32 %v293, %v1257
  %v1340 = vadd.f32 %v1336, %v1337
  %v1341 = vadd.f32 %v1340, %v1338
  %v1342 = vadd.f32 %v1341, %v1339
  %v1343 = vrot.slane %v1342, 4
  %v1344 = vadd.f32 %v1342, %v1343
  %v1345 = vrot.slane %v1344, 2
  %v1346 = vadd.f32 %v1344, %v1345
  %v1347 = vrot.slane %v1346, 1
  %v1348 = vadd.f32 %v1346, %v1347
  %v1349 = vmul.f32 %v308, %v1254
  %v1350 = vmul.f32 %v309, %v1255
  %v1351 = vmul.f32 %v310, %v1256
  %v1352 = vmul.f32 %v311, %v1257
  %v1353 = vadd.f32 %v1349, %v1350
  %v1354 = vadd.f32 %v1353, %v1351
  %v1355 = vadd.f32 %v1354, %v1352
  %v1356 = vrot.slane %v1355, 4
  %v1357 = vadd.f32 %v1355, %v1356
  %v1358 = vrot.slane %v1357, 2
  %v1359 = vadd.f32 %v1357, %v1358
  %v1360 = vrot.slane %v1359, 1
  %v1361 = vadd.f32 %v1359, %v1360
  %v1362 = vmul.f32 %v326, %v1254
  %v1363 = vmul.f32 %v327, %v1255
  %v1364 = vmul.f32 %v328, %v1256
  %v1365 = vmul.f32 %v329, %v1257
  %v1366 = vadd.f32 %v1362, %v1363
  %v1367 = vadd.f32 %v1366, %v1364
  %v1368 = vadd.f32 %v1367, %v1365
  %v1369 = vrot.slane %v1368, 4
  %v1370 = vadd.f32 %v1368, %v1369
  %v1371 = vrot.slane %v1370, 2
  %v1372 = vadd.f32 %v1370, %v1371
  %v1373 = vrot.slane %v1372, 1
  %v1374 = vadd.f32 %v1372, %v1373
  %v1375 = vmul.f32 %v344, %v1254
  %v1376 = vmul.f32 %v345, %v1255
  %v1377 = vmul.f32 %v346, %v1256
  %v1378 = vmul.f32 %v347, %v1257
  %v1379 = vadd.f32 %v1375, %v1376
  %v1380 = vadd.f32 %v1379, %v1377
  %v1381 = vadd.f32 %v1380, %v1378
  %v1382 = vrot.slane %v1381, 4
  %v1383 = vadd.f32 %v1381, %v1382
  %v1384 = vrot.slane %v1383, 2
  %v1385 = vadd.f32 %v1383, %v1384
  %v1386 = vrot.slane %v1385, 1
  %v1387 = vadd.f32 %v1385, %v1386
  %v1388 = vmul.f32 %v362, %v1254
  %v1389 = vmul.f32 %v363, %v1255
  %v1390 = vmul.f32 %v364, %v1256
  %v1391 = vmul.f32 %v365, %v1257
  %v1392 = vadd.f32 %v1388, %v1389
  %v1393 = vadd.f32 %v1392, %v1390
  %v1394 = vadd.f32 %v1393, %v1391
  %v1395 = vrot.slane %v1394, 4
  %v1396 = vadd.f32 %v1394, %v1395
  %v1397 = vrot.slane %v1396, 2
  %v1398 = vadd.f32 %v1396, %v1397
  %v1399 = vrot.slane %v1398, 1
  %v1400 = vadd.f32 %v1398, %v1399
  %v1401 = vmul.f32 %v380, %v1254
  %v1402 = vmul.f32 %v381, %v1255
  %v1403 = vmul.f32 %v382, %v1256
  %v1404 = vmul.f32 %v383, %v1257
  %v1405 = vadd.f32 %v1401, %v1402
  %v1406 = vadd.f32 %v1405, %v1403
  %v1407 = vadd.f32 %v1406, %v1404
  %v1408 = vrot.slane %v1407, 4
  %v1409 = vadd.f32 %v1407, %v1408
  %v1410 = vrot.slane %v1409, 2
  %v1411 = vadd.f32 %v1409, %v1410
  %v1412 = vrot.slane %v1411, 1
  %v1413 = vadd.f32 %v1411, %v1412
  %v1414 = vmul.f32 %v398, %v1254
  %v1415 = vmul.f32 %v399, %v1255
  %v1416 = vmul.f32 %v400, %v1256
  %v1417 = vmul.f32 %v401, %v1257
  %v1418 = vadd.f32 %v1414, %v1415
  %v1419 = vadd.f32 %v1418, %v1416
  %v1420 = vadd.f32 %v1419, %v1417
  %v1421 = vrot.slane %v1420, 4
  %v1422 = vadd.f32 %v1420, %v1421
  %v1423 = vrot.slane %v1422, 2
  %v1424 = vadd.f32 %v1422, %v1423
  %v1425 = vrot.slane %v1424, 1
  %v1426 = vadd.f32 %v1424, %v1425
  %v1427 = vmul.f32 %v416, %v1254
  %v1428 = vmul.f32 %v417, %v1255
  %v1429 = vmul.f32 %v418, %v1256
  %v1430 = vmul.f32 %v419, %v1257
  %v1431 = vadd.f32 %v1427, %v1428
  %v1432 = vadd.f32 %v1431, %v1429
  %v1433 = vadd.f32 %v1432, %v1430
  %v1434 = vrot.slane %v1433, 4
  %v1435 = vadd.f32 %v1433, %v1434
  %v1436 = vrot.slane %v1435, 2
  %v1437 = vadd.f32 %v1435, %v1436
  %v1438 = vrot.slane %v1437, 1
  %v1439 = vadd.f32 %v1437, %v1438
  %v1440 = vmul.f32 %v434, %v1254
  %v1441 = vmul.f32 %v435, %v1255
  %v1442 = vmul.f32 %v436, %v1256
  %v1443 = vmul.f32 %v437, %v1257
  %v1444 = vadd.f32 %v1440, %v1441
  %v1445 = vadd.f32 %v1444, %v1442
  %v1446 = vadd.f32 %v1445, %v1443
  %v1447 = vrot.slane %v1446, 4
  %v1448 = vadd.f32 %v1446, %v1447
  %v1449 = vrot.slane %v1448, 2
  %v1450 = vadd.f32 %v1448, %v1449
  %v1451 = vrot.slane %v1450, 1
  %v1452 = vadd.f32 %v1450, %v1451
  %v1453 = vmul.f32 %v452, %v1254
  %v1454 = vmul.f32 %v453, %v1255
  %v1455 = vmul.f32 %v454, %v1256
  %v1456 = vmul.f32 %v455, %v1257
  %v1457 = vadd.f32 %v1453, %v1454
  %v1458 = vadd.f32 %v1457, %v1455
  %v1459 = vadd.f32 %v1458, %v1456
  %v1460 = vrot.slane %v1459, 4
  %v1461 = vadd.f32 %v1459, %v1460
  %v1462 = vrot.slane %v1461, 2
  %v1463 = vadd.f32 %v1461, %v1462
  %v1464 = vrot.slane %v1463, 1
  %v1465 = vadd.f32 %v1463, %v1464
  %v1466 = vsel %vm469, %v1270, %v1283
  %v1467 = vsel %vm471, %v1466, %v1296
  %v1468 = vsel %vm473, %v1467, %v1309
  %v1469 = vsel %vm475, %v1468, %v1322
  %v1470 = vsel %vm477, %v1469, %v1335
  %v1471 = vsel %vm479, %v1470, %v1348
  %v1472 = vsel %vm481, %v1471, %v1361
  %v1473 = vsel %vm469, %v1374, %v1387
  %v1474 = vsel %vm471, %v1473, %v1400
  %v1475 = vsel %vm473, %v1474, %v1413
  %v1476 = vsel %vm475, %v1475, %v1426
  %v1477 = vsel %vm477, %v1476, %v1439
  %v1478 = vsel %vm479, %v1477, %v1452
  %v1479 = vsel %vm481, %v1478, %v1465
  %1480 = vmatprep.subr.mxu0 0.0
  %1481 = vmatpush1.msra.mxu0 %v48
  %1482 = vmatprep.subr.mxu0 0.0
  %1483 = vmatpush1.msra.mxu0 %v49
  %1484 = vmatprep.subr.mxu0 0.0
  %1485 = vmatpush1.msra.mxu0 %v50
  %1486 = vmatprep.subr.mxu0 0.0
  %1487 = vmatpush1.msra.mxu0 %v51
  %1488 = vmatprep.subr.mxu0 0.0
  %1489 = vmatpush1.msra.mxu0 %v52
  %1490 = vmatprep.subr.mxu0 0.0
  %1491 = vmatpush1.msra.mxu0 %v53
  %1492 = vmatprep.subr.mxu0 0.0
  %1493 = vmatpush1.msra.mxu0 %v54
  %1494 = vmatprep.subr.mxu0 0.0
  %1495 = vmatpush1.msra.mxu0 %v55
  %1496 = vmatprep.subr.mxu0 0.0
  %1497 = vmatpush1.msra.mxu0 %v56
  %1498 = vmatprep.subr.mxu0 0.0
  %1499 = vmatpush1.msra.mxu0 %v57
  %1500 = vmatprep.subr.mxu0 0.0
  %1501 = vmatpush1.msra.mxu0 %v58
  %1502 = vmatprep.subr.mxu0 0.0
  %1503 = vmatpush1.msra.mxu0 %v59
  %1504 = vmatprep.subr.mxu0 0.0
  %1505 = vmatpush1.msra.mxu0 %v60
  %1506 = vmatprep.subr.mxu0 0.0
  %1507 = vmatpush1.msra.mxu0 %v61
  %1508 = vmatprep.subr.mxu0 0.0
  %1509 = vmatpush1.msra.mxu0 %v62
  %1510 = vmatprep.subr.mxu0 0.0
  %1511 = vmatpush1.msra.mxu0 %v63
  %1512 = vmatprep.subr.mxu0 0.0
  %1513 = vmatpush1.msra.mxu0 0.0
  %1514 = vmatprep.subr.mxu0 0.0
  %1515 = vmatpush1.msra.mxu0 0.0
  %1516 = vmatprep.subr.mxu0 0.0
  %1517 = vmatpush1.msra.mxu0 0.0
  %1518 = vmatprep.subr.mxu0 0.0
  %1519 = vmatpush1.msra.mxu0 0.0
  %1520 = vmatprep.subr.mxu0 0.0
  %1521 = vmatpush1.msra.mxu0 0.0
  %1522 = vmatprep.subr.mxu0 0.0
  %1523 = vmatpush1.msra.mxu0 0.0
  %1524 = vmatprep.subr.mxu0 0.0
  %1525 = vmatpush1.msra.mxu0 0.0
  %1526 = vmatprep.subr.mxu0 0.0
  %1527 = vmatpush1.msra.mxu0 0.0
  %1528 = vmatprep.subr.mxu0 0.0
  %1529 = vmatpush1.msra.mxu0 0.0
  %1530 = vmatprep.subr.mxu0 0.0
  %1531 = vmatpush1.msra.mxu0 0.0
  %1532 = vmatprep.subr.mxu0 0.0
  %1533 = vmatpush1.msra.mxu0 0.0
  %1534 = vmatprep.subr.mxu0 0.0
  %1535 = vmatpush1.msra.mxu0 0.0
  %1536 = vmatprep.subr.mxu0 0.0
  %1537 = vmatpush1.msra.mxu0 0.0
  %1538 = vmatprep.subr.mxu0 0.0
  %1539 = vmatpush1.msra.mxu0 0.0
  %1540 = vmatprep.subr.mxu0 0.0
  %1541 = vmatpush1.msra.mxu0 0.0
  %1542 = vmatprep.subr.mxu0 0.0
  %1543 = vmatpush1.msra.mxu0 0.0
  %1544 = vmatprep.mubr.f32.mxu0 0.0
  %1545 = vmatmul.mubr.f32.gmra.mrb[0].mxu0 %v1472
  %v1546 = vpop.f32.mrb[0].mxu0
  %v1547 = vadd.f32 %v493, %v1546
  %v1548 = vpop.f32.mrb[0].mxu0
  %1549 = vmatprep.mubr.f32.mxu0 0.0
  %1550 = vmatmul.mubr.f32.gmra.mrb[0].mxu0 %v1479
  %v1551 = vpop.f32.mrb[0].mxu0
  %v1552 = vadd.f32 %v498, %v1551
  %v1553 = vpop.f32.mrb[0].mxu0
  %1554 = vdwg.mxu0
  %v1555 = vmax.f32 %v1547, 0.0
  %v1556 = vmax.f32 %v1552, 0.0
  %1557 = vmatprep.subr.mxu0 0.0
  %1558 = vmatpush1.msra.mxu0 %v1131
  %1559 = vmatprep.subr.mxu0 0.0
  %1560 = vmatpush1.msra.mxu0 %v1132
  %1561 = vmatprep.subr.mxu0 0.0
  %1562 = vmatpush1.msra.mxu0 0.0
  %1563 = vmatprep.subr.mxu0 0.0
  %1564 = vmatpush1.msra.mxu0 0.0
  %1565 = vmatprep.subr.mxu0 0.0
  %1566 = vmatpush1.msra.mxu0 0.0
  %1567 = vmatprep.subr.mxu0 0.0
  %1568 = vmatpush1.msra.mxu0 0.0
  %1569 = vmatprep.subr.mxu0 0.0
  %1570 = vmatpush1.msra.mxu0 0.0
  %1571 = vmatprep.subr.mxu0 0.0
  %1572 = vmatpush1.msra.mxu0 0.0
  %1573 = vmatprep.subr.mxu0 0.0
  %1574 = vmatpush1.msra.mxu0 0.0
  %1575 = vmatprep.subr.mxu0 0.0
  %1576 = vmatpush1.msra.mxu0 0.0
  %1577 = vmatprep.subr.mxu0 0.0
  %1578 = vmatpush1.msra.mxu0 0.0
  %1579 = vmatprep.subr.mxu0 0.0
  %1580 = vmatpush1.msra.mxu0 0.0
  %1581 = vmatprep.subr.mxu0 0.0
  %1582 = vmatpush1.msra.mxu0 0.0
  %1583 = vmatprep.subr.mxu0 0.0
  %1584 = vmatpush1.msra.mxu0 0.0
  %1585 = vmatprep.subr.mxu0 0.0
  %1586 = vmatpush1.msra.mxu0 0.0
  %1587 = vmatprep.subr.mxu0 0.0
  %1588 = vmatpush1.msra.mxu0 0.0
  %1589 = vmatprep.subr.mxu0 0.0
  %1590 = vmatpush1.msra.mxu0 0.0
  %1591 = vmatprep.subr.mxu0 0.0
  %1592 = vmatpush1.msra.mxu0 0.0
  %1593 = vmatprep.subr.mxu0 0.0
  %1594 = vmatpush1.msra.mxu0 0.0
  %1595 = vmatprep.subr.mxu0 0.0
  %1596 = vmatpush1.msra.mxu0 0.0
  %1597 = vmatprep.subr.mxu0 0.0
  %1598 = vmatpush1.msra.mxu0 0.0
  %1599 = vmatprep.subr.mxu0 0.0
  %1600 = vmatpush1.msra.mxu0 0.0
  %1601 = vmatprep.subr.mxu0 0.0
  %1602 = vmatpush1.msra.mxu0 0.0
  %1603 = vmatprep.subr.mxu0 0.0
  %1604 = vmatpush1.msra.mxu0 0.0
  %1605 = vmatprep.subr.mxu0 0.0
  %1606 = vmatpush1.msra.mxu0 0.0
  %1607 = vmatprep.subr.mxu0 0.0
  %1608 = vmatpush1.msra.mxu0 0.0
  %1609 = vmatprep.subr.mxu0 0.0
  %1610 = vmatpush1.msra.mxu0 0.0
  %1611 = vmatprep.subr.mxu0 0.0
  %1612 = vmatpush1.msra.mxu0 0.0
  %1613 = vmatprep.subr.mxu0 0.0
  %1614 = vmatpush1.msra.mxu0 0.0
  %1615 = vmatprep.subr.mxu0 0.0
  %1616 = vmatpush1.msra.mxu0 0.0
  %1617 = vmatprep.subr.mxu0 0.0
  %1618 = vmatpush1.msra.mxu0 0.0
  %1619 = vmatprep.subr.mxu0 0.0
  %1620 = vmatpush1.msra.mxu0 0.0
  %1621 = vmatprep.mubr.f32.mxu0 0.0
  %1622 = vmatmul.mubr.f32.gmra.mrb[0].mxu0 %v1049
  %v1623 = vpop.f32.mrb[0].mxu0
  %v1624 = vadd.f32 %v1040, %v1623
  %v1625 = vpop.f32.mrb[0].mxu0
  %1626 = vmatprep.mubr.f32.mxu0 0.0
  %1627 = vmatmul.mubr.f32.gmra.mrb[0].mxu0 %v1052
  %v1628 = vpop.f32.mrb[0].mxu0
  %v1629 = vadd.f32 %v1045, %v1628
  %v1630 = vpop.f32.mrb[0].mxu0
  %1631 = vdwg.mxu0
  %v1632 = vadd.f32 %v1555, %v1624
  %v1633 = vadd.f32 %v1556, %v1629
  %v1634 = vmax.f32 %v1632, 0.0
  %v1635 = vmax.f32 %v1633, 0.0
  %s1636 = scalar_lea.vmem %s0, 48
  %v1637 = vld [vmem:[%s1636] sm:$0xf]
  %v1638 = vld [vmem:[%s1636 + $0x4] sm:$0xf]
  %v1639 = vld [vmem:[%s1636 + $0x8] sm:$0xf]
  %v1640 = vld [vmem:[%s1636 + $0xc] sm:$0xf]
  %v1645 = vunpack.c.l.b16 %v1637
  %v1646 = vunpack.c.l.b16 %v1638
  %v1647 = vunpack.c.l.b16 %v1639
  %v1648 = vunpack.c.l.b16 %v1640
  %v1649 = vpack.c.b16 %v1646, %v1645
  %v1650 = vpack.c.b16 %v1648, %v1647
  %1653 = vmatprep.subr.bf16.mxu0 0
  %1654 = vmatpush1.bf16.msra.mxu0 %v1649
  %1655 = vmatprep.subr.bf16.mxu0 0
  %1656 = vmatpush1.bf16.msra.mxu0 %v1650
  %1657 = vmatprep.subr.bf16.mxu0 0
  %1658 = vmatpush1.bf16.msra.mxu0 0
  %1659 = vmatprep.subr.bf16.mxu0 0
  %1660 = vmatpush1.bf16.msra.mxu0 0
  %1661 = vmatprep.subr.bf16.mxu0 0
  %1662 = vmatpush1.bf16.msra.mxu0 0
  %1663 = vmatprep.subr.bf16.mxu0 0
  %1664 = vmatpush1.bf16.msra.mxu0 0
  %1665 = vmatprep.subr.bf16.mxu0 0
  %1666 = vmatpush1.bf16.msra.mxu0 0
  %1667 = vmatprep.subr.bf16.mxu0 0
  %1668 = vmatpush1.bf16.msra.mxu0 0
  %1669 = vmatprep.subr.bf16.mxu0 0
  %1670 = vmatpush1.bf16.msra.mxu0 0
  %1671 = vmatprep.subr.bf16.mxu0 0
  %1672 = vmatpush1.bf16.msra.mxu0 0
  %1673 = vmatprep.subr.bf16.mxu0 0
  %1674 = vmatpush1.bf16.msra.mxu0 0
  %1675 = vmatprep.subr.bf16.mxu0 0
  %1676 = vmatpush1.bf16.msra.mxu0 0
  %1677 = vmatprep.subr.bf16.mxu0 0
  %1678 = vmatpush1.bf16.msra.mxu0 0
  %1679 = vmatprep.subr.bf16.mxu0 0
  %1680 = vmatpush1.bf16.msra.mxu0 0
  %1681 = vmatprep.subr.bf16.mxu0 0
  %1682 = vmatpush1.bf16.msra.mxu0 0
  %1683 = vmatprep.subr.bf16.mxu0 0
  %1684 = vmatpush1.bf16.msra.mxu0 0
  %1685 = vmatprep.mubr.bf16.mxu0 0
  %1686 = vmatmul.mubr.bf16.gmra.mrb[0].mxu0 %v124
  %v1687 = vpop.f32.mrb[0].mxu0
  %v1688 = vadd.f32 %v83, %v1687
  %v1689 = vpop.f32.mrb[0].mxu0
  %v1690 = vpop.f32.mrb[0].mxu0
  %v1691 = vadd.f32 %v88, %v1690
  %v1692 = vpop.f32.mrb[0].mxu0
  %1693 = vmatprep.mubr.bf16.mxu0 0
  %1694 = vmatmul.mubr.bf16.gmra.mrb[0].mxu0 %v127
  %v1695 = vpop.f32.mrb[0].mxu0
  %v1696 = vadd.f32 %v93, %v1695
  %v1697 = vpop.f32.mrb[0].mxu0
  %v1698 = vpop.f32.mrb[0].mxu0
  %v1699 = vadd.f32 %v98, %v1698
  %v1700 = vpop.f32.mrb[0].mxu0
  %1701 = vdwg.mxu0
  %v1702 = vpack.c.bf16 %v1255, %v1254
  %v1703 = vpack.c.bf16 %v1257, %v1256
  %1704 = vmatprep.subr.bf16.mxu0 0
  %1705 = vmatpush1.bf16.msra.mxu0 %v1702
  %1706 = vmatprep.subr.bf16.mxu0 0
  %1707 = vmatpush1.bf16.msra.mxu0 %v1703
  %1708 = vmatprep.subr.bf16.mxu0 0
  %1709 = vmatpush1.bf16.msra.mxu0 0
  %1710 = vmatprep.subr.bf16.mxu0 0
  %1711 = vmatpush1.bf16.msra.mxu0 0
  %1712 = vmatprep.subr.bf16.mxu0 0
  %1713 = vmatpush1.bf16.msra.mxu0 0
  %1714 = vmatprep.subr.bf16.mxu0 0
  %1715 = vmatpush1.bf16.msra.mxu0 0
  %1716 = vmatprep.subr.bf16.mxu0 0
  %1717 = vmatpush1.bf16.msra.mxu0 0
  %1718 = vmatprep.subr.bf16.mxu0 0
  %1719 = vmatpush1.bf16.msra.mxu0 0
  %1720 = vmatprep.subr.bf16.mxu0 0
  %1721 = vmatpush1.bf16.msra.mxu0 0
  %1722 = vmatprep.subr.bf16.mxu0 0
  %1723 = vmatpush1.bf16.msra.mxu0 0
  %1724 = vmatprep.subr.bf16.mxu0 0
  %1725 = vmatpush1.bf16.msra.mxu0 0
  %1726 = vmatprep.subr.bf16.mxu0 0
  %1727 = vmatpush1.bf16.msra.mxu0 0
  %1728 = vmatprep.subr.bf16.mxu0 0
  %1729 = vmatpush1.bf16.msra.mxu0 0
  %1730 = vmatprep.subr.bf16.mxu0 0
  %1731 = vmatpush1.bf16.msra.mxu0 0
  %1732 = vmatprep.subr.bf16.mxu0 0
  %1733 = vmatpush1.bf16.msra.mxu0 0
  %1734 = vmatprep.subr.bf16.mxu0 0
  %1735 = vmatpush1.bf16.msra.mxu0 0
  %1736 = vmatprep.mubr.bf16.mxu0 0
  %1737 = vmatmul.mubr.bf16.gmra.mrb[0].mxu0 %v676
  %v1738 = vpop.f32.mrb[0].mxu0
  %v1739 = vadd.f32 %v648, %v1738
  %v1740 = vpop.f32.mrb[0].mxu0
  %v1741 = vpop.f32.mrb[0].mxu0
  %v1742 = vadd.f32 %v653, %v1741
  %v1743 = vpop.f32.mrb[0].mxu0
  %1744 = vmatprep.mubr.bf16.mxu0 0
  %1745 = vmatmul.mubr.bf16.gmra.mrb[0].mxu0 %v679
  %v1746 = vpop.f32.mrb[0].mxu0
  %v1747 = vadd.f32 %v658, %v1746
  %v1748 = vpop.f32.mrb[0].mxu0
  %v1749 = vpop.f32.mrb[0].mxu0
  %v1750 = vadd.f32 %v663, %v1749
  %v1751 = vpop.f32.mrb[0].mxu0
  %1752 = vdwg.mxu0
  %v1753 = vadd.f32 %v1688, %v1739
  %v1754 = vadd.f32 %v1691, %v1742
  %v1755 = vadd.f32 %v1696, %v1747
  %v1756 = vadd.f32 %v1699, %v1750
  %v1757 = vmax.f32 %v1753, 0.0
  %v1758 = vmax.f32 %v1754, 0.0
  %v1759 = vmax.f32 %v1755, 0.0
  %v1760 = vmax.f32 %v1756, 0.0
  %v1761 = vmul.f32 %v182, %v1757
  %v1762 = vmul.f32 %v183, %v1758
  %v1763 = vmul.f32 %v184, %v1759
  %v1764 = vmul.f32 %v185, %v1760
  %v1765 = vadd.f32 %v1761, %v1762
  %v1766 = vadd.f32 %v1765, %v1763
  %v1767 = vadd.f32 %v1766, %v1764
  %v1768 = vrot.slane %v1767, 4
  %v1769 = vadd.f32 %v1767, %v1768
  %v1770 = vrot.slane %v1769, 2
  %v1771 = vadd.f32 %v1769, %v1770
  %v1772 = vrot.slane %v1771, 1
  %v1773 = vadd.f32 %v1771, %v1772
  %v1774 = vmul.f32 %v200, %v1757
  %v1775 = vmul.f32 %v201, %v1758
  %v1776 = vmul.f32 %v202, %v1759
  %v1777 = vmul.f32 %v203, %v1760
  %v1778 = vadd.f32 %v1774, %v1775
  %v1779 = vadd.f32 %v1778, %v1776
  %v1780 = vadd.f32 %v1779, %v1777
  %v1781 = vrot.slane %v1780, 4
  %v1782 = vadd.f32 %v1780, %v1781
  %v1783 = vrot.slane %v1782, 2
  %v1784 = vadd.f32 %v1782, %v1783
  %v1785 = vrot.slane %v1784, 1
  %v1786 = vadd.f32 %v1784, %v1785
  %v1787 = vmul.f32 %v218, %v1757
  %v1788 = vmul.f32 %v219, %v1758
  %v1789 = vmul.f32 %v220, %v1759
  %v1790 = vmul.f32 %v221, %v1760
  %v1791 = vadd.f32 %v1787, %v1788
  %v1792 = vadd.f32 %v1791, %v1789
  %v1793 = vadd.f32 %v1792, %v1790
  %v1794 = vrot.slane %v1793, 4
  %v1795 = vadd.f32 %v1793, %v1794
  %v1796 = vrot.slane %v1795, 2
  %v1797 = vadd.f32 %v1795, %v1796
  %v1798 = vrot.slane %v1797, 1
  %v1799 = vadd.f32 %v1797, %v1798
  %v1800 = vmul.f32 %v236, %v1757
  %v1801 = vmul.f32 %v237, %v1758
  %v1802 = vmul.f32 %v238, %v1759
  %v1803 = vmul.f32 %v239, %v1760
  %v1804 = vadd.f32 %v1800, %v1801
  %v1805 = vadd.f32 %v1804, %v1802
  %v1806 = vadd.f32 %v1805, %v1803
  %v1807 = vrot.slane %v1806, 4
  %v1808 = vadd.f32 %v1806, %v1807
  %v1809 = vrot.slane %v1808, 2
  %v1810 = vadd.f32 %v1808, %v1809
  %v1811 = vrot.slane %v1810, 1
  %v1812 = vadd.f32 %v1810, %v1811
  %v1813 = vmul.f32 %v254, %v1757
  %v1814 = vmul.f32 %v255, %v1758
  %v1815 = vmul.f32 %v256, %v1759
  %v1816 = vmul.f32 %v257, %v1760
  %v1817 = vadd.f32 %v1813, %v1814
  %v1818 = vadd.f32 %v1817, %v1815
  %v1819 = vadd.f32 %v1818, %v1816
  %v1820 = vrot.slane %v1819, 4
  %v1821 = vadd.f32 %v1819, %v1820
  %v1822 = vrot.slane %v1821, 2
  %v1823 = vadd.f32 %v1821, %v1822
  %v1824 = vrot.slane %v1823, 1
  %v1825 = vadd.f32 %v1823, %v1824
  %v1826 = vmul.f32 %v272, %v1757
  %v1827 = vmul.f32 %v273, %v1758
  %v1828 = vmul.f32 %v274, %v1759
  %v1829 = vmul.f32 %v275, %v1760
  %v1830 = vadd.f32 %v1826, %v1827
  %v1831 = vadd.f32 %v1830, %v1828
  %v1832 = vadd.f32 %v1831, %v1829
  %v1833 = vrot.slane %v1832, 4
  %v1834 = vadd.f32 %v1832, %v1833
  %v1835 = vrot.slane %v1834, 2
  %v1836 = vadd.f32 %v1834, %v1835
  %v1837 = vrot.slane %v1836, 1
  %v1838 = vadd.f32 %v1836, %v1837
  %v1839 = vmul.f32 %v290, %v1757
  %v1840 = vmul.f32 %v291, %v1758
  %v1841 = vmul.f32 %v292, %v1759
  %v1842 = vmul.f32 %v293, %v1760
  %v1843 = vadd.f32 %v1839, %v1840
  %v1844 = vadd.f32 %v1843, %v1841
  %v1845 = vadd.f32 %v1844, %v1842
  %v1846 = vrot.slane %v1845, 4
  %v1847 = vadd.f32 %v1845, %v1846
  %v1848 = vrot.slane %v1847, 2
  %v1849 = vadd.f32 %v1847, %v1848
  %v1850 = vrot.slane %v1849, 1
  %v1851 = vadd.f32 %v1849, %v1850
  %v1852 = vmul.f32 %v308, %v1757
  %v1853 = vmul.f32 %v309, %v1758
  %v1854 = vmul.f32 %v310, %v1759
  %v1855 = vmul.f32 %v311, %v1760
  %v1856 = vadd.f32 %v1852, %v1853
  %v1857 = vadd.f32 %v1856, %v1854
  %v1858 = vadd.f32 %v1857, %v1855
  %v1859 = vrot.slane %v1858, 4
  %v1860 = vadd.f32 %v1858, %v1859
  %v1861 = vrot.slane %v1860, 2
  %v1862 = vadd.f32 %v1860, %v1861
  %v1863 = vrot.slane %v1862, 1
  %v1864 = vadd.f32 %v1862, %v1863
  %v1865 = vmul.f32 %v326, %v1757
  %v1866 = vmul.f32 %v327, %v1758
  %v1867 = vmul.f32 %v328, %v1759
  %v1868 = vmul.f32 %v329, %v1760
  %v1869 = vadd.f32 %v1865, %v1866
  %v1870 = vadd.f32 %v1869, %v1867
  %v1871 = vadd.f32 %v1870, %v1868
  %v1872 = vrot.slane %v1871, 4
  %v1873 = vadd.f32 %v1871, %v1872
  %v1874 = vrot.slane %v1873, 2
  %v1875 = vadd.f32 %v1873, %v1874
  %v1876 = vrot.slane %v1875, 1
  %v1877 = vadd.f32 %v1875, %v1876
  %v1878 = vmul.f32 %v344, %v1757
  %v1879 = vmul.f32 %v345, %v1758
  %v1880 = vmul.f32 %v346, %v1759
  %v1881 = vmul.f32 %v347, %v1760
  %v1882 = vadd.f32 %v1878, %v1879
  %v1883 = vadd.f32 %v1882, %v1880
  %v1884 = vadd.f32 %v1883, %v1881
  %v1885 = vrot.slane %v1884, 4
  %v1886 = vadd.f32 %v1884, %v1885
  %v1887 = vrot.slane %v1886, 2
  %v1888 = vadd.f32 %v1886, %v1887
  %v1889 = vrot.slane %v1888, 1
  %v1890 = vadd.f32 %v1888, %v1889
  %v1891 = vmul.f32 %v362, %v1757
  %v1892 = vmul.f32 %v363, %v1758
  %v1893 = vmul.f32 %v364, %v1759
  %v1894 = vmul.f32 %v365, %v1760
  %v1895 = vadd.f32 %v1891, %v1892
  %v1896 = vadd.f32 %v1895, %v1893
  %v1897 = vadd.f32 %v1896, %v1894
  %v1898 = vrot.slane %v1897, 4
  %v1899 = vadd.f32 %v1897, %v1898
  %v1900 = vrot.slane %v1899, 2
  %v1901 = vadd.f32 %v1899, %v1900
  %v1902 = vrot.slane %v1901, 1
  %v1903 = vadd.f32 %v1901, %v1902
  %v1904 = vmul.f32 %v380, %v1757
  %v1905 = vmul.f32 %v381, %v1758
  %v1906 = vmul.f32 %v382, %v1759
  %v1907 = vmul.f32 %v383, %v1760
  %v1908 = vadd.f32 %v1904, %v1905
  %v1909 = vadd.f32 %v1908, %v1906
  %v1910 = vadd.f32 %v1909, %v1907
  %v1911 = vrot.slane %v1910, 4
  %v1912 = vadd.f32 %v1910, %v1911
  %v1913 = vrot.slane %v1912, 2
  %v1914 = vadd.f32 %v1912, %v1913
  %v1915 = vrot.slane %v1914, 1
  %v1916 = vadd.f32 %v1914, %v1915
  %v1917 = vmul.f32 %v398, %v1757
  %v1918 = vmul.f32 %v399, %v1758
  %v1919 = vmul.f32 %v400, %v1759
  %v1920 = vmul.f32 %v401, %v1760
  %v1921 = vadd.f32 %v1917, %v1918
  %v1922 = vadd.f32 %v1921, %v1919
  %v1923 = vadd.f32 %v1922, %v1920
  %v1924 = vrot.slane %v1923, 4
  %v1925 = vadd.f32 %v1923, %v1924
  %v1926 = vrot.slane %v1925, 2
  %v1927 = vadd.f32 %v1925, %v1926
  %v1928 = vrot.slane %v1927, 1
  %v1929 = vadd.f32 %v1927, %v1928
  %v1930 = vmul.f32 %v416, %v1757
  %v1931 = vmul.f32 %v417, %v1758
  %v1932 = vmul.f32 %v418, %v1759
  %v1933 = vmul.f32 %v419, %v1760
  %v1934 = vadd.f32 %v1930, %v1931
  %v1935 = vadd.f32 %v1934, %v1932
  %v1936 = vadd.f32 %v1935, %v1933
  %v1937 = vrot.slane %v1936, 4
  %v1938 = vadd.f32 %v1936, %v1937
  %v1939 = vrot.slane %v1938, 2
  %v1940 = vadd.f32 %v1938, %v1939
  %v1941 = vrot.slane %v1940, 1
  %v1942 = vadd.f32 %v1940, %v1941
  %v1943 = vmul.f32 %v434, %v1757
  %v1944 = vmul.f32 %v435, %v1758
  %v1945 = vmul.f32 %v436, %v1759
  %v1946 = vmul.f32 %v437, %v1760
  %v1947 = vadd.f32 %v1943, %v1944
  %v1948 = vadd.f32 %v1947, %v1945
  %v1949 = vadd.f32 %v1948, %v1946
  %v1950 = vrot.slane %v1949, 4
  %v1951 = vadd.f32 %v1949, %v1950
  %v1952 = vrot.slane %v1951, 2
  %v1953 = vadd.f32 %v1951, %v1952
  %v1954 = vrot.slane %v1953, 1
  %v1955 = vadd.f32 %v1953, %v1954
  %v1956 = vmul.f32 %v452, %v1757
  %v1957 = vmul.f32 %v453, %v1758
  %v1958 = vmul.f32 %v454, %v1759
  %v1959 = vmul.f32 %v455, %v1760
  %v1960 = vadd.f32 %v1956, %v1957
  %v1961 = vadd.f32 %v1960, %v1958
  %v1962 = vadd.f32 %v1961, %v1959
  %v1963 = vrot.slane %v1962, 4
  %v1964 = vadd.f32 %v1962, %v1963
  %v1965 = vrot.slane %v1964, 2
  %v1966 = vadd.f32 %v1964, %v1965
  %v1967 = vrot.slane %v1966, 1
  %v1968 = vadd.f32 %v1966, %v1967
  %v1969 = vsel %vm469, %v1773, %v1786
  %v1970 = vsel %vm471, %v1969, %v1799
  %v1971 = vsel %vm473, %v1970, %v1812
  %v1972 = vsel %vm475, %v1971, %v1825
  %v1973 = vsel %vm477, %v1972, %v1838
  %v1974 = vsel %vm479, %v1973, %v1851
  %v1975 = vsel %vm481, %v1974, %v1864
  %v1976 = vsel %vm469, %v1877, %v1890
  %v1977 = vsel %vm471, %v1976, %v1903
  %v1978 = vsel %vm473, %v1977, %v1916
  %v1979 = vsel %vm475, %v1978, %v1929
  %v1980 = vsel %vm477, %v1979, %v1942
  %v1981 = vsel %vm479, %v1980, %v1955
  %v1982 = vsel %vm481, %v1981, %v1968
  %1983 = vmatprep.subr.mxu0 0.0
  %1984 = vmatpush1.msra.mxu0 %v48
  %1985 = vmatprep.subr.mxu0 0.0
  %1986 = vmatpush1.msra.mxu0 %v49
  %1987 = vmatprep.subr.mxu0 0.0
  %1988 = vmatpush1.msra.mxu0 %v50
  %1989 = vmatprep.subr.mxu0 0.0
  %1990 = vmatpush1.msra.mxu0 %v51
  %1991 = vmatprep.subr.mxu0 0.0
  %1992 = vmatpush1.msra.mxu0 %v52
  %1993 = vmatprep.subr.mxu0 0.0
  %1994 = vmatpush1.msra.mxu0 %v53
  %1995 = vmatprep.subr.mxu0 0.0
  %1996 = vmatpush1.msra.mxu0 %v54
  %1997 = vmatprep.subr.mxu0 0.0
  %1998 = vmatpush1.msra.mxu0 %v55
  %1999 = vmatprep.subr.mxu0 0.0
  %2000 = vmatpush1.msra.mxu0 %v56
  %2001 = vmatprep.subr.mxu0 0.0
  %2002 = vmatpush1.msra.mxu0 %v57
  %2003 = vmatprep.subr.mxu0 0.0
  %2004 = vmatpush1.msra.mxu0 %v58
  %2005 = vmatprep.subr.mxu0 0.0
  %2006 = vmatpush1.msra.mxu0 %v59
  %2007 = vmatprep.subr.mxu0 0.0
  %2008 = vmatpush1.msra.mxu0 %v60
  %2009 = vmatprep.subr.mxu0 0.0
  %2010 = vmatpush1.msra.mxu0 %v61
  %2011 = vmatprep.subr.mxu0 0.0
  %2012 = vmatpush1.msra.mxu0 %v62
  %2013 = vmatprep.subr.mxu0 0.0
  %2014 = vmatpush1.msra.mxu0 %v63
  %2015 = vmatprep.subr.mxu0 0.0
  %2016 = vmatpush1.msra.mxu0 0.0
  %2017 = vmatprep.subr.mxu0 0.0
  %2018 = vmatpush1.msra.mxu0 0.0
  %2019 = vmatprep.subr.mxu0 0.0
  %2020 = vmatpush1.msra.mxu0 0.0
  %2021 = vmatprep.subr.mxu0 0.0
  %2022 = vmatpush1.msra.mxu0 0.0
  %2023 = vmatprep.subr.mxu0 0.0
  %2024 = vmatpush1.msra.mxu0 0.0
  %2025 = vmatprep.subr.mxu0 0.0
  %2026 = vmatpush1.msra.mxu0 0.0
  %2027 = vmatprep.subr.mxu0 0.0
  %2028 = vmatpush1.msra.mxu0 0.0
  %2029 = vmatprep.subr.mxu0 0.0
  %2030 = vmatpush1.msra.mxu0 0.0
  %2031 = vmatprep.subr.mxu0 0.0
  %2032 = vmatpush1.msra.mxu0 0.0
  %2033 = vmatprep.subr.mxu0 0.0
  %2034 = vmatpush1.msra.mxu0 0.0
  %2035 = vmatprep.subr.mxu0 0.0
  %2036 = vmatpush1.msra.mxu0 0.0
  %2037 = vmatprep.subr.mxu0 0.0
  %2038 = vmatpush1.msra.mxu0 0.0
  %2039 = vmatprep.subr.mxu0 0.0
  %2040 = vmatpush1.msra.mxu0 0.0
  %2041 = vmatprep.subr.mxu0 0.0
  %2042 = vmatpush1.msra.mxu0 0.0
  %2043 = vmatprep.subr.mxu0 0.0
  %2044 = vmatpush1.msra.mxu0 0.0
  %2045 = vmatprep.subr.mxu0 0.0
  %2046 = vmatpush1.msra.mxu0 0.0
  %2047 = vmatprep.mubr.f32.mxu0 0.0
  %2048 = vmatmul.mubr.f32.gmra.mrb[0].mxu0 %v1975
  %v2049 = vpop.f32.mrb[0].mxu0
  %v2050 = vadd.f32 %v493, %v2049
  %v2051 = vpop.f32.mrb[0].mxu0
  %2052 = vmatprep.mubr.f32.mxu0 0.0
  %2053 = vmatmul.mubr.f32.gmra.mrb[0].mxu0 %v1982
  %v2054 = vpop.f32.mrb[0].mxu0
  %v2055 = vadd.f32 %v498, %v2054
  %v2056 = vpop.f32.mrb[0].mxu0
  %2057 = vdwg.mxu0
  %v2058 = vmax.f32 %v2050, 0.0
  %v2059 = vmax.f32 %v2055, 0.0
  %2060 = vmatprep.subr.mxu0 0.0
  %2061 = vmatpush1.msra.mxu0 %v1634
  %2062 = vmatprep.subr.mxu0 0.0
  %2063 = vmatpush1.msra.mxu0 %v1635
  %2064 = vmatprep.subr.mxu0 0.0
  %2065 = vmatpush1.msra.mxu0 0.0
  %2066 = vmatprep.subr.mxu0 0.0
  %2067 = vmatpush1.msra.mxu0 0.0
  %2068 = vmatprep.subr.mxu0 0.0
  %2069 = vmatpush1.msra.mxu0 0.0
  %2070 = vmatprep.subr.mxu0 0.0
  %2071 = vmatpush1.msra.mxu0 0.0
  %2072 = vmatprep.subr.mxu0 0.0
  %2073 = vmatpush1.msra.mxu0 0.0
  %2074 = vmatprep.subr.mxu0 0.0
  %2075 = vmatpush1.msra.mxu0 0.0
  %2076 = vmatprep.subr.mxu0 0.0
  %2077 = vmatpush1.msra.mxu0 0.0
  %2078 = vmatprep.subr.mxu0 0.0
  %2079 = vmatpush1.msra.mxu0 0.0
  %2080 = vmatprep.subr.mxu0 0.0
  %2081 = vmatpush1.msra.mxu0 0.0
  %2082 = vmatprep.subr.mxu0 0.0
  %2083 = vmatpush1.msra.mxu0 0.0
  %2084 = vmatprep.subr.mxu0 0.0
  %2085 = vmatpush1.msra.mxu0 0.0
  %2086 = vmatprep.subr.mxu0 0.0
  %2087 = vmatpush1.msra.mxu0 0.0
  %2088 = vmatprep.subr.mxu0 0.0
  %2089 = vmatpush1.msra.mxu0 0.0
  %2090 = vmatprep.subr.mxu0 0.0
  %2091 = vmatpush1.msra.mxu0 0.0
  %2092 = vmatprep.subr.mxu0 0.0
  %2093 = vmatpush1.msra.mxu0 0.0
  %2094 = vmatprep.subr.mxu0 0.0
  %2095 = vmatpush1.msra.mxu0 0.0
  %2096 = vmatprep.subr.mxu0 0.0
  %2097 = vmatpush1.msra.mxu0 0.0
  %2098 = vmatprep.subr.mxu0 0.0
  %2099 = vmatpush1.msra.mxu0 0.0
  %2100 = vmatprep.subr.mxu0 0.0
  %2101 = vmatpush1.msra.mxu0 0.0
  %2102 = vmatprep.subr.mxu0 0.0
  %2103 = vmatpush1.msra.mxu0 0.0
  %2104 = vmatprep.subr.mxu0 0.0
  %2105 = vmatpush1.msra.mxu0 0.0
  %2106 = vmatprep.subr.mxu0 0.0
  %2107 = vmatpush1.msra.mxu0 0.0
  %2108 = vmatprep.subr.mxu0 0.0
  %2109 = vmatpush1.msra.mxu0 0.0
  %2110 = vmatprep.subr.mxu0 0.0
  %2111 = vmatpush1.msra.mxu0 0.0
  %2112 = vmatprep.subr.mxu0 0.0
  %2113 = vmatpush1.msra.mxu0 0.0
  %2114 = vmatprep.subr.mxu0 0.0
  %2115 = vmatpush1.msra.mxu0 0.0
  %2116 = vmatprep.subr.mxu0 0.0
  %2117 = vmatpush1.msra.mxu0 0.0
  %2118 = vmatprep.subr.mxu0 0.0
  %2119 = vmatpush1.msra.mxu0 0.0
  %2120 = vmatprep.subr.mxu0 0.0
  %2121 = vmatpush1.msra.mxu0 0.0
  %2122 = vmatprep.subr.mxu0 0.0
  %2123 = vmatpush1.msra.mxu0 0.0
  %2124 = vmatprep.mubr.f32.mxu0 0.0
  %2125 = vmatmul.mubr.f32.gmra.mrb[0].mxu0 %v1049
  %v2126 = vpop.f32.mrb[0].mxu0
  %v2127 = vadd.f32 %v1040, %v2126
  %v2128 = vpop.f32.mrb[0].mxu0
  %2129 = vmatprep.mubr.f32.mxu0 0.0
  %2130 = vmatmul.mubr.f32.gmra.mrb[0].mxu0 %v1052
  %v2131 = vpop.f32.mrb[0].mxu0
  %v2132 = vadd.f32 %v1045, %v2131
  %v2133 = vpop.f32.mrb[0].mxu0
  %2134 = vdwg.mxu0
  %v2135 = vadd.f32 %v2058, %v2127
  %v2136 = vadd.f32 %v2059, %v2132
  %v2137 = vmax.f32 %v2135, 0.0
  %v2138 = vmax.f32 %v2136, 0.0
  %2139 = vst [vmem:[%s10] sm:$0xff] %v1757
  %2140 = vst [vmem:[%s10 + $0x8] sm:$0xff] %v1758
  %2141 = vst [vmem:[%s10 + $0x10] sm:$0xff] %v1759
  %2142 = vst [vmem:[%s10 + $0x18] sm:$0xff] %v1760
  %vm2143 = vcmask 15360
  %2144 = vst.msk [vmem:[%s11] sm:$0xff] %vm2143, %v2137
  %2145 = vst.msk [vmem:[%s11 + $0x8] sm:$0xff] %vm2143, %v2138
  // Predicated region
  $region42: #{conv_rnn_encoder.1} parent=0 // pred_check
    _
  $region43: #{conv_rnn_encoder.1} parent=0 // pred_check_branch
    %2147 = sbr.rel (0) target = $region45
  $region44: #{conv_rnn_encoder.1} parent=0 // pred_region
    _
  $region45: #{conv_rnn_encoder.1} parent=0 // pred_fallthru
    _
  // Predicated region
  $region46: #{conv_rnn_encoder.1} parent=0 // pred_check
    _
  $region47: #{conv_rnn_encoder.1} parent=0 // pred_check_branch
    %2149 = sbr.rel (0) target = $region49
  $region48: #{conv_rnn_encoder.1} parent=0 // pred_region
    _
  $region49: #{conv_rnn_encoder.1} parent=0 // pred_fallthru
    _
  // Predicated region
  $region50: #{conv_rnn_encoder.1} parent=0 // pred_check
    _
  $region51: #{conv_rnn_encoder.1} parent=0 // pred_check_branch
    %2151 = sbr.rel (0) target = $region53
  $region52: #{conv_rnn_encoder.1} parent=0 // pred_region
    _
  $region53: #{conv_rnn_encoder.1} parent=0 // pred_fallthru
    _
  // Predicated region
  $region54: #{conv_rnn_encoder.1} parent=0 // pred_check
    _
  $region55: #{conv_rnn_encoder.1} parent=0 // pred_check_branch
    %2153 = sbr.rel (0) target = $region57
  $region56: #{conv_rnn_encoder.1} parent=0 // pred_region
    _
  $region57: #{conv_rnn_encoder.1} parent=0 // pred_fallthru
    _

</llo_original>
